<compile_context>
chip_gen: v7x
topology: tpu7x:2x2x1
jax: 0.10.0
libtpu: 0.0.40
codegen_flags: <defaults>
</compile_context>

<pallas_src>
import functools

import jax
import jax.numpy as jnp
from jax.experimental import pallas as pl
from jax.experimental.pallas import tpu as pltpu

_LANE = 128                               # lane width / channel padding unit
_TILE_VMEM_BUDGET = 20 * 1024 * 1024      # per-step working-set target for row tiling


def _round_up(x, m):
    return (x + m - 1) // m * m


@functools.lru_cache(maxsize=1)
def _vmem_limit_bytes():
    try:
        cap = int(pltpu.get_tpu_info().vmem_capacity_bytes)
    except Exception:
        cap = 64 * 1024 * 1024            # conservative fallback (v7x-sized)
    return int(min(cap * 3 // 4, 100 * 1024 * 1024))


def _compiler_params():
    return pltpu.CompilerParams(
        dimension_semantics=("parallel", "parallel"),
        vmem_limit_bytes=_vmem_limit_bytes(),
    )


# ----------------------------------------------------------------------------
# Kernel 1: fused stride-1 conv over a halo'd row tile.
# Input tile is the flattened padded image slab (Lt, Cin); the contribution of
# tap (ki, kj) to output flat row m = o*Wp8 + ow is X[m + ki*Wp8 + kj].  All
# taps are concatenated along lanes into a single (Mt, ntap*Cin) im2col buffer
# in VMEM and contracted with one MXU matmul.  Rows with ow >= Wo are garbage
# and sliced off by the wrapper.
# ----------------------------------------------------------------------------
def _conv_taps_kernel(x_ref, w_ref, b_ref, o_ref, *, taps, cin, mt, relu_out):
    X = x_ref[0, 0, :, :].astype(jnp.bfloat16)               # (Lt, Cin)
    if cin % _LANE == 0:
        patches = jnp.concatenate([X[off:off + mt, :] for off in taps], axis=1)
        acc = jnp.dot(patches, w_ref[...], preferred_element_type=jnp.float32)
    else:
        # lane-sparse Cin (only the tiny first conv): per-tap accumulation
        W = w_ref[...]
        acc = None
        for t, off in enumerate(taps):
            part = jnp.dot(X[off:off + mt, :], W[t * cin:(t + 1) * cin, :],
                           preferred_element_type=jnp.float32)
            acc = part if acc is None else acc + part
    acc = acc + b_ref[...]
    if relu_out:
        acc = jnp.maximum(acc, 0.0)
    o_ref[0, 0, :, :] = acc.astype(o_ref.dtype)


# ----------------------------------------------------------------------------
# Kernel 2: fully fused ResBlock over a halo'd row tile:
#   relu -> conv3x3(+b1) -> relu -> conv1x1(+b2) -> + residual [-> final relu]
# The residual is the centre-tap window (offset Wp8 + 1) of the un-relu'd f32
# input slab, so it is read exactly once and added in f32.
# ----------------------------------------------------------------------------
def _resblock_kernel(x_ref, w1_ref, b1_ref, w2_ref, b2_ref, o_ref, *,
                     taps, cin, mt, center, final_relu):
    X = x_ref[0, 0, :, :]                                     # (Lt, C) f32 residual
    Xr = jnp.maximum(X, 0.0).astype(jnp.bfloat16)             # leading ReLU (MXU operand)
    if cin % _LANE == 0:
        patches = jnp.concatenate([Xr[off:off + mt, :] for off in taps], axis=1)
        h = jnp.dot(patches, w1_ref[...], preferred_element_type=jnp.float32)
    else:
        W1 = w1_ref[...]
        h = None
        for t, off in enumerate(taps):
            part = jnp.dot(Xr[off:off + mt, :], W1[t * cin:(t + 1) * cin, :],
                           preferred_element_type=jnp.float32)
            h = part if h is None else h + part
    h = jnp.maximum(h + b1_ref[...], 0.0).astype(jnp.bfloat16)       # (Mt, Crcp)
    out = jnp.dot(h, w2_ref[...], preferred_element_type=jnp.float32)
    out = out + b2_ref[...] + X[center:center + mt, :].astype(jnp.float32)
    if final_relu:
        out = jnp.maximum(out, 0.0)
    o_ref[0, 0, :, :] = out.astype(o_ref.dtype)


# ----------------------------------------------------------------------------
# Wrapper-side tiling / layout helpers
# ----------------------------------------------------------------------------
def _pick_tile_rows(ho, wp8, cin, coutp, ntap, crcp=0, max_tile_rows=None):
    # Rough per-output-row VMEM bytes: f32 input (double-buffered), bf16
    # patches, f32 acc, f32 output (double-buffered), resblock hidden.
    per_row = wp8 * (8 * cin + 2 * ntap * cin + 12 * coutp + 6 * crcp)
    th = max(1, min(ho, _TILE_VMEM_BUDGET // max(per_row, 1)))
    if max_tile_rows is not None:
        th = max(1, min(th, int(max_tile_rows)))
    return int(th)


def _build_row_tiles(xpad, kh, kw, th):
    """xpad: (N, Hp, Wp, C) image with conv padding already applied.
    Returns halo'd flat row tiles (N, n_tiles, Lt, C) and layout info."""
    n, hp, wp, c = xpad.shape
    ho, wo = hp - kh + 1, wp - kw + 1
    wp8 = _round_up(wp, 8)                       # 8-aligned row pitch
    n_tiles = -(-ho // th)
    hp_t = n_tiles * th + (kh - 1)
    xpad = jnp.pad(xpad, ((0, 0), (0, hp_t - hp), (0, wp8 - wp), (0, 0)))
    slabs = [xpad[:, r * th:r * th + th + kh - 1] for r in range(n_tiles)]
    xt = jnp.stack(slabs, axis=1).reshape(n, n_tiles, (th + kh - 1) * wp8, c)
    xt = jnp.pad(xt, ((0, 0), (0, 0), (0, kw - 1), (0, 0)))   # slack for kj > 0 taps
    lt = (th + kh - 1) * wp8 + (kw - 1)
    return xt, n_tiles, wp8, lt, ho, wo


def _fused_conv(xpad, w_flat, bias, *, kh, kw, relu_out, out_dtype, max_tile_rows=None):
    n, hp, wp, cin = xpad.shape
    coutp = w_flat.shape[1]
    th = _pick_tile_rows(hp - kh + 1, _round_up(wp, 8), cin, coutp, kh * kw,
                         max_tile_rows=max_tile_rows)
    xt, n_tiles, wp8, lt, ho, wo = _build_row_tiles(xpad, kh, kw, th)
    mt = th * wp8
    taps = tuple(ki * wp8 + kj for ki in range(kh) for kj in range(kw))

    out = pl.pallas_call(
        functools.partial(_conv_taps_kernel, taps=taps, cin=cin, mt=mt,
                          relu_out=relu_out),
        out_shape=jax.ShapeDtypeStruct((n, n_tiles, mt, coutp), out_dtype),
        grid=(n, n_tiles),
        in_specs=[pl.BlockSpec((1, 1, lt, cin), lambda b, r: (b, r, 0, 0)),
                  pl.BlockSpec(w_flat.shape, lambda b, r: (0, 0)),
                  pl.BlockSpec((1, coutp), lambda b, r: (0, 0))],
        out_specs=pl.BlockSpec((1, 1, mt, coutp), lambda b, r: (b, r, 0, 0)),
        compiler_params=_compiler_params(),
    )(xt, w_flat, bias)
    return out.reshape(n, n_tiles * th, wp8, coutp)[:, :ho, :wo, :]


def _fused_resblock(xpad, w1_flat, b1, w2_flat, b2, *, final_relu, out_dtype,
                    max_tile_rows=None):
    n, hp, wp, c = xpad.shape
    kh = kw = 3
    crcp = w1_flat.shape[1]
    th = _pick_tile_rows(hp - kh + 1, _round_up(wp, 8), c, c, kh * kw, crcp=crcp,
                         max_tile_rows=max_tile_rows)
    xt, n_tiles, wp8, lt, ho, wo = _build_row_tiles(xpad, kh, kw, th)
    mt = th * wp8
    taps = tuple(ki * wp8 + kj for ki in range(kh) for kj in range(kw))
    center = wp8 + 1                      # centre tap of the 3x3, pad = 1

    out = pl.pallas_call(
        functools.partial(_resblock_kernel, taps=taps, cin=c, mt=mt,
                          center=center, final_relu=final_relu),
        out_shape=jax.ShapeDtypeStruct((n, n_tiles, mt, c), out_dtype),
        grid=(n, n_tiles),
        in_specs=[pl.BlockSpec((1, 1, lt, c), lambda b, r: (b, r, 0, 0)),
                  pl.BlockSpec(w1_flat.shape, lambda b, r: (0, 0)),
                  pl.BlockSpec((1, crcp), lambda b, r: (0, 0)),
                  pl.BlockSpec(w2_flat.shape, lambda b, r: (0, 0)),
                  pl.BlockSpec((1, c), lambda b, r: (0, 0))],
        out_specs=pl.BlockSpec((1, 1, mt, c), lambda b, r: (b, r, 0, 0)),
        compiler_params=_compiler_params(),
    )(xt, w1_flat, b1, w2_flat, b2)
    return out.reshape(n, n_tiles * th, wp8, c)[:, :ho, :wo, :]


# ----------------------------------------------------------------------------
# Weight preparation (Cin padded to the activation's channel count, Cout padded
# to a multiple of 128; all zeros, hence harmless).
# ----------------------------------------------------------------------------
def _prep_conv_weights(w_oihw, bias, cin_act):
    cout, cin, kh, kw = w_oihw.shape
    coutp = _round_up(cout, _LANE)
    w = jnp.pad(w_oihw, ((0, coutp - cout), (0, cin_act - cin), (0, 0), (0, 0)))
    w_flat = jnp.transpose(w, (2, 3, 1, 0)).reshape(kh * kw * cin_act, coutp)
    b = jnp.pad(bias, (0, coutp - cout)).reshape(1, coutp)
    return w_flat.astype(jnp.bfloat16), b.astype(jnp.float32)


def _prep_s2d_weights(w_oihw, bias, cin_act):
    # 4x4 stride-2 kernel regrouped for the space-to-depth formulation:
    # s2d tap (ti, tj), channel slot (dy, dx, c) == original tap (2*ti+dy, 2*tj+dx).
    cout, cin, kh, kw = w_oihw.shape
    assert kh == 4 and kw == 4
    coutp = _round_up(cout, _LANE)
    w = jnp.pad(w_oihw, ((0, coutp - cout), (0, cin_act - cin), (0, 0), (0, 0)))
    w = w.reshape(coutp, cin_act, 2, 2, 2, 2)            # (o, c, ti, dy, tj, dx)
    w = jnp.transpose(w, (2, 4, 3, 5, 1, 0))             # (ti, tj, dy, dx, c, o)
    w_flat = w.reshape(4 * 4 * cin_act, coutp)
    b = jnp.pad(bias, (0, coutp - cout)).reshape(1, coutp)
    return w_flat.astype(jnp.bfloat16), b.astype(jnp.float32)


def _prep_res_weights(w1, b1, w2, b2, cin_act):
    crc, c1, kh, kw = w1.shape
    crcp = _round_up(crc, _LANE)
    w1p = jnp.pad(w1, ((0, crcp - crc), (0, cin_act - c1), (0, 0), (0, 0)))
    w1f = jnp.transpose(w1p, (2, 3, 1, 0)).reshape(kh * kw * cin_act, crcp)
    b1f = jnp.pad(b1, (0, crcp - crc)).reshape(1, crcp)
    cout2, crc2 = w2.shape[0], w2.shape[1]
    w2p = jnp.pad(w2.reshape(cout2, crc2), ((0, cin_act - cout2), (0, crcp - crc2)))
    w2f = jnp.transpose(w2p, (1, 0))                     # (Crcp, Cact)
    b2f = jnp.pad(b2, (0, cin_act - cout2)).reshape(1, cin_act)
    return (w1f.astype(jnp.bfloat16), b1f.astype(jnp.float32),
            w2f.astype(jnp.bfloat16), b2f.astype(jnp.float32))


def _space_to_depth2(x):
    n, h, w, c = x.shape
    assert h % 2 == 0 and w % 2 == 0
    x = x.reshape(n, h // 2, 2, w // 2, 2, c)
    x = jnp.transpose(x, (0, 1, 3, 2, 4, 5))
    return x.reshape(n, h // 2, w // 2, 4 * c)


# ----------------------------------------------------------------------------
# Layer wrappers
# ----------------------------------------------------------------------------
def conv3x3_s1(x, w, b, *, relu_out, out_dtype, max_tile_rows=None):
    w_flat, b_flat = _prep_conv_weights(w, b, x.shape[-1])
    xpad = jnp.pad(x, ((0, 0), (1, 1), (1, 1), (0, 0)))
    return _fused_conv(xpad, w_flat, b_flat, kh=3, kw=3, relu_out=relu_out,
                       out_dtype=out_dtype, max_tile_rows=max_tile_rows)


def conv4x4_s2(x, w, b, *, relu_out, out_dtype, max_tile_rows=None):
    # 4x4 stride-2 pad-1 conv == space-to-depth(2) of the padded image followed
    # by a 2x2 stride-1 conv (no further padding): no HBM im2col.
    w_flat, b_flat = _prep_s2d_weights(w, b, x.shape[-1])
    xpad = jnp.pad(x, ((0, 0), (1, 1), (1, 1), (0, 0)))
    xs = _space_to_depth2(xpad)
    return _fused_conv(xs, w_flat, b_flat, kh=2, kw=2, relu_out=relu_out,
                       out_dtype=out_dtype, max_tile_rows=max_tile_rows)


def resblock(x, w1, b1, w2, b2, *, final_relu, out_dtype, max_tile_rows=None):
    w1f, b1f, w2f, b2f = _prep_res_weights(w1, b1, w2, b2, x.shape[-1])
    xpad = jnp.pad(x, ((0, 0), (1, 1), (1, 1), (0, 0)))
    return _fused_resblock(xpad, w1f, b1f, w2f, b2f, final_relu=final_relu,
                           out_dtype=out_dtype, max_tile_rows=max_tile_rows)


# ----------------------------------------------------------------------------
# Parameter init (deterministic, PyTorch-Conv2d-like uniform bounds)
# ----------------------------------------------------------------------------
def init_conv(key, cout, cin, k):
    kw_, kb_ = jax.random.split(key)
    fan_in = cin * k * k
    bound = 1.0 / (fan_in ** 0.5)
    w = jax.random.uniform(kw_, (cout, cin, k, k), jnp.float32, -bound, bound)
    b = jax.random.uniform(kb_, (cout,), jnp.float32, -bound, bound)
    return w, b


def init_encoder_params(key, in_channel, channel, n_res_block, n_res_channel, stride):
    keys = jax.random.split(key, 3 + 2 * n_res_block)
    params = {}
    if stride == 4:
        params["c0"] = init_conv(keys[0], channel // 2, in_channel, 4)
        params["c1"] = init_conv(keys[1], channel, channel // 2, 4)
        params["c2"] = init_conv(keys[2], channel, channel, 3)
    elif stride == 2:
        params["c0"] = init_conv(keys[0], channel // 2, in_channel, 4)
        params["c1"] = init_conv(keys[1], channel, channel // 2, 3)
    params["res"] = []
    for i in range(n_res_block):
        w1 = init_conv(keys[3 + 2 * i], n_res_channel, channel, 3)
        w2 = init_conv(keys[4 + 2 * i], channel, n_res_channel, 1)
        params["res"].append((w1, w2))
    return params


# ----------------------------------------------------------------------------
# Encoder forward (Pallas path)
# ----------------------------------------------------------------------------
def encoder_forward_pallas(x_nchw, params, *, stride, n_res_block, channel,
                           max_tile_rows=None):
    x = jnp.transpose(x_nchw, (0, 2, 3, 1)).astype(jnp.float32)   # NCHW -> NHWC
    inter = jnp.bfloat16                 # downsampling-stage activations
    last_conv_is_final = (n_res_block == 0)

    if stride == 4:
        w, b = params["c0"]
        x = conv4x4_s2(x, w, b, relu_out=True, out_dtype=inter,
                       max_tile_rows=max_tile_rows)
        w, b = params["c1"]
        x = conv4x4_s2(x, w, b, relu_out=True, out_dtype=inter,
                       max_tile_rows=max_tile_rows)
        w, b = params["c2"]
        x = conv3x3_s1(x, w, b, relu_out=last_conv_is_final,
                       out_dtype=jnp.float32, max_tile_rows=max_tile_rows)
    elif stride == 2:
        w, b = params["c0"]
        x = conv4x4_s2(x, w, b, relu_out=True, out_dtype=inter,
                       max_tile_rows=max_tile_rows)
        w, b = params["c1"]
        x = conv3x3_s1(x, w, b, relu_out=last_conv_is_final,
                       out_dtype=jnp.float32, max_tile_rows=max_tile_rows)
    else:
        raise ValueError(f"unsupported stride {stride}")

    for i, ((w1, b1), (w2, b2)) in enumerate(params["res"]):
        last = (i == n_res_block - 1)
        x = resblock(x, w1, b1, w2, b2, final_relu=last, out_dtype=jnp.float32,
                     max_tile_rows=max_tile_rows)

    x = x[..., :channel]                                   # drop lane-padding channels
    return jnp.transpose(x, (0, 3, 1, 2)).astype(jnp.float32)   # NHWC -> NCHW


# ----------------------------------------------------------------------------
# Pure-JAX f32 reference (correctness check only)
# ----------------------------------------------------------------------------
def conv_ref(x, w, b, stride, pad):
    y = jax.lax.conv_general_dilated(
        x, w, (stride, stride), ((pad, pad), (pad, pad)),
        dimension_numbers=("NHWC", "OIHW", "NHWC"))
    return y + b.reshape(1, 1, 1, -1)


def encoder_forward_ref(x_nchw, params, *, stride, n_res_block):
    x = jnp.transpose(x_nchw, (0, 2, 3, 1))
    if stride == 4:
        x = jax.nn.relu(conv_ref(x, *params["c0"], 2, 1))
        x = jax.nn.relu(conv_ref(x, *params["c1"], 2, 1))
        x = conv_ref(x, *params["c2"], 1, 1)
    else:
        x = jax.nn.relu(conv_ref(x, *params["c0"], 2, 1))
        x = conv_ref(x, *params["c1"], 1, 1)
    for (w1, b1), (w2, b2) in params["res"]:
        h = jax.nn.relu(conv_ref(jax.nn.relu(x), w1, b1, 1, 1))
        x = conv_ref(h, w2, b2, 1, 0) + x
    x = jax.nn.relu(x)
    return jnp.transpose(x, (0, 3, 1, 2))


if __name__ == "__main__":
    # Small config consistent with the module
    in_channel, channel, n_res_block, n_res_channel, stride = 4, 32, 2, 8, 4

    key = jax.random.PRNGKey(0)
    kx, kp = jax.random.split(key)
    x = jax.random.normal(kx, (2, in_channel, 16, 16), jnp.float32)  # NCHW
    params = init_encoder_params(kp, in_channel, channel, n_res_block,
                                 n_res_channel, stride)

    ref = encoder_forward_ref(x, params, stride=stride, n_res_block=n_res_block)

    # Default tiling (whole image per row-tile at this size).
    fwd = jax.jit(functools.partial(encoder_forward_pallas, stride=stride,
                                    n_res_block=n_res_block, channel=channel))
    out = jax.block_until_ready(fwd(x, params))
    assert out.shape == (2, channel, 4, 4), out.shape
    err = float(jnp.max(jnp.abs(out - ref)))
    assert jnp.allclose(out, ref, atol=7e-2, rtol=7e-2), err

    # Forced small row tiles to exercise the multi-tile halo'd path
    # (including a ragged last tile).
    fwd_tiled = jax.jit(functools.partial(encoder_forward_pallas, stride=stride,
                                          n_res_block=n_res_block, channel=channel,
                                          max_tile_rows=3))
    out_t = jax.block_until_ready(fwd_tiled(x, params))
    err_t = float(jnp.max(jnp.abs(out_t - ref)))
    assert jnp.allclose(out_t, ref, atol=7e-2, rtol=7e-2), err_t

    print("KERNEL_OK")
</pallas_src>

<mosaic_0001>
module attributes {stable_mosaic.version = 11 : i64} {
  func.func @_conv_taps_kernel(%arg0: i32, %arg1: i32, %arg2: memref<1x1x145x16xf32, #tpu.memory_space<vmem>>, %arg3: memref<64x128xbf16, #tpu.memory_space<vmem>>, %arg4: memref<1x128xf32, #tpu.memory_space<vmem>>, %arg5: memref<1x1x128x128xbf16, #tpu.memory_space<vmem>>) attributes {dimension_semantics = [#tpu.dimension_semantics<parallel>, #tpu.dimension_semantics<parallel>], iteration_bounds = array<i64: 2, 1>, scalar_prefetch = 0 : i64, scratch_operands = 0 : i64, tpu.core_type = #tpu.core_type<tc>, window_params = [{transform_indices = @transform_0, window_bounds = array<i64: 1, 1, 145, 16>}, {pipeline_mode = #tpu.pipeline_mode<synchronous>, transform_indices = @transform_1, window_bounds = array<i64: 64, 128>}, {pipeline_mode = #tpu.pipeline_mode<synchronous>, transform_indices = @transform_2, window_bounds = array<i64: 1, 128>}, {transform_indices = @transform_3, window_bounds = array<i64: 1, 1, 128, 128>}]} {
    %c0 = arith.constant 0 : index
    %c0_0 = arith.constant 0 : index
    %c0_1 = arith.constant 0 : index
    %c0_2 = arith.constant 0 : index
    %0 = vector.load %arg2[%c0, %c0_0, %c0_1, %c0_2] : memref<1x1x145x16xf32, #tpu.memory_space<vmem>>, vector<1x1x145x16xf32>
    %1 = vector.shape_cast %0 : vector<1x1x145x16xf32> to vector<145x16xf32>
    %2 = arith.truncf %1 : vector<145x16xf32> to vector<145x16xbf16>
    %c0_3 = arith.constant 0 : index
    %c0_4 = arith.constant 0 : index
    %3 = vector.load %arg3[%c0_3, %c0_4] : memref<64x128xbf16, #tpu.memory_space<vmem>>, vector<64x128xbf16>
    %4 = vector.extract_strided_slice %2 {offsets = [0, 0], sizes = [128, 16], strides = [1, 1]} : vector<145x16xbf16> to vector<128x16xbf16>
    %5 = vector.extract_strided_slice %3 {offsets = [0, 0], sizes = [16, 128], strides = [1, 1]} : vector<64x128xbf16> to vector<16x128xbf16>
    %cst = arith.constant dense<0.000000e+00> : vector<128x128xf32>
    %6 = tpu.matmul %4, %5, %cst {dimension_numbers = #tpu.dot_dimension_numbers<[1], [0], [0], [1], [0, 0, 1, 1], [], []>} : vector<128x16xbf16>, vector<16x128xbf16>, vector<128x128xf32> -> vector<128x128xf32>
    %7 = vector.extract_strided_slice %2 {offsets = [1, 0], sizes = [128, 16], strides = [1, 1]} : vector<145x16xbf16> to vector<128x16xbf16>
    %8 = vector.extract_strided_slice %3 {offsets = [16, 0], sizes = [16, 128], strides = [1, 1]} : vector<64x128xbf16> to vector<16x128xbf16>
    %cst_5 = arith.constant dense<0.000000e+00> : vector<128x128xf32>
    %9 = tpu.matmul %7, %8, %cst_5 {dimension_numbers = #tpu.dot_dimension_numbers<[1], [0], [0], [1], [0, 0, 1, 1], [], []>} : vector<128x16xbf16>, vector<16x128xbf16>, vector<128x128xf32> -> vector<128x128xf32>
    %10 = arith.addf %6, %9 : vector<128x128xf32>
    %11 = vector.extract_strided_slice %2 {offsets = [16, 0], sizes = [128, 16], strides = [1, 1]} : vector<145x16xbf16> to vector<128x16xbf16>
    %12 = vector.extract_strided_slice %3 {offsets = [32, 0], sizes = [16, 128], strides = [1, 1]} : vector<64x128xbf16> to vector<16x128xbf16>
    %cst_6 = arith.constant dense<0.000000e+00> : vector<128x128xf32>
    %13 = tpu.matmul %11, %12, %cst_6 {dimension_numbers = #tpu.dot_dimension_numbers<[1], [0], [0], [1], [0, 0, 1, 1], [], []>} : vector<128x16xbf16>, vector<16x128xbf16>, vector<128x128xf32> -> vector<128x128xf32>
    %14 = arith.addf %10, %13 : vector<128x128xf32>
    %15 = vector.extract_strided_slice %2 {offsets = [17, 0], sizes = [128, 16], strides = [1, 1]} : vector<145x16xbf16> to vector<128x16xbf16>
    %16 = vector.extract_strided_slice %3 {offsets = [48, 0], sizes = [16, 128], strides = [1, 1]} : vector<64x128xbf16> to vector<16x128xbf16>
    %cst_7 = arith.constant dense<0.000000e+00> : vector<128x128xf32>
    %17 = tpu.matmul %15, %16, %cst_7 {dimension_numbers = #tpu.dot_dimension_numbers<[1], [0], [0], [1], [0, 0, 1, 1], [], []>} : vector<128x16xbf16>, vector<16x128xbf16>, vector<128x128xf32> -> vector<128x128xf32>
    %18 = arith.addf %14, %17 : vector<128x128xf32>
    %c0_8 = arith.constant 0 : index
    %c0_9 = arith.constant 0 : index
    %19 = vector.load %arg4[%c0_8, %c0_9] : memref<1x128xf32, #tpu.memory_space<vmem>>, vector<1x128xf32>
    %20 = vector.broadcast %19 : vector<1x128xf32> to vector<128x128xf32>
    %21 = arith.addf %18, %20 : vector<128x128xf32>
    %cst_10 = arith.constant 0.000000e+00 : f32
    %22 = vector.broadcast %cst_10 : f32 to vector<128x128xf32>
    %23 = arith.maximumf %21, %22 : vector<128x128xf32>
    %24 = arith.truncf %23 : vector<128x128xf32> to vector<128x128xbf16>
    %c0_11 = arith.constant 0 : index
    %c0_12 = arith.constant 0 : index
    %c0_13 = arith.constant 0 : index
    %c0_14 = arith.constant 0 : index
    %25 = vector.load %arg5[%c0_11, %c0_12, %c0_13, %c0_14] : memref<1x1x128x128xbf16, #tpu.memory_space<vmem>>, vector<1x1x128x128xbf16>
    %26 = vector.shape_cast %25 : vector<1x1x128x128xbf16> to vector<128x128xbf16>
    %27 = vector.shape_cast %24 : vector<128x128xbf16> to vector<1x1x128x128xbf16>
    tpu.vector_store %arg5[%c0_11, %c0_12, %c0_13, %c0_14], %27 {strides = array<i32>} : memref<1x1x128x128xbf16, #tpu.memory_space<vmem>>, vector<1x1x128x128xbf16>,
    return
  }
  func.func @transform_0(%arg0: i32, %arg1: i32) -> (i32, i32, i32, i32) {
    %c0_i32 = arith.constant 0 : i32
    %c0_i32_0 = arith.constant 0 : i32
    %c0_i32_1 = arith.constant 0 : i32
    return %arg0, %arg1, %c0_i32, %c0_i32_0 : i32, i32, i32, i32
  }
  func.func @transform_1(%arg0: i32, %arg1: i32) -> (i32, i32) {
    %c0_i32 = arith.constant 0 : i32
    %c0_i32_0 = arith.constant 0 : i32
    %c0_i32_1 = arith.constant 0 : i32
    return %c0_i32, %c0_i32_0 : i32, i32
  }
  func.func @transform_2(%arg0: i32, %arg1: i32) -> (i32, i32) {
    %c0_i32 = arith.constant 0 : i32
    %c0_i32_0 = arith.constant 0 : i32
    %c0_i32_1 = arith.constant 0 : i32
    return %c0_i32, %c0_i32_0 : i32, i32
  }
  func.func @transform_3(%arg0: i32, %arg1: i32) -> (i32, i32, i32, i32) {
    %c0_i32 = arith.constant 0 : i32
    %c0_i32_0 = arith.constant 0 : i32
    %c0_i32_1 = arith.constant 0 : i32
    return %arg0, %arg1, %c0_i32, %c0_i32_0 : i32, i32, i32, i32
  }
}

module attributes {stable_mosaic.version = 11 : i64} {
  func.func @_conv_taps_kernel(%arg0: i32, %arg1: i32, %arg2: memref<1x1x41x512xbf16, #tpu.memory_space<vmem>>, %arg3: memref<2048x128xbf16, #tpu.memory_space<vmem>>, %arg4: memref<1x128xf32, #tpu.memory_space<vmem>>, %arg5: memref<1x1x32x128xbf16, #tpu.memory_space<vmem>>) attributes {dimension_semantics = [#tpu.dimension_semantics<parallel>, #tpu.dimension_semantics<parallel>], iteration_bounds = array<i64: 2, 1>, scalar_prefetch = 0 : i64, scratch_operands = 0 : i64, tpu.core_type = #tpu.core_type<tc>, window_params = [{transform_indices = @transform_0, window_bounds = array<i64: 1, 1, 41, 512>}, {pipeline_mode = #tpu.pipeline_mode<synchronous>, transform_indices = @transform_1, window_bounds = array<i64: 2048, 128>}, {pipeline_mode = #tpu.pipeline_mode<synchronous>, transform_indices = @transform_2, window_bounds = array<i64: 1, 128>}, {transform_indices = @transform_3, window_bounds = array<i64: 1, 1, 32, 128>}]} {
    %c0 = arith.constant 0 : index
    %c0_0 = arith.constant 0 : index
    %c0_1 = arith.constant 0 : index
    %c0_2 = arith.constant 0 : index
    %0 = vector.load %arg2[%c0, %c0_0, %c0_1, %c0_2] : memref<1x1x41x512xbf16, #tpu.memory_space<vmem>>, vector<1x1x41x512xbf16>
    %1 = vector.shape_cast %0 : vector<1x1x41x512xbf16> to vector<41x512xbf16>
    %2 = vector.extract_strided_slice %1 {offsets = [0, 0], sizes = [32, 512], strides = [1, 1]} : vector<41x512xbf16> to vector<32x512xbf16>
    %3 = vector.extract_strided_slice %1 {offsets = [1, 0], sizes = [32, 512], strides = [1, 1]} : vector<41x512xbf16> to vector<32x512xbf16>
    %4 = vector.extract_strided_slice %1 {offsets = [8, 0], sizes = [32, 512], strides = [1, 1]} : vector<41x512xbf16> to vector<32x512xbf16>
    %5 = vector.extract_strided_slice %1 {offsets = [9, 0], sizes = [32, 512], strides = [1, 1]} : vector<41x512xbf16> to vector<32x512xbf16>
    %6 = tpu.concatenate %2, %3, %4, %5 in 1 : vector<32x512xbf16>, vector<32x512xbf16>, vector<32x512xbf16>, vector<32x512xbf16> -> vector<32x2048xbf16>
    %c0_3 = arith.constant 0 : index
    %c0_4 = arith.constant 0 : index
    %7 = vector.load %arg3[%c0_3, %c0_4] : memref<2048x128xbf16, #tpu.memory_space<vmem>>, vector<2048x128xbf16>
    %cst = arith.constant dense<0.000000e+00> : vector<32x128xf32>
    %8 = tpu.matmul %6, %7, %cst {dimension_numbers = #tpu.dot_dimension_numbers<[1], [0], [0], [1], [0, 0, 1, 1], [], []>} : vector<32x2048xbf16>, vector<2048x128xbf16>, vector<32x128xf32> -> vector<32x128xf32>
    %c0_5 = arith.constant 0 : index
    %c0_6 = arith.constant 0 : index
    %9 = vector.load %arg4[%c0_5, %c0_6] : memref<1x128xf32, #tpu.memory_space<vmem>>, vector<1x128xf32>
    %10 = vector.broadcast %9 : vector<1x128xf32> to vector<32x128xf32>
    %11 = arith.addf %8, %10 : vector<32x128xf32>
    %cst_7 = arith.constant 0.000000e+00 : f32
    %12 = vector.broadcast %cst_7 : f32 to vector<32x128xf32>
    %13 = arith.maximumf %11, %12 : vector<32x128xf32>
    %14 = arith.truncf %13 : vector<32x128xf32> to vector<32x128xbf16>
    %c0_8 = arith.constant 0 : index
    %c0_9 = arith.constant 0 : index
    %c0_10 = arith.constant 0 : index
    %c0_11 = arith.constant 0 : index
    %15 = vector.load %arg5[%c0_8, %c0_9, %c0_10, %c0_11] : memref<1x1x32x128xbf16, #tpu.memory_space<vmem>>, vector<1x1x32x128xbf16>
    %16 = vector.shape_cast %15 : vector<1x1x32x128xbf16> to vector<32x128xbf16>
    %17 = vector.shape_cast %14 : vector<32x128xbf16> to vector<1x1x32x128xbf16>
    tpu.vector_store %arg5[%c0_8, %c0_9, %c0_10, %c0_11], %17 {strides = array<i32>} : memref<1x1x32x128xbf16, #tpu.memory_space<vmem>>, vector<1x1x32x128xbf16>,
    return
  }
  func.func @transform_0(%arg0: i32, %arg1: i32) -> (i32, i32, i32, i32) {
    %c0_i32 = arith.constant 0 : i32
    %c0_i32_0 = arith.constant 0 : i32
    %c0_i32_1 = arith.constant 0 : i32
    return %arg0, %arg1, %c0_i32, %c0_i32_0 : i32, i32, i32, i32
  }
  func.func @transform_1(%arg0: i32, %arg1: i32) -> (i32, i32) {
    %c0_i32 = arith.constant 0 : i32
    %c0_i32_0 = arith.constant 0 : i32
    %c0_i32_1 = arith.constant 0 : i32
    return %c0_i32, %c0_i32_0 : i32, i32
  }
  func.func @transform_2(%arg0: i32, %arg1: i32) -> (i32, i32) {
    %c0_i32 = arith.constant 0 : i32
    %c0_i32_0 = arith.constant 0 : i32
    %c0_i32_1 = arith.constant 0 : i32
    return %c0_i32, %c0_i32_0 : i32, i32
  }
  func.func @transform_3(%arg0: i32, %arg1: i32) -> (i32, i32, i32, i32) {
    %c0_i32 = arith.constant 0 : i32
    %c0_i32_0 = arith.constant 0 : i32
    %c0_i32_1 = arith.constant 0 : i32
    return %arg0, %arg1, %c0_i32, %c0_i32_0 : i32, i32, i32, i32
  }
}

module attributes {stable_mosaic.version = 11 : i64} {
  func.func @_conv_taps_kernel(%arg0: i32, %arg1: i32, %arg2: memref<1x1x50x128xbf16, #tpu.memory_space<vmem>>, %arg3: memref<1152x128xbf16, #tpu.memory_space<vmem>>, %arg4: memref<1x128xf32, #tpu.memory_space<vmem>>, %arg5: memref<1x1x32x128xf32, #tpu.memory_space<vmem>>) attributes {dimension_semantics = [#tpu.dimension_semantics<parallel>, #tpu.dimension_semantics<parallel>], iteration_bounds = array<i64: 2, 1>, scalar_prefetch = 0 : i64, scratch_operands = 0 : i64, tpu.core_type = #tpu.core_type<tc>, window_params = [{transform_indices = @transform_0, window_bounds = array<i64: 1, 1, 50, 128>}, {pipeline_mode = #tpu.pipeline_mode<synchronous>, transform_indices = @transform_1, window_bounds = array<i64: 1152, 128>}, {pipeline_mode = #tpu.pipeline_mode<synchronous>, transform_indices = @transform_2, window_bounds = array<i64: 1, 128>}, {transform_indices = @transform_3, window_bounds = array<i64: 1, 1, 32, 128>}]} {
    %c0 = arith.constant 0 : index
    %c0_0 = arith.constant 0 : index
    %c0_1 = arith.constant 0 : index
    %c0_2 = arith.constant 0 : index
    %0 = vector.load %arg2[%c0, %c0_0, %c0_1, %c0_2] : memref<1x1x50x128xbf16, #tpu.memory_space<vmem>>, vector<1x1x50x128xbf16>
    %1 = vector.shape_cast %0 : vector<1x1x50x128xbf16> to vector<50x128xbf16>
    %2 = vector.extract_strided_slice %1 {offsets = [0, 0], sizes = [32, 128], strides = [1, 1]} : vector<50x128xbf16> to vector<32x128xbf16>
    %3 = vector.extract_strided_slice %1 {offsets = [1, 0], sizes = [32, 128], strides = [1, 1]} : vector<50x128xbf16> to vector<32x128xbf16>
    %4 = vector.extract_strided_slice %1 {offsets = [2, 0], sizes = [32, 128], strides = [1, 1]} : vector<50x128xbf16> to vector<32x128xbf16>
    %5 = vector.extract_strided_slice %1 {offsets = [8, 0], sizes = [32, 128], strides = [1, 1]} : vector<50x128xbf16> to vector<32x128xbf16>
    %6 = vector.extract_strided_slice %1 {offsets = [9, 0], sizes = [32, 128], strides = [1, 1]} : vector<50x128xbf16> to vector<32x128xbf16>
    %7 = vector.extract_strided_slice %1 {offsets = [10, 0], sizes = [32, 128], strides = [1, 1]} : vector<50x128xbf16> to vector<32x128xbf16>
    %8 = vector.extract_strided_slice %1 {offsets = [16, 0], sizes = [32, 128], strides = [1, 1]} : vector<50x128xbf16> to vector<32x128xbf16>
    %9 = vector.extract_strided_slice %1 {offsets = [17, 0], sizes = [32, 128], strides = [1, 1]} : vector<50x128xbf16> to vector<32x128xbf16>
    %10 = vector.extract_strided_slice %1 {offsets = [18, 0], sizes = [32, 128], strides = [1, 1]} : vector<50x128xbf16> to vector<32x128xbf16>
    %11 = tpu.concatenate %2, %3, %4, %5, %6, %7, %8, %9, %10 in 1 : vector<32x128xbf16>, vector<32x128xbf16>, vector<32x128xbf16>, vector<32x128xbf16>, vector<32x128xbf16>, vector<32x128xbf16>, vector<32x128xbf16>, vector<32x128xbf16>, vector<32x128xbf16> -> vector<32x1152xbf16>
    %c0_3 = arith.constant 0 : index
    %c0_4 = arith.constant 0 : index
    %12 = vector.load %arg3[%c0_3, %c0_4] : memref<1152x128xbf16, #tpu.memory_space<vmem>>, vector<1152x128xbf16>
    %cst = arith.constant dense<0.000000e+00> : vector<32x128xf32>
    %13 = tpu.matmul %11, %12, %cst {dimension_numbers = #tpu.dot_dimension_numbers<[1], [0], [0], [1], [0, 0, 1, 1], [], []>} : vector<32x1152xbf16>, vector<1152x128xbf16>, vector<32x128xf32> -> vector<32x128xf32>
    %c0_5 = arith.constant 0 : index
    %c0_6 = arith.constant 0 : index
    %14 = vector.load %arg4[%c0_5, %c0_6] : memref<1x128xf32, #tpu.memory_space<vmem>>, vector<1x128xf32>
    %15 = vector.broadcast %14 : vector<1x128xf32> to vector<32x128xf32>
    %16 = arith.addf %13, %15 : vector<32x128xf32>
    %c0_7 = arith.constant 0 : index
    %c0_8 = arith.constant 0 : index
    %c0_9 = arith.constant 0 : index
    %c0_10 = arith.constant 0 : index
    %17 = vector.load %arg5[%c0_7, %c0_8, %c0_9, %c0_10] : memref<1x1x32x128xf32, #tpu.memory_space<vmem>>, vector<1x1x32x128xf32>
    %18 = vector.shape_cast %17 : vector<1x1x32x128xf32> to vector<32x128xf32>
    %19 = vector.shape_cast %16 : vector<32x128xf32> to vector<1x1x32x128xf32>
    tpu.vector_store %arg5[%c0_7, %c0_8, %c0_9, %c0_10], %19 {strides = array<i32>} : memref<1x1x32x128xf32, #tpu.memory_space<vmem>>, vector<1x1x32x128xf32>,
    return
  }
  func.func @transform_0(%arg0: i32, %arg1: i32) -> (i32, i32, i32, i32) {
    %c0_i32 = arith.constant 0 : i32
    %c0_i32_0 = arith.constant 0 : i32
    %c0_i32_1 = arith.constant 0 : i32
    return %arg0, %arg1, %c0_i32, %c0_i32_0 : i32, i32, i32, i32
  }
  func.func @transform_1(%arg0: i32, %arg1: i32) -> (i32, i32) {
    %c0_i32 = arith.constant 0 : i32
    %c0_i32_0 = arith.constant 0 : i32
    %c0_i32_1 = arith.constant 0 : i32
    return %c0_i32, %c0_i32_0 : i32, i32
  }
  func.func @transform_2(%arg0: i32, %arg1: i32) -> (i32, i32) {
    %c0_i32 = arith.constant 0 : i32
    %c0_i32_0 = arith.constant 0 : i32
    %c0_i32_1 = arith.constant 0 : i32
    return %c0_i32, %c0_i32_0 : i32, i32
  }
  func.func @transform_3(%arg0: i32, %arg1: i32) -> (i32, i32, i32, i32) {
    %c0_i32 = arith.constant 0 : i32
    %c0_i32_0 = arith.constant 0 : i32
    %c0_i32_1 = arith.constant 0 : i32
    return %arg0, %arg1, %c0_i32, %c0_i32_0 : i32, i32, i32, i32
  }
}

module attributes {stable_mosaic.version = 11 : i64} {
  func.func @_resblock_kernel(%arg0: i32, %arg1: i32, %arg2: memref<1x1x50x128xf32, #tpu.memory_space<vmem>>, %arg3: memref<1152x128xbf16, #tpu.memory_space<vmem>>, %arg4: memref<1x128xf32, #tpu.memory_space<vmem>>, %arg5: memref<128x128xbf16, #tpu.memory_space<vmem>>, %arg6: memref<1x128xf32, #tpu.memory_space<vmem>>, %arg7: memref<1x1x32x128xf32, #tpu.memory_space<vmem>>) attributes {dimension_semantics = [#tpu.dimension_semantics<parallel>, #tpu.dimension_semantics<parallel>], iteration_bounds = array<i64: 2, 1>, scalar_prefetch = 0 : i64, scratch_operands = 0 : i64, tpu.core_type = #tpu.core_type<tc>, window_params = [{transform_indices = @transform_0, window_bounds = array<i64: 1, 1, 50, 128>}, {pipeline_mode = #tpu.pipeline_mode<synchronous>, transform_indices = @transform_1, window_bounds = array<i64: 1152, 128>}, {pipeline_mode = #tpu.pipeline_mode<synchronous>, transform_indices = @transform_2, window_bounds = array<i64: 1, 128>}, {pipeline_mode = #tpu.pipeline_mode<synchronous>, transform_indices = @transform_3, window_bounds = array<i64: 128, 128>}, {pipeline_mode = #tpu.pipeline_mode<synchronous>, transform_indices = @transform_4, window_bounds = array<i64: 1, 128>}, {transform_indices = @transform_5, window_bounds = array<i64: 1, 1, 32, 128>}]} {
    %c0 = arith.constant 0 : index
    %c0_0 = arith.constant 0 : index
    %c0_1 = arith.constant 0 : index
    %c0_2 = arith.constant 0 : index
    %0 = vector.load %arg2[%c0, %c0_0, %c0_1, %c0_2] : memref<1x1x50x128xf32, #tpu.memory_space<vmem>>, vector<1x1x50x128xf32>
    %1 = vector.shape_cast %0 : vector<1x1x50x128xf32> to vector<50x128xf32>
    %cst = arith.constant 0.000000e+00 : f32
    %2 = vector.broadcast %cst : f32 to vector<50x128xf32>
    %3 = arith.maximumf %1, %2 : vector<50x128xf32>
    %4 = arith.truncf %3 : vector<50x128xf32> to vector<50x128xbf16>
    %5 = vector.extract_strided_slice %4 {offsets = [0, 0], sizes = [32, 128], strides = [1, 1]} : vector<50x128xbf16> to vector<32x128xbf16>
    %6 = vector.extract_strided_slice %4 {offsets = [1, 0], sizes = [32, 128], strides = [1, 1]} : vector<50x128xbf16> to vector<32x128xbf16>
    %7 = vector.extract_strided_slice %4 {offsets = [2, 0], sizes = [32, 128], strides = [1, 1]} : vector<50x128xbf16> to vector<32x128xbf16>
    %8 = vector.extract_strided_slice %4 {offsets = [8, 0], sizes = [32, 128], strides = [1, 1]} : vector<50x128xbf16> to vector<32x128xbf16>
    %9 = vector.extract_strided_slice %4 {offsets = [9, 0], sizes = [32, 128], strides = [1, 1]} : vector<50x128xbf16> to vector<32x128xbf16>
    %10 = vector.extract_strided_slice %4 {offsets = [10, 0], sizes = [32, 128], strides = [1, 1]} : vector<50x128xbf16> to vector<32x128xbf16>
    %11 = vector.extract_strided_slice %4 {offsets = [16, 0], sizes = [32, 128], strides = [1, 1]} : vector<50x128xbf16> to vector<32x128xbf16>
    %12 = vector.extract_strided_slice %4 {offsets = [17, 0], sizes = [32, 128], strides = [1, 1]} : vector<50x128xbf16> to vector<32x128xbf16>
    %13 = vector.extract_strided_slice %4 {offsets = [18, 0], sizes = [32, 128], strides = [1, 1]} : vector<50x128xbf16> to vector<32x128xbf16>
    %14 = tpu.concatenate %5, %6, %7, %8, %9, %10, %11, %12, %13 in 1 : vector<32x128xbf16>, vector<32x128xbf16>, vector<32x128xbf16>, vector<32x128xbf16>, vector<32x128xbf16>, vector<32x128xbf16>, vector<32x128xbf16>, vector<32x128xbf16>, vector<32x128xbf16> -> vector<32x1152xbf16>
    %c0_3 = arith.constant 0 : index
    %c0_4 = arith.constant 0 : index
    %15 = vector.load %arg3[%c0_3, %c0_4] : memref<1152x128xbf16, #tpu.memory_space<vmem>>, vector<1152x128xbf16>
    %cst_5 = arith.constant dense<0.000000e+00> : vector<32x128xf32>
    %16 = tpu.matmul %14, %15, %cst_5 {dimension_numbers = #tpu.dot_dimension_numbers<[1], [0], [0], [1], [0, 0, 1, 1], [], []>} : vector<32x1152xbf16>, vector<1152x128xbf16>, vector<32x128xf32> -> vector<32x128xf32>
    %c0_6 = arith.constant 0 : index
    %c0_7 = arith.constant 0 : index
    %17 = vector.load %arg4[%c0_6, %c0_7] : memref<1x128xf32, #tpu.memory_space<vmem>>, vector<1x128xf32>
    %18 = vector.broadcast %17 : vector<1x128xf32> to vector<32x128xf32>
    %19 = arith.addf %16, %18 : vector<32x128xf32>
    %cst_8 = arith.constant 0.000000e+00 : f32
    %20 = vector.broadcast %cst_8 : f32 to vector<32x128xf32>
    %21 = arith.maximumf %19, %20 : vector<32x128xf32>
    %22 = arith.truncf %21 : vector<32x128xf32> to vector<32x128xbf16>
    %c0_9 = arith.constant 0 : index
    %c0_10 = arith.constant 0 : index
    %23 = vector.load %arg5[%c0_9, %c0_10] : memref<128x128xbf16, #tpu.memory_space<vmem>>, vector<128x128xbf16>
    %cst_11 = arith.constant dense<0.000000e+00> : vector<32x128xf32>
    %24 = tpu.matmul %22, %23, %cst_11 {dimension_numbers = #tpu.dot_dimension_numbers<[1], [0], [0], [1], [0, 0, 1, 1], [], []>} : vector<32x128xbf16>, vector<128x128xbf16>, vector<32x128xf32> -> vector<32x128xf32>
    %c0_12 = arith.constant 0 : index
    %c0_13 = arith.constant 0 : index
    %25 = vector.load %arg6[%c0_12, %c0_13] : memref<1x128xf32, #tpu.memory_space<vmem>>, vector<1x128xf32>
    %26 = vector.broadcast %25 : vector<1x128xf32> to vector<32x128xf32>
    %27 = arith.addf %24, %26 : vector<32x128xf32>
    %28 = vector.extract_strided_slice %1 {offsets = [9, 0], sizes = [32, 128], strides = [1, 1]} : vector<50x128xf32> to vector<32x128xf32>
    %29 = arith.addf %27, %28 : vector<32x128xf32>
    %c0_14 = arith.constant 0 : index
    %c0_15 = arith.constant 0 : index
    %c0_16 = arith.constant 0 : index
    %c0_17 = arith.constant 0 : index
    %30 = vector.load %arg7[%c0_14, %c0_15, %c0_16, %c0_17] : memref<1x1x32x128xf32, #tpu.memory_space<vmem>>, vector<1x1x32x128xf32>
    %31 = vector.shape_cast %30 : vector<1x1x32x128xf32> to vector<32x128xf32>
    %32 = vector.shape_cast %29 : vector<32x128xf32> to vector<1x1x32x128xf32>
    tpu.vector_store %arg7[%c0_14, %c0_15, %c0_16, %c0_17], %32 {strides = array<i32>} : memref<1x1x32x128xf32, #tpu.memory_space<vmem>>, vector<1x1x32x128xf32>,
    return
  }
  func.func @transform_0(%arg0: i32, %arg1: i32) -> (i32, i32, i32, i32) {
    %c0_i32 = arith.constant 0 : i32
    %c0_i32_0 = arith.constant 0 : i32
    %c0_i32_1 = arith.constant 0 : i32
    return %arg0, %arg1, %c0_i32, %c0_i32_0 : i32, i32, i32, i32
  }
  func.func @transform_1(%arg0: i32, %arg1: i32) -> (i32, i32) {
    %c0_i32 = arith.constant 0 : i32
    %c0_i32_0 = arith.constant 0 : i32
    %c0_i32_1 = arith.constant 0 : i32
    return %c0_i32, %c0_i32_0 : i32, i32
  }
  func.func @transform_2(%arg0: i32, %arg1: i32) -> (i32, i32) {
    %c0_i32 = arith.constant 0 : i32
    %c0_i32_0 = arith.constant 0 : i32
    %c0_i32_1 = arith.constant 0 : i32
    return %c0_i32, %c0_i32_0 : i32, i32
  }
  func.func @transform_3(%arg0: i32, %arg1: i32) -> (i32, i32) {
    %c0_i32 = arith.constant 0 : i32
    %c0_i32_0 = arith.constant 0 : i32
    %c0_i32_1 = arith.constant 0 : i32
    return %c0_i32, %c0_i32_0 : i32, i32
  }
  func.func @transform_4(%arg0: i32, %arg1: i32) -> (i32, i32) {
    %c0_i32 = arith.constant 0 : i32
    %c0_i32_0 = arith.constant 0 : i32
    %c0_i32_1 = arith.constant 0 : i32
    return %c0_i32, %c0_i32_0 : i32, i32
  }
  func.func @transform_5(%arg0: i32, %arg1: i32) -> (i32, i32, i32, i32) {
    %c0_i32 = arith.constant 0 : i32
    %c0_i32_0 = arith.constant 0 : i32
    %c0_i32_1 = arith.constant 0 : i32
    return %arg0, %arg1, %c0_i32, %c0_i32_0 : i32, i32, i32, i32
  }
}

module attributes {stable_mosaic.version = 11 : i64} {
  func.func @_resblock_kernel(%arg0: i32, %arg1: i32, %arg2: memref<1x1x50x128xf32, #tpu.memory_space<vmem>>, %arg3: memref<1152x128xbf16, #tpu.memory_space<vmem>>, %arg4: memref<1x128xf32, #tpu.memory_space<vmem>>, %arg5: memref<128x128xbf16, #tpu.memory_space<vmem>>, %arg6: memref<1x128xf32, #tpu.memory_space<vmem>>, %arg7: memref<1x1x32x128xf32, #tpu.memory_space<vmem>>) attributes {dimension_semantics = [#tpu.dimension_semantics<parallel>, #tpu.dimension_semantics<parallel>], iteration_bounds = array<i64: 2, 1>, scalar_prefetch = 0 : i64, scratch_operands = 0 : i64, tpu.core_type = #tpu.core_type<tc>, window_params = [{transform_indices = @transform_0, window_bounds = array<i64: 1, 1, 50, 128>}, {pipeline_mode = #tpu.pipeline_mode<synchronous>, transform_indices = @transform_1, window_bounds = array<i64: 1152, 128>}, {pipeline_mode = #tpu.pipeline_mode<synchronous>, transform_indices = @transform_2, window_bounds = array<i64: 1, 128>}, {pipeline_mode = #tpu.pipeline_mode<synchronous>, transform_indices = @transform_3, window_bounds = array<i64: 128, 128>}, {pipeline_mode = #tpu.pipeline_mode<synchronous>, transform_indices = @transform_4, window_bounds = array<i64: 1, 128>}, {transform_indices = @transform_5, window_bounds = array<i64: 1, 1, 32, 128>}]} {
    %c0 = arith.constant 0 : index
    %c0_0 = arith.constant 0 : index
    %c0_1 = arith.constant 0 : index
    %c0_2 = arith.constant 0 : index
    %0 = vector.load %arg2[%c0, %c0_0, %c0_1, %c0_2] : memref<1x1x50x128xf32, #tpu.memory_space<vmem>>, vector<1x1x50x128xf32>
    %1 = vector.shape_cast %0 : vector<1x1x50x128xf32> to vector<50x128xf32>
    %cst = arith.constant 0.000000e+00 : f32
    %2 = vector.broadcast %cst : f32 to vector<50x128xf32>
    %3 = arith.maximumf %1, %2 : vector<50x128xf32>
    %4 = arith.truncf %3 : vector<50x128xf32> to vector<50x128xbf16>
    %5 = vector.extract_strided_slice %4 {offsets = [0, 0], sizes = [32, 128], strides = [1, 1]} : vector<50x128xbf16> to vector<32x128xbf16>
    %6 = vector.extract_strided_slice %4 {offsets = [1, 0], sizes = [32, 128], strides = [1, 1]} : vector<50x128xbf16> to vector<32x128xbf16>
    %7 = vector.extract_strided_slice %4 {offsets = [2, 0], sizes = [32, 128], strides = [1, 1]} : vector<50x128xbf16> to vector<32x128xbf16>
    %8 = vector.extract_strided_slice %4 {offsets = [8, 0], sizes = [32, 128], strides = [1, 1]} : vector<50x128xbf16> to vector<32x128xbf16>
    %9 = vector.extract_strided_slice %4 {offsets = [9, 0], sizes = [32, 128], strides = [1, 1]} : vector<50x128xbf16> to vector<32x128xbf16>
    %10 = vector.extract_strided_slice %4 {offsets = [10, 0], sizes = [32, 128], strides = [1, 1]} : vector<50x128xbf16> to vector<32x128xbf16>
    %11 = vector.extract_strided_slice %4 {offsets = [16, 0], sizes = [32, 128], strides = [1, 1]} : vector<50x128xbf16> to vector<32x128xbf16>
    %12 = vector.extract_strided_slice %4 {offsets = [17, 0], sizes = [32, 128], strides = [1, 1]} : vector<50x128xbf16> to vector<32x128xbf16>
    %13 = vector.extract_strided_slice %4 {offsets = [18, 0], sizes = [32, 128], strides = [1, 1]} : vector<50x128xbf16> to vector<32x128xbf16>
    %14 = tpu.concatenate %5, %6, %7, %8, %9, %10, %11, %12, %13 in 1 : vector<32x128xbf16>, vector<32x128xbf16>, vector<32x128xbf16>, vector<32x128xbf16>, vector<32x128xbf16>, vector<32x128xbf16>, vector<32x128xbf16>, vector<32x128xbf16>, vector<32x128xbf16> -> vector<32x1152xbf16>
    %c0_3 = arith.constant 0 : index
    %c0_4 = arith.constant 0 : index
    %15 = vector.load %arg3[%c0_3, %c0_4] : memref<1152x128xbf16, #tpu.memory_space<vmem>>, vector<1152x128xbf16>
    %cst_5 = arith.constant dense<0.000000e+00> : vector<32x128xf32>
    %16 = tpu.matmul %14, %15, %cst_5 {dimension_numbers = #tpu.dot_dimension_numbers<[1], [0], [0], [1], [0, 0, 1, 1], [], []>} : vector<32x1152xbf16>, vector<1152x128xbf16>, vector<32x128xf32> -> vector<32x128xf32>
    %c0_6 = arith.constant 0 : index
    %c0_7 = arith.constant 0 : index
    %17 = vector.load %arg4[%c0_6, %c0_7] : memref<1x128xf32, #tpu.memory_space<vmem>>, vector<1x128xf32>
    %18 = vector.broadcast %17 : vector<1x128xf32> to vector<32x128xf32>
    %19 = arith.addf %16, %18 : vector<32x128xf32>
    %cst_8 = arith.constant 0.000000e+00 : f32
    %20 = vector.broadcast %cst_8 : f32 to vector<32x128xf32>
    %21 = arith.maximumf %19, %20 : vector<32x128xf32>
    %22 = arith.truncf %21 : vector<32x128xf32> to vector<32x128xbf16>
    %c0_9 = arith.constant 0 : index
    %c0_10 = arith.constant 0 : index
    %23 = vector.load %arg5[%c0_9, %c0_10] : memref<128x128xbf16, #tpu.memory_space<vmem>>, vector<128x128xbf16>
    %cst_11 = arith.constant dense<0.000000e+00> : vector<32x128xf32>
    %24 = tpu.matmul %22, %23, %cst_11 {dimension_numbers = #tpu.dot_dimension_numbers<[1], [0], [0], [1], [0, 0, 1, 1], [], []>} : vector<32x128xbf16>, vector<128x128xbf16>, vector<32x128xf32> -> vector<32x128xf32>
    %c0_12 = arith.constant 0 : index
    %c0_13 = arith.constant 0 : index
    %25 = vector.load %arg6[%c0_12, %c0_13] : memref<1x128xf32, #tpu.memory_space<vmem>>, vector<1x128xf32>
    %26 = vector.broadcast %25 : vector<1x128xf32> to vector<32x128xf32>
    %27 = arith.addf %24, %26 : vector<32x128xf32>
    %28 = vector.extract_strided_slice %1 {offsets = [9, 0], sizes = [32, 128], strides = [1, 1]} : vector<50x128xf32> to vector<32x128xf32>
    %29 = arith.addf %27, %28 : vector<32x128xf32>
    %cst_14 = arith.constant 0.000000e+00 : f32
    %30 = vector.broadcast %cst_14 : f32 to vector<32x128xf32>
    %31 = arith.maximumf %29, %30 : vector<32x128xf32>
    %c0_15 = arith.constant 0 : index
    %c0_16 = arith.constant 0 : index
    %c0_17 = arith.constant 0 : index
    %c0_18 = arith.constant 0 : index
    %32 = vector.load %arg7[%c0_15, %c0_16, %c0_17, %c0_18] : memref<1x1x32x128xf32, #tpu.memory_space<vmem>>, vector<1x1x32x128xf32>
    %33 = vector.shape_cast %32 : vector<1x1x32x128xf32> to vector<32x128xf32>
    %34 = vector.shape_cast %31 : vector<32x128xf32> to vector<1x1x32x128xf32>
    tpu.vector_store %arg7[%c0_15, %c0_16, %c0_17, %c0_18], %34 {strides = array<i32>} : memref<1x1x32x128xf32, #tpu.memory_space<vmem>>, vector<1x1x32x128xf32>,
    return
  }
  func.func @transform_0(%arg0: i32, %arg1: i32) -> (i32, i32, i32, i32) {
    %c0_i32 = arith.constant 0 : i32
    %c0_i32_0 = arith.constant 0 : i32
    %c0_i32_1 = arith.constant 0 : i32
    return %arg0, %arg1, %c0_i32, %c0_i32_0 : i32, i32, i32, i32
  }
  func.func @transform_1(%arg0: i32, %arg1: i32) -> (i32, i32) {
    %c0_i32 = arith.constant 0 : i32
    %c0_i32_0 = arith.constant 0 : i32
    %c0_i32_1 = arith.constant 0 : i32
    return %c0_i32, %c0_i32_0 : i32, i32
  }
  func.func @transform_2(%arg0: i32, %arg1: i32) -> (i32, i32) {
    %c0_i32 = arith.constant 0 : i32
    %c0_i32_0 = arith.constant 0 : i32
    %c0_i32_1 = arith.constant 0 : i32
    return %c0_i32, %c0_i32_0 : i32, i32
  }
  func.func @transform_3(%arg0: i32, %arg1: i32) -> (i32, i32) {
    %c0_i32 = arith.constant 0 : i32
    %c0_i32_0 = arith.constant 0 : i32
    %c0_i32_1 = arith.constant 0 : i32
    return %c0_i32, %c0_i32_0 : i32, i32
  }
  func.func @transform_4(%arg0: i32, %arg1: i32) -> (i32, i32) {
    %c0_i32 = arith.constant 0 : i32
    %c0_i32_0 = arith.constant 0 : i32
    %c0_i32_1 = arith.constant 0 : i32
    return %c0_i32, %c0_i32_0 : i32, i32
  }
  func.func @transform_5(%arg0: i32, %arg1: i32) -> (i32, i32, i32, i32) {
    %c0_i32 = arith.constant 0 : i32
    %c0_i32_0 = arith.constant 0 : i32
    %c0_i32_1 = arith.constant 0 : i32
    return %arg0, %arg1, %c0_i32, %c0_i32_0 : i32, i32, i32, i32
  }
}

</mosaic_0001>

<llo_original>
// kernel: encoder_forward_pallas.5
$region0: #{encoder_forward_pallas.5}
  #allocation0 [shape = 'u32[]', space=smem, size = 0x4, offset = 0x4, fixed_abs, tag = 'smem constant byte address 0x4 - core index']
  #allocation1 [shape = 'u32[144,128]{1,0:T(1,128)}', space=vmem, size = 0x12000, scoped, tag = 'internal scratch']
  %s0 = inlined_call_operand.vmem [shape: f32[2,1,145,16], index: 0, kind: input, shape index: {}]
  %s1 = inlined_call_operand.vmem [shape: bf16[64,128], index: 1, kind: input, shape index: {}]
  %s2 = inlined_call_operand.vmem [shape: f32[1,128], index: 2, kind: input, shape index: {}]
  %s3 = inlined_call_operand.vmem [shape: bf16[2,1,128,128], index: 3, kind: output, shape index: {}]
  %s4 = sld [smem:[#allocation0]]
  $region45: #{encoder_forward_pallas.5} parent=0
    _
  %s6 = ssub.s32 1, %s4
  %s7 = scalar_select 0, %s6, %s4
  loop: start=0, step=1, limit=4
  $region2: #{encoder_forward_pallas.5} parent=0 // loop_pre_header
    _
  $region3: #{encoder_forward_pallas.5} parent=0 // loop_header
    %s9 = sphi 0, %s13
    %p10 = scmp.ge.s32.totalorder %s9, 4
    %s16 = sphi 0, %s28
    %s17 = sphi 0, %s24
    %s18 = sphi 0, %s16
    %s19 = sphi 0, %s17
    %s20 = sphi 0, %s18
    %s21 = sphi 0, %s19
    %s33 = sphi 0, %s35
    %s36 = sphi 0, %s33
    %s37 = sphi 0, %s36
    %s53 = sphi 0, %s37
    %s57 = sphi 0, %s57
    %s59 = sphi 0, %s57
    %s60 = sphi 0, %s59
    %s74 = sphi 0, %s60
    %s78 = sphi 0, %s78
    %s80 = sphi 0, %s78
    %s81 = sphi 0, %s80
    %s95 = sphi 0, %s81
    %s103 = sphi 0, %s105
    %s106 = sphi 0, %s103
    %s107 = sphi 0, %s106
    %s123 = sphi 0, %s107
  $region4: #{encoder_forward_pallas.5} parent=0 // loop_header_branch
    %12 = sbr.rel (%p10) target = $region8
  $region5: #{encoder_forward_pallas.5} parent=0 // loop_body
    %s14 = ssub.s32 %s9, 1
    %s15 = ssub.s32 %s9, 2
    %s22 = sadd.s32 1, %s17
    %p23 = scmp.ge.s32.totalorder %s22, 1
    %s24 = scalar_select %p23, 0, %s22
    %s25 = sadd.s32 1, %s16
    %s26 = scalar_select %p23, %s25, %s16
    %p27 = scmp.ge.s32.totalorder %s26, 2
    %s28 = scalar_select %p27, 0, %s26
    %s29 = ssub.s32 %s16, %s28
    %s30 = ssub.s32 %s17, %s24
    %s31 = sor.u32 %s29, %s30
    %p32 = scmp.eq.s32.totalorder %s31, 0
    %s34 = sadd.s32 %s33, 1
    %s35 = scalar_select %p32, %s33, %s34
    %p38 = pneg %p32
    %p39 = scmp.eq.s32.totalorder %s9, 1
    %p40 = por %p38, %p39
    %p41 = scmp.ne.s32.totalorder %s33, %s36
    %p42 = scmp.eq.s32.totalorder %s9, 0
    %p43 = por %p41, %p42
    %p44 = scmp.ne.s32.totalorder %s33, %s36
    %p45 = scmp.eq.s32.totalorder %s14, 1
    %p46 = por %p44, %p45
    %p47 = scmp.ne.s32.totalorder %s36, %s37
    %p48 = scmp.eq.s32.totalorder %s14, 0
    %p49 = por %p47, %p48
    %p50 = scmp.ne.s32.totalorder %s36, %s37
    %p51 = scmp.eq.s32.totalorder %s15, 1
    %p52 = por %p50, %p51
    %p54 = scmp.ne.s32.totalorder %s37, %s53
    %p55 = scmp.eq.s32.totalorder %s15, 0
    %p56 = por %p54, %p55
    %s58 = sadd.s32 %s57, 1
    %p61 = scmp.eq.s32.totalorder %s9, 1
    %p62 = scmp.ne.s32.totalorder %s57, %s59
    %p63 = scmp.eq.s32.totalorder %s9, 0
    %p64 = por %p62, %p63
    %p65 = scmp.ne.s32.totalorder %s57, %s59
    %p66 = scmp.eq.s32.totalorder %s14, 1
    %p67 = por %p65, %p66
    %p68 = scmp.ne.s32.totalorder %s59, %s60
    %p69 = scmp.eq.s32.totalorder %s14, 0
    %p70 = por %p68, %p69
    %p71 = scmp.ne.s32.totalorder %s59, %s60
    %p72 = scmp.eq.s32.totalorder %s15, 1
    %p73 = por %p71, %p72
    %p75 = scmp.ne.s32.totalorder %s60, %s74
    %p76 = scmp.eq.s32.totalorder %s15, 0
    %p77 = por %p75, %p76
    %s79 = sadd.s32 %s78, 1
    %p82 = scmp.eq.s32.totalorder %s9, 1
    %p83 = scmp.ne.s32.totalorder %s78, %s80
    %p84 = scmp.eq.s32.totalorder %s9, 0
    %p85 = por %p83, %p84
    %p86 = scmp.ne.s32.totalorder %s78, %s80
    %p87 = scmp.eq.s32.totalorder %s14, 1
    %p88 = por %p86, %p87
    %p89 = scmp.ne.s32.totalorder %s80, %s81
    %p90 = scmp.eq.s32.totalorder %s14, 0
    %p91 = por %p89, %p90
    %p92 = scmp.ne.s32.totalorder %s80, %s81
    %p93 = scmp.eq.s32.totalorder %s15, 1
    %p94 = por %p92, %p93
    %p96 = scmp.ne.s32.totalorder %s81, %s95
    %p97 = scmp.eq.s32.totalorder %s15, 0
    %p98 = por %p96, %p97
    %s99 = ssub.s32 %s16, %s28
    %s100 = ssub.s32 %s17, %s24
    %s101 = sor.u32 %s99, %s100
    %p102 = scmp.eq.s32.totalorder %s101, 0
    %s104 = sadd.s32 %s103, 1
    %s105 = scalar_select %p102, %s103, %s104
    %p108 = pneg %p102
    %p109 = scmp.eq.s32.totalorder %s9, 1
    %p110 = por %p108, %p109
    %p111 = scmp.ne.s32.totalorder %s103, %s106
    %p112 = scmp.eq.s32.totalorder %s9, 0
    %p113 = por %p111, %p112
    %p114 = scmp.ne.s32.totalorder %s103, %s106
    %p115 = scmp.eq.s32.totalorder %s14, 1
    %p116 = por %p114, %p115
    %p117 = scmp.ne.s32.totalorder %s106, %s107
    %p118 = scmp.eq.s32.totalorder %s14, 0
    %p119 = por %p117, %p118
    %p120 = scmp.ne.s32.totalorder %s106, %s107
    %p121 = scmp.eq.s32.totalorder %s15, 1
    %p122 = por %p120, %p121
    %p124 = scmp.ne.s32.totalorder %s107, %s123
    %p125 = scmp.eq.s32.totalorder %s15, 0
    %p126 = por %p124, %p125
    %p127 = scmp.le.s32.totalorder 1, %s9
    %p128 = scmp.lt.s32.totalorder %s9, 3
    %p129 = pnand %p127, %p128
    %p130 = pneg %p129
    // Predicated region
    $region9: #{encoder_forward_pallas.5} parent=5 // pred_check
      _
    $region10: #{encoder_forward_pallas.5} parent=5 // pred_check_branch
      %132 = sbr.rel (%p129) target = $region12
    $region11: #{encoder_forward_pallas.5} parent=5 // pred_region
      %s133 = ssub.s32 %s9, 1
      // Predicated region
      $region13: #{encoder_forward_pallas.5} parent=11 // pred_check
        %p134 = pneg %p70
      $region14: #{encoder_forward_pallas.5} parent=11 // pred_check_branch
        %136 = sbr.rel (%p134) target = $region16
      $region15: #{encoder_forward_pallas.5} parent=11 // pred_region
        _
      $region16: #{encoder_forward_pallas.5} parent=11 // pred_fallthru
        _
      // Predicated region
      $region17: #{encoder_forward_pallas.5} parent=11 // pred_check
        %p137 = pneg %p91
      $region18: #{encoder_forward_pallas.5} parent=11 // pred_check_branch
        %139 = sbr.rel (%p137) target = $region20
      $region19: #{encoder_forward_pallas.5} parent=11 // pred_region
        _
      $region20: #{encoder_forward_pallas.5} parent=11 // pred_fallthru
        _
    $region12: #{encoder_forward_pallas.5} parent=5 // pred_fallthru
      _
    %p140 = scmp.lt.s32.totalorder %s9, 2
    // Predicated region
    $region21: #{encoder_forward_pallas.5} parent=5 // pred_check
      %p141 = pneg %p140
    $region22: #{encoder_forward_pallas.5} parent=5 // pred_check_branch
      %143 = sbr.rel (%p141) target = $region24
    $region23: #{encoder_forward_pallas.5} parent=5 // pred_region
      // Predicated region
      $region25: #{encoder_forward_pallas.5} parent=23 // pred_check
        %p144 = pneg %p43
      $region26: #{encoder_forward_pallas.5} parent=23 // pred_check_branch
        %146 = sbr.rel (%p144) target = $region28
      $region27: #{encoder_forward_pallas.5} parent=23 // pred_region
        %p147 = scmp.lt.s32.totalorder %s16, 1
        %s148 = scalar_select %p147, %s16, 1
        %p149 = scmp.lt.s32.totalorder %s17, 0
        %s150 = scalar_select %p149, %s17, 0
        %s151 = smul.addr %s150, 19
        %s152 = smul.addr %s148, 19
        %s153 = sadd.s32 %s151, %s152
        %s154 = smul.addr %s153, 8
        %s155 = scalar_lea.vmem %s0, %s154
      $region28: #{encoder_forward_pallas.5} parent=23 // pred_fallthru
        _
    $region24: #{encoder_forward_pallas.5} parent=5 // pred_fallthru
      _
    %p156 = scmp.le.s32.totalorder 1, %s9
    %p157 = scmp.lt.s32.totalorder %s9, 3
    %p158 = pnand %p156, %p157
    %p159 = pneg %p158
    // Predicated region
    $region29: #{encoder_forward_pallas.5} parent=5 // pred_check
      _
    $region30: #{encoder_forward_pallas.5} parent=5 // pred_check_branch
      %161 = sbr.rel (%p158) target = $region32
    $region31: #{encoder_forward_pallas.5} parent=5 // pred_region
      %s162 = ssub.s32 %s9, 1
      %p163 = scmp.lt.s32.totalorder %s18, 1
      %s164 = scalar_select %p163, %s18, 1
      %p165 = scmp.lt.s32.totalorder %s19, 0
      %s166 = scalar_select %p165, %s19, 0
      %s167 = smul.addr %s166, 19
      %s168 = smul.addr %s164, 19
      %s169 = sadd.s32 %s167, %s168
      %s170 = smul.addr %s169, 8
      %s171 = scalar_lea.vmem %s0, %s170
      %p172 = pneg %p49
      %p173 = pneg %p46
      %p174 = pneg %p70
      %p175 = pneg %p67
      %p176 = pneg %p91
      %p177 = pneg %p88
      %p178 = pneg %p119
      %p179 = pneg %p116
      %p180 = scmp.lt.s32.totalorder %s18, 1
      %s181 = scalar_select %p180, %s18, 1
      %p182 = scmp.lt.s32.totalorder %s19, 0
      %s183 = scalar_select %p182, %s19, 0
      %s184 = smul.addr %s183, 16
      %s185 = smul.addr %s181, 16
      %s186 = sadd.s32 %s184, %s185
      %s187 = smul.addr %s186, 4
      %s188 = scalar_lea.vmem %s3, %s187
      %p189 = scmp.lt.s32.totalorder %s18, 1
      %s190 = scalar_select %p189, %s18, 1
      %p191 = scmp.lt.s32.totalorder %s19, 0
      %s192 = scalar_select %p191, %s19, 0
      %s193 = smul.addr %s192, 19
      %s194 = smul.addr %s190, 19
      %s195 = sadd.s32 %s193, %s194
      %s196 = smul.addr %s195, 8
      %s197 = scalar_lea.vmem %s0, %s196
      %p198 = scmp.lt.s32.totalorder %s18, 1
      %s199 = scalar_select %p198, %s18, 1
      %p200 = scmp.lt.s32.totalorder %s19, 0
      %s201 = scalar_select %p200, %s19, 0
      %s202 = smul.addr %s201, 16
      %s203 = smul.addr %s199, 16
      %s204 = sadd.s32 %s202, %s203
      %s205 = smul.addr %s204, 4
      %s206 = scalar_lea.vmem %s3, %s205
      %v208 = vld [vmem:[%s197] sm:$0xff]
      %v209 = vld [vmem:[%s197 + $0x8] sm:$0xff]
      %v210 = vld [vmem:[%s197 + $0x10] sm:$0xff]
      %v211 = vld [vmem:[%s197 + $0x18] sm:$0xff]
      %v212 = vld [vmem:[%s197 + $0x20] sm:$0xff]
      %v213 = vld [vmem:[%s197 + $0x28] sm:$0xff]
      %v214 = vld [vmem:[%s197 + $0x30] sm:$0xff]
      %v215 = vld [vmem:[%s197 + $0x38] sm:$0xff]
      %v216 = vld [vmem:[%s197 + $0x40] sm:$0xff]
      %v217 = vld [vmem:[%s197 + $0x48] sm:$0xff]
      %v218 = vld [vmem:[%s197 + $0x50] sm:$0xff]
      %v219 = vld [vmem:[%s197 + $0x58] sm:$0xff]
      %v220 = vld [vmem:[%s197 + $0x60] sm:$0xff]
      %v221 = vld [vmem:[%s197 + $0x68] sm:$0xff]
      %v222 = vld [vmem:[%s197 + $0x70] sm:$0xff]
      %v223 = vld [vmem:[%s197 + $0x78] sm:$0xff]
      %v224 = vld [vmem:[%s197 + $0x80] sm:$0xff]
      %v225 = vld [vmem:[%s197 + $0x88] sm:$0xff]
      %v226 = vld [vmem:[%s197 + $0x90] sm:$0x1]
      %v227 = vpack.c.bf16 %v209, %v208
      %v228 = vpack.c.bf16 %v211, %v210
      %v229 = vpack.c.bf16 %v213, %v212
      %v230 = vpack.c.bf16 %v215, %v214
      %v231 = vpack.c.bf16 %v217, %v216
      %v232 = vpack.c.bf16 %v219, %v218
      %v233 = vpack.c.bf16 %v221, %v220
      %v234 = vpack.c.bf16 %v223, %v222
      %v235 = vpack.c.bf16 %v225, %v224
      %v236 = vpack.c.bf16 %v226, %v226
      %v237 = vld [vmem:[%s1] sm:$0xf]
      %v238 = vld [vmem:[%s1 + $0x4] sm:$0xf]
      %v239 = vld [vmem:[%s1 + $0x8] sm:$0xf]
      %v240 = vld [vmem:[%s1 + $0xc] sm:$0xf]
      %v241 = vld [vmem:[%s1 + $0x10] sm:$0xf]
      %v242 = vld [vmem:[%s1 + $0x14] sm:$0xf]
      %v243 = vld [vmem:[%s1 + $0x18] sm:$0xf]
      %v244 = vld [vmem:[%s1 + $0x1c] sm:$0xf]
      %vm245 = vsmask.f32 7424
      %v247 = vshrl.u32 %v227, 16
      %v249 = vshll.u32 %v227, 16
      %v251 = vrot.slane %v249, 1
      %v252 = vor.u32 %v247, %v251
      %v254 = vshll.u32 %v228, 16
      %v256 = vrot.slane %v254, 1
      %v257 = vsel %vm245, %v252, %v256
      %v258 = vshrl.u32 %v228, 16
      %v260 = vor.u32 %v258, %v256
      %v262 = vshll.u32 %v229, 16
      %v264 = vrot.slane %v262, 1
      %v265 = vsel %vm245, %v260, %v264
      %v266 = vshrl.u32 %v229, 16
      %v268 = vor.u32 %v266, %v264
      %v270 = vshll.u32 %v230, 16
      %v272 = vrot.slane %v270, 1
      %v273 = vsel %vm245, %v268, %v272
      %v274 = vshrl.u32 %v230, 16
      %v276 = vor.u32 %v274, %v272
      %v278 = vshll.u32 %v231, 16
      %v280 = vrot.slane %v278, 1
      %v281 = vsel %vm245, %v276, %v280
      %v282 = vshrl.u32 %v231, 16
      %v284 = vor.u32 %v282, %v280
      %v286 = vshll.u32 %v232, 16
      %v288 = vrot.slane %v286, 1
      %v289 = vsel %vm245, %v284, %v288
      %v290 = vshrl.u32 %v232, 16
      %v292 = vor.u32 %v290, %v288
      %v294 = vshll.u32 %v233, 16
      %v296 = vrot.slane %v294, 1
      %v297 = vsel %vm245, %v292, %v296
      %v298 = vshrl.u32 %v233, 16
      %v300 = vor.u32 %v298, %v296
      %v302 = vshll.u32 %v234, 16
      %v304 = vrot.slane %v302, 1
      %v305 = vsel %vm245, %v300, %v304
      %v306 = vshrl.u32 %v234, 16
      %v308 = vor.u32 %v306, %v304
      %v310 = vshll.u32 %v235, 16
      %v312 = vrot.slane %v310, 1
      %v313 = vsel %vm245, %v308, %v312
      %v316 = vunpack.c.l.b16 %v239
      %v317 = vunpack.c.l.b16 %v240
      %v318 = vpack.c.b16 %v317, %v316
      %vm320 = vcmask 130048
      %v322 = vsel %vm320, %v257, 0
      %v325 = vsel %vm320, %v265, 0
      %v328 = vsel %vm320, %v273, 0
      %v331 = vsel %vm320, %v281, 0
      %v334 = vsel %vm320, %v289, 0
      %v337 = vsel %vm320, %v297, 0
      %v340 = vsel %vm320, %v305, 0
      %v343 = vsel %vm320, %v313, 0
      %345 = vmatprep.subr.bf16.mxu0 0
      %346 = vmatpush1.bf16.msra.mxu0 %v318
      %347 = vmatprep.subr.bf16.mxu0 0
      %348 = vmatpush1.bf16.msra.mxu0 0
      %349 = vmatprep.subr.bf16.mxu0 0
      %350 = vmatpush1.bf16.msra.mxu0 0
      %351 = vmatprep.subr.bf16.mxu0 0
      %352 = vmatpush1.bf16.msra.mxu0 0
      %353 = vmatprep.subr.bf16.mxu0 0
      %354 = vmatpush1.bf16.msra.mxu0 0
      %355 = vmatprep.subr.bf16.mxu0 0
      %356 = vmatpush1.bf16.msra.mxu0 0
      %357 = vmatprep.subr.bf16.mxu0 0
      %358 = vmatpush1.bf16.msra.mxu0 0
      %359 = vmatprep.subr.bf16.mxu0 0
      %360 = vmatpush1.bf16.msra.mxu0 0
      %361 = vmatprep.subr.bf16.mxu0 0
      %362 = vmatpush1.bf16.msra.mxu0 0
      %363 = vmatprep.subr.bf16.mxu0 0
      %364 = vmatpush1.bf16.msra.mxu0 0
      %365 = vmatprep.subr.bf16.mxu0 0
      %366 = vmatpush1.bf16.msra.mxu0 0
      %367 = vmatprep.subr.bf16.mxu0 0
      %368 = vmatpush1.bf16.msra.mxu0 0
      %369 = vmatprep.subr.bf16.mxu0 0
      %370 = vmatpush1.bf16.msra.mxu0 0
      %371 = vmatprep.subr.bf16.mxu0 0
      %372 = vmatpush1.bf16.msra.mxu0 0
      %373 = vmatprep.subr.bf16.mxu0 0
      %374 = vmatpush1.bf16.msra.mxu0 0
      %375 = vmatprep.subr.bf16.mxu0 0
      %376 = vmatpush1.bf16.msra.mxu0 0
      %377 = vmatprep.mubr.bf16.mxu0 0
      %378 = vmatmul.mubr.bf16.gmra.mrb[0].mxu0 %v322
      %v379 = vpop.f32.mrb[0].mxu0
      %v380 = vadd.f32 0.0, %v379
      %v381 = vpop.f32.mrb[0].mxu0
      %v382 = vpop.f32.mrb[0].mxu0
      %v383 = vadd.f32 0.0, %v382
      %v384 = vpop.f32.mrb[0].mxu0
      %385 = vmatprep.mubr.bf16.mxu0 0
      %386 = vmatmul.mubr.bf16.gmra.mrb[0].mxu0 %v325
      %v387 = vpop.f32.mrb[0].mxu0
      %v388 = vadd.f32 0.0, %v387
      %v389 = vpop.f32.mrb[0].mxu0
      %v390 = vpop.f32.mrb[0].mxu0
      %v391 = vadd.f32 0.0, %v390
      %v392 = vpop.f32.mrb[0].mxu0
      %393 = vmatprep.mubr.bf16.mxu0 0
      %394 = vmatmul.mubr.bf16.gmra.mrb[0].mxu0 %v328
      %v395 = vpop.f32.mrb[0].mxu0
      %v396 = vadd.f32 0.0, %v395
      %v397 = vpop.f32.mrb[0].mxu0
      %v398 = vpop.f32.mrb[0].mxu0
      %v399 = vadd.f32 0.0, %v398
      %v400 = vpop.f32.mrb[0].mxu0
      %401 = vmatprep.mubr.bf16.mxu0 0
      %402 = vmatmul.mubr.bf16.gmra.mrb[0].mxu0 %v331
      %v403 = vpop.f32.mrb[0].mxu0
      %v404 = vadd.f32 0.0, %v403
      %v405 = vpop.f32.mrb[0].mxu0
      %v406 = vpop.f32.mrb[0].mxu0
      %v407 = vadd.f32 0.0, %v406
      %v408 = vpop.f32.mrb[0].mxu0
      %409 = vmatprep.mubr.bf16.mxu0 0
      %410 = vmatmul.mubr.bf16.gmra.mrb[0].mxu0 %v334
      %v411 = vpop.f32.mrb[0].mxu0
      %v412 = vadd.f32 0.0, %v411
      %v413 = vpop.f32.mrb[0].mxu0
      %v414 = vpop.f32.mrb[0].mxu0
      %v415 = vadd.f32 0.0, %v414
      %v416 = vpop.f32.mrb[0].mxu0
      %417 = vmatprep.mubr.bf16.mxu0 0
      %418 = vmatmul.mubr.bf16.gmra.mrb[0].mxu0 %v337
      %v419 = vpop.f32.mrb[0].mxu0
      %v420 = vadd.f32 0.0, %v419
      %v421 = vpop.f32.mrb[0].mxu0
      %v422 = vpop.f32.mrb[0].mxu0
      %v423 = vadd.f32 0.0, %v422
      %v424 = vpop.f32.mrb[0].mxu0
      %425 = vmatprep.mubr.bf16.mxu0 0
      %426 = vmatmul.mubr.bf16.gmra.mrb[0].mxu0 %v340
      %v427 = vpop.f32.mrb[0].mxu0
      %v428 = vadd.f32 0.0, %v427
      %v429 = vpop.f32.mrb[0].mxu0
      %v430 = vpop.f32.mrb[0].mxu0
      %v431 = vadd.f32 0.0, %v430
      %v432 = vpop.f32.mrb[0].mxu0
      %433 = vmatprep.mubr.bf16.mxu0 0
      %434 = vmatmul.mubr.bf16.gmra.mrb[0].mxu0 %v343
      %v435 = vpop.f32.mrb[0].mxu0
      %v436 = vadd.f32 0.0, %v435
      %v437 = vpop.f32.mrb[0].mxu0
      %v438 = vpop.f32.mrb[0].mxu0
      %v439 = vadd.f32 0.0, %v438
      %v440 = vpop.f32.mrb[0].mxu0
      %441 = vdwg.mxu0
      %v444 = vunpack.c.l.b16 %v237
      %v445 = vunpack.c.l.b16 %v238
      %v446 = vpack.c.b16 %v445, %v444
      %v448 = vsel %vm320, %v227, 0
      %v450 = vsel %vm320, %v228, 0
      %v452 = vsel %vm320, %v229, 0
      %v454 = vsel %vm320, %v230, 0
      %v456 = vsel %vm320, %v231, 0
      %v458 = vsel %vm320, %v232, 0
      %v460 = vsel %vm320, %v233, 0
      %v462 = vsel %vm320, %v234, 0
      %464 = vmatprep.subr.bf16.mxu0 0
      %465 = vmatpush1.bf16.msra.mxu0 %v446
      %466 = vmatprep.subr.bf16.mxu0 0
      %467 = vmatpush1.bf16.msra.mxu0 0
      %468 = vmatprep.subr.bf16.mxu0 0
      %469 = vmatpush1.bf16.msra.mxu0 0
      %470 = vmatprep.subr.bf16.mxu0 0
      %471 = vmatpush1.bf16.msra.mxu0 0
      %472 = vmatprep.subr.bf16.mxu0 0
      %473 = vmatpush1.bf16.msra.mxu0 0
      %474 = vmatprep.subr.bf16.mxu0 0
      %475 = vmatpush1.bf16.msra.mxu0 0
      %476 = vmatprep.subr.bf16.mxu0 0
      %477 = vmatpush1.bf16.msra.mxu0 0
      %478 = vmatprep.subr.bf16.mxu0 0
      %479 = vmatpush1.bf16.msra.mxu0 0
      %480 = vmatprep.subr.bf16.mxu0 0
      %481 = vmatpush1.bf16.msra.mxu0 0
      %482 = vmatprep.subr.bf16.mxu0 0
      %483 = vmatpush1.bf16.msra.mxu0 0
      %484 = vmatprep.subr.bf16.mxu0 0
      %485 = vmatpush1.bf16.msra.mxu0 0
      %486 = vmatprep.subr.bf16.mxu0 0
      %487 = vmatpush1.bf16.msra.mxu0 0
      %488 = vmatprep.subr.bf16.mxu0 0
      %489 = vmatpush1.bf16.msra.mxu0 0
      %490 = vmatprep.subr.bf16.mxu0 0
      %491 = vmatpush1.bf16.msra.mxu0 0
      %492 = vmatprep.subr.bf16.mxu0 0
      %493 = vmatpush1.bf16.msra.mxu0 0
      %494 = vmatprep.subr.bf16.mxu0 0
      %495 = vmatpush1.bf16.msra.mxu0 0
      %496 = vmatprep.mubr.bf16.mxu0 0
      %497 = vmatmul.mubr.bf16.gmra.mrb[0].mxu0 %v448
      %v498 = vpop.f32.mrb[0].mxu0
      %v499 = vadd.f32 %v380, %v498
      %v500 = vpop.f32.mrb[0].mxu0
      %v501 = vpop.f32.mrb[0].mxu0
      %v502 = vadd.f32 %v383, %v501
      %v503 = vpop.f32.mrb[0].mxu0
      %504 = vmatprep.mubr.bf16.mxu0 0
      %505 = vmatmul.mubr.bf16.gmra.mrb[0].mxu0 %v450
      %v506 = vpop.f32.mrb[0].mxu0
      %v507 = vadd.f32 %v388, %v506
      %v508 = vpop.f32.mrb[0].mxu0
      %v509 = vpop.f32.mrb[0].mxu0
      %v510 = vadd.f32 %v391, %v509
      %v511 = vpop.f32.mrb[0].mxu0
      %512 = vmatprep.mubr.bf16.mxu0 0
      %513 = vmatmul.mubr.bf16.gmra.mrb[0].mxu0 %v452
      %v514 = vpop.f32.mrb[0].mxu0
      %v515 = vadd.f32 %v396, %v514
      %v516 = vpop.f32.mrb[0].mxu0
      %v517 = vpop.f32.mrb[0].mxu0
      %v518 = vadd.f32 %v399, %v517
      %v519 = vpop.f32.mrb[0].mxu0
      %520 = vmatprep.mubr.bf16.mxu0 0
      %521 = vmatmul.mubr.bf16.gmra.mrb[0].mxu0 %v454
      %v522 = vpop.f32.mrb[0].mxu0
      %v523 = vadd.f32 %v404, %v522
      %v524 = vpop.f32.mrb[0].mxu0
      %v525 = vpop.f32.mrb[0].mxu0
      %v526 = vadd.f32 %v407, %v525
      %v527 = vpop.f32.mrb[0].mxu0
      %528 = vmatprep.mubr.bf16.mxu0 0
      %529 = vmatmul.mubr.bf16.gmra.mrb[0].mxu0 %v456
      %v530 = vpop.f32.mrb[0].mxu0
      %v531 = vadd.f32 %v412, %v530
      %v532 = vpop.f32.mrb[0].mxu0
      %v533 = vpop.f32.mrb[0].mxu0
      %v534 = vadd.f32 %v415, %v533
      %v535 = vpop.f32.mrb[0].mxu0
      %536 = vmatprep.mubr.bf16.mxu0 0
      %537 = vmatmul.mubr.bf16.gmra.mrb[0].mxu0 %v458
      %v538 = vpop.f32.mrb[0].mxu0
      %v539 = vadd.f32 %v420, %v538
      %v540 = vpop.f32.mrb[0].mxu0
      %v541 = vpop.f32.mrb[0].mxu0
      %v542 = vadd.f32 %v423, %v541
      %v543 = vpop.f32.mrb[0].mxu0
      %544 = vmatprep.mubr.bf16.mxu0 0
      %545 = vmatmul.mubr.bf16.gmra.mrb[0].mxu0 %v460
      %v546 = vpop.f32.mrb[0].mxu0
      %v547 = vadd.f32 %v428, %v546
      %v548 = vpop.f32.mrb[0].mxu0
      %v549 = vpop.f32.mrb[0].mxu0
      %v550 = vadd.f32 %v431, %v549
      %v551 = vpop.f32.mrb[0].mxu0
      %552 = vmatprep.mubr.bf16.mxu0 0
      %553 = vmatmul.mubr.bf16.gmra.mrb[0].mxu0 %v462
      %v554 = vpop.f32.mrb[0].mxu0
      %v555 = vadd.f32 %v436, %v554
      %v556 = vpop.f32.mrb[0].mxu0
      %v557 = vpop.f32.mrb[0].mxu0
      %v558 = vadd.f32 %v439, %v557
      %v559 = vpop.f32.mrb[0].mxu0
      %560 = vdwg.mxu0
      %v563 = vunpack.c.l.b16 %v241
      %v564 = vunpack.c.l.b16 %v242
      %v565 = vpack.c.b16 %v564, %v563
      %v567 = vsel %vm320, %v235, 0
      %569 = vmatprep.subr.bf16.mxu0 0
      %570 = vmatpush1.bf16.msra.mxu0 %v565
      %571 = vmatprep.subr.bf16.mxu0 0
      %572 = vmatpush1.bf16.msra.mxu0 0
      %573 = vmatprep.subr.bf16.mxu0 0
      %574 = vmatpush1.bf16.msra.mxu0 0
      %575 = vmatprep.subr.bf16.mxu0 0
      %576 = vmatpush1.bf16.msra.mxu0 0
      %577 = vmatprep.subr.bf16.mxu0 0
      %578 = vmatpush1.bf16.msra.mxu0 0
      %579 = vmatprep.subr.bf16.mxu0 0
      %580 = vmatpush1.bf16.msra.mxu0 0
      %581 = vmatprep.subr.bf16.mxu0 0
      %582 = vmatpush1.bf16.msra.mxu0 0
      %583 = vmatprep.subr.bf16.mxu0 0
      %584 = vmatpush1.bf16.msra.mxu0 0
      %585 = vmatprep.subr.bf16.mxu0 0
      %586 = vmatpush1.bf16.msra.mxu0 0
      %587 = vmatprep.subr.bf16.mxu0 0
      %588 = vmatpush1.bf16.msra.mxu0 0
      %589 = vmatprep.subr.bf16.mxu0 0
      %590 = vmatpush1.bf16.msra.mxu0 0
      %591 = vmatprep.subr.bf16.mxu0 0
      %592 = vmatpush1.bf16.msra.mxu0 0
      %593 = vmatprep.subr.bf16.mxu0 0
      %594 = vmatpush1.bf16.msra.mxu0 0
      %595 = vmatprep.subr.bf16.mxu0 0
      %596 = vmatpush1.bf16.msra.mxu0 0
      %597 = vmatprep.subr.bf16.mxu0 0
      %598 = vmatpush1.bf16.msra.mxu0 0
      %599 = vmatprep.subr.bf16.mxu0 0
      %600 = vmatpush1.bf16.msra.mxu0 0
      %601 = vmatprep.mubr.bf16.mxu0 0
      %602 = vmatmul.mubr.bf16.gmra.mrb[0].mxu0 %v450
      %v603 = vpop.f32.mrb[0].mxu0
      %v604 = vadd.f32 0.0, %v603
      %v605 = vpop.f32.mrb[0].mxu0
      %v606 = vpop.f32.mrb[0].mxu0
      %v607 = vadd.f32 0.0, %v606
      %v608 = vpop.f32.mrb[0].mxu0
      %609 = vmatprep.mubr.bf16.mxu0 0
      %610 = vmatmul.mubr.bf16.gmra.mrb[0].mxu0 %v452
      %v611 = vpop.f32.mrb[0].mxu0
      %v612 = vadd.f32 0.0, %v611
      %v613 = vpop.f32.mrb[0].mxu0
      %v614 = vpop.f32.mrb[0].mxu0
      %v615 = vadd.f32 0.0, %v614
      %v616 = vpop.f32.mrb[0].mxu0
      %617 = vmatprep.mubr.bf16.mxu0 0
      %618 = vmatmul.mubr.bf16.gmra.mrb[0].mxu0 %v454
      %v619 = vpop.f32.mrb[0].mxu0
      %v620 = vadd.f32 0.0, %v619
      %v621 = vpop.f32.mrb[0].mxu0
      %v622 = vpop.f32.mrb[0].mxu0
      %v623 = vadd.f32 0.0, %v622
      %v624 = vpop.f32.mrb[0].mxu0
      %625 = vmatprep.mubr.bf16.mxu0 0
      %626 = vmatmul.mubr.bf16.gmra.mrb[0].mxu0 %v456
      %v627 = vpop.f32.mrb[0].mxu0
      %v628 = vadd.f32 0.0, %v627
      %v629 = vpop.f32.mrb[0].mxu0
      %v630 = vpop.f32.mrb[0].mxu0
      %v631 = vadd.f32 0.0, %v630
      %v632 = vpop.f32.mrb[0].mxu0
      %633 = vmatprep.mubr.bf16.mxu0 0
      %634 = vmatmul.mubr.bf16.gmra.mrb[0].mxu0 %v458
      %v635 = vpop.f32.mrb[0].mxu0
      %v636 = vadd.f32 0.0, %v635
      %v637 = vpop.f32.mrb[0].mxu0
      %v638 = vpop.f32.mrb[0].mxu0
      %v639 = vadd.f32 0.0, %v638
      %v640 = vpop.f32.mrb[0].mxu0
      %641 = vmatprep.mubr.bf16.mxu0 0
      %642 = vmatmul.mubr.bf16.gmra.mrb[0].mxu0 %v460
      %v643 = vpop.f32.mrb[0].mxu0
      %v644 = vadd.f32 0.0, %v643
      %v645 = vpop.f32.mrb[0].mxu0
      %v646 = vpop.f32.mrb[0].mxu0
      %v647 = vadd.f32 0.0, %v646
      %v648 = vpop.f32.mrb[0].mxu0
      %649 = vmatprep.mubr.bf16.mxu0 0
      %650 = vmatmul.mubr.bf16.gmra.mrb[0].mxu0 %v462
      %v651 = vpop.f32.mrb[0].mxu0
      %v652 = vadd.f32 0.0, %v651
      %v653 = vpop.f32.mrb[0].mxu0
      %v654 = vpop.f32.mrb[0].mxu0
      %v655 = vadd.f32 0.0, %v654
      %v656 = vpop.f32.mrb[0].mxu0
      %657 = vmatprep.mubr.bf16.mxu0 0
      %658 = vmatmul.mubr.bf16.gmra.mrb[0].mxu0 %v567
      %v659 = vpop.f32.mrb[0].mxu0
      %v660 = vadd.f32 0.0, %v659
      %v661 = vpop.f32.mrb[0].mxu0
      %v662 = vpop.f32.mrb[0].mxu0
      %v663 = vadd.f32 0.0, %v662
      %v664 = vpop.f32.mrb[0].mxu0
      %665 = vdwg.mxu0
      %v666 = vadd.f32 %v499, %v604
      %v667 = vadd.f32 %v502, %v607
      %v668 = vadd.f32 %v507, %v612
      %v669 = vadd.f32 %v510, %v615
      %v670 = vadd.f32 %v515, %v620
      %v671 = vadd.f32 %v518, %v623
      %v672 = vadd.f32 %v523, %v628
      %v673 = vadd.f32 %v526, %v631
      %v674 = vadd.f32 %v531, %v636
      %v675 = vadd.f32 %v534, %v639
      %v676 = vadd.f32 %v539, %v644
      %v677 = vadd.f32 %v542, %v647
      %v678 = vadd.f32 %v547, %v652
      %v679 = vadd.f32 %v550, %v655
      %v680 = vadd.f32 %v555, %v660
      %v681 = vadd.f32 %v558, %v663
      %v682 = vshrl.u32 %v235, 16
      %v684 = vor.u32 %v682, %v312
      %v686 = vshll.u32 %v236, 16
      %v688 = vrot.slane %v686, 1
      %v689 = vsel %vm245, %v684, %v688
      %v692 = vunpack.c.l.b16 %v243
      %v693 = vunpack.c.l.b16 %v244
      %v694 = vpack.c.b16 %v693, %v692
      %v697 = vsel %vm320, %v689, 0
      %699 = vmatprep.subr.bf16.mxu0 0
      %700 = vmatpush1.bf16.msra.mxu0 %v694
      %701 = vmatprep.subr.bf16.mxu0 0
      %702 = vmatpush1.bf16.msra.mxu0 0
      %703 = vmatprep.subr.bf16.mxu0 0
      %704 = vmatpush1.bf16.msra.mxu0 0
      %705 = vmatprep.subr.bf16.mxu0 0
      %706 = vmatpush1.bf16.msra.mxu0 0
      %707 = vmatprep.subr.bf16.mxu0 0
      %708 = vmatpush1.bf16.msra.mxu0 0
      %709 = vmatprep.subr.bf16.mxu0 0
      %710 = vmatpush1.bf16.msra.mxu0 0
      %711 = vmatprep.subr.bf16.mxu0 0
      %712 = vmatpush1.bf16.msra.mxu0 0
      %713 = vmatprep.subr.bf16.mxu0 0
      %714 = vmatpush1.bf16.msra.mxu0 0
      %715 = vmatprep.subr.bf16.mxu0 0
      %716 = vmatpush1.bf16.msra.mxu0 0
      %717 = vmatprep.subr.bf16.mxu0 0
      %718 = vmatpush1.bf16.msra.mxu0 0
      %719 = vmatprep.subr.bf16.mxu0 0
      %720 = vmatpush1.bf16.msra.mxu0 0
      %721 = vmatprep.subr.bf16.mxu0 0
      %722 = vmatpush1.bf16.msra.mxu0 0
      %723 = vmatprep.subr.bf16.mxu0 0
      %724 = vmatpush1.bf16.msra.mxu0 0
      %725 = vmatprep.subr.bf16.mxu0 0
      %726 = vmatpush1.bf16.msra.mxu0 0
      %727 = vmatprep.subr.bf16.mxu0 0
      %728 = vmatpush1.bf16.msra.mxu0 0
      %729 = vmatprep.subr.bf16.mxu0 0
      %730 = vmatpush1.bf16.msra.mxu0 0
      %731 = vmatprep.mubr.bf16.mxu0 0
      %732 = vmatmul.mubr.bf16.gmra.mrb[0].mxu0 %v325
      %v733 = vpop.f32.mrb[0].mxu0
      %v734 = vadd.f32 0.0, %v733
      %v735 = vpop.f32.mrb[0].mxu0
      %v736 = vpop.f32.mrb[0].mxu0
      %v737 = vadd.f32 0.0, %v736
      %v738 = vpop.f32.mrb[0].mxu0
      %739 = vmatprep.mubr.bf16.mxu0 0
      %740 = vmatmul.mubr.bf16.gmra.mrb[0].mxu0 %v328
      %v741 = vpop.f32.mrb[0].mxu0
      %v742 = vadd.f32 0.0, %v741
      %v743 = vpop.f32.mrb[0].mxu0
      %v744 = vpop.f32.mrb[0].mxu0
      %v745 = vadd.f32 0.0, %v744
      %v746 = vpop.f32.mrb[0].mxu0
      %747 = vmatprep.mubr.bf16.mxu0 0
      %748 = vmatmul.mubr.bf16.gmra.mrb[0].mxu0 %v331
      %v749 = vpop.f32.mrb[0].mxu0
      %v750 = vadd.f32 0.0, %v749
      %v751 = vpop.f32.mrb[0].mxu0
      %v752 = vpop.f32.mrb[0].mxu0
      %v753 = vadd.f32 0.0, %v752
      %v754 = vpop.f32.mrb[0].mxu0
      %755 = vmatprep.mubr.bf16.mxu0 0
      %756 = vmatmul.mubr.bf16.gmra.mrb[0].mxu0 %v334
      %v757 = vpop.f32.mrb[0].mxu0
      %v758 = vadd.f32 0.0, %v757
      %v759 = vpop.f32.mrb[0].mxu0
      %v760 = vpop.f32.mrb[0].mxu0
      %v761 = vadd.f32 0.0, %v760
      %v762 = vpop.f32.mrb[0].mxu0
      %763 = vmatprep.mubr.bf16.mxu0 0
      %764 = vmatmul.mubr.bf16.gmra.mrb[0].mxu0 %v337
      %v765 = vpop.f32.mrb[0].mxu0
      %v766 = vadd.f32 0.0, %v765
      %v767 = vpop.f32.mrb[0].mxu0
      %v768 = vpop.f32.mrb[0].mxu0
      %v769 = vadd.f32 0.0, %v768
      %v770 = vpop.f32.mrb[0].mxu0
      %771 = vmatprep.mubr.bf16.mxu0 0
      %772 = vmatmul.mubr.bf16.gmra.mrb[0].mxu0 %v340
      %v773 = vpop.f32.mrb[0].mxu0
      %v774 = vadd.f32 0.0, %v773
      %v775 = vpop.f32.mrb[0].mxu0
      %v776 = vpop.f32.mrb[0].mxu0
      %v777 = vadd.f32 0.0, %v776
      %v778 = vpop.f32.mrb[0].mxu0
      %779 = vmatprep.mubr.bf16.mxu0 0
      %780 = vmatmul.mubr.bf16.gmra.mrb[0].mxu0 %v343
      %v781 = vpop.f32.mrb[0].mxu0
      %v782 = vadd.f32 0.0, %v781
      %v783 = vpop.f32.mrb[0].mxu0
      %v784 = vpop.f32.mrb[0].mxu0
      %v785 = vadd.f32 0.0, %v784
      %v786 = vpop.f32.mrb[0].mxu0
      %787 = vmatprep.mubr.bf16.mxu0 0
      %788 = vmatmul.mubr.bf16.gmra.mrb[0].mxu0 %v697
      %v789 = vpop.f32.mrb[0].mxu0
      %v790 = vadd.f32 0.0, %v789
      %v791 = vpop.f32.mrb[0].mxu0
      %v792 = vpop.f32.mrb[0].mxu0
      %v793 = vadd.f32 0.0, %v792
      %v794 = vpop.f32.mrb[0].mxu0
      %795 = vdwg.mxu0
      %v796 = vadd.f32 %v666, %v734
      %v797 = vadd.f32 %v667, %v737
      %v798 = vadd.f32 %v668, %v742
      %v799 = vadd.f32 %v669, %v745
      %v800 = vadd.f32 %v670, %v750
      %v801 = vadd.f32 %v671, %v753
      %v802 = vadd.f32 %v672, %v758
      %v803 = vadd.f32 %v673, %v761
      %v804 = vadd.f32 %v674, %v766
      %v805 = vadd.f32 %v675, %v769
      %v806 = vadd.f32 %v676, %v774
      %v807 = vadd.f32 %v677, %v777
      %v808 = vadd.f32 %v678, %v782
      %v809 = vadd.f32 %v679, %v785
      %v810 = vadd.f32 %v680, %v790
      %v811 = vadd.f32 %v681, %v793
      %v812 = vld [vmem:[%s2] sm:$0x1]
      %v814 = vlaneseq
      %v815 = vshrl.u32 %v814, 7
      %v816 = vsub.s32 0, %v815
      %v817 = vrot.slane %v812, %v816
      %v819 = vadd.f32 %v796, %v817
      %v820 = vadd.f32 %v797, %v817
      %v821 = vadd.f32 %v798, %v817
      %v822 = vadd.f32 %v799, %v817
      %v823 = vadd.f32 %v800, %v817
      %v824 = vadd.f32 %v801, %v817
      %v825 = vadd.f32 %v802, %v817
      %v826 = vadd.f32 %v803, %v817
      %v827 = vadd.f32 %v804, %v817
      %v828 = vadd.f32 %v805, %v817
      %v829 = vadd.f32 %v806, %v817
      %v830 = vadd.f32 %v807, %v817
      %v831 = vadd.f32 %v808, %v817
      %v832 = vadd.f32 %v809, %v817
      %v833 = vadd.f32 %v810, %v817
      %v834 = vadd.f32 %v811, %v817
      %v835 = vmax.f32 %v819, 0.0
      %v836 = vmax.f32 %v820, 0.0
      %v837 = vmax.f32 %v821, 0.0
      %v838 = vmax.f32 %v822, 0.0
      %v839 = vmax.f32 %v823, 0.0
      %v840 = vmax.f32 %v824, 0.0
      %v841 = vmax.f32 %v825, 0.0
      %v842 = vmax.f32 %v826, 0.0
      %v843 = vmax.f32 %v827, 0.0
      %v844 = vmax.f32 %v828, 0.0
      %v845 = vmax.f32 %v829, 0.0
      %v846 = vmax.f32 %v830, 0.0
      %v847 = vmax.f32 %v831, 0.0
      %v848 = vmax.f32 %v832, 0.0
      %v849 = vmax.f32 %v833, 0.0
      %v850 = vmax.f32 %v834, 0.0
      %v851 = vpack.c.bf16 %v836, %v835
      %v852 = vpack.c.bf16 %v838, %v837
      %v853 = vpack.c.bf16 %v840, %v839
      %v854 = vpack.c.bf16 %v842, %v841
      %v855 = vpack.c.bf16 %v844, %v843
      %v856 = vpack.c.bf16 %v846, %v845
      %v857 = vpack.c.bf16 %v848, %v847
      %v858 = vpack.c.bf16 %v850, %v849
      %v867 = vunpack.c.l.b16 %v851
      %v868 = vunpack.c.h.b16 %v851
      %v869 = vunpack.c.l.b16 %v852
      %v870 = vunpack.c.h.b16 %v852
      %v871 = vunpack.c.l.b16 %v853
      %v872 = vunpack.c.h.b16 %v853
      %v873 = vunpack.c.l.b16 %v854
      %v874 = vunpack.c.h.b16 %v854
      %v875 = vunpack.c.l.b16 %v855
      %v876 = vunpack.c.h.b16 %v855
      %v877 = vunpack.c.l.b16 %v856
      %v878 = vunpack.c.h.b16 %v856
      %v879 = vunpack.c.l.b16 %v857
      %v880 = vunpack.c.h.b16 %v857
      %v881 = vunpack.c.l.b16 %v858
      %v882 = vunpack.c.h.b16 %v858
      %v883 = vpack.c.b16 %v867, %v867
      %v884 = vpack.c.b16 %v868, %v868
      %v885 = vpack.c.b16 %v869, %v869
      %v886 = vpack.c.b16 %v870, %v870
      %v887 = vpack.c.b16 %v871, %v871
      %v888 = vpack.c.b16 %v872, %v872
      %v889 = vpack.c.b16 %v873, %v873
      %v890 = vpack.c.b16 %v874, %v874
      %v891 = vpack.c.b16 %v875, %v875
      %v892 = vpack.c.b16 %v876, %v876
      %v893 = vpack.c.b16 %v877, %v877
      %v894 = vpack.c.b16 %v878, %v878
      %v895 = vpack.c.b16 %v879, %v879
      %v896 = vpack.c.b16 %v880, %v880
      %v897 = vpack.c.b16 %v881, %v881
      %v898 = vpack.c.b16 %v882, %v882
      %915 = vst [vmem:[%s206] sm:$0xf] %v883
      %916 = vst [vmem:[%s206 + $0x4] sm:$0xf] %v884
      %917 = vst [vmem:[%s206 + $0x8] sm:$0xf] %v885
      %918 = vst [vmem:[%s206 + $0xc] sm:$0xf] %v886
      %919 = vst [vmem:[%s206 + $0x10] sm:$0xf] %v887
      %920 = vst [vmem:[%s206 + $0x14] sm:$0xf] %v888
      %921 = vst [vmem:[%s206 + $0x18] sm:$0xf] %v889
      %922 = vst [vmem:[%s206 + $0x1c] sm:$0xf] %v890
      %923 = vst [vmem:[%s206 + $0x20] sm:$0xf] %v891
      %924 = vst [vmem:[%s206 + $0x24] sm:$0xf] %v892
      %925 = vst [vmem:[%s206 + $0x28] sm:$0xf] %v893
      %926 = vst [vmem:[%s206 + $0x2c] sm:$0xf] %v894
      %927 = vst [vmem:[%s206 + $0x30] sm:$0xf] %v895
      %928 = vst [vmem:[%s206 + $0x34] sm:$0xf] %v896
      %929 = vst [vmem:[%s206 + $0x38] sm:$0xf] %v897
      %930 = vst [vmem:[%s206 + $0x3c] sm:$0xf] %v898
      %p931 = scmp.lt.s32.totalorder %s18, 1
      %s932 = scalar_select %p931, %s18, 1
      %p933 = scmp.lt.s32.totalorder %s19, 0
      %s934 = scalar_select %p933, %s19, 0
      %s935 = smul.addr %s934, 16
      %s936 = smul.addr %s932, 16
      %s937 = sadd.s32 %s935, %s936
      %s938 = smul.addr %s937, 4
      %s939 = scalar_lea.vmem %s3, %s938
      // Predicated region
      $region33: #{encoder_forward_pallas.5} parent=31 // pred_check
        %p940 = pneg %p116
      $region34: #{encoder_forward_pallas.5} parent=31 // pred_check_branch
        %942 = sbr.rel (%p940) target = $region36
      $region35: #{encoder_forward_pallas.5} parent=31 // pred_region
        _
      $region36: #{encoder_forward_pallas.5} parent=31 // pred_fallthru
        _
    $region32: #{encoder_forward_pallas.5} parent=5 // pred_fallthru
      _
    %p943 = scmp.le.s32.totalorder 2, %s9
    // Predicated region
    $region37: #{encoder_forward_pallas.5} parent=5 // pred_check
      %p944 = pneg %p943
    $region38: #{encoder_forward_pallas.5} parent=5 // pred_check_branch
      %946 = sbr.rel (%p944) target = $region40
    $region39: #{encoder_forward_pallas.5} parent=5 // pred_region
      %s947 = ssub.s32 %s9, 2
      // Predicated region
      $region41: #{encoder_forward_pallas.5} parent=39 // pred_check
        %p948 = pneg %p122
      $region42: #{encoder_forward_pallas.5} parent=39 // pred_check_branch
        %950 = sbr.rel (%p948) target = $region44
      $region43: #{encoder_forward_pallas.5} parent=39 // pred_region
        %p951 = scmp.lt.s32.totalorder %s20, 1
        %s952 = scalar_select %p951, %s20, 1
        %p953 = scmp.lt.s32.totalorder %s21, 0
        %s954 = scalar_select %p953, %s21, 0
        %s955 = smul.addr %s954, 16
        %s956 = smul.addr %s952, 16
        %s957 = sadd.s32 %s955, %s956
        %s958 = smul.addr %s957, 4
        %s959 = scalar_lea.vmem %s3, %s958
      $region44: #{encoder_forward_pallas.5} parent=39 // pred_fallthru
        _
    $region40: #{encoder_forward_pallas.5} parent=5 // pred_fallthru
      _
  $region6: #{encoder_forward_pallas.5} parent=0 // loop_footer
    %s13 = sadd.s32 1, %s9
  $region7: #{encoder_forward_pallas.5} parent=0 // loop_footer_branch
    %8 = sbr.rel target = $region3
  $region8: #{encoder_forward_pallas.5} parent=0 // loop_exit
    _

// kernel: encoder_forward_pallas.6
$region0: #{encoder_forward_pallas.6}
  #allocation0 [shape = 'u32[]', space=smem, size = 0x4, offset = 0x4, fixed_abs, tag = 'smem constant byte address 0x4 - core index']
  #allocation1 [shape = 'u32[144,128]{1,0:T(1,128)}', space=vmem, size = 0x12000, scoped, tag = 'internal scratch']
  %s0 = inlined_call_operand.vmem [shape: bf16[2,1,41,512], index: 0, kind: input, shape index: {}]
  %s1 = inlined_call_operand.vmem [shape: bf16[2048,128], index: 1, kind: input, shape index: {}]
  %s2 = inlined_call_operand.vmem [shape: f32[1,128], index: 2, kind: input, shape index: {}]
  %s3 = inlined_call_operand.vmem [shape: bf16[2,1,32,128], index: 3, kind: output, shape index: {}]
  %s4 = sld [smem:[#allocation0]]
  $region45: #{encoder_forward_pallas.6} parent=0
    _
  %s6 = ssub.s32 1, %s4
  %s7 = scalar_select 0, %s6, %s4
  loop: start=0, step=1, limit=4
  $region2: #{encoder_forward_pallas.6} parent=0 // loop_pre_header
    _
  $region3: #{encoder_forward_pallas.6} parent=0 // loop_header
    %s9 = sphi 0, %s13
    %p10 = scmp.ge.s32.totalorder %s9, 4
    %s16 = sphi 0, %s28
    %s17 = sphi 0, %s24
    %s18 = sphi 0, %s16
    %s19 = sphi 0, %s17
    %s20 = sphi 0, %s18
    %s21 = sphi 0, %s19
    %s33 = sphi 0, %s35
    %s36 = sphi 0, %s33
    %s37 = sphi 0, %s36
    %s53 = sphi 0, %s37
    %s57 = sphi 0, %s57
    %s59 = sphi 0, %s57
    %s60 = sphi 0, %s59
    %s74 = sphi 0, %s60
    %s78 = sphi 0, %s78
    %s80 = sphi 0, %s78
    %s81 = sphi 0, %s80
    %s95 = sphi 0, %s81
    %s103 = sphi 0, %s105
    %s106 = sphi 0, %s103
    %s107 = sphi 0, %s106
    %s123 = sphi 0, %s107
  $region4: #{encoder_forward_pallas.6} parent=0 // loop_header_branch
    %12 = sbr.rel (%p10) target = $region8
  $region5: #{encoder_forward_pallas.6} parent=0 // loop_body
    %s14 = ssub.s32 %s9, 1
    %s15 = ssub.s32 %s9, 2
    %s22 = sadd.s32 1, %s17
    %p23 = scmp.ge.s32.totalorder %s22, 1
    %s24 = scalar_select %p23, 0, %s22
    %s25 = sadd.s32 1, %s16
    %s26 = scalar_select %p23, %s25, %s16
    %p27 = scmp.ge.s32.totalorder %s26, 2
    %s28 = scalar_select %p27, 0, %s26
    %s29 = ssub.s32 %s16, %s28
    %s30 = ssub.s32 %s17, %s24
    %s31 = sor.u32 %s29, %s30
    %p32 = scmp.eq.s32.totalorder %s31, 0
    %s34 = sadd.s32 %s33, 1
    %s35 = scalar_select %p32, %s33, %s34
    %p38 = pneg %p32
    %p39 = scmp.eq.s32.totalorder %s9, 1
    %p40 = por %p38, %p39
    %p41 = scmp.ne.s32.totalorder %s33, %s36
    %p42 = scmp.eq.s32.totalorder %s9, 0
    %p43 = por %p41, %p42
    %p44 = scmp.ne.s32.totalorder %s33, %s36
    %p45 = scmp.eq.s32.totalorder %s14, 1
    %p46 = por %p44, %p45
    %p47 = scmp.ne.s32.totalorder %s36, %s37
    %p48 = scmp.eq.s32.totalorder %s14, 0
    %p49 = por %p47, %p48
    %p50 = scmp.ne.s32.totalorder %s36, %s37
    %p51 = scmp.eq.s32.totalorder %s15, 1
    %p52 = por %p50, %p51
    %p54 = scmp.ne.s32.totalorder %s37, %s53
    %p55 = scmp.eq.s32.totalorder %s15, 0
    %p56 = por %p54, %p55
    %s58 = sadd.s32 %s57, 1
    %p61 = scmp.eq.s32.totalorder %s9, 1
    %p62 = scmp.ne.s32.totalorder %s57, %s59
    %p63 = scmp.eq.s32.totalorder %s9, 0
    %p64 = por %p62, %p63
    %p65 = scmp.ne.s32.totalorder %s57, %s59
    %p66 = scmp.eq.s32.totalorder %s14, 1
    %p67 = por %p65, %p66
    %p68 = scmp.ne.s32.totalorder %s59, %s60
    %p69 = scmp.eq.s32.totalorder %s14, 0
    %p70 = por %p68, %p69
    %p71 = scmp.ne.s32.totalorder %s59, %s60
    %p72 = scmp.eq.s32.totalorder %s15, 1
    %p73 = por %p71, %p72
    %p75 = scmp.ne.s32.totalorder %s60, %s74
    %p76 = scmp.eq.s32.totalorder %s15, 0
    %p77 = por %p75, %p76
    %s79 = sadd.s32 %s78, 1
    %p82 = scmp.eq.s32.totalorder %s9, 1
    %p83 = scmp.ne.s32.totalorder %s78, %s80
    %p84 = scmp.eq.s32.totalorder %s9, 0
    %p85 = por %p83, %p84
    %p86 = scmp.ne.s32.totalorder %s78, %s80
    %p87 = scmp.eq.s32.totalorder %s14, 1
    %p88 = por %p86, %p87
    %p89 = scmp.ne.s32.totalorder %s80, %s81
    %p90 = scmp.eq.s32.totalorder %s14, 0
    %p91 = por %p89, %p90
    %p92 = scmp.ne.s32.totalorder %s80, %s81
    %p93 = scmp.eq.s32.totalorder %s15, 1
    %p94 = por %p92, %p93
    %p96 = scmp.ne.s32.totalorder %s81, %s95
    %p97 = scmp.eq.s32.totalorder %s15, 0
    %p98 = por %p96, %p97
    %s99 = ssub.s32 %s16, %s28
    %s100 = ssub.s32 %s17, %s24
    %s101 = sor.u32 %s99, %s100
    %p102 = scmp.eq.s32.totalorder %s101, 0
    %s104 = sadd.s32 %s103, 1
    %s105 = scalar_select %p102, %s103, %s104
    %p108 = pneg %p102
    %p109 = scmp.eq.s32.totalorder %s9, 1
    %p110 = por %p108, %p109
    %p111 = scmp.ne.s32.totalorder %s103, %s106
    %p112 = scmp.eq.s32.totalorder %s9, 0
    %p113 = por %p111, %p112
    %p114 = scmp.ne.s32.totalorder %s103, %s106
    %p115 = scmp.eq.s32.totalorder %s14, 1
    %p116 = por %p114, %p115
    %p117 = scmp.ne.s32.totalorder %s106, %s107
    %p118 = scmp.eq.s32.totalorder %s14, 0
    %p119 = por %p117, %p118
    %p120 = scmp.ne.s32.totalorder %s106, %s107
    %p121 = scmp.eq.s32.totalorder %s15, 1
    %p122 = por %p120, %p121
    %p124 = scmp.ne.s32.totalorder %s107, %s123
    %p125 = scmp.eq.s32.totalorder %s15, 0
    %p126 = por %p124, %p125
    %p127 = scmp.le.s32.totalorder 1, %s9
    %p128 = scmp.lt.s32.totalorder %s9, 3
    %p129 = pnand %p127, %p128
    %p130 = pneg %p129
    // Predicated region
    $region9: #{encoder_forward_pallas.6} parent=5 // pred_check
      _
    $region10: #{encoder_forward_pallas.6} parent=5 // pred_check_branch
      %132 = sbr.rel (%p129) target = $region12
    $region11: #{encoder_forward_pallas.6} parent=5 // pred_region
      %s133 = ssub.s32 %s9, 1
      // Predicated region
      $region13: #{encoder_forward_pallas.6} parent=11 // pred_check
        %p134 = pneg %p70
      $region14: #{encoder_forward_pallas.6} parent=11 // pred_check_branch
        %136 = sbr.rel (%p134) target = $region16
      $region15: #{encoder_forward_pallas.6} parent=11 // pred_region
        _
      $region16: #{encoder_forward_pallas.6} parent=11 // pred_fallthru
        _
      // Predicated region
      $region17: #{encoder_forward_pallas.6} parent=11 // pred_check
        %p137 = pneg %p91
      $region18: #{encoder_forward_pallas.6} parent=11 // pred_check_branch
        %139 = sbr.rel (%p137) target = $region20
      $region19: #{encoder_forward_pallas.6} parent=11 // pred_region
        _
      $region20: #{encoder_forward_pallas.6} parent=11 // pred_fallthru
        _
    $region12: #{encoder_forward_pallas.6} parent=5 // pred_fallthru
      _
    %p140 = scmp.lt.s32.totalorder %s9, 2
    // Predicated region
    $region21: #{encoder_forward_pallas.6} parent=5 // pred_check
      %p141 = pneg %p140
    $region22: #{encoder_forward_pallas.6} parent=5 // pred_check_branch
      %143 = sbr.rel (%p141) target = $region24
    $region23: #{encoder_forward_pallas.6} parent=5 // pred_region
      // Predicated region
      $region25: #{encoder_forward_pallas.6} parent=23 // pred_check
        %p144 = pneg %p43
      $region26: #{encoder_forward_pallas.6} parent=23 // pred_check_branch
        %146 = sbr.rel (%p144) target = $region28
      $region27: #{encoder_forward_pallas.6} parent=23 // pred_region
        %p147 = scmp.lt.s32.totalorder %s16, 1
        %s148 = scalar_select %p147, %s16, 1
        %p149 = scmp.lt.s32.totalorder %s17, 0
        %s150 = scalar_select %p149, %s17, 0
        %s151 = smul.addr %s150, 24
        %s152 = smul.addr %s148, 24
        %s153 = sadd.s32 %s151, %s152
        %s154 = smul.addr %s153, 4
        %s155 = scalar_lea.vmem %s0, %s154
      $region28: #{encoder_forward_pallas.6} parent=23 // pred_fallthru
        _
    $region24: #{encoder_forward_pallas.6} parent=5 // pred_fallthru
      _
    %p156 = scmp.le.s32.totalorder 1, %s9
    %p157 = scmp.lt.s32.totalorder %s9, 3
    %p158 = pnand %p156, %p157
    %p159 = pneg %p158
    // Predicated region
    $region29: #{encoder_forward_pallas.6} parent=5 // pred_check
      _
    $region30: #{encoder_forward_pallas.6} parent=5 // pred_check_branch
      %161 = sbr.rel (%p158) target = $region32
    $region31: #{encoder_forward_pallas.6} parent=5 // pred_region
      %s162 = ssub.s32 %s9, 1
      %p163 = scmp.lt.s32.totalorder %s18, 1
      %s164 = scalar_select %p163, %s18, 1
      %p165 = scmp.lt.s32.totalorder %s19, 0
      %s166 = scalar_select %p165, %s19, 0
      %s167 = smul.addr %s166, 24
      %s168 = smul.addr %s164, 24
      %s169 = sadd.s32 %s167, %s168
      %s170 = smul.addr %s169, 4
      %s171 = scalar_lea.vmem %s0, %s170
      %p172 = pneg %p49
      %p173 = pneg %p46
      %p174 = pneg %p70
      %p175 = pneg %p67
      %p176 = pneg %p91
      %p177 = pneg %p88
      %p178 = pneg %p119
      %p179 = pneg %p116
      %p180 = scmp.lt.s32.totalorder %s18, 1
      %s181 = scalar_select %p180, %s18, 1
      %p182 = scmp.lt.s32.totalorder %s19, 0
      %s183 = scalar_select %p182, %s19, 0
      %s184 = smul.addr %s183, 4
      %s185 = smul.addr %s181, 4
      %s186 = sadd.s32 %s184, %s185
      %s187 = smul.addr %s186, 4
      %s188 = scalar_lea.vmem %s3, %s187
      %p189 = scmp.lt.s32.totalorder %s18, 1
      %s190 = scalar_select %p189, %s18, 1
      %p191 = scmp.lt.s32.totalorder %s19, 0
      %s192 = scalar_select %p191, %s19, 0
      %s193 = smul.addr %s192, 24
      %s194 = smul.addr %s190, 24
      %s195 = sadd.s32 %s193, %s194
      %s196 = smul.addr %s195, 4
      %s197 = scalar_lea.vmem %s0, %s196
      %p198 = scmp.lt.s32.totalorder %s18, 1
      %s199 = scalar_select %p198, %s18, 1
      %p200 = scmp.lt.s32.totalorder %s19, 0
      %s201 = scalar_select %p200, %s19, 0
      %s202 = smul.addr %s201, 4
      %s203 = smul.addr %s199, 4
      %s204 = sadd.s32 %s202, %s203
      %s205 = smul.addr %s204, 4
      %s206 = scalar_lea.vmem %s3, %s205
      %v208 = vld [vmem:[%s197] sm:$0xff]
      %v209 = vld [vmem:[%s197 + $0x8] sm:$0xff]
      %v210 = vld [vmem:[%s197 + $0x10] sm:$0xff]
      %v211 = vld [vmem:[%s197 + $0x18] sm:$0xff]
      %v212 = vld [vmem:[%s197 + $0x20] sm:$0xff]
      %v213 = vld [vmem:[%s197 + $0x28] sm:$0xff]
      %v214 = vld [vmem:[%s197 + $0x30] sm:$0xff]
      %v215 = vld [vmem:[%s197 + $0x38] sm:$0xff]
      %v216 = vld [vmem:[%s197 + $0x40] sm:$0xff]
      %v217 = vld [vmem:[%s197 + $0x48] sm:$0xff]
      %v218 = vld [vmem:[%s197 + $0x50] sm:$0x11]
      %v219 = vld [vmem:[%s197 + $0x58] sm:$0x11]
      %v228 = vunpack.c.l.b16 %v208
      %v229 = vunpack.c.h.b16 %v208
      %v230 = vunpack.c.l.b16 %v209
      %v231 = vunpack.c.h.b16 %v209
      %v232 = vunpack.c.l.b16 %v210
      %v233 = vunpack.c.h.b16 %v210
      %v234 = vunpack.c.l.b16 %v211
      %v235 = vunpack.c.h.b16 %v211
      %v236 = vunpack.c.l.b16 %v212
      %v237 = vunpack.c.h.b16 %v212
      %v238 = vunpack.c.l.b16 %v213
      %v239 = vunpack.c.h.b16 %v213
      %v240 = vunpack.c.l.b16 %v214
      %v241 = vunpack.c.h.b16 %v214
      %v242 = vunpack.c.l.b16 %v215
      %v243 = vunpack.c.h.b16 %v215
      %v244 = vpack.c.b16 %v232, %v228
      %v245 = vpack.c.b16 %v233, %v229
      %v246 = vpack.c.b16 %v234, %v230
      %v247 = vpack.c.b16 %v235, %v231
      %v248 = vpack.c.b16 %v240, %v236
      %v249 = vpack.c.b16 %v241, %v237
      %v250 = vpack.c.b16 %v242, %v238
      %v251 = vpack.c.b16 %v243, %v239
      %v262 = vunpack.c.l.b16 %v216
      %v263 = vunpack.c.h.b16 %v216
      %v264 = vunpack.c.l.b16 %v217
      %v265 = vunpack.c.h.b16 %v217
      %v266 = vpack.c.b16 %v262, %v262
      %v267 = vpack.c.b16 %v263, %v263
      %v268 = vpack.c.b16 %v264, %v264
      %v269 = vpack.c.b16 %v265, %v265
      %vm270 = vsmask.f32 7424
      %v272 = vshrl.u32 %v244, 16
      %v274 = vshll.u32 %v244, 16
      %v276 = vrot.slane %v274, 1
      %v277 = vor.u32 %v272, %v276
      %v279 = vshll.u32 %v248, 16
      %v281 = vrot.slane %v279, 1
      %v282 = vsel %vm270, %v277, %v281
      %v284 = vshrl.u32 %v245, 16
      %v286 = vshll.u32 %v245, 16
      %v288 = vrot.slane %v286, 1
      %v289 = vor.u32 %v284, %v288
      %v291 = vshll.u32 %v249, 16
      %v293 = vrot.slane %v291, 1
      %v294 = vsel %vm270, %v289, %v293
      %v296 = vshrl.u32 %v246, 16
      %v298 = vshll.u32 %v246, 16
      %v300 = vrot.slane %v298, 1
      %v301 = vor.u32 %v296, %v300
      %v303 = vshll.u32 %v250, 16
      %v305 = vrot.slane %v303, 1
      %v306 = vsel %vm270, %v301, %v305
      %v308 = vshrl.u32 %v247, 16
      %v310 = vshll.u32 %v247, 16
      %v312 = vrot.slane %v310, 1
      %v313 = vor.u32 %v308, %v312
      %v315 = vshll.u32 %v251, 16
      %v317 = vrot.slane %v315, 1
      %v318 = vsel %vm270, %v313, %v317
      %v319 = vshrl.u32 %v248, 16
      %v321 = vor.u32 %v319, %v281
      %v323 = vshll.u32 %v266, 16
      %v325 = vrot.slane %v323, 1
      %v326 = vsel %vm270, %v321, %v325
      %v327 = vshrl.u32 %v249, 16
      %v329 = vor.u32 %v327, %v293
      %v331 = vshll.u32 %v267, 16
      %v333 = vrot.slane %v331, 1
      %v334 = vsel %vm270, %v329, %v333
      %v335 = vshrl.u32 %v250, 16
      %v337 = vor.u32 %v335, %v305
      %v339 = vshll.u32 %v268, 16
      %v341 = vrot.slane %v339, 1
      %v342 = vsel %vm270, %v337, %v341
      %v343 = vshrl.u32 %v251, 16
      %v345 = vor.u32 %v343, %v317
      %v347 = vshll.u32 %v269, 16
      %v349 = vrot.slane %v347, 1
      %v350 = vsel %vm270, %v345, %v349
      %v359 = vpack.c.b16 %v236, %v232
      %v360 = vpack.c.b16 %v237, %v233
      %v361 = vpack.c.b16 %v238, %v234
      %v362 = vpack.c.b16 %v239, %v235
      %v363 = vpack.c.b16 %v262, %v240
      %v364 = vpack.c.b16 %v263, %v241
      %v365 = vpack.c.b16 %v264, %v242
      %v366 = vpack.c.b16 %v265, %v243
      %v377 = vunpack.c.l.b16 %v218
      %v378 = vunpack.c.h.b16 %v218
      %v379 = vunpack.c.l.b16 %v219
      %v380 = vunpack.c.h.b16 %v219
      %v381 = vpack.c.b16 %v377, %v377
      %v382 = vpack.c.b16 %v378, %v378
      %v383 = vpack.c.b16 %v379, %v379
      %v384 = vpack.c.b16 %v380, %v380
      %v386 = vshrl.u32 %v359, 16
      %v388 = vshll.u32 %v359, 16
      %v390 = vrot.slane %v388, 1
      %v391 = vor.u32 %v386, %v390
      %v393 = vshll.u32 %v363, 16
      %v395 = vrot.slane %v393, 1
      %v396 = vsel %vm270, %v391, %v395
      %v398 = vshrl.u32 %v360, 16
      %v400 = vshll.u32 %v360, 16
      %v402 = vrot.slane %v400, 1
      %v403 = vor.u32 %v398, %v402
      %v405 = vshll.u32 %v364, 16
      %v407 = vrot.slane %v405, 1
      %v408 = vsel %vm270, %v403, %v407
      %v410 = vshrl.u32 %v361, 16
      %v412 = vshll.u32 %v361, 16
      %v414 = vrot.slane %v412, 1
      %v415 = vor.u32 %v410, %v414
      %v417 = vshll.u32 %v365, 16
      %v419 = vrot.slane %v417, 1
      %v420 = vsel %vm270, %v415, %v419
      %v422 = vshrl.u32 %v362, 16
      %v424 = vshll.u32 %v362, 16
      %v426 = vrot.slane %v424, 1
      %v427 = vor.u32 %v422, %v426
      %v429 = vshll.u32 %v366, 16
      %v431 = vrot.slane %v429, 1
      %v432 = vsel %vm270, %v427, %v431
      %v433 = vshrl.u32 %v363, 16
      %v435 = vor.u32 %v433, %v395
      %v437 = vshll.u32 %v381, 16
      %v439 = vrot.slane %v437, 1
      %v440 = vsel %vm270, %v435, %v439
      %v441 = vshrl.u32 %v364, 16
      %v443 = vor.u32 %v441, %v407
      %v445 = vshll.u32 %v382, 16
      %v447 = vrot.slane %v445, 1
      %v448 = vsel %vm270, %v443, %v447
      %v449 = vshrl.u32 %v365, 16
      %v451 = vor.u32 %v449, %v419
      %v453 = vshll.u32 %v383, 16
      %v455 = vrot.slane %v453, 1
      %v456 = vsel %vm270, %v451, %v455
      %v457 = vshrl.u32 %v366, 16
      %v459 = vor.u32 %v457, %v431
      %v461 = vshll.u32 %v384, 16
      %v463 = vrot.slane %v461, 1
      %v464 = vsel %vm270, %v459, %v463
      %v473 = vld [vmem:[%s1] sm:$0xf]
      %v474 = vld [vmem:[%s1 + $0x4] sm:$0xf]
      %v475 = vld [vmem:[%s1 + $0x8] sm:$0xf]
      %v476 = vld [vmem:[%s1 + $0xc] sm:$0xf]
      %v477 = vld [vmem:[%s1 + $0x10] sm:$0xf]
      %v478 = vld [vmem:[%s1 + $0x14] sm:$0xf]
      %v479 = vld [vmem:[%s1 + $0x18] sm:$0xf]
      %v480 = vld [vmem:[%s1 + $0x1c] sm:$0xf]
      %v481 = vld [vmem:[%s1 + $0x20] sm:$0xf]
      %v482 = vld [vmem:[%s1 + $0x24] sm:$0xf]
      %v483 = vld [vmem:[%s1 + $0x28] sm:$0xf]
      %v484 = vld [vmem:[%s1 + $0x2c] sm:$0xf]
      %v485 = vld [vmem:[%s1 + $0x30] sm:$0xf]
      %v486 = vld [vmem:[%s1 + $0x34] sm:$0xf]
      %v487 = vld [vmem:[%s1 + $0x38] sm:$0xf]
      %v488 = vld [vmem:[%s1 + $0x3c] sm:$0xf]
      %v489 = vld [vmem:[%s1 + $0x40] sm:$0xf]
      %v490 = vld [vmem:[%s1 + $0x44] sm:$0xf]
      %v491 = vld [vmem:[%s1 + $0x48] sm:$0xf]
      %v492 = vld [vmem:[%s1 + $0x4c] sm:$0xf]
      %v493 = vld [vmem:[%s1 + $0x50] sm:$0xf]
      %v494 = vld [vmem:[%s1 + $0x54] sm:$0xf]
      %v495 = vld [vmem:[%s1 + $0x58] sm:$0xf]
      %v496 = vld [vmem:[%s1 + $0x5c] sm:$0xf]
      %v497 = vld [vmem:[%s1 + $0x60] sm:$0xf]
      %v498 = vld [vmem:[%s1 + $0x64] sm:$0xf]
      %v499 = vld [vmem:[%s1 + $0x68] sm:$0xf]
      %v500 = vld [vmem:[%s1 + $0x6c] sm:$0xf]
      %v501 = vld [vmem:[%s1 + $0x70] sm:$0xf]
      %v502 = vld [vmem:[%s1 + $0x74] sm:$0xf]
      %v503 = vld [vmem:[%s1 + $0x78] sm:$0xf]
      %v504 = vld [vmem:[%s1 + $0x7c] sm:$0xf]
      %v505 = vld [vmem:[%s1 + $0x80] sm:$0xf]
      %v506 = vld [vmem:[%s1 + $0x84] sm:$0xf]
      %v507 = vld [vmem:[%s1 + $0x88] sm:$0xf]
      %v508 = vld [vmem:[%s1 + $0x8c] sm:$0xf]
      %v509 = vld [vmem:[%s1 + $0x90] sm:$0xf]
      %v510 = vld [vmem:[%s1 + $0x94] sm:$0xf]
      %v511 = vld [vmem:[%s1 + $0x98] sm:$0xf]
      %v512 = vld [vmem:[%s1 + $0x9c] sm:$0xf]
      %v513 = vld [vmem:[%s1 + $0xa0] sm:$0xf]
      %v514 = vld [vmem:[%s1 + $0xa4] sm:$0xf]
      %v515 = vld [vmem:[%s1 + $0xa8] sm:$0xf]
      %v516 = vld [vmem:[%s1 + $0xac] sm:$0xf]
      %v517 = vld [vmem:[%s1 + $0xb0] sm:$0xf]
      %v518 = vld [vmem:[%s1 + $0xb4] sm:$0xf]
      %v519 = vld [vmem:[%s1 + $0xb8] sm:$0xf]
      %v520 = vld [vmem:[%s1 + $0xbc] sm:$0xf]
      %v521 = vld [vmem:[%s1 + $0xc0] sm:$0xf]
      %v522 = vld [vmem:[%s1 + $0xc4] sm:$0xf]
      %v523 = vld [vmem:[%s1 + $0xc8] sm:$0xf]
      %v524 = vld [vmem:[%s1 + $0xcc] sm:$0xf]
      %v525 = vld [vmem:[%s1 + $0xd0] sm:$0xf]
      %v526 = vld [vmem:[%s1 + $0xd4] sm:$0xf]
      %v527 = vld [vmem:[%s1 + $0xd8] sm:$0xf]
      %v528 = vld [vmem:[%s1 + $0xdc] sm:$0xf]
      %v529 = vld [vmem:[%s1 + $0xe0] sm:$0xf]
      %v530 = vld [vmem:[%s1 + $0xe4] sm:$0xf]
      %v531 = vld [vmem:[%s1 + $0xe8] sm:$0xf]
      %v532 = vld [vmem:[%s1 + $0xec] sm:$0xf]
      %v533 = vld [vmem:[%s1 + $0xf0] sm:$0xf]
      %v534 = vld [vmem:[%s1 + $0xf4] sm:$0xf]
      %v535 = vld [vmem:[%s1 + $0xf8] sm:$0xf]
      %v536 = vld [vmem:[%s1 + $0xfc] sm:$0xf]
      %v537 = vld [vmem:[%s1 + $0x100] sm:$0xf]
      %v538 = vld [vmem:[%s1 + $0x104] sm:$0xf]
      %v539 = vld [vmem:[%s1 + $0x108] sm:$0xf]
      %v540 = vld [vmem:[%s1 + $0x10c] sm:$0xf]
      %v541 = vld [vmem:[%s1 + $0x110] sm:$0xf]
      %v542 = vld [vmem:[%s1 + $0x114] sm:$0xf]
      %v543 = vld [vmem:[%s1 + $0x118] sm:$0xf]
      %v544 = vld [vmem:[%s1 + $0x11c] sm:$0xf]
      %v545 = vld [vmem:[%s1 + $0x120] sm:$0xf]
      %v546 = vld [vmem:[%s1 + $0x124] sm:$0xf]
      %v547 = vld [vmem:[%s1 + $0x128] sm:$0xf]
      %v548 = vld [vmem:[%s1 + $0x12c] sm:$0xf]
      %v549 = vld [vmem:[%s1 + $0x130] sm:$0xf]
      %v550 = vld [vmem:[%s1 + $0x134] sm:$0xf]
      %v551 = vld [vmem:[%s1 + $0x138] sm:$0xf]
      %v552 = vld [vmem:[%s1 + $0x13c] sm:$0xf]
      %v553 = vld [vmem:[%s1 + $0x140] sm:$0xf]
      %v554 = vld [vmem:[%s1 + $0x144] sm:$0xf]
      %v555 = vld [vmem:[%s1 + $0x148] sm:$0xf]
      %v556 = vld [vmem:[%s1 + $0x14c] sm:$0xf]
      %v557 = vld [vmem:[%s1 + $0x150] sm:$0xf]
      %v558 = vld [vmem:[%s1 + $0x154] sm:$0xf]
      %v559 = vld [vmem:[%s1 + $0x158] sm:$0xf]
      %v560 = vld [vmem:[%s1 + $0x15c] sm:$0xf]
      %v561 = vld [vmem:[%s1 + $0x160] sm:$0xf]
      %v562 = vld [vmem:[%s1 + $0x164] sm:$0xf]
      %v563 = vld [vmem:[%s1 + $0x168] sm:$0xf]
      %v564 = vld [vmem:[%s1 + $0x16c] sm:$0xf]
      %v565 = vld [vmem:[%s1 + $0x170] sm:$0xf]
      %v566 = vld [vmem:[%s1 + $0x174] sm:$0xf]
      %v567 = vld [vmem:[%s1 + $0x178] sm:$0xf]
      %v568 = vld [vmem:[%s1 + $0x17c] sm:$0xf]
      %v569 = vld [vmem:[%s1 + $0x180] sm:$0xf]
      %v570 = vld [vmem:[%s1 + $0x184] sm:$0xf]
      %v571 = vld [vmem:[%s1 + $0x188] sm:$0xf]
      %v572 = vld [vmem:[%s1 + $0x18c] sm:$0xf]
      %v573 = vld [vmem:[%s1 + $0x190] sm:$0xf]
      %v574 = vld [vmem:[%s1 + $0x194] sm:$0xf]
      %v575 = vld [vmem:[%s1 + $0x198] sm:$0xf]
      %v576 = vld [vmem:[%s1 + $0x19c] sm:$0xf]
      %v577 = vld [vmem:[%s1 + $0x1a0] sm:$0xf]
      %v578 = vld [vmem:[%s1 + $0x1a4] sm:$0xf]
      %v579 = vld [vmem:[%s1 + $0x1a8] sm:$0xf]
      %v580 = vld [vmem:[%s1 + $0x1ac] sm:$0xf]
      %v581 = vld [vmem:[%s1 + $0x1b0] sm:$0xf]
      %v582 = vld [vmem:[%s1 + $0x1b4] sm:$0xf]
      %v583 = vld [vmem:[%s1 + $0x1b8] sm:$0xf]
      %v584 = vld [vmem:[%s1 + $0x1bc] sm:$0xf]
      %v585 = vld [vmem:[%s1 + $0x1c0] sm:$0xf]
      %v586 = vld [vmem:[%s1 + $0x1c4] sm:$0xf]
      %v587 = vld [vmem:[%s1 + $0x1c8] sm:$0xf]
      %v588 = vld [vmem:[%s1 + $0x1cc] sm:$0xf]
      %v589 = vld [vmem:[%s1 + $0x1d0] sm:$0xf]
      %v590 = vld [vmem:[%s1 + $0x1d4] sm:$0xf]
      %v591 = vld [vmem:[%s1 + $0x1d8] sm:$0xf]
      %v592 = vld [vmem:[%s1 + $0x1dc] sm:$0xf]
      %v593 = vld [vmem:[%s1 + $0x1e0] sm:$0xf]
      %v594 = vld [vmem:[%s1 + $0x1e4] sm:$0xf]
      %v595 = vld [vmem:[%s1 + $0x1e8] sm:$0xf]
      %v596 = vld [vmem:[%s1 + $0x1ec] sm:$0xf]
      %v597 = vld [vmem:[%s1 + $0x1f0] sm:$0xf]
      %v598 = vld [vmem:[%s1 + $0x1f4] sm:$0xf]
      %v599 = vld [vmem:[%s1 + $0x1f8] sm:$0xf]
      %v600 = vld [vmem:[%s1 + $0x1fc] sm:$0xf]
      %v601 = vld [vmem:[%s1 + $0x200] sm:$0xf]
      %v602 = vld [vmem:[%s1 + $0x204] sm:$0xf]
      %v603 = vld [vmem:[%s1 + $0x208] sm:$0xf]
      %v604 = vld [vmem:[%s1 + $0x20c] sm:$0xf]
      %v605 = vld [vmem:[%s1 + $0x210] sm:$0xf]
      %v606 = vld [vmem:[%s1 + $0x214] sm:$0xf]
      %v607 = vld [vmem:[%s1 + $0x218] sm:$0xf]
      %v608 = vld [vmem:[%s1 + $0x21c] sm:$0xf]
      %v609 = vld [vmem:[%s1 + $0x220] sm:$0xf]
      %v610 = vld [vmem:[%s1 + $0x224] sm:$0xf]
      %v611 = vld [vmem:[%s1 + $0x228] sm:$0xf]
      %v612 = vld [vmem:[%s1 + $0x22c] sm:$0xf]
      %v613 = vld [vmem:[%s1 + $0x230] sm:$0xf]
      %v614 = vld [vmem:[%s1 + $0x234] sm:$0xf]
      %v615 = vld [vmem:[%s1 + $0x238] sm:$0xf]
      %v616 = vld [vmem:[%s1 + $0x23c] sm:$0xf]
      %v617 = vld [vmem:[%s1 + $0x240] sm:$0xf]
      %v618 = vld [vmem:[%s1 + $0x244] sm:$0xf]
      %v619 = vld [vmem:[%s1 + $0x248] sm:$0xf]
      %v620 = vld [vmem:[%s1 + $0x24c] sm:$0xf]
      %v621 = vld [vmem:[%s1 + $0x250] sm:$0xf]
      %v622 = vld [vmem:[%s1 + $0x254] sm:$0xf]
      %v623 = vld [vmem:[%s1 + $0x258] sm:$0xf]
      %v624 = vld [vmem:[%s1 + $0x25c] sm:$0xf]
      %v625 = vld [vmem:[%s1 + $0x260] sm:$0xf]
      %v626 = vld [vmem:[%s1 + $0x264] sm:$0xf]
      %v627 = vld [vmem:[%s1 + $0x268] sm:$0xf]
      %v628 = vld [vmem:[%s1 + $0x26c] sm:$0xf]
      %v629 = vld [vmem:[%s1 + $0x270] sm:$0xf]
      %v630 = vld [vmem:[%s1 + $0x274] sm:$0xf]
      %v631 = vld [vmem:[%s1 + $0x278] sm:$0xf]
      %v632 = vld [vmem:[%s1 + $0x27c] sm:$0xf]
      %v633 = vld [vmem:[%s1 + $0x280] sm:$0xf]
      %v634 = vld [vmem:[%s1 + $0x284] sm:$0xf]
      %v635 = vld [vmem:[%s1 + $0x288] sm:$0xf]
      %v636 = vld [vmem:[%s1 + $0x28c] sm:$0xf]
      %v637 = vld [vmem:[%s1 + $0x290] sm:$0xf]
      %v638 = vld [vmem:[%s1 + $0x294] sm:$0xf]
      %v639 = vld [vmem:[%s1 + $0x298] sm:$0xf]
      %v640 = vld [vmem:[%s1 + $0x29c] sm:$0xf]
      %v641 = vld [vmem:[%s1 + $0x2a0] sm:$0xf]
      %v642 = vld [vmem:[%s1 + $0x2a4] sm:$0xf]
      %v643 = vld [vmem:[%s1 + $0x2a8] sm:$0xf]
      %v644 = vld [vmem:[%s1 + $0x2ac] sm:$0xf]
      %v645 = vld [vmem:[%s1 + $0x2b0] sm:$0xf]
      %v646 = vld [vmem:[%s1 + $0x2b4] sm:$0xf]
      %v647 = vld [vmem:[%s1 + $0x2b8] sm:$0xf]
      %v648 = vld [vmem:[%s1 + $0x2bc] sm:$0xf]
      %v649 = vld [vmem:[%s1 + $0x2c0] sm:$0xf]
      %v650 = vld [vmem:[%s1 + $0x2c4] sm:$0xf]
      %v651 = vld [vmem:[%s1 + $0x2c8] sm:$0xf]
      %v652 = vld [vmem:[%s1 + $0x2cc] sm:$0xf]
      %v653 = vld [vmem:[%s1 + $0x2d0] sm:$0xf]
      %v654 = vld [vmem:[%s1 + $0x2d4] sm:$0xf]
      %v655 = vld [vmem:[%s1 + $0x2d8] sm:$0xf]
      %v656 = vld [vmem:[%s1 + $0x2dc] sm:$0xf]
      %v657 = vld [vmem:[%s1 + $0x2e0] sm:$0xf]
      %v658 = vld [vmem:[%s1 + $0x2e4] sm:$0xf]
      %v659 = vld [vmem:[%s1 + $0x2e8] sm:$0xf]
      %v660 = vld [vmem:[%s1 + $0x2ec] sm:$0xf]
      %v661 = vld [vmem:[%s1 + $0x2f0] sm:$0xf]
      %v662 = vld [vmem:[%s1 + $0x2f4] sm:$0xf]
      %v663 = vld [vmem:[%s1 + $0x2f8] sm:$0xf]
      %v664 = vld [vmem:[%s1 + $0x2fc] sm:$0xf]
      %v665 = vld [vmem:[%s1 + $0x300] sm:$0xf]
      %v666 = vld [vmem:[%s1 + $0x304] sm:$0xf]
      %v667 = vld [vmem:[%s1 + $0x308] sm:$0xf]
      %v668 = vld [vmem:[%s1 + $0x30c] sm:$0xf]
      %v669 = vld [vmem:[%s1 + $0x310] sm:$0xf]
      %v670 = vld [vmem:[%s1 + $0x314] sm:$0xf]
      %v671 = vld [vmem:[%s1 + $0x318] sm:$0xf]
      %v672 = vld [vmem:[%s1 + $0x31c] sm:$0xf]
      %v673 = vld [vmem:[%s1 + $0x320] sm:$0xf]
      %v674 = vld [vmem:[%s1 + $0x324] sm:$0xf]
      %v675 = vld [vmem:[%s1 + $0x328] sm:$0xf]
      %v676 = vld [vmem:[%s1 + $0x32c] sm:$0xf]
      %v677 = vld [vmem:[%s1 + $0x330] sm:$0xf]
      %v678 = vld [vmem:[%s1 + $0x334] sm:$0xf]
      %v679 = vld [vmem:[%s1 + $0x338] sm:$0xf]
      %v680 = vld [vmem:[%s1 + $0x33c] sm:$0xf]
      %v681 = vld [vmem:[%s1 + $0x340] sm:$0xf]
      %v682 = vld [vmem:[%s1 + $0x344] sm:$0xf]
      %v683 = vld [vmem:[%s1 + $0x348] sm:$0xf]
      %v684 = vld [vmem:[%s1 + $0x34c] sm:$0xf]
      %v685 = vld [vmem:[%s1 + $0x350] sm:$0xf]
      %v686 = vld [vmem:[%s1 + $0x354] sm:$0xf]
      %v687 = vld [vmem:[%s1 + $0x358] sm:$0xf]
      %v688 = vld [vmem:[%s1 + $0x35c] sm:$0xf]
      %v689 = vld [vmem:[%s1 + $0x360] sm:$0xf]
      %v690 = vld [vmem:[%s1 + $0x364] sm:$0xf]
      %v691 = vld [vmem:[%s1 + $0x368] sm:$0xf]
      %v692 = vld [vmem:[%s1 + $0x36c] sm:$0xf]
      %v693 = vld [vmem:[%s1 + $0x370] sm:$0xf]
      %v694 = vld [vmem:[%s1 + $0x374] sm:$0xf]
      %v695 = vld [vmem:[%s1 + $0x378] sm:$0xf]
      %v696 = vld [vmem:[%s1 + $0x37c] sm:$0xf]
      %v697 = vld [vmem:[%s1 + $0x380] sm:$0xf]
      %v698 = vld [vmem:[%s1 + $0x384] sm:$0xf]
      %v699 = vld [vmem:[%s1 + $0x388] sm:$0xf]
      %v700 = vld [vmem:[%s1 + $0x38c] sm:$0xf]
      %v701 = vld [vmem:[%s1 + $0x390] sm:$0xf]
      %v702 = vld [vmem:[%s1 + $0x394] sm:$0xf]
      %v703 = vld [vmem:[%s1 + $0x398] sm:$0xf]
      %v704 = vld [vmem:[%s1 + $0x39c] sm:$0xf]
      %v705 = vld [vmem:[%s1 + $0x3a0] sm:$0xf]
      %v706 = vld [vmem:[%s1 + $0x3a4] sm:$0xf]
      %v707 = vld [vmem:[%s1 + $0x3a8] sm:$0xf]
      %v708 = vld [vmem:[%s1 + $0x3ac] sm:$0xf]
      %v709 = vld [vmem:[%s1 + $0x3b0] sm:$0xf]
      %v710 = vld [vmem:[%s1 + $0x3b4] sm:$0xf]
      %v711 = vld [vmem:[%s1 + $0x3b8] sm:$0xf]
      %v712 = vld [vmem:[%s1 + $0x3bc] sm:$0xf]
      %v713 = vld [vmem:[%s1 + $0x3c0] sm:$0xf]
      %v714 = vld [vmem:[%s1 + $0x3c4] sm:$0xf]
      %v715 = vld [vmem:[%s1 + $0x3c8] sm:$0xf]
      %v716 = vld [vmem:[%s1 + $0x3cc] sm:$0xf]
      %v717 = vld [vmem:[%s1 + $0x3d0] sm:$0xf]
      %v718 = vld [vmem:[%s1 + $0x3d4] sm:$0xf]
      %v719 = vld [vmem:[%s1 + $0x3d8] sm:$0xf]
      %v720 = vld [vmem:[%s1 + $0x3dc] sm:$0xf]
      %v721 = vld [vmem:[%s1 + $0x3e0] sm:$0xf]
      %v722 = vld [vmem:[%s1 + $0x3e4] sm:$0xf]
      %v723 = vld [vmem:[%s1 + $0x3e8] sm:$0xf]
      %v724 = vld [vmem:[%s1 + $0x3ec] sm:$0xf]
      %v725 = vld [vmem:[%s1 + $0x3f0] sm:$0xf]
      %v726 = vld [vmem:[%s1 + $0x3f4] sm:$0xf]
      %v727 = vld [vmem:[%s1 + $0x3f8] sm:$0xf]
      %v728 = vld [vmem:[%s1 + $0x3fc] sm:$0xf]
      %v729 = vld [vmem:[%s2] sm:$0x1]
      %v731 = vlaneseq
      %v732 = vshrl.u32 %v731, 7
      %v733 = vsub.s32 0, %v732
      %v734 = vrot.slane %v729, %v733
      %v992 = vunpack.c.l.b16 %v473
      %v993 = vunpack.c.l.b16 %v474
      %v994 = vunpack.c.l.b16 %v475
      %v995 = vunpack.c.l.b16 %v476
      %v996 = vunpack.c.l.b16 %v477
      %v997 = vunpack.c.l.b16 %v478
      %v998 = vunpack.c.l.b16 %v479
      %v999 = vunpack.c.l.b16 %v480
      %v1000 = vunpack.c.l.b16 %v481
      %v1001 = vunpack.c.l.b16 %v482
      %v1002 = vunpack.c.l.b16 %v483
      %v1003 = vunpack.c.l.b16 %v484
      %v1004 = vunpack.c.l.b16 %v485
      %v1005 = vunpack.c.l.b16 %v486
      %v1006 = vunpack.c.l.b16 %v487
      %v1007 = vunpack.c.l.b16 %v488
      %v1008 = vunpack.c.l.b16 %v489
      %v1009 = vunpack.c.l.b16 %v490
      %v1010 = vunpack.c.l.b16 %v491
      %v1011 = vunpack.c.l.b16 %v492
      %v1012 = vunpack.c.l.b16 %v493
      %v1013 = vunpack.c.l.b16 %v494
      %v1014 = vunpack.c.l.b16 %v495
      %v1015 = vunpack.c.l.b16 %v496
      %v1016 = vunpack.c.l.b16 %v497
      %v1017 = vunpack.c.l.b16 %v498
      %v1018 = vunpack.c.l.b16 %v499
      %v1019 = vunpack.c.l.b16 %v500
      %v1020 = vunpack.c.l.b16 %v501
      %v1021 = vunpack.c.l.b16 %v502
      %v1022 = vunpack.c.l.b16 %v503
      %v1023 = vunpack.c.l.b16 %v504
      %v1024 = vunpack.c.l.b16 %v505
      %v1025 = vunpack.c.l.b16 %v506
      %v1026 = vunpack.c.l.b16 %v507
      %v1027 = vunpack.c.l.b16 %v508
      %v1028 = vunpack.c.l.b16 %v509
      %v1029 = vunpack.c.l.b16 %v510
      %v1030 = vunpack.c.l.b16 %v511
      %v1031 = vunpack.c.l.b16 %v512
      %v1032 = vunpack.c.l.b16 %v513
      %v1033 = vunpack.c.l.b16 %v514
      %v1034 = vunpack.c.l.b16 %v515
      %v1035 = vunpack.c.l.b16 %v516
      %v1036 = vunpack.c.l.b16 %v517
      %v1037 = vunpack.c.l.b16 %v518
      %v1038 = vunpack.c.l.b16 %v519
      %v1039 = vunpack.c.l.b16 %v520
      %v1040 = vunpack.c.l.b16 %v521
      %v1041 = vunpack.c.l.b16 %v522
      %v1042 = vunpack.c.l.b16 %v523
      %v1043 = vunpack.c.l.b16 %v524
      %v1044 = vunpack.c.l.b16 %v525
      %v1045 = vunpack.c.l.b16 %v526
      %v1046 = vunpack.c.l.b16 %v527
      %v1047 = vunpack.c.l.b16 %v528
      %v1048 = vunpack.c.l.b16 %v529
      %v1049 = vunpack.c.l.b16 %v530
      %v1050 = vunpack.c.l.b16 %v531
      %v1051 = vunpack.c.l.b16 %v532
      %v1052 = vunpack.c.l.b16 %v533
      %v1053 = vunpack.c.l.b16 %v534
      %v1054 = vunpack.c.l.b16 %v535
      %v1055 = vunpack.c.l.b16 %v536
      %v1056 = vunpack.c.l.b16 %v537
      %v1057 = vunpack.c.l.b16 %v538
      %v1058 = vunpack.c.l.b16 %v539
      %v1059 = vunpack.c.l.b16 %v540
      %v1060 = vunpack.c.l.b16 %v541
      %v1061 = vunpack.c.l.b16 %v542
      %v1062 = vunpack.c.l.b16 %v543
      %v1063 = vunpack.c.l.b16 %v544
      %v1064 = vunpack.c.l.b16 %v545
      %v1065 = vunpack.c.l.b16 %v546
      %v1066 = vunpack.c.l.b16 %v547
      %v1067 = vunpack.c.l.b16 %v548
      %v1068 = vunpack.c.l.b16 %v549
      %v1069 = vunpack.c.l.b16 %v550
      %v1070 = vunpack.c.l.b16 %v551
      %v1071 = vunpack.c.l.b16 %v552
      %v1072 = vunpack.c.l.b16 %v553
      %v1073 = vunpack.c.l.b16 %v554
      %v1074 = vunpack.c.l.b16 %v555
      %v1075 = vunpack.c.l.b16 %v556
      %v1076 = vunpack.c.l.b16 %v557
      %v1077 = vunpack.c.l.b16 %v558
      %v1078 = vunpack.c.l.b16 %v559
      %v1079 = vunpack.c.l.b16 %v560
      %v1080 = vunpack.c.l.b16 %v561
      %v1081 = vunpack.c.l.b16 %v562
      %v1082 = vunpack.c.l.b16 %v563
      %v1083 = vunpack.c.l.b16 %v564
      %v1084 = vunpack.c.l.b16 %v565
      %v1085 = vunpack.c.l.b16 %v566
      %v1086 = vunpack.c.l.b16 %v567
      %v1087 = vunpack.c.l.b16 %v568
      %v1088 = vunpack.c.l.b16 %v569
      %v1089 = vunpack.c.l.b16 %v570
      %v1090 = vunpack.c.l.b16 %v571
      %v1091 = vunpack.c.l.b16 %v572
      %v1092 = vunpack.c.l.b16 %v573
      %v1093 = vunpack.c.l.b16 %v574
      %v1094 = vunpack.c.l.b16 %v575
      %v1095 = vunpack.c.l.b16 %v576
      %v1096 = vunpack.c.l.b16 %v577
      %v1097 = vunpack.c.l.b16 %v578
      %v1098 = vunpack.c.l.b16 %v579
      %v1099 = vunpack.c.l.b16 %v580
      %v1100 = vunpack.c.l.b16 %v581
      %v1101 = vunpack.c.l.b16 %v582
      %v1102 = vunpack.c.l.b16 %v583
      %v1103 = vunpack.c.l.b16 %v584
      %v1104 = vunpack.c.l.b16 %v585
      %v1105 = vunpack.c.l.b16 %v586
      %v1106 = vunpack.c.l.b16 %v587
      %v1107 = vunpack.c.l.b16 %v588
      %v1108 = vunpack.c.l.b16 %v589
      %v1109 = vunpack.c.l.b16 %v590
      %v1110 = vunpack.c.l.b16 %v591
      %v1111 = vunpack.c.l.b16 %v592
      %v1112 = vunpack.c.l.b16 %v593
      %v1113 = vunpack.c.l.b16 %v594
      %v1114 = vunpack.c.l.b16 %v595
      %v1115 = vunpack.c.l.b16 %v596
      %v1116 = vunpack.c.l.b16 %v597
      %v1117 = vunpack.c.l.b16 %v598
      %v1118 = vunpack.c.l.b16 %v599
      %v1119 = vunpack.c.l.b16 %v600
      %v1120 = vunpack.c.l.b16 %v601
      %v1121 = vunpack.c.l.b16 %v602
      %v1122 = vunpack.c.l.b16 %v603
      %v1123 = vunpack.c.l.b16 %v604
      %v1124 = vunpack.c.l.b16 %v605
      %v1125 = vunpack.c.l.b16 %v606
      %v1126 = vunpack.c.l.b16 %v607
      %v1127 = vunpack.c.l.b16 %v608
      %v1128 = vunpack.c.l.b16 %v609
      %v1129 = vunpack.c.l.b16 %v610
      %v1130 = vunpack.c.l.b16 %v611
      %v1131 = vunpack.c.l.b16 %v612
      %v1132 = vunpack.c.l.b16 %v613
      %v1133 = vunpack.c.l.b16 %v614
      %v1134 = vunpack.c.l.b16 %v615
      %v1135 = vunpack.c.l.b16 %v616
      %v1136 = vunpack.c.l.b16 %v617
      %v1137 = vunpack.c.l.b16 %v618
      %v1138 = vunpack.c.l.b16 %v619
      %v1139 = vunpack.c.l.b16 %v620
      %v1140 = vunpack.c.l.b16 %v621
      %v1141 = vunpack.c.l.b16 %v622
      %v1142 = vunpack.c.l.b16 %v623
      %v1143 = vunpack.c.l.b16 %v624
      %v1144 = vunpack.c.l.b16 %v625
      %v1145 = vunpack.c.l.b16 %v626
      %v1146 = vunpack.c.l.b16 %v627
      %v1147 = vunpack.c.l.b16 %v628
      %v1148 = vunpack.c.l.b16 %v629
      %v1149 = vunpack.c.l.b16 %v630
      %v1150 = vunpack.c.l.b16 %v631
      %v1151 = vunpack.c.l.b16 %v632
      %v1152 = vunpack.c.l.b16 %v633
      %v1153 = vunpack.c.l.b16 %v634
      %v1154 = vunpack.c.l.b16 %v635
      %v1155 = vunpack.c.l.b16 %v636
      %v1156 = vunpack.c.l.b16 %v637
      %v1157 = vunpack.c.l.b16 %v638
      %v1158 = vunpack.c.l.b16 %v639
      %v1159 = vunpack.c.l.b16 %v640
      %v1160 = vunpack.c.l.b16 %v641
      %v1161 = vunpack.c.l.b16 %v642
      %v1162 = vunpack.c.l.b16 %v643
      %v1163 = vunpack.c.l.b16 %v644
      %v1164 = vunpack.c.l.b16 %v645
      %v1165 = vunpack.c.l.b16 %v646
      %v1166 = vunpack.c.l.b16 %v647
      %v1167 = vunpack.c.l.b16 %v648
      %v1168 = vunpack.c.l.b16 %v649
      %v1169 = vunpack.c.l.b16 %v650
      %v1170 = vunpack.c.l.b16 %v651
      %v1171 = vunpack.c.l.b16 %v652
      %v1172 = vunpack.c.l.b16 %v653
      %v1173 = vunpack.c.l.b16 %v654
      %v1174 = vunpack.c.l.b16 %v655
      %v1175 = vunpack.c.l.b16 %v656
      %v1176 = vunpack.c.l.b16 %v657
      %v1177 = vunpack.c.l.b16 %v658
      %v1178 = vunpack.c.l.b16 %v659
      %v1179 = vunpack.c.l.b16 %v660
      %v1180 = vunpack.c.l.b16 %v661
      %v1181 = vunpack.c.l.b16 %v662
      %v1182 = vunpack.c.l.b16 %v663
      %v1183 = vunpack.c.l.b16 %v664
      %v1184 = vunpack.c.l.b16 %v665
      %v1185 = vunpack.c.l.b16 %v666
      %v1186 = vunpack.c.l.b16 %v667
      %v1187 = vunpack.c.l.b16 %v668
      %v1188 = vunpack.c.l.b16 %v669
      %v1189 = vunpack.c.l.b16 %v670
      %v1190 = vunpack.c.l.b16 %v671
      %v1191 = vunpack.c.l.b16 %v672
      %v1192 = vunpack.c.l.b16 %v673
      %v1193 = vunpack.c.l.b16 %v674
      %v1194 = vunpack.c.l.b16 %v675
      %v1195 = vunpack.c.l.b16 %v676
      %v1196 = vunpack.c.l.b16 %v677
      %v1197 = vunpack.c.l.b16 %v678
      %v1198 = vunpack.c.l.b16 %v679
      %v1199 = vunpack.c.l.b16 %v680
      %v1200 = vunpack.c.l.b16 %v681
      %v1201 = vunpack.c.l.b16 %v682
      %v1202 = vunpack.c.l.b16 %v683
      %v1203 = vunpack.c.l.b16 %v684
      %v1204 = vunpack.c.l.b16 %v685
      %v1205 = vunpack.c.l.b16 %v686
      %v1206 = vunpack.c.l.b16 %v687
      %v1207 = vunpack.c.l.b16 %v688
      %v1208 = vunpack.c.l.b16 %v689
      %v1209 = vunpack.c.l.b16 %v690
      %v1210 = vunpack.c.l.b16 %v691
      %v1211 = vunpack.c.l.b16 %v692
      %v1212 = vunpack.c.l.b16 %v693
      %v1213 = vunpack.c.l.b16 %v694
      %v1214 = vunpack.c.l.b16 %v695
      %v1215 = vunpack.c.l.b16 %v696
      %v1216 = vunpack.c.l.b16 %v697
      %v1217 = vunpack.c.l.b16 %v698
      %v1218 = vunpack.c.l.b16 %v699
      %v1219 = vunpack.c.l.b16 %v700
      %v1220 = vunpack.c.l.b16 %v701
      %v1221 = vunpack.c.l.b16 %v702
      %v1222 = vunpack.c.l.b16 %v703
      %v1223 = vunpack.c.l.b16 %v704
      %v1224 = vunpack.c.l.b16 %v705
      %v1225 = vunpack.c.l.b16 %v706
      %v1226 = vunpack.c.l.b16 %v707
      %v1227 = vunpack.c.l.b16 %v708
      %v1228 = vunpack.c.l.b16 %v709
      %v1229 = vunpack.c.l.b16 %v710
      %v1230 = vunpack.c.l.b16 %v711
      %v1231 = vunpack.c.l.b16 %v712
      %v1232 = vunpack.c.l.b16 %v713
      %v1233 = vunpack.c.l.b16 %v714
      %v1234 = vunpack.c.l.b16 %v715
      %v1235 = vunpack.c.l.b16 %v716
      %v1236 = vunpack.c.l.b16 %v717
      %v1237 = vunpack.c.l.b16 %v718
      %v1238 = vunpack.c.l.b16 %v719
      %v1239 = vunpack.c.l.b16 %v720
      %v1240 = vunpack.c.l.b16 %v721
      %v1241 = vunpack.c.l.b16 %v722
      %v1242 = vunpack.c.l.b16 %v723
      %v1243 = vunpack.c.l.b16 %v724
      %v1244 = vunpack.c.l.b16 %v725
      %v1245 = vunpack.c.l.b16 %v726
      %v1246 = vunpack.c.l.b16 %v727
      %v1247 = vunpack.c.l.b16 %v728
      %v1248 = vpack.c.b16 %v993, %v992
      %v1249 = vpack.c.b16 %v995, %v994
      %v1250 = vpack.c.b16 %v997, %v996
      %v1251 = vpack.c.b16 %v999, %v998
      %v1252 = vpack.c.b16 %v1001, %v1000
      %v1253 = vpack.c.b16 %v1003, %v1002
      %v1254 = vpack.c.b16 %v1005, %v1004
      %v1255 = vpack.c.b16 %v1007, %v1006
      %v1256 = vpack.c.b16 %v1009, %v1008
      %v1257 = vpack.c.b16 %v1011, %v1010
      %v1258 = vpack.c.b16 %v1013, %v1012
      %v1259 = vpack.c.b16 %v1015, %v1014
      %v1260 = vpack.c.b16 %v1017, %v1016
      %v1261 = vpack.c.b16 %v1019, %v1018
      %v1262 = vpack.c.b16 %v1021, %v1020
      %v1263 = vpack.c.b16 %v1023, %v1022
      %v1264 = vpack.c.b16 %v1025, %v1024
      %v1265 = vpack.c.b16 %v1027, %v1026
      %v1266 = vpack.c.b16 %v1029, %v1028
      %v1267 = vpack.c.b16 %v1031, %v1030
      %v1268 = vpack.c.b16 %v1033, %v1032
      %v1269 = vpack.c.b16 %v1035, %v1034
      %v1270 = vpack.c.b16 %v1037, %v1036
      %v1271 = vpack.c.b16 %v1039, %v1038
      %v1272 = vpack.c.b16 %v1041, %v1040
      %v1273 = vpack.c.b16 %v1043, %v1042
      %v1274 = vpack.c.b16 %v1045, %v1044
      %v1275 = vpack.c.b16 %v1047, %v1046
      %v1276 = vpack.c.b16 %v1049, %v1048
      %v1277 = vpack.c.b16 %v1051, %v1050
      %v1278 = vpack.c.b16 %v1053, %v1052
      %v1279 = vpack.c.b16 %v1055, %v1054
      %v1280 = vpack.c.b16 %v1057, %v1056
      %v1281 = vpack.c.b16 %v1059, %v1058
      %v1282 = vpack.c.b16 %v1061, %v1060
      %v1283 = vpack.c.b16 %v1063, %v1062
      %v1284 = vpack.c.b16 %v1065, %v1064
      %v1285 = vpack.c.b16 %v1067, %v1066
      %v1286 = vpack.c.b16 %v1069, %v1068
      %v1287 = vpack.c.b16 %v1071, %v1070
      %v1288 = vpack.c.b16 %v1073, %v1072
      %v1289 = vpack.c.b16 %v1075, %v1074
      %v1290 = vpack.c.b16 %v1077, %v1076
      %v1291 = vpack.c.b16 %v1079, %v1078
      %v1292 = vpack.c.b16 %v1081, %v1080
      %v1293 = vpack.c.b16 %v1083, %v1082
      %v1294 = vpack.c.b16 %v1085, %v1084
      %v1295 = vpack.c.b16 %v1087, %v1086
      %v1296 = vpack.c.b16 %v1089, %v1088
      %v1297 = vpack.c.b16 %v1091, %v1090
      %v1298 = vpack.c.b16 %v1093, %v1092
      %v1299 = vpack.c.b16 %v1095, %v1094
      %v1300 = vpack.c.b16 %v1097, %v1096
      %v1301 = vpack.c.b16 %v1099, %v1098
      %v1302 = vpack.c.b16 %v1101, %v1100
      %v1303 = vpack.c.b16 %v1103, %v1102
      %v1304 = vpack.c.b16 %v1105, %v1104
      %v1305 = vpack.c.b16 %v1107, %v1106
      %v1306 = vpack.c.b16 %v1109, %v1108
      %v1307 = vpack.c.b16 %v1111, %v1110
      %v1308 = vpack.c.b16 %v1113, %v1112
      %v1309 = vpack.c.b16 %v1115, %v1114
      %v1310 = vpack.c.b16 %v1117, %v1116
      %v1311 = vpack.c.b16 %v1119, %v1118
      %v1312 = vpack.c.b16 %v1121, %v1120
      %v1313 = vpack.c.b16 %v1123, %v1122
      %v1314 = vpack.c.b16 %v1125, %v1124
      %v1315 = vpack.c.b16 %v1127, %v1126
      %v1316 = vpack.c.b16 %v1129, %v1128
      %v1317 = vpack.c.b16 %v1131, %v1130
      %v1318 = vpack.c.b16 %v1133, %v1132
      %v1319 = vpack.c.b16 %v1135, %v1134
      %v1320 = vpack.c.b16 %v1137, %v1136
      %v1321 = vpack.c.b16 %v1139, %v1138
      %v1322 = vpack.c.b16 %v1141, %v1140
      %v1323 = vpack.c.b16 %v1143, %v1142
      %v1324 = vpack.c.b16 %v1145, %v1144
      %v1325 = vpack.c.b16 %v1147, %v1146
      %v1326 = vpack.c.b16 %v1149, %v1148
      %v1327 = vpack.c.b16 %v1151, %v1150
      %v1328 = vpack.c.b16 %v1153, %v1152
      %v1329 = vpack.c.b16 %v1155, %v1154
      %v1330 = vpack.c.b16 %v1157, %v1156
      %v1331 = vpack.c.b16 %v1159, %v1158
      %v1332 = vpack.c.b16 %v1161, %v1160
      %v1333 = vpack.c.b16 %v1163, %v1162
      %v1334 = vpack.c.b16 %v1165, %v1164
      %v1335 = vpack.c.b16 %v1167, %v1166
      %v1336 = vpack.c.b16 %v1169, %v1168
      %v1337 = vpack.c.b16 %v1171, %v1170
      %v1338 = vpack.c.b16 %v1173, %v1172
      %v1339 = vpack.c.b16 %v1175, %v1174
      %v1340 = vpack.c.b16 %v1177, %v1176
      %v1341 = vpack.c.b16 %v1179, %v1178
      %v1342 = vpack.c.b16 %v1181, %v1180
      %v1343 = vpack.c.b16 %v1183, %v1182
      %v1344 = vpack.c.b16 %v1185, %v1184
      %v1345 = vpack.c.b16 %v1187, %v1186
      %v1346 = vpack.c.b16 %v1189, %v1188
      %v1347 = vpack.c.b16 %v1191, %v1190
      %v1348 = vpack.c.b16 %v1193, %v1192
      %v1349 = vpack.c.b16 %v1195, %v1194
      %v1350 = vpack.c.b16 %v1197, %v1196
      %v1351 = vpack.c.b16 %v1199, %v1198
      %v1352 = vpack.c.b16 %v1201, %v1200
      %v1353 = vpack.c.b16 %v1203, %v1202
      %v1354 = vpack.c.b16 %v1205, %v1204
      %v1355 = vpack.c.b16 %v1207, %v1206
      %v1356 = vpack.c.b16 %v1209, %v1208
      %v1357 = vpack.c.b16 %v1211, %v1210
      %v1358 = vpack.c.b16 %v1213, %v1212
      %v1359 = vpack.c.b16 %v1215, %v1214
      %v1360 = vpack.c.b16 %v1217, %v1216
      %v1361 = vpack.c.b16 %v1219, %v1218
      %v1362 = vpack.c.b16 %v1221, %v1220
      %v1363 = vpack.c.b16 %v1223, %v1222
      %v1364 = vpack.c.b16 %v1225, %v1224
      %v1365 = vpack.c.b16 %v1227, %v1226
      %v1366 = vpack.c.b16 %v1229, %v1228
      %v1367 = vpack.c.b16 %v1231, %v1230
      %v1368 = vpack.c.b16 %v1233, %v1232
      %v1369 = vpack.c.b16 %v1235, %v1234
      %v1370 = vpack.c.b16 %v1237, %v1236
      %v1371 = vpack.c.b16 %v1239, %v1238
      %v1372 = vpack.c.b16 %v1241, %v1240
      %v1373 = vpack.c.b16 %v1243, %v1242
      %v1374 = vpack.c.b16 %v1245, %v1244
      %v1375 = vpack.c.b16 %v1247, %v1246
      %1504 = vmatprep.subr.bf16.mxu0 0
      %1505 = vmatpush1.bf16.msra.mxu0 %v1248
      %1506 = vmatprep.subr.bf16.mxu0 0
      %1507 = vmatpush1.bf16.msra.mxu0 %v1249
      %1508 = vmatprep.subr.bf16.mxu0 0
      %1509 = vmatpush1.bf16.msra.mxu0 %v1250
      %1510 = vmatprep.subr.bf16.mxu0 0
      %1511 = vmatpush1.bf16.msra.mxu0 %v1251
      %1512 = vmatprep.subr.bf16.mxu0 0
      %1513 = vmatpush1.bf16.msra.mxu0 %v1252
      %1514 = vmatprep.subr.bf16.mxu0 0
      %1515 = vmatpush1.bf16.msra.mxu0 %v1253
      %1516 = vmatprep.subr.bf16.mxu0 0
      %1517 = vmatpush1.bf16.msra.mxu0 %v1254
      %1518 = vmatprep.subr.bf16.mxu0 0
      %1519 = vmatpush1.bf16.msra.mxu0 %v1255
      %1520 = vmatprep.subr.bf16.mxu0 0
      %1521 = vmatpush1.bf16.msra.mxu0 %v1256
      %1522 = vmatprep.subr.bf16.mxu0 0
      %1523 = vmatpush1.bf16.msra.mxu0 %v1257
      %1524 = vmatprep.subr.bf16.mxu0 0
      %1525 = vmatpush1.bf16.msra.mxu0 %v1258
      %1526 = vmatprep.subr.bf16.mxu0 0
      %1527 = vmatpush1.bf16.msra.mxu0 %v1259
      %1528 = vmatprep.subr.bf16.mxu0 0
      %1529 = vmatpush1.bf16.msra.mxu0 %v1260
      %1530 = vmatprep.subr.bf16.mxu0 0
      %1531 = vmatpush1.bf16.msra.mxu0 %v1261
      %1532 = vmatprep.subr.bf16.mxu0 0
      %1533 = vmatpush1.bf16.msra.mxu0 %v1262
      %1534 = vmatprep.subr.bf16.mxu0 0
      %1535 = vmatpush1.bf16.msra.mxu0 %v1263
      %1536 = vmatprep.mubr.bf16.mxu0 %v245
      %1537 = vmatmul.mubr.bf16.gmra.mrb[0].mxu0 %v244
      %v1538 = vpop.f32.mrb[0].mxu0
      %v1539 = vadd.f32 %v734, %v1538
      %v1540 = vpop.f32.mrb[0].mxu0
      %v1541 = vpop.f32.mrb[0].mxu0
      %v1542 = vadd.f32 %v734, %v1541
      %v1543 = vpop.f32.mrb[0].mxu0
      %1544 = vmatprep.mubr.bf16.mxu0 %v249
      %1545 = vmatmul.mubr.bf16.gmra.mrb[0].mxu0 %v248
      %v1546 = vpop.f32.mrb[0].mxu0
      %v1547 = vadd.f32 %v734, %v1546
      %v1548 = vpop.f32.mrb[0].mxu0
      %v1549 = vpop.f32.mrb[0].mxu0
      %v1550 = vadd.f32 %v734, %v1549
      %v1551 = vpop.f32.mrb[0].mxu0
      %1552 = vdwg.mxu0
      %1553 = vmatprep.subr.bf16.mxu0 0
      %1554 = vmatpush1.bf16.msra.mxu0 %v1264
      %1555 = vmatprep.subr.bf16.mxu0 0
      %1556 = vmatpush1.bf16.msra.mxu0 %v1265
      %1557 = vmatprep.subr.bf16.mxu0 0
      %1558 = vmatpush1.bf16.msra.mxu0 %v1266
      %1559 = vmatprep.subr.bf16.mxu0 0
      %1560 = vmatpush1.bf16.msra.mxu0 %v1267
      %1561 = vmatprep.subr.bf16.mxu0 0
      %1562 = vmatpush1.bf16.msra.mxu0 %v1268
      %1563 = vmatprep.subr.bf16.mxu0 0
      %1564 = vmatpush1.bf16.msra.mxu0 %v1269
      %1565 = vmatprep.subr.bf16.mxu0 0
      %1566 = vmatpush1.bf16.msra.mxu0 %v1270
      %1567 = vmatprep.subr.bf16.mxu0 0
      %1568 = vmatpush1.bf16.msra.mxu0 %v1271
      %1569 = vmatprep.subr.bf16.mxu0 0
      %1570 = vmatpush1.bf16.msra.mxu0 %v1272
      %1571 = vmatprep.subr.bf16.mxu0 0
      %1572 = vmatpush1.bf16.msra.mxu0 %v1273
      %1573 = vmatprep.subr.bf16.mxu0 0
      %1574 = vmatpush1.bf16.msra.mxu0 %v1274
      %1575 = vmatprep.subr.bf16.mxu0 0
      %1576 = vmatpush1.bf16.msra.mxu0 %v1275
      %1577 = vmatprep.subr.bf16.mxu0 0
      %1578 = vmatpush1.bf16.msra.mxu0 %v1276
      %1579 = vmatprep.subr.bf16.mxu0 0
      %1580 = vmatpush1.bf16.msra.mxu0 %v1277
      %1581 = vmatprep.subr.bf16.mxu0 0
      %1582 = vmatpush1.bf16.msra.mxu0 %v1278
      %1583 = vmatprep.subr.bf16.mxu0 0
      %1584 = vmatpush1.bf16.msra.mxu0 %v1279
      %1585 = vmatprep.mubr.bf16.mxu0 %v247
      %1586 = vmatmul.mubr.bf16.gmra.mrb[0].mxu0 %v246
      %v1587 = vpop.f32.mrb[0].mxu0
      %v1588 = vadd.f32 %v1539, %v1587
      %v1589 = vpop.f32.mrb[0].mxu0
      %v1590 = vpop.f32.mrb[0].mxu0
      %v1591 = vadd.f32 %v1542, %v1590
      %v1592 = vpop.f32.mrb[0].mxu0
      %1593 = vmatprep.mubr.bf16.mxu0 %v251
      %1594 = vmatmul.mubr.bf16.gmra.mrb[0].mxu0 %v250
      %v1595 = vpop.f32.mrb[0].mxu0
      %v1596 = vadd.f32 %v1547, %v1595
      %v1597 = vpop.f32.mrb[0].mxu0
      %v1598 = vpop.f32.mrb[0].mxu0
      %v1599 = vadd.f32 %v1550, %v1598
      %v1600 = vpop.f32.mrb[0].mxu0
      %1601 = vdwg.mxu0
      %1602 = vmatprep.subr.bf16.mxu0 0
      %1603 = vmatpush1.bf16.msra.mxu0 %v1280
      %1604 = vmatprep.subr.bf16.mxu0 0
      %1605 = vmatpush1.bf16.msra.mxu0 %v1281
      %1606 = vmatprep.subr.bf16.mxu0 0
      %1607 = vmatpush1.bf16.msra.mxu0 %v1282
      %1608 = vmatprep.subr.bf16.mxu0 0
      %1609 = vmatpush1.bf16.msra.mxu0 %v1283
      %1610 = vmatprep.subr.bf16.mxu0 0
      %1611 = vmatpush1.bf16.msra.mxu0 %v1284
      %1612 = vmatprep.subr.bf16.mxu0 0
      %1613 = vmatpush1.bf16.msra.mxu0 %v1285
      %1614 = vmatprep.subr.bf16.mxu0 0
      %1615 = vmatpush1.bf16.msra.mxu0 %v1286
      %1616 = vmatprep.subr.bf16.mxu0 0
      %1617 = vmatpush1.bf16.msra.mxu0 %v1287
      %1618 = vmatprep.subr.bf16.mxu0 0
      %1619 = vmatpush1.bf16.msra.mxu0 %v1288
      %1620 = vmatprep.subr.bf16.mxu0 0
      %1621 = vmatpush1.bf16.msra.mxu0 %v1289
      %1622 = vmatprep.subr.bf16.mxu0 0
      %1623 = vmatpush1.bf16.msra.mxu0 %v1290
      %1624 = vmatprep.subr.bf16.mxu0 0
      %1625 = vmatpush1.bf16.msra.mxu0 %v1291
      %1626 = vmatprep.subr.bf16.mxu0 0
      %1627 = vmatpush1.bf16.msra.mxu0 %v1292
      %1628 = vmatprep.subr.bf16.mxu0 0
      %1629 = vmatpush1.bf16.msra.mxu0 %v1293
      %1630 = vmatprep.subr.bf16.mxu0 0
      %1631 = vmatpush1.bf16.msra.mxu0 %v1294
      %1632 = vmatprep.subr.bf16.mxu0 0
      %1633 = vmatpush1.bf16.msra.mxu0 %v1295
      %1634 = vmatprep.mubr.bf16.mxu0 %v294
      %1635 = vmatmul.mubr.bf16.gmra.mrb[0].mxu0 %v282
      %v1636 = vpop.f32.mrb[0].mxu0
      %v1637 = vadd.f32 %v1588, %v1636
      %v1638 = vpop.f32.mrb[0].mxu0
      %v1639 = vpop.f32.mrb[0].mxu0
      %v1640 = vadd.f32 %v1591, %v1639
      %v1641 = vpop.f32.mrb[0].mxu0
      %1642 = vmatprep.mubr.bf16.mxu0 %v334
      %1643 = vmatmul.mubr.bf16.gmra.mrb[0].mxu0 %v326
      %v1644 = vpop.f32.mrb[0].mxu0
      %v1645 = vadd.f32 %v1596, %v1644
      %v1646 = vpop.f32.mrb[0].mxu0
      %v1647 = vpop.f32.mrb[0].mxu0
      %v1648 = vadd.f32 %v1599, %v1647
      %v1649 = vpop.f32.mrb[0].mxu0
      %1650 = vdwg.mxu0
      %1651 = vmatprep.subr.bf16.mxu0 0
      %1652 = vmatpush1.bf16.msra.mxu0 %v1296
      %1653 = vmatprep.subr.bf16.mxu0 0
      %1654 = vmatpush1.bf16.msra.mxu0 %v1297
      %1655 = vmatprep.subr.bf16.mxu0 0
      %1656 = vmatpush1.bf16.msra.mxu0 %v1298
      %1657 = vmatprep.subr.bf16.mxu0 0
      %1658 = vmatpush1.bf16.msra.mxu0 %v1299
      %1659 = vmatprep.subr.bf16.mxu0 0
      %1660 = vmatpush1.bf16.msra.mxu0 %v1300
      %1661 = vmatprep.subr.bf16.mxu0 0
      %1662 = vmatpush1.bf16.msra.mxu0 %v1301
      %1663 = vmatprep.subr.bf16.mxu0 0
      %1664 = vmatpush1.bf16.msra.mxu0 %v1302
      %1665 = vmatprep.subr.bf16.mxu0 0
      %1666 = vmatpush1.bf16.msra.mxu0 %v1303
      %1667 = vmatprep.subr.bf16.mxu0 0
      %1668 = vmatpush1.bf16.msra.mxu0 %v1304
      %1669 = vmatprep.subr.bf16.mxu0 0
      %1670 = vmatpush1.bf16.msra.mxu0 %v1305
      %1671 = vmatprep.subr.bf16.mxu0 0
      %1672 = vmatpush1.bf16.msra.mxu0 %v1306
      %1673 = vmatprep.subr.bf16.mxu0 0
      %1674 = vmatpush1.bf16.msra.mxu0 %v1307
      %1675 = vmatprep.subr.bf16.mxu0 0
      %1676 = vmatpush1.bf16.msra.mxu0 %v1308
      %1677 = vmatprep.subr.bf16.mxu0 0
      %1678 = vmatpush1.bf16.msra.mxu0 %v1309
      %1679 = vmatprep.subr.bf16.mxu0 0
      %1680 = vmatpush1.bf16.msra.mxu0 %v1310
      %1681 = vmatprep.subr.bf16.mxu0 0
      %1682 = vmatpush1.bf16.msra.mxu0 %v1311
      %1683 = vmatprep.mubr.bf16.mxu0 %v318
      %1684 = vmatmul.mubr.bf16.gmra.mrb[0].mxu0 %v306
      %v1685 = vpop.f32.mrb[0].mxu0
      %v1686 = vadd.f32 %v1637, %v1685
      %v1687 = vpop.f32.mrb[0].mxu0
      %v1688 = vpop.f32.mrb[0].mxu0
      %v1689 = vadd.f32 %v1640, %v1688
      %v1690 = vpop.f32.mrb[0].mxu0
      %1691 = vmatprep.mubr.bf16.mxu0 %v350
      %1692 = vmatmul.mubr.bf16.gmra.mrb[0].mxu0 %v342
      %v1693 = vpop.f32.mrb[0].mxu0
      %v1694 = vadd.f32 %v1645, %v1693
      %v1695 = vpop.f32.mrb[0].mxu0
      %v1696 = vpop.f32.mrb[0].mxu0
      %v1697 = vadd.f32 %v1648, %v1696
      %v1698 = vpop.f32.mrb[0].mxu0
      %1699 = vdwg.mxu0
      %1700 = vmatprep.subr.bf16.mxu0 0
      %1701 = vmatpush1.bf16.msra.mxu0 %v1312
      %1702 = vmatprep.subr.bf16.mxu0 0
      %1703 = vmatpush1.bf16.msra.mxu0 %v1313
      %1704 = vmatprep.subr.bf16.mxu0 0
      %1705 = vmatpush1.bf16.msra.mxu0 %v1314
      %1706 = vmatprep.subr.bf16.mxu0 0
      %1707 = vmatpush1.bf16.msra.mxu0 %v1315
      %1708 = vmatprep.subr.bf16.mxu0 0
      %1709 = vmatpush1.bf16.msra.mxu0 %v1316
      %1710 = vmatprep.subr.bf16.mxu0 0
      %1711 = vmatpush1.bf16.msra.mxu0 %v1317
      %1712 = vmatprep.subr.bf16.mxu0 0
      %1713 = vmatpush1.bf16.msra.mxu0 %v1318
      %1714 = vmatprep.subr.bf16.mxu0 0
      %1715 = vmatpush1.bf16.msra.mxu0 %v1319
      %1716 = vmatprep.subr.bf16.mxu0 0
      %1717 = vmatpush1.bf16.msra.mxu0 %v1320
      %1718 = vmatprep.subr.bf16.mxu0 0
      %1719 = vmatpush1.bf16.msra.mxu0 %v1321
      %1720 = vmatprep.subr.bf16.mxu0 0
      %1721 = vmatpush1.bf16.msra.mxu0 %v1322
      %1722 = vmatprep.subr.bf16.mxu0 0
      %1723 = vmatpush1.bf16.msra.mxu0 %v1323
      %1724 = vmatprep.subr.bf16.mxu0 0
      %1725 = vmatpush1.bf16.msra.mxu0 %v1324
      %1726 = vmatprep.subr.bf16.mxu0 0
      %1727 = vmatpush1.bf16.msra.mxu0 %v1325
      %1728 = vmatprep.subr.bf16.mxu0 0
      %1729 = vmatpush1.bf16.msra.mxu0 %v1326
      %1730 = vmatprep.subr.bf16.mxu0 0
      %1731 = vmatpush1.bf16.msra.mxu0 %v1327
      %1732 = vmatprep.mubr.bf16.mxu0 %v360
      %1733 = vmatmul.mubr.bf16.gmra.mrb[0].mxu0 %v359
      %v1734 = vpop.f32.mrb[0].mxu0
      %v1735 = vadd.f32 %v1686, %v1734
      %v1736 = vpop.f32.mrb[0].mxu0
      %v1737 = vpop.f32.mrb[0].mxu0
      %v1738 = vadd.f32 %v1689, %v1737
      %v1739 = vpop.f32.mrb[0].mxu0
      %1740 = vmatprep.mubr.bf16.mxu0 %v364
      %1741 = vmatmul.mubr.bf16.gmra.mrb[0].mxu0 %v363
      %v1742 = vpop.f32.mrb[0].mxu0
      %v1743 = vadd.f32 %v1694, %v1742
      %v1744 = vpop.f32.mrb[0].mxu0
      %v1745 = vpop.f32.mrb[0].mxu0
      %v1746 = vadd.f32 %v1697, %v1745
      %v1747 = vpop.f32.mrb[0].mxu0
      %1748 = vdwg.mxu0
      %1749 = vmatprep.subr.bf16.mxu0 0
      %1750 = vmatpush1.bf16.msra.mxu0 %v1328
      %1751 = vmatprep.subr.bf16.mxu0 0
      %1752 = vmatpush1.bf16.msra.mxu0 %v1329
      %1753 = vmatprep.subr.bf16.mxu0 0
      %1754 = vmatpush1.bf16.msra.mxu0 %v1330
      %1755 = vmatprep.subr.bf16.mxu0 0
      %1756 = vmatpush1.bf16.msra.mxu0 %v1331
      %1757 = vmatprep.subr.bf16.mxu0 0
      %1758 = vmatpush1.bf16.msra.mxu0 %v1332
      %1759 = vmatprep.subr.bf16.mxu0 0
      %1760 = vmatpush1.bf16.msra.mxu0 %v1333
      %1761 = vmatprep.subr.bf16.mxu0 0
      %1762 = vmatpush1.bf16.msra.mxu0 %v1334
      %1763 = vmatprep.subr.bf16.mxu0 0
      %1764 = vmatpush1.bf16.msra.mxu0 %v1335
      %1765 = vmatprep.subr.bf16.mxu0 0
      %1766 = vmatpush1.bf16.msra.mxu0 %v1336
      %1767 = vmatprep.subr.bf16.mxu0 0
      %1768 = vmatpush1.bf16.msra.mxu0 %v1337
      %1769 = vmatprep.subr.bf16.mxu0 0
      %1770 = vmatpush1.bf16.msra.mxu0 %v1338
      %1771 = vmatprep.subr.bf16.mxu0 0
      %1772 = vmatpush1.bf16.msra.mxu0 %v1339
      %1773 = vmatprep.subr.bf16.mxu0 0
      %1774 = vmatpush1.bf16.msra.mxu0 %v1340
      %1775 = vmatprep.subr.bf16.mxu0 0
      %1776 = vmatpush1.bf16.msra.mxu0 %v1341
      %1777 = vmatprep.subr.bf16.mxu0 0
      %1778 = vmatpush1.bf16.msra.mxu0 %v1342
      %1779 = vmatprep.subr.bf16.mxu0 0
      %1780 = vmatpush1.bf16.msra.mxu0 %v1343
      %1781 = vmatprep.mubr.bf16.mxu0 %v362
      %1782 = vmatmul.mubr.bf16.gmra.mrb[0].mxu0 %v361
      %v1783 = vpop.f32.mrb[0].mxu0
      %v1784 = vadd.f32 %v1735, %v1783
      %v1785 = vpop.f32.mrb[0].mxu0
      %v1786 = vpop.f32.mrb[0].mxu0
      %v1787 = vadd.f32 %v1738, %v1786
      %v1788 = vpop.f32.mrb[0].mxu0
      %1789 = vmatprep.mubr.bf16.mxu0 %v366
      %1790 = vmatmul.mubr.bf16.gmra.mrb[0].mxu0 %v365
      %v1791 = vpop.f32.mrb[0].mxu0
      %v1792 = vadd.f32 %v1743, %v1791
      %v1793 = vpop.f32.mrb[0].mxu0
      %v1794 = vpop.f32.mrb[0].mxu0
      %v1795 = vadd.f32 %v1746, %v1794
      %v1796 = vpop.f32.mrb[0].mxu0
      %1797 = vdwg.mxu0
      %1798 = vmatprep.subr.bf16.mxu0 0
      %1799 = vmatpush1.bf16.msra.mxu0 %v1344
      %1800 = vmatprep.subr.bf16.mxu0 0
      %1801 = vmatpush1.bf16.msra.mxu0 %v1345
      %1802 = vmatprep.subr.bf16.mxu0 0
      %1803 = vmatpush1.bf16.msra.mxu0 %v1346
      %1804 = vmatprep.subr.bf16.mxu0 0
      %1805 = vmatpush1.bf16.msra.mxu0 %v1347
      %1806 = vmatprep.subr.bf16.mxu0 0
      %1807 = vmatpush1.bf16.msra.mxu0 %v1348
      %1808 = vmatprep.subr.bf16.mxu0 0
      %1809 = vmatpush1.bf16.msra.mxu0 %v1349
      %1810 = vmatprep.subr.bf16.mxu0 0
      %1811 = vmatpush1.bf16.msra.mxu0 %v1350
      %1812 = vmatprep.subr.bf16.mxu0 0
      %1813 = vmatpush1.bf16.msra.mxu0 %v1351
      %1814 = vmatprep.subr.bf16.mxu0 0
      %1815 = vmatpush1.bf16.msra.mxu0 %v1352
      %1816 = vmatprep.subr.bf16.mxu0 0
      %1817 = vmatpush1.bf16.msra.mxu0 %v1353
      %1818 = vmatprep.subr.bf16.mxu0 0
      %1819 = vmatpush1.bf16.msra.mxu0 %v1354
      %1820 = vmatprep.subr.bf16.mxu0 0
      %1821 = vmatpush1.bf16.msra.mxu0 %v1355
      %1822 = vmatprep.subr.bf16.mxu0 0
      %1823 = vmatpush1.bf16.msra.mxu0 %v1356
      %1824 = vmatprep.subr.bf16.mxu0 0
      %1825 = vmatpush1.bf16.msra.mxu0 %v1357
      %1826 = vmatprep.subr.bf16.mxu0 0
      %1827 = vmatpush1.bf16.msra.mxu0 %v1358
      %1828 = vmatprep.subr.bf16.mxu0 0
      %1829 = vmatpush1.bf16.msra.mxu0 %v1359
      %1830 = vmatprep.mubr.bf16.mxu0 %v408
      %1831 = vmatmul.mubr.bf16.gmra.mrb[0].mxu0 %v396
      %v1832 = vpop.f32.mrb[0].mxu0
      %v1833 = vadd.f32 %v1784, %v1832
      %v1834 = vpop.f32.mrb[0].mxu0
      %v1835 = vpop.f32.mrb[0].mxu0
      %v1836 = vadd.f32 %v1787, %v1835
      %v1837 = vpop.f32.mrb[0].mxu0
      %1838 = vmatprep.mubr.bf16.mxu0 %v448
      %1839 = vmatmul.mubr.bf16.gmra.mrb[0].mxu0 %v440
      %v1840 = vpop.f32.mrb[0].mxu0
      %v1841 = vadd.f32 %v1792, %v1840
      %v1842 = vpop.f32.mrb[0].mxu0
      %v1843 = vpop.f32.mrb[0].mxu0
      %v1844 = vadd.f32 %v1795, %v1843
      %v1845 = vpop.f32.mrb[0].mxu0
      %1846 = vdwg.mxu0
      %1847 = vmatprep.subr.bf16.mxu0 0
      %1848 = vmatpush1.bf16.msra.mxu0 %v1360
      %1849 = vmatprep.subr.bf16.mxu0 0
      %1850 = vmatpush1.bf16.msra.mxu0 %v1361
      %1851 = vmatprep.subr.bf16.mxu0 0
      %1852 = vmatpush1.bf16.msra.mxu0 %v1362
      %1853 = vmatprep.subr.bf16.mxu0 0
      %1854 = vmatpush1.bf16.msra.mxu0 %v1363
      %1855 = vmatprep.subr.bf16.mxu0 0
      %1856 = vmatpush1.bf16.msra.mxu0 %v1364
      %1857 = vmatprep.subr.bf16.mxu0 0
      %1858 = vmatpush1.bf16.msra.mxu0 %v1365
      %1859 = vmatprep.subr.bf16.mxu0 0
      %1860 = vmatpush1.bf16.msra.mxu0 %v1366
      %1861 = vmatprep.subr.bf16.mxu0 0
      %1862 = vmatpush1.bf16.msra.mxu0 %v1367
      %1863 = vmatprep.subr.bf16.mxu0 0
      %1864 = vmatpush1.bf16.msra.mxu0 %v1368
      %1865 = vmatprep.subr.bf16.mxu0 0
      %1866 = vmatpush1.bf16.msra.mxu0 %v1369
      %1867 = vmatprep.subr.bf16.mxu0 0
      %1868 = vmatpush1.bf16.msra.mxu0 %v1370
      %1869 = vmatprep.subr.bf16.mxu0 0
      %1870 = vmatpush1.bf16.msra.mxu0 %v1371
      %1871 = vmatprep.subr.bf16.mxu0 0
      %1872 = vmatpush1.bf16.msra.mxu0 %v1372
      %1873 = vmatprep.subr.bf16.mxu0 0
      %1874 = vmatpush1.bf16.msra.mxu0 %v1373
      %1875 = vmatprep.subr.bf16.mxu0 0
      %1876 = vmatpush1.bf16.msra.mxu0 %v1374
      %1877 = vmatprep.subr.bf16.mxu0 0
      %1878 = vmatpush1.bf16.msra.mxu0 %v1375
      %1879 = vmatprep.mubr.bf16.mxu0 %v432
      %1880 = vmatmul.mubr.bf16.gmra.mrb[0].mxu0 %v420
      %v1881 = vpop.f32.mrb[0].mxu0
      %v1882 = vadd.f32 %v1833, %v1881
      %v1883 = vpop.f32.mrb[0].mxu0
      %v1884 = vpop.f32.mrb[0].mxu0
      %v1885 = vadd.f32 %v1836, %v1884
      %v1886 = vpop.f32.mrb[0].mxu0
      %1887 = vmatprep.mubr.bf16.mxu0 %v464
      %1888 = vmatmul.mubr.bf16.gmra.mrb[0].mxu0 %v456
      %v1889 = vpop.f32.mrb[0].mxu0
      %v1890 = vadd.f32 %v1841, %v1889
      %v1891 = vpop.f32.mrb[0].mxu0
      %v1892 = vpop.f32.mrb[0].mxu0
      %v1893 = vadd.f32 %v1844, %v1892
      %v1894 = vpop.f32.mrb[0].mxu0
      %1895 = vdwg.mxu0
      %v1896 = vmax.f32 %v1882, 0.0
      %v1897 = vmax.f32 %v1885, 0.0
      %v1898 = vmax.f32 %v1890, 0.0
      %v1899 = vmax.f32 %v1893, 0.0
      %v1900 = vpack.c.bf16 %v1897, %v1896
      %v1901 = vpack.c.bf16 %v1899, %v1898
      %v1904 = vunpack.c.l.b16 %v1900
      %v1905 = vunpack.c.h.b16 %v1900
      %v1906 = vunpack.c.l.b16 %v1901
      %v1907 = vunpack.c.h.b16 %v1901
      %v1908 = vpack.c.b16 %v1904, %v1904
      %v1909 = vpack.c.b16 %v1905, %v1905
      %v1910 = vpack.c.b16 %v1906, %v1906
      %v1911 = vpack.c.b16 %v1907, %v1907
      %1916 = vst [vmem:[%s206] sm:$0xf] %v1908
      %1917 = vst [vmem:[%s206 + $0x4] sm:$0xf] %v1909
      %1918 = vst [vmem:[%s206 + $0x8] sm:$0xf] %v1910
      %1919 = vst [vmem:[%s206 + $0xc] sm:$0xf] %v1911
      %p1920 = scmp.lt.s32.totalorder %s18, 1
      %s1921 = scalar_select %p1920, %s18, 1
      %p1922 = scmp.lt.s32.totalorder %s19, 0
      %s1923 = scalar_select %p1922, %s19, 0
      %s1924 = smul.addr %s1923, 4
      %s1925 = smul.addr %s1921, 4
      %s1926 = sadd.s32 %s1924, %s1925
      %s1927 = smul.addr %s1926, 4
      %s1928 = scalar_lea.vmem %s3, %s1927
      // Predicated region
      $region33: #{encoder_forward_pallas.6} parent=31 // pred_check
        %p1929 = pneg %p116
      $region34: #{encoder_forward_pallas.6} parent=31 // pred_check_branch
        %1931 = sbr.rel (%p1929) target = $region36
      $region35: #{encoder_forward_pallas.6} parent=31 // pred_region
        _
      $region36: #{encoder_forward_pallas.6} parent=31 // pred_fallthru
        _
    $region32: #{encoder_forward_pallas.6} parent=5 // pred_fallthru
      _
    %p1932 = scmp.le.s32.totalorder 2, %s9
    // Predicated region
    $region37: #{encoder_forward_pallas.6} parent=5 // pred_check
      %p1933 = pneg %p1932
    $region38: #{encoder_forward_pallas.6} parent=5 // pred_check_branch
      %1935 = sbr.rel (%p1933) target = $region40
    $region39: #{encoder_forward_pallas.6} parent=5 // pred_region
      %s1936 = ssub.s32 %s9, 2
      // Predicated region
      $region41: #{encoder_forward_pallas.6} parent=39 // pred_check
        %p1937 = pneg %p122
      $region42: #{encoder_forward_pallas.6} parent=39 // pred_check_branch
        %1939 = sbr.rel (%p1937) target = $region44
      $region43: #{encoder_forward_pallas.6} parent=39 // pred_region
        %p1940 = scmp.lt.s32.totalorder %s20, 1
        %s1941 = scalar_select %p1940, %s20, 1
        %p1942 = scmp.lt.s32.totalorder %s21, 0
        %s1943 = scalar_select %p1942, %s21, 0
        %s1944 = smul.addr %s1943, 4
        %s1945 = smul.addr %s1941, 4
        %s1946 = sadd.s32 %s1944, %s1945
        %s1947 = smul.addr %s1946, 4
        %s1948 = scalar_lea.vmem %s3, %s1947
      $region44: #{encoder_forward_pallas.6} parent=39 // pred_fallthru
        _
    $region40: #{encoder_forward_pallas.6} parent=5 // pred_fallthru
      _
  $region6: #{encoder_forward_pallas.6} parent=0 // loop_footer
    %s13 = sadd.s32 1, %s9
  $region7: #{encoder_forward_pallas.6} parent=0 // loop_footer_branch
    %8 = sbr.rel target = $region3
  $region8: #{encoder_forward_pallas.6} parent=0 // loop_exit
    _

// kernel: encoder_forward_pallas.7
$region0: #{encoder_forward_pallas.7}
  #allocation0 [shape = 'u32[]', space=smem, size = 0x4, offset = 0x4, fixed_abs, tag = 'smem constant byte address 0x4 - core index']
  #allocation1 [shape = 'u32[144,128]{1,0:T(1,128)}', space=vmem, size = 0x12000, scoped, tag = 'internal scratch']
  %s0 = inlined_call_operand.vmem [shape: bf16[2,1,50,128], index: 0, kind: input, shape index: {}]
  %s1 = inlined_call_operand.vmem [shape: bf16[1152,128], index: 1, kind: input, shape index: {}]
  %s2 = inlined_call_operand.vmem [shape: f32[1,128], index: 2, kind: input, shape index: {}]
  %s3 = inlined_call_operand.vmem [shape: f32[2,1,32,128], index: 3, kind: output, shape index: {}]
  %s4 = sld [smem:[#allocation0]]
  $region45: #{encoder_forward_pallas.7} parent=0
    _
  %s6 = ssub.s32 1, %s4
  %s7 = scalar_select 0, %s6, %s4
  loop: start=0, step=1, limit=4
  $region2: #{encoder_forward_pallas.7} parent=0 // loop_pre_header
    _
  $region3: #{encoder_forward_pallas.7} parent=0 // loop_header
    %s9 = sphi 0, %s13
    %p10 = scmp.ge.s32.totalorder %s9, 4
    %s16 = sphi 0, %s28
    %s17 = sphi 0, %s24
    %s18 = sphi 0, %s16
    %s19 = sphi 0, %s17
    %s20 = sphi 0, %s18
    %s21 = sphi 0, %s19
    %s33 = sphi 0, %s35
    %s36 = sphi 0, %s33
    %s37 = sphi 0, %s36
    %s53 = sphi 0, %s37
    %s57 = sphi 0, %s57
    %s59 = sphi 0, %s57
    %s60 = sphi 0, %s59
    %s74 = sphi 0, %s60
    %s78 = sphi 0, %s78
    %s80 = sphi 0, %s78
    %s81 = sphi 0, %s80
    %s95 = sphi 0, %s81
    %s103 = sphi 0, %s105
    %s106 = sphi 0, %s103
    %s107 = sphi 0, %s106
    %s123 = sphi 0, %s107
  $region4: #{encoder_forward_pallas.7} parent=0 // loop_header_branch
    %12 = sbr.rel (%p10) target = $region8
  $region5: #{encoder_forward_pallas.7} parent=0 // loop_body
    %s14 = ssub.s32 %s9, 1
    %s15 = ssub.s32 %s9, 2
    %s22 = sadd.s32 1, %s17
    %p23 = scmp.ge.s32.totalorder %s22, 1
    %s24 = scalar_select %p23, 0, %s22
    %s25 = sadd.s32 1, %s16
    %s26 = scalar_select %p23, %s25, %s16
    %p27 = scmp.ge.s32.totalorder %s26, 2
    %s28 = scalar_select %p27, 0, %s26
    %s29 = ssub.s32 %s16, %s28
    %s30 = ssub.s32 %s17, %s24
    %s31 = sor.u32 %s29, %s30
    %p32 = scmp.eq.s32.totalorder %s31, 0
    %s34 = sadd.s32 %s33, 1
    %s35 = scalar_select %p32, %s33, %s34
    %p38 = pneg %p32
    %p39 = scmp.eq.s32.totalorder %s9, 1
    %p40 = por %p38, %p39
    %p41 = scmp.ne.s32.totalorder %s33, %s36
    %p42 = scmp.eq.s32.totalorder %s9, 0
    %p43 = por %p41, %p42
    %p44 = scmp.ne.s32.totalorder %s33, %s36
    %p45 = scmp.eq.s32.totalorder %s14, 1
    %p46 = por %p44, %p45
    %p47 = scmp.ne.s32.totalorder %s36, %s37
    %p48 = scmp.eq.s32.totalorder %s14, 0
    %p49 = por %p47, %p48
    %p50 = scmp.ne.s32.totalorder %s36, %s37
    %p51 = scmp.eq.s32.totalorder %s15, 1
    %p52 = por %p50, %p51
    %p54 = scmp.ne.s32.totalorder %s37, %s53
    %p55 = scmp.eq.s32.totalorder %s15, 0
    %p56 = por %p54, %p55
    %s58 = sadd.s32 %s57, 1
    %p61 = scmp.eq.s32.totalorder %s9, 1
    %p62 = scmp.ne.s32.totalorder %s57, %s59
    %p63 = scmp.eq.s32.totalorder %s9, 0
    %p64 = por %p62, %p63
    %p65 = scmp.ne.s32.totalorder %s57, %s59
    %p66 = scmp.eq.s32.totalorder %s14, 1
    %p67 = por %p65, %p66
    %p68 = scmp.ne.s32.totalorder %s59, %s60
    %p69 = scmp.eq.s32.totalorder %s14, 0
    %p70 = por %p68, %p69
    %p71 = scmp.ne.s32.totalorder %s59, %s60
    %p72 = scmp.eq.s32.totalorder %s15, 1
    %p73 = por %p71, %p72
    %p75 = scmp.ne.s32.totalorder %s60, %s74
    %p76 = scmp.eq.s32.totalorder %s15, 0
    %p77 = por %p75, %p76
    %s79 = sadd.s32 %s78, 1
    %p82 = scmp.eq.s32.totalorder %s9, 1
    %p83 = scmp.ne.s32.totalorder %s78, %s80
    %p84 = scmp.eq.s32.totalorder %s9, 0
    %p85 = por %p83, %p84
    %p86 = scmp.ne.s32.totalorder %s78, %s80
    %p87 = scmp.eq.s32.totalorder %s14, 1
    %p88 = por %p86, %p87
    %p89 = scmp.ne.s32.totalorder %s80, %s81
    %p90 = scmp.eq.s32.totalorder %s14, 0
    %p91 = por %p89, %p90
    %p92 = scmp.ne.s32.totalorder %s80, %s81
    %p93 = scmp.eq.s32.totalorder %s15, 1
    %p94 = por %p92, %p93
    %p96 = scmp.ne.s32.totalorder %s81, %s95
    %p97 = scmp.eq.s32.totalorder %s15, 0
    %p98 = por %p96, %p97
    %s99 = ssub.s32 %s16, %s28
    %s100 = ssub.s32 %s17, %s24
    %s101 = sor.u32 %s99, %s100
    %p102 = scmp.eq.s32.totalorder %s101, 0
    %s104 = sadd.s32 %s103, 1
    %s105 = scalar_select %p102, %s103, %s104
    %p108 = pneg %p102
    %p109 = scmp.eq.s32.totalorder %s9, 1
    %p110 = por %p108, %p109
    %p111 = scmp.ne.s32.totalorder %s103, %s106
    %p112 = scmp.eq.s32.totalorder %s9, 0
    %p113 = por %p111, %p112
    %p114 = scmp.ne.s32.totalorder %s103, %s106
    %p115 = scmp.eq.s32.totalorder %s14, 1
    %p116 = por %p114, %p115
    %p117 = scmp.ne.s32.totalorder %s106, %s107
    %p118 = scmp.eq.s32.totalorder %s14, 0
    %p119 = por %p117, %p118
    %p120 = scmp.ne.s32.totalorder %s106, %s107
    %p121 = scmp.eq.s32.totalorder %s15, 1
    %p122 = por %p120, %p121
    %p124 = scmp.ne.s32.totalorder %s107, %s123
    %p125 = scmp.eq.s32.totalorder %s15, 0
    %p126 = por %p124, %p125
    %p127 = scmp.le.s32.totalorder 1, %s9
    %p128 = scmp.lt.s32.totalorder %s9, 3
    %p129 = pnand %p127, %p128
    %p130 = pneg %p129
    // Predicated region
    $region9: #{encoder_forward_pallas.7} parent=5 // pred_check
      _
    $region10: #{encoder_forward_pallas.7} parent=5 // pred_check_branch
      %132 = sbr.rel (%p129) target = $region12
    $region11: #{encoder_forward_pallas.7} parent=5 // pred_region
      %s133 = ssub.s32 %s9, 1
      // Predicated region
      $region13: #{encoder_forward_pallas.7} parent=11 // pred_check
        %p134 = pneg %p70
      $region14: #{encoder_forward_pallas.7} parent=11 // pred_check_branch
        %136 = sbr.rel (%p134) target = $region16
      $region15: #{encoder_forward_pallas.7} parent=11 // pred_region
        _
      $region16: #{encoder_forward_pallas.7} parent=11 // pred_fallthru
        _
      // Predicated region
      $region17: #{encoder_forward_pallas.7} parent=11 // pred_check
        %p137 = pneg %p91
      $region18: #{encoder_forward_pallas.7} parent=11 // pred_check_branch
        %139 = sbr.rel (%p137) target = $region20
      $region19: #{encoder_forward_pallas.7} parent=11 // pred_region
        _
      $region20: #{encoder_forward_pallas.7} parent=11 // pred_fallthru
        _
    $region12: #{encoder_forward_pallas.7} parent=5 // pred_fallthru
      _
    %p140 = scmp.lt.s32.totalorder %s9, 2
    // Predicated region
    $region21: #{encoder_forward_pallas.7} parent=5 // pred_check
      %p141 = pneg %p140
    $region22: #{encoder_forward_pallas.7} parent=5 // pred_check_branch
      %143 = sbr.rel (%p141) target = $region24
    $region23: #{encoder_forward_pallas.7} parent=5 // pred_region
      // Predicated region
      $region25: #{encoder_forward_pallas.7} parent=23 // pred_check
        %p144 = pneg %p43
      $region26: #{encoder_forward_pallas.7} parent=23 // pred_check_branch
        %146 = sbr.rel (%p144) target = $region28
      $region27: #{encoder_forward_pallas.7} parent=23 // pred_region
        %p147 = scmp.lt.s32.totalorder %s16, 1
        %s148 = scalar_select %p147, %s16, 1
        %p149 = scmp.lt.s32.totalorder %s17, 0
        %s150 = scalar_select %p149, %s17, 0
        %s151 = smul.addr %s150, 7
        %s152 = smul.addr %s148, 7
        %s153 = sadd.s32 %s151, %s152
        %s154 = smul.addr %s153, 4
        %s155 = scalar_lea.vmem %s0, %s154
      $region28: #{encoder_forward_pallas.7} parent=23 // pred_fallthru
        _
    $region24: #{encoder_forward_pallas.7} parent=5 // pred_fallthru
      _
    %p156 = scmp.le.s32.totalorder 1, %s9
    %p157 = scmp.lt.s32.totalorder %s9, 3
    %p158 = pnand %p156, %p157
    %p159 = pneg %p158
    // Predicated region
    $region29: #{encoder_forward_pallas.7} parent=5 // pred_check
      _
    $region30: #{encoder_forward_pallas.7} parent=5 // pred_check_branch
      %161 = sbr.rel (%p158) target = $region32
    $region31: #{encoder_forward_pallas.7} parent=5 // pred_region
      %s162 = ssub.s32 %s9, 1
      %p163 = scmp.lt.s32.totalorder %s18, 1
      %s164 = scalar_select %p163, %s18, 1
      %p165 = scmp.lt.s32.totalorder %s19, 0
      %s166 = scalar_select %p165, %s19, 0
      %s167 = smul.addr %s166, 7
      %s168 = smul.addr %s164, 7
      %s169 = sadd.s32 %s167, %s168
      %s170 = smul.addr %s169, 4
      %s171 = scalar_lea.vmem %s0, %s170
      %p172 = pneg %p49
      %p173 = pneg %p46
      %p174 = pneg %p70
      %p175 = pneg %p67
      %p176 = pneg %p91
      %p177 = pneg %p88
      %p178 = pneg %p119
      %p179 = pneg %p116
      %p180 = scmp.lt.s32.totalorder %s18, 1
      %s181 = scalar_select %p180, %s18, 1
      %p182 = scmp.lt.s32.totalorder %s19, 0
      %s183 = scalar_select %p182, %s19, 0
      %s184 = smul.addr %s183, 4
      %s185 = smul.addr %s181, 4
      %s186 = sadd.s32 %s184, %s185
      %s187 = smul.addr %s186, 8
      %s188 = scalar_lea.vmem %s3, %s187
      %p189 = scmp.lt.s32.totalorder %s18, 1
      %s190 = scalar_select %p189, %s18, 1
      %p191 = scmp.lt.s32.totalorder %s19, 0
      %s192 = scalar_select %p191, %s19, 0
      %s193 = smul.addr %s192, 7
      %s194 = smul.addr %s190, 7
      %s195 = sadd.s32 %s193, %s194
      %s196 = smul.addr %s195, 4
      %s197 = scalar_lea.vmem %s0, %s196
      %p198 = scmp.lt.s32.totalorder %s18, 1
      %s199 = scalar_select %p198, %s18, 1
      %p200 = scmp.lt.s32.totalorder %s19, 0
      %s201 = scalar_select %p200, %s19, 0
      %s202 = smul.addr %s201, 4
      %s203 = smul.addr %s199, 4
      %s204 = sadd.s32 %s202, %s203
      %s205 = smul.addr %s204, 8
      %s206 = scalar_lea.vmem %s3, %s205
      %v208 = vld [vmem:[%s197] sm:$0xf]
      %v209 = vld [vmem:[%s197 + $0x4] sm:$0xf]
      %v210 = vld [vmem:[%s197 + $0x8] sm:$0xf]
      %v211 = vld [vmem:[%s197 + $0xc] sm:$0xf]
      %v212 = vld [vmem:[%s197 + $0x10] sm:$0xf]
      %v213 = vld [vmem:[%s197 + $0x14] sm:$0xf]
      %v214 = vld [vmem:[%s197 + $0x18] sm:$0x1]
      %v219 = vunpack.c.l.b16 %v208
      %v220 = vunpack.c.l.b16 %v209
      %v221 = vunpack.c.l.b16 %v210
      %v222 = vunpack.c.l.b16 %v211
      %v223 = vpack.c.b16 %v220, %v219
      %v224 = vpack.c.b16 %v222, %v221
      %v228 = vunpack.c.l.b16 %v212
      %v229 = vpack.c.b16 %v228, %v228
      %vm230 = vsmask.f32 7424
      %v232 = vshrl.u32 %v223, 16
      %v234 = vshll.u32 %v223, 16
      %v236 = vrot.slane %v234, 1
      %v237 = vor.u32 %v232, %v236
      %v239 = vshll.u32 %v224, 16
      %v241 = vrot.slane %v239, 1
      %v242 = vsel %vm230, %v237, %v241
      %v243 = vshrl.u32 %v224, 16
      %v245 = vor.u32 %v243, %v241
      %v247 = vshll.u32 %v229, 16
      %v249 = vrot.slane %v247, 1
      %v250 = vsel %vm230, %v245, %v249
      %vm253 = vcmask 1046528
      %v254 = vrot.slane %v223, 1
      %v255 = vrot.slane %v224, 1
      %v256 = vsel %vm253, %v254, %v255
      %v257 = vrot.slane %v229, 1
      %v258 = vsel %vm253, %v255, %v257
      %v261 = vpack.c.b16 %v221, %v220
      %v262 = vpack.c.b16 %v228, %v222
      %v266 = vunpack.c.l.b16 %v213
      %v267 = vpack.c.b16 %v266, %v266
      %v269 = vshrl.u32 %v261, 16
      %v271 = vshll.u32 %v261, 16
      %v273 = vrot.slane %v271, 1
      %v274 = vor.u32 %v269, %v273
      %v276 = vshll.u32 %v262, 16
      %v278 = vrot.slane %v276, 1
      %v279 = vsel %vm230, %v274, %v278
      %v280 = vshrl.u32 %v262, 16
      %v282 = vor.u32 %v280, %v278
      %v284 = vshll.u32 %v267, 16
      %v286 = vrot.slane %v284, 1
      %v287 = vsel %vm230, %v282, %v286
      %v290 = vrot.slane %v261, 1
      %v291 = vrot.slane %v262, 1
      %v292 = vsel %vm253, %v290, %v291
      %v293 = vrot.slane %v267, 1
      %v294 = vsel %vm253, %v291, %v293
      %v297 = vpack.c.b16 %v266, %v228
      %v300 = vunpack.c.l.b16 %v214
      %v301 = vpack.c.b16 %v300, %v300
      %v303 = vshll.u32 %v297, 16
      %v305 = vrot.slane %v303, 1
      %v306 = vsel %vm230, %v245, %v305
      %v307 = vshrl.u32 %v297, 16
      %v309 = vor.u32 %v307, %v305
      %v311 = vshll.u32 %v301, 16
      %v313 = vrot.slane %v311, 1
      %v314 = vsel %vm230, %v309, %v313
      %v317 = vrot.slane %v297, 1
      %v318 = vsel %vm253, %v255, %v317
      %v319 = vrot.slane %v301, 1
      %v320 = vsel %vm253, %v317, %v319
      %v323 = vld [vmem:[%s1] sm:$0xf]
      %v324 = vld [vmem:[%s1 + $0x4] sm:$0xf]
      %v325 = vld [vmem:[%s1 + $0x8] sm:$0xf]
      %v326 = vld [vmem:[%s1 + $0xc] sm:$0xf]
      %v327 = vld [vmem:[%s1 + $0x10] sm:$0xf]
      %v328 = vld [vmem:[%s1 + $0x14] sm:$0xf]
      %v329 = vld [vmem:[%s1 + $0x18] sm:$0xf]
      %v330 = vld [vmem:[%s1 + $0x1c] sm:$0xf]
      %v331 = vld [vmem:[%s1 + $0x20] sm:$0xf]
      %v332 = vld [vmem:[%s1 + $0x24] sm:$0xf]
      %v333 = vld [vmem:[%s1 + $0x28] sm:$0xf]
      %v334 = vld [vmem:[%s1 + $0x2c] sm:$0xf]
      %v335 = vld [vmem:[%s1 + $0x30] sm:$0xf]
      %v336 = vld [vmem:[%s1 + $0x34] sm:$0xf]
      %v337 = vld [vmem:[%s1 + $0x38] sm:$0xf]
      %v338 = vld [vmem:[%s1 + $0x3c] sm:$0xf]
      %v339 = vld [vmem:[%s1 + $0x40] sm:$0xf]
      %v340 = vld [vmem:[%s1 + $0x44] sm:$0xf]
      %v341 = vld [vmem:[%s1 + $0x48] sm:$0xf]
      %v342 = vld [vmem:[%s1 + $0x4c] sm:$0xf]
      %v343 = vld [vmem:[%s1 + $0x50] sm:$0xf]
      %v344 = vld [vmem:[%s1 + $0x54] sm:$0xf]
      %v345 = vld [vmem:[%s1 + $0x58] sm:$0xf]
      %v346 = vld [vmem:[%s1 + $0x5c] sm:$0xf]
      %v347 = vld [vmem:[%s1 + $0x60] sm:$0xf]
      %v348 = vld [vmem:[%s1 + $0x64] sm:$0xf]
      %v349 = vld [vmem:[%s1 + $0x68] sm:$0xf]
      %v350 = vld [vmem:[%s1 + $0x6c] sm:$0xf]
      %v351 = vld [vmem:[%s1 + $0x70] sm:$0xf]
      %v352 = vld [vmem:[%s1 + $0x74] sm:$0xf]
      %v353 = vld [vmem:[%s1 + $0x78] sm:$0xf]
      %v354 = vld [vmem:[%s1 + $0x7c] sm:$0xf]
      %v355 = vld [vmem:[%s1 + $0x80] sm:$0xf]
      %v356 = vld [vmem:[%s1 + $0x84] sm:$0xf]
      %v357 = vld [vmem:[%s1 + $0x88] sm:$0xf]
      %v358 = vld [vmem:[%s1 + $0x8c] sm:$0xf]
      %v359 = vld [vmem:[%s1 + $0x90] sm:$0xf]
      %v360 = vld [vmem:[%s1 + $0x94] sm:$0xf]
      %v361 = vld [vmem:[%s1 + $0x98] sm:$0xf]
      %v362 = vld [vmem:[%s1 + $0x9c] sm:$0xf]
      %v363 = vld [vmem:[%s1 + $0xa0] sm:$0xf]
      %v364 = vld [vmem:[%s1 + $0xa4] sm:$0xf]
      %v365 = vld [vmem:[%s1 + $0xa8] sm:$0xf]
      %v366 = vld [vmem:[%s1 + $0xac] sm:$0xf]
      %v367 = vld [vmem:[%s1 + $0xb0] sm:$0xf]
      %v368 = vld [vmem:[%s1 + $0xb4] sm:$0xf]
      %v369 = vld [vmem:[%s1 + $0xb8] sm:$0xf]
      %v370 = vld [vmem:[%s1 + $0xbc] sm:$0xf]
      %v371 = vld [vmem:[%s1 + $0xc0] sm:$0xf]
      %v372 = vld [vmem:[%s1 + $0xc4] sm:$0xf]
      %v373 = vld [vmem:[%s1 + $0xc8] sm:$0xf]
      %v374 = vld [vmem:[%s1 + $0xcc] sm:$0xf]
      %v375 = vld [vmem:[%s1 + $0xd0] sm:$0xf]
      %v376 = vld [vmem:[%s1 + $0xd4] sm:$0xf]
      %v377 = vld [vmem:[%s1 + $0xd8] sm:$0xf]
      %v378 = vld [vmem:[%s1 + $0xdc] sm:$0xf]
      %v379 = vld [vmem:[%s1 + $0xe0] sm:$0xf]
      %v380 = vld [vmem:[%s1 + $0xe4] sm:$0xf]
      %v381 = vld [vmem:[%s1 + $0xe8] sm:$0xf]
      %v382 = vld [vmem:[%s1 + $0xec] sm:$0xf]
      %v383 = vld [vmem:[%s1 + $0xf0] sm:$0xf]
      %v384 = vld [vmem:[%s1 + $0xf4] sm:$0xf]
      %v385 = vld [vmem:[%s1 + $0xf8] sm:$0xf]
      %v386 = vld [vmem:[%s1 + $0xfc] sm:$0xf]
      %v387 = vld [vmem:[%s1 + $0x100] sm:$0xf]
      %v388 = vld [vmem:[%s1 + $0x104] sm:$0xf]
      %v389 = vld [vmem:[%s1 + $0x108] sm:$0xf]
      %v390 = vld [vmem:[%s1 + $0x10c] sm:$0xf]
      %v391 = vld [vmem:[%s1 + $0x110] sm:$0xf]
      %v392 = vld [vmem:[%s1 + $0x114] sm:$0xf]
      %v393 = vld [vmem:[%s1 + $0x118] sm:$0xf]
      %v394 = vld [vmem:[%s1 + $0x11c] sm:$0xf]
      %v395 = vld [vmem:[%s1 + $0x120] sm:$0xf]
      %v396 = vld [vmem:[%s1 + $0x124] sm:$0xf]
      %v397 = vld [vmem:[%s1 + $0x128] sm:$0xf]
      %v398 = vld [vmem:[%s1 + $0x12c] sm:$0xf]
      %v399 = vld [vmem:[%s1 + $0x130] sm:$0xf]
      %v400 = vld [vmem:[%s1 + $0x134] sm:$0xf]
      %v401 = vld [vmem:[%s1 + $0x138] sm:$0xf]
      %v402 = vld [vmem:[%s1 + $0x13c] sm:$0xf]
      %v403 = vld [vmem:[%s1 + $0x140] sm:$0xf]
      %v404 = vld [vmem:[%s1 + $0x144] sm:$0xf]
      %v405 = vld [vmem:[%s1 + $0x148] sm:$0xf]
      %v406 = vld [vmem:[%s1 + $0x14c] sm:$0xf]
      %v407 = vld [vmem:[%s1 + $0x150] sm:$0xf]
      %v408 = vld [vmem:[%s1 + $0x154] sm:$0xf]
      %v409 = vld [vmem:[%s1 + $0x158] sm:$0xf]
      %v410 = vld [vmem:[%s1 + $0x15c] sm:$0xf]
      %v411 = vld [vmem:[%s1 + $0x160] sm:$0xf]
      %v412 = vld [vmem:[%s1 + $0x164] sm:$0xf]
      %v413 = vld [vmem:[%s1 + $0x168] sm:$0xf]
      %v414 = vld [vmem:[%s1 + $0x16c] sm:$0xf]
      %v415 = vld [vmem:[%s1 + $0x170] sm:$0xf]
      %v416 = vld [vmem:[%s1 + $0x174] sm:$0xf]
      %v417 = vld [vmem:[%s1 + $0x178] sm:$0xf]
      %v418 = vld [vmem:[%s1 + $0x17c] sm:$0xf]
      %v419 = vld [vmem:[%s1 + $0x180] sm:$0xf]
      %v420 = vld [vmem:[%s1 + $0x184] sm:$0xf]
      %v421 = vld [vmem:[%s1 + $0x188] sm:$0xf]
      %v422 = vld [vmem:[%s1 + $0x18c] sm:$0xf]
      %v423 = vld [vmem:[%s1 + $0x190] sm:$0xf]
      %v424 = vld [vmem:[%s1 + $0x194] sm:$0xf]
      %v425 = vld [vmem:[%s1 + $0x198] sm:$0xf]
      %v426 = vld [vmem:[%s1 + $0x19c] sm:$0xf]
      %v427 = vld [vmem:[%s1 + $0x1a0] sm:$0xf]
      %v428 = vld [vmem:[%s1 + $0x1a4] sm:$0xf]
      %v429 = vld [vmem:[%s1 + $0x1a8] sm:$0xf]
      %v430 = vld [vmem:[%s1 + $0x1ac] sm:$0xf]
      %v431 = vld [vmem:[%s1 + $0x1b0] sm:$0xf]
      %v432 = vld [vmem:[%s1 + $0x1b4] sm:$0xf]
      %v433 = vld [vmem:[%s1 + $0x1b8] sm:$0xf]
      %v434 = vld [vmem:[%s1 + $0x1bc] sm:$0xf]
      %v435 = vld [vmem:[%s1 + $0x1c0] sm:$0xf]
      %v436 = vld [vmem:[%s1 + $0x1c4] sm:$0xf]
      %v437 = vld [vmem:[%s1 + $0x1c8] sm:$0xf]
      %v438 = vld [vmem:[%s1 + $0x1cc] sm:$0xf]
      %v439 = vld [vmem:[%s1 + $0x1d0] sm:$0xf]
      %v440 = vld [vmem:[%s1 + $0x1d4] sm:$0xf]
      %v441 = vld [vmem:[%s1 + $0x1d8] sm:$0xf]
      %v442 = vld [vmem:[%s1 + $0x1dc] sm:$0xf]
      %v443 = vld [vmem:[%s1 + $0x1e0] sm:$0xf]
      %v444 = vld [vmem:[%s1 + $0x1e4] sm:$0xf]
      %v445 = vld [vmem:[%s1 + $0x1e8] sm:$0xf]
      %v446 = vld [vmem:[%s1 + $0x1ec] sm:$0xf]
      %v447 = vld [vmem:[%s1 + $0x1f0] sm:$0xf]
      %v448 = vld [vmem:[%s1 + $0x1f4] sm:$0xf]
      %v449 = vld [vmem:[%s1 + $0x1f8] sm:$0xf]
      %v450 = vld [vmem:[%s1 + $0x1fc] sm:$0xf]
      %v451 = vld [vmem:[%s1 + $0x200] sm:$0xf]
      %v452 = vld [vmem:[%s1 + $0x204] sm:$0xf]
      %v453 = vld [vmem:[%s1 + $0x208] sm:$0xf]
      %v454 = vld [vmem:[%s1 + $0x20c] sm:$0xf]
      %v455 = vld [vmem:[%s1 + $0x210] sm:$0xf]
      %v456 = vld [vmem:[%s1 + $0x214] sm:$0xf]
      %v457 = vld [vmem:[%s1 + $0x218] sm:$0xf]
      %v458 = vld [vmem:[%s1 + $0x21c] sm:$0xf]
      %v459 = vld [vmem:[%s1 + $0x220] sm:$0xf]
      %v460 = vld [vmem:[%s1 + $0x224] sm:$0xf]
      %v461 = vld [vmem:[%s1 + $0x228] sm:$0xf]
      %v462 = vld [vmem:[%s1 + $0x22c] sm:$0xf]
      %v463 = vld [vmem:[%s1 + $0x230] sm:$0xf]
      %v464 = vld [vmem:[%s1 + $0x234] sm:$0xf]
      %v465 = vld [vmem:[%s1 + $0x238] sm:$0xf]
      %v466 = vld [vmem:[%s1 + $0x23c] sm:$0xf]
      %v467 = vld [vmem:[%s2] sm:$0x1]
      %v469 = vlaneseq
      %v470 = vshrl.u32 %v469, 7
      %v471 = vsub.s32 0, %v470
      %v472 = vrot.slane %v467, %v471
      %v618 = vunpack.c.l.b16 %v323
      %v619 = vunpack.c.l.b16 %v324
      %v620 = vunpack.c.l.b16 %v325
      %v621 = vunpack.c.l.b16 %v326
      %v622 = vunpack.c.l.b16 %v327
      %v623 = vunpack.c.l.b16 %v328
      %v624 = vunpack.c.l.b16 %v329
      %v625 = vunpack.c.l.b16 %v330
      %v626 = vunpack.c.l.b16 %v331
      %v627 = vunpack.c.l.b16 %v332
      %v628 = vunpack.c.l.b16 %v333
      %v629 = vunpack.c.l.b16 %v334
      %v630 = vunpack.c.l.b16 %v335
      %v631 = vunpack.c.l.b16 %v336
      %v632 = vunpack.c.l.b16 %v337
      %v633 = vunpack.c.l.b16 %v338
      %v634 = vunpack.c.l.b16 %v339
      %v635 = vunpack.c.l.b16 %v340
      %v636 = vunpack.c.l.b16 %v341
      %v637 = vunpack.c.l.b16 %v342
      %v638 = vunpack.c.l.b16 %v343
      %v639 = vunpack.c.l.b16 %v344
      %v640 = vunpack.c.l.b16 %v345
      %v641 = vunpack.c.l.b16 %v346
      %v642 = vunpack.c.l.b16 %v347
      %v643 = vunpack.c.l.b16 %v348
      %v644 = vunpack.c.l.b16 %v349
      %v645 = vunpack.c.l.b16 %v350
      %v646 = vunpack.c.l.b16 %v351
      %v647 = vunpack.c.l.b16 %v352
      %v648 = vunpack.c.l.b16 %v353
      %v649 = vunpack.c.l.b16 %v354
      %v650 = vunpack.c.l.b16 %v355
      %v651 = vunpack.c.l.b16 %v356
      %v652 = vunpack.c.l.b16 %v357
      %v653 = vunpack.c.l.b16 %v358
      %v654 = vunpack.c.l.b16 %v359
      %v655 = vunpack.c.l.b16 %v360
      %v656 = vunpack.c.l.b16 %v361
      %v657 = vunpack.c.l.b16 %v362
      %v658 = vunpack.c.l.b16 %v363
      %v659 = vunpack.c.l.b16 %v364
      %v660 = vunpack.c.l.b16 %v365
      %v661 = vunpack.c.l.b16 %v366
      %v662 = vunpack.c.l.b16 %v367
      %v663 = vunpack.c.l.b16 %v368
      %v664 = vunpack.c.l.b16 %v369
      %v665 = vunpack.c.l.b16 %v370
      %v666 = vunpack.c.l.b16 %v371
      %v667 = vunpack.c.l.b16 %v372
      %v668 = vunpack.c.l.b16 %v373
      %v669 = vunpack.c.l.b16 %v374
      %v670 = vunpack.c.l.b16 %v375
      %v671 = vunpack.c.l.b16 %v376
      %v672 = vunpack.c.l.b16 %v377
      %v673 = vunpack.c.l.b16 %v378
      %v674 = vunpack.c.l.b16 %v379
      %v675 = vunpack.c.l.b16 %v380
      %v676 = vunpack.c.l.b16 %v381
      %v677 = vunpack.c.l.b16 %v382
      %v678 = vunpack.c.l.b16 %v383
      %v679 = vunpack.c.l.b16 %v384
      %v680 = vunpack.c.l.b16 %v385
      %v681 = vunpack.c.l.b16 %v386
      %v682 = vunpack.c.l.b16 %v387
      %v683 = vunpack.c.l.b16 %v388
      %v684 = vunpack.c.l.b16 %v389
      %v685 = vunpack.c.l.b16 %v390
      %v686 = vunpack.c.l.b16 %v391
      %v687 = vunpack.c.l.b16 %v392
      %v688 = vunpack.c.l.b16 %v393
      %v689 = vunpack.c.l.b16 %v394
      %v690 = vunpack.c.l.b16 %v395
      %v691 = vunpack.c.l.b16 %v396
      %v692 = vunpack.c.l.b16 %v397
      %v693 = vunpack.c.l.b16 %v398
      %v694 = vunpack.c.l.b16 %v399
      %v695 = vunpack.c.l.b16 %v400
      %v696 = vunpack.c.l.b16 %v401
      %v697 = vunpack.c.l.b16 %v402
      %v698 = vunpack.c.l.b16 %v403
      %v699 = vunpack.c.l.b16 %v404
      %v700 = vunpack.c.l.b16 %v405
      %v701 = vunpack.c.l.b16 %v406
      %v702 = vunpack.c.l.b16 %v407
      %v703 = vunpack.c.l.b16 %v408
      %v704 = vunpack.c.l.b16 %v409
      %v705 = vunpack.c.l.b16 %v410
      %v706 = vunpack.c.l.b16 %v411
      %v707 = vunpack.c.l.b16 %v412
      %v708 = vunpack.c.l.b16 %v413
      %v709 = vunpack.c.l.b16 %v414
      %v710 = vunpack.c.l.b16 %v415
      %v711 = vunpack.c.l.b16 %v416
      %v712 = vunpack.c.l.b16 %v417
      %v713 = vunpack.c.l.b16 %v418
      %v714 = vunpack.c.l.b16 %v419
      %v715 = vunpack.c.l.b16 %v420
      %v716 = vunpack.c.l.b16 %v421
      %v717 = vunpack.c.l.b16 %v422
      %v718 = vunpack.c.l.b16 %v423
      %v719 = vunpack.c.l.b16 %v424
      %v720 = vunpack.c.l.b16 %v425
      %v721 = vunpack.c.l.b16 %v426
      %v722 = vunpack.c.l.b16 %v427
      %v723 = vunpack.c.l.b16 %v428
      %v724 = vunpack.c.l.b16 %v429
      %v725 = vunpack.c.l.b16 %v430
      %v726 = vunpack.c.l.b16 %v431
      %v727 = vunpack.c.l.b16 %v432
      %v728 = vunpack.c.l.b16 %v433
      %v729 = vunpack.c.l.b16 %v434
      %v730 = vunpack.c.l.b16 %v435
      %v731 = vunpack.c.l.b16 %v436
      %v732 = vunpack.c.l.b16 %v437
      %v733 = vunpack.c.l.b16 %v438
      %v734 = vunpack.c.l.b16 %v439
      %v735 = vunpack.c.l.b16 %v440
      %v736 = vunpack.c.l.b16 %v441
      %v737 = vunpack.c.l.b16 %v442
      %v738 = vunpack.c.l.b16 %v443
      %v739 = vunpack.c.l.b16 %v444
      %v740 = vunpack.c.l.b16 %v445
      %v741 = vunpack.c.l.b16 %v446
      %v742 = vunpack.c.l.b16 %v447
      %v743 = vunpack.c.l.b16 %v448
      %v744 = vunpack.c.l.b16 %v449
      %v745 = vunpack.c.l.b16 %v450
      %v746 = vunpack.c.l.b16 %v451
      %v747 = vunpack.c.l.b16 %v452
      %v748 = vunpack.c.l.b16 %v453
      %v749 = vunpack.c.l.b16 %v454
      %v750 = vunpack.c.l.b16 %v455
      %v751 = vunpack.c.l.b16 %v456
      %v752 = vunpack.c.l.b16 %v457
      %v753 = vunpack.c.l.b16 %v458
      %v754 = vunpack.c.l.b16 %v459
      %v755 = vunpack.c.l.b16 %v460
      %v756 = vunpack.c.l.b16 %v461
      %v757 = vunpack.c.l.b16 %v462
      %v758 = vunpack.c.l.b16 %v463
      %v759 = vunpack.c.l.b16 %v464
      %v760 = vunpack.c.l.b16 %v465
      %v761 = vunpack.c.l.b16 %v466
      %v762 = vpack.c.b16 %v619, %v618
      %v763 = vpack.c.b16 %v621, %v620
      %v764 = vpack.c.b16 %v623, %v622
      %v765 = vpack.c.b16 %v625, %v624
      %v766 = vpack.c.b16 %v627, %v626
      %v767 = vpack.c.b16 %v629, %v628
      %v768 = vpack.c.b16 %v631, %v630
      %v769 = vpack.c.b16 %v633, %v632
      %v770 = vpack.c.b16 %v635, %v634
      %v771 = vpack.c.b16 %v637, %v636
      %v772 = vpack.c.b16 %v639, %v638
      %v773 = vpack.c.b16 %v641, %v640
      %v774 = vpack.c.b16 %v643, %v642
      %v775 = vpack.c.b16 %v645, %v644
      %v776 = vpack.c.b16 %v647, %v646
      %v777 = vpack.c.b16 %v649, %v648
      %v778 = vpack.c.b16 %v651, %v650
      %v779 = vpack.c.b16 %v653, %v652
      %v780 = vpack.c.b16 %v655, %v654
      %v781 = vpack.c.b16 %v657, %v656
      %v782 = vpack.c.b16 %v659, %v658
      %v783 = vpack.c.b16 %v661, %v660
      %v784 = vpack.c.b16 %v663, %v662
      %v785 = vpack.c.b16 %v665, %v664
      %v786 = vpack.c.b16 %v667, %v666
      %v787 = vpack.c.b16 %v669, %v668
      %v788 = vpack.c.b16 %v671, %v670
      %v789 = vpack.c.b16 %v673, %v672
      %v790 = vpack.c.b16 %v675, %v674
      %v791 = vpack.c.b16 %v677, %v676
      %v792 = vpack.c.b16 %v679, %v678
      %v793 = vpack.c.b16 %v681, %v680
      %v794 = vpack.c.b16 %v683, %v682
      %v795 = vpack.c.b16 %v685, %v684
      %v796 = vpack.c.b16 %v687, %v686
      %v797 = vpack.c.b16 %v689, %v688
      %v798 = vpack.c.b16 %v691, %v690
      %v799 = vpack.c.b16 %v693, %v692
      %v800 = vpack.c.b16 %v695, %v694
      %v801 = vpack.c.b16 %v697, %v696
      %v802 = vpack.c.b16 %v699, %v698
      %v803 = vpack.c.b16 %v701, %v700
      %v804 = vpack.c.b16 %v703, %v702
      %v805 = vpack.c.b16 %v705, %v704
      %v806 = vpack.c.b16 %v707, %v706
      %v807 = vpack.c.b16 %v709, %v708
      %v808 = vpack.c.b16 %v711, %v710
      %v809 = vpack.c.b16 %v713, %v712
      %v810 = vpack.c.b16 %v715, %v714
      %v811 = vpack.c.b16 %v717, %v716
      %v812 = vpack.c.b16 %v719, %v718
      %v813 = vpack.c.b16 %v721, %v720
      %v814 = vpack.c.b16 %v723, %v722
      %v815 = vpack.c.b16 %v725, %v724
      %v816 = vpack.c.b16 %v727, %v726
      %v817 = vpack.c.b16 %v729, %v728
      %v818 = vpack.c.b16 %v731, %v730
      %v819 = vpack.c.b16 %v733, %v732
      %v820 = vpack.c.b16 %v735, %v734
      %v821 = vpack.c.b16 %v737, %v736
      %v822 = vpack.c.b16 %v739, %v738
      %v823 = vpack.c.b16 %v741, %v740
      %v824 = vpack.c.b16 %v743, %v742
      %v825 = vpack.c.b16 %v745, %v744
      %v826 = vpack.c.b16 %v747, %v746
      %v827 = vpack.c.b16 %v749, %v748
      %v828 = vpack.c.b16 %v751, %v750
      %v829 = vpack.c.b16 %v753, %v752
      %v830 = vpack.c.b16 %v755, %v754
      %v831 = vpack.c.b16 %v757, %v756
      %v832 = vpack.c.b16 %v759, %v758
      %v833 = vpack.c.b16 %v761, %v760
      %906 = vmatprep.subr.bf16.mxu0 0
      %907 = vmatpush1.bf16.msra.mxu0 %v762
      %908 = vmatprep.subr.bf16.mxu0 0
      %909 = vmatpush1.bf16.msra.mxu0 %v763
      %910 = vmatprep.subr.bf16.mxu0 0
      %911 = vmatpush1.bf16.msra.mxu0 %v764
      %912 = vmatprep.subr.bf16.mxu0 0
      %913 = vmatpush1.bf16.msra.mxu0 %v765
      %914 = vmatprep.subr.bf16.mxu0 0
      %915 = vmatpush1.bf16.msra.mxu0 %v766
      %916 = vmatprep.subr.bf16.mxu0 0
      %917 = vmatpush1.bf16.msra.mxu0 %v767
      %918 = vmatprep.subr.bf16.mxu0 0
      %919 = vmatpush1.bf16.msra.mxu0 %v768
      %920 = vmatprep.subr.bf16.mxu0 0
      %921 = vmatpush1.bf16.msra.mxu0 %v769
      %922 = vmatprep.subr.bf16.mxu0 0
      %923 = vmatpush1.bf16.msra.mxu0 %v770
      %924 = vmatprep.subr.bf16.mxu0 0
      %925 = vmatpush1.bf16.msra.mxu0 %v771
      %926 = vmatprep.subr.bf16.mxu0 0
      %927 = vmatpush1.bf16.msra.mxu0 %v772
      %928 = vmatprep.subr.bf16.mxu0 0
      %929 = vmatpush1.bf16.msra.mxu0 %v773
      %930 = vmatprep.subr.bf16.mxu0 0
      %931 = vmatpush1.bf16.msra.mxu0 %v774
      %932 = vmatprep.subr.bf16.mxu0 0
      %933 = vmatpush1.bf16.msra.mxu0 %v775
      %934 = vmatprep.subr.bf16.mxu0 0
      %935 = vmatpush1.bf16.msra.mxu0 %v776
      %936 = vmatprep.subr.bf16.mxu0 0
      %937 = vmatpush1.bf16.msra.mxu0 %v777
      %938 = vmatprep.mubr.bf16.mxu0 %v242
      %939 = vmatmul.mubr.bf16.gmra.mrb[0].mxu0 %v223
      %v940 = vpop.f32.mrb[0].mxu0
      %v941 = vadd.f32 %v472, %v940
      %v942 = vpop.f32.mrb[0].mxu0
      %v943 = vpop.f32.mrb[0].mxu0
      %v944 = vadd.f32 %v472, %v943
      %v945 = vpop.f32.mrb[0].mxu0
      %946 = vmatprep.mubr.bf16.mxu0 %v250
      %947 = vmatmul.mubr.bf16.gmra.mrb[0].mxu0 %v224
      %v948 = vpop.f32.mrb[0].mxu0
      %v949 = vadd.f32 %v472, %v948
      %v950 = vpop.f32.mrb[0].mxu0
      %v951 = vpop.f32.mrb[0].mxu0
      %v952 = vadd.f32 %v472, %v951
      %v953 = vpop.f32.mrb[0].mxu0
      %954 = vdwg.mxu0
      %955 = vmatprep.subr.bf16.mxu0 0
      %956 = vmatpush1.bf16.msra.mxu0 %v778
      %957 = vmatprep.subr.bf16.mxu0 0
      %958 = vmatpush1.bf16.msra.mxu0 %v779
      %959 = vmatprep.subr.bf16.mxu0 0
      %960 = vmatpush1.bf16.msra.mxu0 %v780
      %961 = vmatprep.subr.bf16.mxu0 0
      %962 = vmatpush1.bf16.msra.mxu0 %v781
      %963 = vmatprep.subr.bf16.mxu0 0
      %964 = vmatpush1.bf16.msra.mxu0 %v782
      %965 = vmatprep.subr.bf16.mxu0 0
      %966 = vmatpush1.bf16.msra.mxu0 %v783
      %967 = vmatprep.subr.bf16.mxu0 0
      %968 = vmatpush1.bf16.msra.mxu0 %v784
      %969 = vmatprep.subr.bf16.mxu0 0
      %970 = vmatpush1.bf16.msra.mxu0 %v785
      %971 = vmatprep.subr.bf16.mxu0 0
      %972 = vmatpush1.bf16.msra.mxu0 %v786
      %973 = vmatprep.subr.bf16.mxu0 0
      %974 = vmatpush1.bf16.msra.mxu0 %v787
      %975 = vmatprep.subr.bf16.mxu0 0
      %976 = vmatpush1.bf16.msra.mxu0 %v788
      %977 = vmatprep.subr.bf16.mxu0 0
      %978 = vmatpush1.bf16.msra.mxu0 %v789
      %979 = vmatprep.subr.bf16.mxu0 0
      %980 = vmatpush1.bf16.msra.mxu0 %v790
      %981 = vmatprep.subr.bf16.mxu0 0
      %982 = vmatpush1.bf16.msra.mxu0 %v791
      %983 = vmatprep.subr.bf16.mxu0 0
      %984 = vmatpush1.bf16.msra.mxu0 %v792
      %985 = vmatprep.subr.bf16.mxu0 0
      %986 = vmatpush1.bf16.msra.mxu0 %v793
      %987 = vmatprep.mubr.bf16.mxu0 %v261
      %988 = vmatmul.mubr.bf16.gmra.mrb[0].mxu0 %v256
      %v989 = vpop.f32.mrb[0].mxu0
      %v990 = vadd.f32 %v941, %v989
      %v991 = vpop.f32.mrb[0].mxu0
      %v992 = vpop.f32.mrb[0].mxu0
      %v993 = vadd.f32 %v944, %v992
      %v994 = vpop.f32.mrb[0].mxu0
      %995 = vmatprep.mubr.bf16.mxu0 %v262
      %996 = vmatmul.mubr.bf16.gmra.mrb[0].mxu0 %v258
      %v997 = vpop.f32.mrb[0].mxu0
      %v998 = vadd.f32 %v949, %v997
      %v999 = vpop.f32.mrb[0].mxu0
      %v1000 = vpop.f32.mrb[0].mxu0
      %v1001 = vadd.f32 %v952, %v1000
      %v1002 = vpop.f32.mrb[0].mxu0
      %1003 = vdwg.mxu0
      %1004 = vmatprep.subr.bf16.mxu0 0
      %1005 = vmatpush1.bf16.msra.mxu0 %v794
      %1006 = vmatprep.subr.bf16.mxu0 0
      %1007 = vmatpush1.bf16.msra.mxu0 %v795
      %1008 = vmatprep.subr.bf16.mxu0 0
      %1009 = vmatpush1.bf16.msra.mxu0 %v796
      %1010 = vmatprep.subr.bf16.mxu0 0
      %1011 = vmatpush1.bf16.msra.mxu0 %v797
      %1012 = vmatprep.subr.bf16.mxu0 0
      %1013 = vmatpush1.bf16.msra.mxu0 %v798
      %1014 = vmatprep.subr.bf16.mxu0 0
      %1015 = vmatpush1.bf16.msra.mxu0 %v799
      %1016 = vmatprep.subr.bf16.mxu0 0
      %1017 = vmatpush1.bf16.msra.mxu0 %v800
      %1018 = vmatprep.subr.bf16.mxu0 0
      %1019 = vmatpush1.bf16.msra.mxu0 %v801
      %1020 = vmatprep.subr.bf16.mxu0 0
      %1021 = vmatpush1.bf16.msra.mxu0 %v802
      %1022 = vmatprep.subr.bf16.mxu0 0
      %1023 = vmatpush1.bf16.msra.mxu0 %v803
      %1024 = vmatprep.subr.bf16.mxu0 0
      %1025 = vmatpush1.bf16.msra.mxu0 %v804
      %1026 = vmatprep.subr.bf16.mxu0 0
      %1027 = vmatpush1.bf16.msra.mxu0 %v805
      %1028 = vmatprep.subr.bf16.mxu0 0
      %1029 = vmatpush1.bf16.msra.mxu0 %v806
      %1030 = vmatprep.subr.bf16.mxu0 0
      %1031 = vmatpush1.bf16.msra.mxu0 %v807
      %1032 = vmatprep.subr.bf16.mxu0 0
      %1033 = vmatpush1.bf16.msra.mxu0 %v808
      %1034 = vmatprep.subr.bf16.mxu0 0
      %1035 = vmatpush1.bf16.msra.mxu0 %v809
      %1036 = vmatprep.mubr.bf16.mxu0 %v292
      %1037 = vmatmul.mubr.bf16.gmra.mrb[0].mxu0 %v279
      %v1038 = vpop.f32.mrb[0].mxu0
      %v1039 = vadd.f32 %v990, %v1038
      %v1040 = vpop.f32.mrb[0].mxu0
      %v1041 = vpop.f32.mrb[0].mxu0
      %v1042 = vadd.f32 %v993, %v1041
      %v1043 = vpop.f32.mrb[0].mxu0
      %1044 = vmatprep.mubr.bf16.mxu0 %v294
      %1045 = vmatmul.mubr.bf16.gmra.mrb[0].mxu0 %v287
      %v1046 = vpop.f32.mrb[0].mxu0
      %v1047 = vadd.f32 %v998, %v1046
      %v1048 = vpop.f32.mrb[0].mxu0
      %v1049 = vpop.f32.mrb[0].mxu0
      %v1050 = vadd.f32 %v1001, %v1049
      %v1051 = vpop.f32.mrb[0].mxu0
      %1052 = vdwg.mxu0
      %1053 = vmatprep.subr.bf16.mxu0 0
      %1054 = vmatpush1.bf16.msra.mxu0 %v810
      %1055 = vmatprep.subr.bf16.mxu0 0
      %1056 = vmatpush1.bf16.msra.mxu0 %v811
      %1057 = vmatprep.subr.bf16.mxu0 0
      %1058 = vmatpush1.bf16.msra.mxu0 %v812
      %1059 = vmatprep.subr.bf16.mxu0 0
      %1060 = vmatpush1.bf16.msra.mxu0 %v813
      %1061 = vmatprep.subr.bf16.mxu0 0
      %1062 = vmatpush1.bf16.msra.mxu0 %v814
      %1063 = vmatprep.subr.bf16.mxu0 0
      %1064 = vmatpush1.bf16.msra.mxu0 %v815
      %1065 = vmatprep.subr.bf16.mxu0 0
      %1066 = vmatpush1.bf16.msra.mxu0 %v816
      %1067 = vmatprep.subr.bf16.mxu0 0
      %1068 = vmatpush1.bf16.msra.mxu0 %v817
      %1069 = vmatprep.subr.bf16.mxu0 0
      %1070 = vmatpush1.bf16.msra.mxu0 %v818
      %1071 = vmatprep.subr.bf16.mxu0 0
      %1072 = vmatpush1.bf16.msra.mxu0 %v819
      %1073 = vmatprep.subr.bf16.mxu0 0
      %1074 = vmatpush1.bf16.msra.mxu0 %v820
      %1075 = vmatprep.subr.bf16.mxu0 0
      %1076 = vmatpush1.bf16.msra.mxu0 %v821
      %1077 = vmatprep.subr.bf16.mxu0 0
      %1078 = vmatpush1.bf16.msra.mxu0 %v822
      %1079 = vmatprep.subr.bf16.mxu0 0
      %1080 = vmatpush1.bf16.msra.mxu0 %v823
      %1081 = vmatprep.subr.bf16.mxu0 0
      %1082 = vmatpush1.bf16.msra.mxu0 %v824
      %1083 = vmatprep.subr.bf16.mxu0 0
      %1084 = vmatpush1.bf16.msra.mxu0 %v825
      %1085 = vmatprep.mubr.bf16.mxu0 %v306
      %1086 = vmatmul.mubr.bf16.gmra.mrb[0].mxu0 %v224
      %v1087 = vpop.f32.mrb[0].mxu0
      %v1088 = vadd.f32 %v1039, %v1087
      %v1089 = vpop.f32.mrb[0].mxu0
      %v1090 = vpop.f32.mrb[0].mxu0
      %v1091 = vadd.f32 %v1042, %v1090
      %v1092 = vpop.f32.mrb[0].mxu0
      %1093 = vmatprep.mubr.bf16.mxu0 %v314
      %1094 = vmatmul.mubr.bf16.gmra.mrb[0].mxu0 %v297
      %v1095 = vpop.f32.mrb[0].mxu0
      %v1096 = vadd.f32 %v1047, %v1095
      %v1097 = vpop.f32.mrb[0].mxu0
      %v1098 = vpop.f32.mrb[0].mxu0
      %v1099 = vadd.f32 %v1050, %v1098
      %v1100 = vpop.f32.mrb[0].mxu0
      %1101 = vdwg.mxu0
      %1102 = vmatprep.subr.bf16.mxu0 0
      %1103 = vmatpush1.bf16.msra.mxu0 %v826
      %1104 = vmatprep.subr.bf16.mxu0 0
      %1105 = vmatpush1.bf16.msra.mxu0 %v827
      %1106 = vmatprep.subr.bf16.mxu0 0
      %1107 = vmatpush1.bf16.msra.mxu0 %v828
      %1108 = vmatprep.subr.bf16.mxu0 0
      %1109 = vmatpush1.bf16.msra.mxu0 %v829
      %1110 = vmatprep.subr.bf16.mxu0 0
      %1111 = vmatpush1.bf16.msra.mxu0 %v830
      %1112 = vmatprep.subr.bf16.mxu0 0
      %1113 = vmatpush1.bf16.msra.mxu0 %v831
      %1114 = vmatprep.subr.bf16.mxu0 0
      %1115 = vmatpush1.bf16.msra.mxu0 %v832
      %1116 = vmatprep.subr.bf16.mxu0 0
      %1117 = vmatpush1.bf16.msra.mxu0 %v833
      %1118 = vmatprep.subr.bf16.mxu0 0
      %1119 = vmatpush1.bf16.msra.mxu0 0
      %1120 = vmatprep.subr.bf16.mxu0 0
      %1121 = vmatpush1.bf16.msra.mxu0 0
      %1122 = vmatprep.subr.bf16.mxu0 0
      %1123 = vmatpush1.bf16.msra.mxu0 0
      %1124 = vmatprep.subr.bf16.mxu0 0
      %1125 = vmatpush1.bf16.msra.mxu0 0
      %1126 = vmatprep.subr.bf16.mxu0 0
      %1127 = vmatpush1.bf16.msra.mxu0 0
      %1128 = vmatprep.subr.bf16.mxu0 0
      %1129 = vmatpush1.bf16.msra.mxu0 0
      %1130 = vmatprep.subr.bf16.mxu0 0
      %1131 = vmatpush1.bf16.msra.mxu0 0
      %1132 = vmatprep.subr.bf16.mxu0 0
      %1133 = vmatpush1.bf16.msra.mxu0 0
      %1134 = vmatprep.mubr.bf16.mxu0 0
      %1135 = vmatmul.mubr.bf16.gmra.mrb[0].mxu0 %v318
      %v1136 = vpop.f32.mrb[0].mxu0
      %v1137 = vadd.f32 %v1088, %v1136
      %v1138 = vpop.f32.mrb[0].mxu0
      %v1139 = vpop.f32.mrb[0].mxu0
      %v1140 = vadd.f32 %v1091, %v1139
      %v1141 = vpop.f32.mrb[0].mxu0
      %1142 = vmatprep.mubr.bf16.mxu0 0
      %1143 = vmatmul.mubr.bf16.gmra.mrb[0].mxu0 %v320
      %v1144 = vpop.f32.mrb[0].mxu0
      %v1145 = vadd.f32 %v1096, %v1144
      %v1146 = vpop.f32.mrb[0].mxu0
      %v1147 = vpop.f32.mrb[0].mxu0
      %v1148 = vadd.f32 %v1099, %v1147
      %v1149 = vpop.f32.mrb[0].mxu0
      %1150 = vdwg.mxu0
      %1151 = vst [vmem:[%s206] sm:$0xff] %v1137
      %1152 = vst [vmem:[%s206 + $0x8] sm:$0xff] %v1140
      %1153 = vst [vmem:[%s206 + $0x10] sm:$0xff] %v1145
      %1154 = vst [vmem:[%s206 + $0x18] sm:$0xff] %v1148
      %p1155 = scmp.lt.s32.totalorder %s18, 1
      %s1156 = scalar_select %p1155, %s18, 1
      %p1157 = scmp.lt.s32.totalorder %s19, 0
      %s1158 = scalar_select %p1157, %s19, 0
      %s1159 = smul.addr %s1158, 4
      %s1160 = smul.addr %s1156, 4
      %s1161 = sadd.s32 %s1159, %s1160
      %s1162 = smul.addr %s1161, 8
      %s1163 = scalar_lea.vmem %s3, %s1162
      // Predicated region
      $region33: #{encoder_forward_pallas.7} parent=31 // pred_check
        %p1164 = pneg %p116
      $region34: #{encoder_forward_pallas.7} parent=31 // pred_check_branch
        %1166 = sbr.rel (%p1164) target = $region36
      $region35: #{encoder_forward_pallas.7} parent=31 // pred_region
        _
      $region36: #{encoder_forward_pallas.7} parent=31 // pred_fallthru
        _
    $region32: #{encoder_forward_pallas.7} parent=5 // pred_fallthru
      _
    %p1167 = scmp.le.s32.totalorder 2, %s9
    // Predicated region
    $region37: #{encoder_forward_pallas.7} parent=5 // pred_check
      %p1168 = pneg %p1167
    $region38: #{encoder_forward_pallas.7} parent=5 // pred_check_branch
      %1170 = sbr.rel (%p1168) target = $region40
    $region39: #{encoder_forward_pallas.7} parent=5 // pred_region
      %s1171 = ssub.s32 %s9, 2
      // Predicated region
      $region41: #{encoder_forward_pallas.7} parent=39 // pred_check
        %p1172 = pneg %p122
      $region42: #{encoder_forward_pallas.7} parent=39 // pred_check_branch
        %1174 = sbr.rel (%p1172) target = $region44
      $region43: #{encoder_forward_pallas.7} parent=39 // pred_region
        %p1175 = scmp.lt.s32.totalorder %s20, 1
        %s1176 = scalar_select %p1175, %s20, 1
        %p1177 = scmp.lt.s32.totalorder %s21, 0
        %s1178 = scalar_select %p1177, %s21, 0
        %s1179 = smul.addr %s1178, 4
        %s1180 = smul.addr %s1176, 4
        %s1181 = sadd.s32 %s1179, %s1180
        %s1182 = smul.addr %s1181, 8
        %s1183 = scalar_lea.vmem %s3, %s1182
      $region44: #{encoder_forward_pallas.7} parent=39 // pred_fallthru
        _
    $region40: #{encoder_forward_pallas.7} parent=5 // pred_fallthru
      _
  $region6: #{encoder_forward_pallas.7} parent=0 // loop_footer
    %s13 = sadd.s32 1, %s9
  $region7: #{encoder_forward_pallas.7} parent=0 // loop_footer_branch
    %8 = sbr.rel target = $region3
  $region8: #{encoder_forward_pallas.7} parent=0 // loop_exit
    _

// kernel: encoder_forward_pallas.8
$region0: #{encoder_forward_pallas.8}
  #allocation0 [shape = 'u32[]', space=smem, size = 0x4, offset = 0x4, fixed_abs, tag = 'smem constant byte address 0x4 - core index']
  #allocation1 [shape = 'u32[144,128]{1,0:T(1,128)}', space=vmem, size = 0x12000, scoped, tag = 'internal scratch']
  %s0 = inlined_call_operand.vmem [shape: f32[2,1,50,128], index: 0, kind: input, shape index: {}]
  %s1 = inlined_call_operand.vmem [shape: bf16[1152,128], index: 1, kind: input, shape index: {}]
  %s2 = inlined_call_operand.vmem [shape: f32[1,128], index: 2, kind: input, shape index: {}]
  %s3 = inlined_call_operand.vmem [shape: bf16[128,128], index: 3, kind: input, shape index: {}]
  %s4 = inlined_call_operand.vmem [shape: f32[1,128], index: 4, kind: input, shape index: {}]
  %s5 = inlined_call_operand.vmem [shape: f32[2,1,32,128], index: 5, kind: output, shape index: {}]
  %s6 = sld [smem:[#allocation0]]
  $region53: #{encoder_forward_pallas.8} parent=0
    _
  %s8 = ssub.s32 1, %s6
  %s9 = scalar_select 0, %s8, %s6
  loop: start=0, step=1, limit=4
  $region2: #{encoder_forward_pallas.8} parent=0 // loop_pre_header
    _
  $region3: #{encoder_forward_pallas.8} parent=0 // loop_header
    %s11 = sphi 0, %s15
    %p12 = scmp.ge.s32.totalorder %s11, 4
    %s18 = sphi 0, %s30
    %s19 = sphi 0, %s26
    %s20 = sphi 0, %s18
    %s21 = sphi 0, %s19
    %s22 = sphi 0, %s20
    %s23 = sphi 0, %s21
    %s35 = sphi 0, %s37
    %s38 = sphi 0, %s35
    %s39 = sphi 0, %s38
    %s55 = sphi 0, %s39
    %s59 = sphi 0, %s59
    %s61 = sphi 0, %s59
    %s62 = sphi 0, %s61
    %s76 = sphi 0, %s62
    %s80 = sphi 0, %s80
    %s82 = sphi 0, %s80
    %s83 = sphi 0, %s82
    %s97 = sphi 0, %s83
    %s101 = sphi 0, %s101
    %s103 = sphi 0, %s101
    %s104 = sphi 0, %s103
    %s118 = sphi 0, %s104
    %s122 = sphi 0, %s122
    %s124 = sphi 0, %s122
    %s125 = sphi 0, %s124
    %s139 = sphi 0, %s125
    %s147 = sphi 0, %s149
    %s150 = sphi 0, %s147
    %s151 = sphi 0, %s150
    %s167 = sphi 0, %s151
  $region4: #{encoder_forward_pallas.8} parent=0 // loop_header_branch
    %14 = sbr.rel (%p12) target = $region8
  $region5: #{encoder_forward_pallas.8} parent=0 // loop_body
    %s16 = ssub.s32 %s11, 1
    %s17 = ssub.s32 %s11, 2
    %s24 = sadd.s32 1, %s19
    %p25 = scmp.ge.s32.totalorder %s24, 1
    %s26 = scalar_select %p25, 0, %s24
    %s27 = sadd.s32 1, %s18
    %s28 = scalar_select %p25, %s27, %s18
    %p29 = scmp.ge.s32.totalorder %s28, 2
    %s30 = scalar_select %p29, 0, %s28
    %s31 = ssub.s32 %s18, %s30
    %s32 = ssub.s32 %s19, %s26
    %s33 = sor.u32 %s31, %s32
    %p34 = scmp.eq.s32.totalorder %s33, 0
    %s36 = sadd.s32 %s35, 1
    %s37 = scalar_select %p34, %s35, %s36
    %p40 = pneg %p34
    %p41 = scmp.eq.s32.totalorder %s11, 1
    %p42 = por %p40, %p41
    %p43 = scmp.ne.s32.totalorder %s35, %s38
    %p44 = scmp.eq.s32.totalorder %s11, 0
    %p45 = por %p43, %p44
    %p46 = scmp.ne.s32.totalorder %s35, %s38
    %p47 = scmp.eq.s32.totalorder %s16, 1
    %p48 = por %p46, %p47
    %p49 = scmp.ne.s32.totalorder %s38, %s39
    %p50 = scmp.eq.s32.totalorder %s16, 0
    %p51 = por %p49, %p50
    %p52 = scmp.ne.s32.totalorder %s38, %s39
    %p53 = scmp.eq.s32.totalorder %s17, 1
    %p54 = por %p52, %p53
    %p56 = scmp.ne.s32.totalorder %s39, %s55
    %p57 = scmp.eq.s32.totalorder %s17, 0
    %p58 = por %p56, %p57
    %s60 = sadd.s32 %s59, 1
    %p63 = scmp.eq.s32.totalorder %s11, 1
    %p64 = scmp.ne.s32.totalorder %s59, %s61
    %p65 = scmp.eq.s32.totalorder %s11, 0
    %p66 = por %p64, %p65
    %p67 = scmp.ne.s32.totalorder %s59, %s61
    %p68 = scmp.eq.s32.totalorder %s16, 1
    %p69 = por %p67, %p68
    %p70 = scmp.ne.s32.totalorder %s61, %s62
    %p71 = scmp.eq.s32.totalorder %s16, 0
    %p72 = por %p70, %p71
    %p73 = scmp.ne.s32.totalorder %s61, %s62
    %p74 = scmp.eq.s32.totalorder %s17, 1
    %p75 = por %p73, %p74
    %p77 = scmp.ne.s32.totalorder %s62, %s76
    %p78 = scmp.eq.s32.totalorder %s17, 0
    %p79 = por %p77, %p78
    %s81 = sadd.s32 %s80, 1
    %p84 = scmp.eq.s32.totalorder %s11, 1
    %p85 = scmp.ne.s32.totalorder %s80, %s82
    %p86 = scmp.eq.s32.totalorder %s11, 0
    %p87 = por %p85, %p86
    %p88 = scmp.ne.s32.totalorder %s80, %s82
    %p89 = scmp.eq.s32.totalorder %s16, 1
    %p90 = por %p88, %p89
    %p91 = scmp.ne.s32.totalorder %s82, %s83
    %p92 = scmp.eq.s32.totalorder %s16, 0
    %p93 = por %p91, %p92
    %p94 = scmp.ne.s32.totalorder %s82, %s83
    %p95 = scmp.eq.s32.totalorder %s17, 1
    %p96 = por %p94, %p95
    %p98 = scmp.ne.s32.totalorder %s83, %s97
    %p99 = scmp.eq.s32.totalorder %s17, 0
    %p100 = por %p98, %p99
    %s102 = sadd.s32 %s101, 1
    %p105 = scmp.eq.s32.totalorder %s11, 1
    %p106 = scmp.ne.s32.totalorder %s101, %s103
    %p107 = scmp.eq.s32.totalorder %s11, 0
    %p108 = por %p106, %p107
    %p109 = scmp.ne.s32.totalorder %s101, %s103
    %p110 = scmp.eq.s32.totalorder %s16, 1
    %p111 = por %p109, %p110
    %p112 = scmp.ne.s32.totalorder %s103, %s104
    %p113 = scmp.eq.s32.totalorder %s16, 0
    %p114 = por %p112, %p113
    %p115 = scmp.ne.s32.totalorder %s103, %s104
    %p116 = scmp.eq.s32.totalorder %s17, 1
    %p117 = por %p115, %p116
    %p119 = scmp.ne.s32.totalorder %s104, %s118
    %p120 = scmp.eq.s32.totalorder %s17, 0
    %p121 = por %p119, %p120
    %s123 = sadd.s32 %s122, 1
    %p126 = scmp.eq.s32.totalorder %s11, 1
    %p127 = scmp.ne.s32.totalorder %s122, %s124
    %p128 = scmp.eq.s32.totalorder %s11, 0
    %p129 = por %p127, %p128
    %p130 = scmp.ne.s32.totalorder %s122, %s124
    %p131 = scmp.eq.s32.totalorder %s16, 1
    %p132 = por %p130, %p131
    %p133 = scmp.ne.s32.totalorder %s124, %s125
    %p134 = scmp.eq.s32.totalorder %s16, 0
    %p135 = por %p133, %p134
    %p136 = scmp.ne.s32.totalorder %s124, %s125
    %p137 = scmp.eq.s32.totalorder %s17, 1
    %p138 = por %p136, %p137
    %p140 = scmp.ne.s32.totalorder %s125, %s139
    %p141 = scmp.eq.s32.totalorder %s17, 0
    %p142 = por %p140, %p141
    %s143 = ssub.s32 %s18, %s30
    %s144 = ssub.s32 %s19, %s26
    %s145 = sor.u32 %s143, %s144
    %p146 = scmp.eq.s32.totalorder %s145, 0
    %s148 = sadd.s32 %s147, 1
    %s149 = scalar_select %p146, %s147, %s148
    %p152 = pneg %p146
    %p153 = scmp.eq.s32.totalorder %s11, 1
    %p154 = por %p152, %p153
    %p155 = scmp.ne.s32.totalorder %s147, %s150
    %p156 = scmp.eq.s32.totalorder %s11, 0
    %p157 = por %p155, %p156
    %p158 = scmp.ne.s32.totalorder %s147, %s150
    %p159 = scmp.eq.s32.totalorder %s16, 1
    %p160 = por %p158, %p159
    %p161 = scmp.ne.s32.totalorder %s150, %s151
    %p162 = scmp.eq.s32.totalorder %s16, 0
    %p163 = por %p161, %p162
    %p164 = scmp.ne.s32.totalorder %s150, %s151
    %p165 = scmp.eq.s32.totalorder %s17, 1
    %p166 = por %p164, %p165
    %p168 = scmp.ne.s32.totalorder %s151, %s167
    %p169 = scmp.eq.s32.totalorder %s17, 0
    %p170 = por %p168, %p169
    %p171 = scmp.le.s32.totalorder 1, %s11
    %p172 = scmp.lt.s32.totalorder %s11, 3
    %p173 = pnand %p171, %p172
    %p174 = pneg %p173
    // Predicated region
    $region9: #{encoder_forward_pallas.8} parent=5 // pred_check
      _
    $region10: #{encoder_forward_pallas.8} parent=5 // pred_check_branch
      %176 = sbr.rel (%p173) target = $region12
    $region11: #{encoder_forward_pallas.8} parent=5 // pred_region
      %s177 = ssub.s32 %s11, 1
      // Predicated region
      $region13: #{encoder_forward_pallas.8} parent=11 // pred_check
        %p178 = pneg %p72
      $region14: #{encoder_forward_pallas.8} parent=11 // pred_check_branch
        %180 = sbr.rel (%p178) target = $region16
      $region15: #{encoder_forward_pallas.8} parent=11 // pred_region
        _
      $region16: #{encoder_forward_pallas.8} parent=11 // pred_fallthru
        _
      // Predicated region
      $region17: #{encoder_forward_pallas.8} parent=11 // pred_check
        %p181 = pneg %p93
      $region18: #{encoder_forward_pallas.8} parent=11 // pred_check_branch
        %183 = sbr.rel (%p181) target = $region20
      $region19: #{encoder_forward_pallas.8} parent=11 // pred_region
        _
      $region20: #{encoder_forward_pallas.8} parent=11 // pred_fallthru
        _
      // Predicated region
      $region21: #{encoder_forward_pallas.8} parent=11 // pred_check
        %p184 = pneg %p114
      $region22: #{encoder_forward_pallas.8} parent=11 // pred_check_branch
        %186 = sbr.rel (%p184) target = $region24
      $region23: #{encoder_forward_pallas.8} parent=11 // pred_region
        _
      $region24: #{encoder_forward_pallas.8} parent=11 // pred_fallthru
        _
      // Predicated region
      $region25: #{encoder_forward_pallas.8} parent=11 // pred_check
        %p187 = pneg %p135
      $region26: #{encoder_forward_pallas.8} parent=11 // pred_check_branch
        %189 = sbr.rel (%p187) target = $region28
      $region27: #{encoder_forward_pallas.8} parent=11 // pred_region
        _
      $region28: #{encoder_forward_pallas.8} parent=11 // pred_fallthru
        _
    $region12: #{encoder_forward_pallas.8} parent=5 // pred_fallthru
      _
    %p190 = scmp.lt.s32.totalorder %s11, 2
    // Predicated region
    $region29: #{encoder_forward_pallas.8} parent=5 // pred_check
      %p191 = pneg %p190
    $region30: #{encoder_forward_pallas.8} parent=5 // pred_check_branch
      %193 = sbr.rel (%p191) target = $region32
    $region31: #{encoder_forward_pallas.8} parent=5 // pred_region
      // Predicated region
      $region33: #{encoder_forward_pallas.8} parent=31 // pred_check
        %p194 = pneg %p45
      $region34: #{encoder_forward_pallas.8} parent=31 // pred_check_branch
        %196 = sbr.rel (%p194) target = $region36
      $region35: #{encoder_forward_pallas.8} parent=31 // pred_region
        %p197 = scmp.lt.s32.totalorder %s18, 1
        %s198 = scalar_select %p197, %s18, 1
        %p199 = scmp.lt.s32.totalorder %s19, 0
        %s200 = scalar_select %p199, %s19, 0
        %s201 = smul.addr %s200, 7
        %s202 = smul.addr %s198, 7
        %s203 = sadd.s32 %s201, %s202
        %s204 = smul.addr %s203, 8
        %s205 = scalar_lea.vmem %s0, %s204
      $region36: #{encoder_forward_pallas.8} parent=31 // pred_fallthru
        _
    $region32: #{encoder_forward_pallas.8} parent=5 // pred_fallthru
      _
    %p206 = scmp.le.s32.totalorder 1, %s11
    %p207 = scmp.lt.s32.totalorder %s11, 3
    %p208 = pnand %p206, %p207
    %p209 = pneg %p208
    // Predicated region
    $region37: #{encoder_forward_pallas.8} parent=5 // pred_check
      _
    $region38: #{encoder_forward_pallas.8} parent=5 // pred_check_branch
      %211 = sbr.rel (%p208) target = $region40
    $region39: #{encoder_forward_pallas.8} parent=5 // pred_region
      %s212 = ssub.s32 %s11, 1
      %p213 = scmp.lt.s32.totalorder %s20, 1
      %s214 = scalar_select %p213, %s20, 1
      %p215 = scmp.lt.s32.totalorder %s21, 0
      %s216 = scalar_select %p215, %s21, 0
      %s217 = smul.addr %s216, 7
      %s218 = smul.addr %s214, 7
      %s219 = sadd.s32 %s217, %s218
      %s220 = smul.addr %s219, 8
      %s221 = scalar_lea.vmem %s0, %s220
      %p222 = pneg %p51
      %p223 = pneg %p48
      %p224 = pneg %p72
      %p225 = pneg %p69
      %p226 = pneg %p93
      %p227 = pneg %p90
      %p228 = pneg %p114
      %p229 = pneg %p111
      %p230 = pneg %p135
      %p231 = pneg %p132
      %p232 = pneg %p163
      %p233 = pneg %p160
      %p234 = scmp.lt.s32.totalorder %s20, 1
      %s235 = scalar_select %p234, %s20, 1
      %p236 = scmp.lt.s32.totalorder %s21, 0
      %s237 = scalar_select %p236, %s21, 0
      %s238 = smul.addr %s237, 4
      %s239 = smul.addr %s235, 4
      %s240 = sadd.s32 %s238, %s239
      %s241 = smul.addr %s240, 8
      %s242 = scalar_lea.vmem %s5, %s241
      %p243 = scmp.lt.s32.totalorder %s20, 1
      %s244 = scalar_select %p243, %s20, 1
      %p245 = scmp.lt.s32.totalorder %s21, 0
      %s246 = scalar_select %p245, %s21, 0
      %s247 = smul.addr %s246, 7
      %s248 = smul.addr %s244, 7
      %s249 = sadd.s32 %s247, %s248
      %s250 = smul.addr %s249, 8
      %s251 = scalar_lea.vmem %s0, %s250
      %p252 = scmp.lt.s32.totalorder %s20, 1
      %s253 = scalar_select %p252, %s20, 1
      %p254 = scmp.lt.s32.totalorder %s21, 0
      %s255 = scalar_select %p254, %s21, 0
      %s256 = smul.addr %s255, 4
      %s257 = smul.addr %s253, 4
      %s258 = sadd.s32 %s256, %s257
      %s259 = smul.addr %s258, 8
      %s260 = scalar_lea.vmem %s5, %s259
      %v262 = vld [vmem:[%s251] sm:$0xff]
      %v263 = vld [vmem:[%s251 + $0x8] sm:$0xff]
      %v264 = vld [vmem:[%s251 + $0x10] sm:$0xff]
      %v265 = vld [vmem:[%s251 + $0x18] sm:$0xff]
      %v266 = vld [vmem:[%s251 + $0x20] sm:$0xff]
      %v267 = vld [vmem:[%s251 + $0x28] sm:$0xff]
      %v268 = vld [vmem:[%s251 + $0x30] sm:$0x3]
      %v269 = vmax.f32 %v262, 0.0
      %v270 = vmax.f32 %v263, 0.0
      %v271 = vmax.f32 %v264, 0.0
      %v272 = vmax.f32 %v265, 0.0
      %v273 = vmax.f32 %v266, 0.0
      %v274 = vmax.f32 %v267, 0.0
      %v275 = vmax.f32 %v268, 0.0
      %v276 = vpack.c.bf16 %v270, %v269
      %v277 = vpack.c.bf16 %v272, %v271
      %v278 = vpack.c.bf16 %v274, %v273
      %v279 = vpack.c.bf16 %v275, %v275
      %vm280 = vsmask.f32 7424
      %v282 = vshrl.u32 %v276, 16
      %v284 = vshll.u32 %v276, 16
      %v286 = vrot.slane %v284, 1
      %v287 = vor.u32 %v282, %v286
      %v289 = vshll.u32 %v277, 16
      %v291 = vrot.slane %v289, 1
      %v292 = vsel %vm280, %v287, %v291
      %v293 = vshrl.u32 %v277, 16
      %v295 = vor.u32 %v293, %v291
      %v297 = vshll.u32 %v278, 16
      %v299 = vrot.slane %v297, 1
      %v300 = vsel %vm280, %v295, %v299
      %vm306 = vcmask 1046528
      %v307 = vrot.slane %v276, 1
      %v308 = vrot.slane %v277, 1
      %v309 = vsel %vm306, %v307, %v308
      %v310 = vrot.slane %v278, 1
      %v311 = vsel %vm306, %v308, %v310
      %vm314 = vcmask 1043456
      %v315 = vrot.slane %v276, 4
      %v316 = vrot.slane %v277, 4
      %v317 = vsel %vm314, %v315, %v316
      %v318 = vrot.slane %v278, 4
      %v319 = vsel %vm314, %v316, %v318
      %vm322 = vsmask.f32 3328
      %v323 = vrot.slane %v282, 4
      %v324 = vrot.slane %v284, 5
      %v325 = vor.u32 %v323, %v324
      %v326 = vrot.slane %v293, 4
      %v327 = vrot.slane %v289, 5
      %v328 = vor.u32 %v326, %v327
      %v329 = vsel %vm322, %v325, %v328
      %v330 = vshrl.u32 %v278, 16
      %v332 = vrot.slane %v330, 4
      %v333 = vrot.slane %v297, 5
      %v334 = vor.u32 %v332, %v333
      %v335 = vsel %vm322, %v328, %v334
      %vm338 = vcmask 1042432
      %v339 = vrot.slane %v276, 5
      %v340 = vrot.slane %v277, 5
      %v341 = vsel %vm338, %v339, %v340
      %v342 = vrot.slane %v278, 5
      %v343 = vsel %vm338, %v340, %v342
      %v346 = vor.u32 %v330, %v299
      %v348 = vshll.u32 %v279, 16
      %v350 = vrot.slane %v348, 1
      %v351 = vsel %vm280, %v346, %v350
      %v354 = vrot.slane %v279, 1
      %v355 = vsel %vm306, %v310, %v354
      %v357 = vld [vmem:[%s1] sm:$0xf]
      %v358 = vld [vmem:[%s1 + $0x4] sm:$0xf]
      %v359 = vld [vmem:[%s1 + $0x8] sm:$0xf]
      %v360 = vld [vmem:[%s1 + $0xc] sm:$0xf]
      %v361 = vld [vmem:[%s1 + $0x10] sm:$0xf]
      %v362 = vld [vmem:[%s1 + $0x14] sm:$0xf]
      %v363 = vld [vmem:[%s1 + $0x18] sm:$0xf]
      %v364 = vld [vmem:[%s1 + $0x1c] sm:$0xf]
      %v365 = vld [vmem:[%s1 + $0x20] sm:$0xf]
      %v366 = vld [vmem:[%s1 + $0x24] sm:$0xf]
      %v367 = vld [vmem:[%s1 + $0x28] sm:$0xf]
      %v368 = vld [vmem:[%s1 + $0x2c] sm:$0xf]
      %v369 = vld [vmem:[%s1 + $0x30] sm:$0xf]
      %v370 = vld [vmem:[%s1 + $0x34] sm:$0xf]
      %v371 = vld [vmem:[%s1 + $0x38] sm:$0xf]
      %v372 = vld [vmem:[%s1 + $0x3c] sm:$0xf]
      %v373 = vld [vmem:[%s1 + $0x40] sm:$0xf]
      %v374 = vld [vmem:[%s1 + $0x44] sm:$0xf]
      %v375 = vld [vmem:[%s1 + $0x48] sm:$0xf]
      %v376 = vld [vmem:[%s1 + $0x4c] sm:$0xf]
      %v377 = vld [vmem:[%s1 + $0x50] sm:$0xf]
      %v378 = vld [vmem:[%s1 + $0x54] sm:$0xf]
      %v379 = vld [vmem:[%s1 + $0x58] sm:$0xf]
      %v380 = vld [vmem:[%s1 + $0x5c] sm:$0xf]
      %v381 = vld [vmem:[%s1 + $0x60] sm:$0xf]
      %v382 = vld [vmem:[%s1 + $0x64] sm:$0xf]
      %v383 = vld [vmem:[%s1 + $0x68] sm:$0xf]
      %v384 = vld [vmem:[%s1 + $0x6c] sm:$0xf]
      %v385 = vld [vmem:[%s1 + $0x70] sm:$0xf]
      %v386 = vld [vmem:[%s1 + $0x74] sm:$0xf]
      %v387 = vld [vmem:[%s1 + $0x78] sm:$0xf]
      %v388 = vld [vmem:[%s1 + $0x7c] sm:$0xf]
      %v389 = vld [vmem:[%s1 + $0x80] sm:$0xf]
      %v390 = vld [vmem:[%s1 + $0x84] sm:$0xf]
      %v391 = vld [vmem:[%s1 + $0x88] sm:$0xf]
      %v392 = vld [vmem:[%s1 + $0x8c] sm:$0xf]
      %v393 = vld [vmem:[%s1 + $0x90] sm:$0xf]
      %v394 = vld [vmem:[%s1 + $0x94] sm:$0xf]
      %v395 = vld [vmem:[%s1 + $0x98] sm:$0xf]
      %v396 = vld [vmem:[%s1 + $0x9c] sm:$0xf]
      %v397 = vld [vmem:[%s1 + $0xa0] sm:$0xf]
      %v398 = vld [vmem:[%s1 + $0xa4] sm:$0xf]
      %v399 = vld [vmem:[%s1 + $0xa8] sm:$0xf]
      %v400 = vld [vmem:[%s1 + $0xac] sm:$0xf]
      %v401 = vld [vmem:[%s1 + $0xb0] sm:$0xf]
      %v402 = vld [vmem:[%s1 + $0xb4] sm:$0xf]
      %v403 = vld [vmem:[%s1 + $0xb8] sm:$0xf]
      %v404 = vld [vmem:[%s1 + $0xbc] sm:$0xf]
      %v405 = vld [vmem:[%s1 + $0xc0] sm:$0xf]
      %v406 = vld [vmem:[%s1 + $0xc4] sm:$0xf]
      %v407 = vld [vmem:[%s1 + $0xc8] sm:$0xf]
      %v408 = vld [vmem:[%s1 + $0xcc] sm:$0xf]
      %v409 = vld [vmem:[%s1 + $0xd0] sm:$0xf]
      %v410 = vld [vmem:[%s1 + $0xd4] sm:$0xf]
      %v411 = vld [vmem:[%s1 + $0xd8] sm:$0xf]
      %v412 = vld [vmem:[%s1 + $0xdc] sm:$0xf]
      %v413 = vld [vmem:[%s1 + $0xe0] sm:$0xf]
      %v414 = vld [vmem:[%s1 + $0xe4] sm:$0xf]
      %v415 = vld [vmem:[%s1 + $0xe8] sm:$0xf]
      %v416 = vld [vmem:[%s1 + $0xec] sm:$0xf]
      %v417 = vld [vmem:[%s1 + $0xf0] sm:$0xf]
      %v418 = vld [vmem:[%s1 + $0xf4] sm:$0xf]
      %v419 = vld [vmem:[%s1 + $0xf8] sm:$0xf]
      %v420 = vld [vmem:[%s1 + $0xfc] sm:$0xf]
      %v421 = vld [vmem:[%s1 + $0x100] sm:$0xf]
      %v422 = vld [vmem:[%s1 + $0x104] sm:$0xf]
      %v423 = vld [vmem:[%s1 + $0x108] sm:$0xf]
      %v424 = vld [vmem:[%s1 + $0x10c] sm:$0xf]
      %v425 = vld [vmem:[%s1 + $0x110] sm:$0xf]
      %v426 = vld [vmem:[%s1 + $0x114] sm:$0xf]
      %v427 = vld [vmem:[%s1 + $0x118] sm:$0xf]
      %v428 = vld [vmem:[%s1 + $0x11c] sm:$0xf]
      %v429 = vld [vmem:[%s1 + $0x120] sm:$0xf]
      %v430 = vld [vmem:[%s1 + $0x124] sm:$0xf]
      %v431 = vld [vmem:[%s1 + $0x128] sm:$0xf]
      %v432 = vld [vmem:[%s1 + $0x12c] sm:$0xf]
      %v433 = vld [vmem:[%s1 + $0x130] sm:$0xf]
      %v434 = vld [vmem:[%s1 + $0x134] sm:$0xf]
      %v435 = vld [vmem:[%s1 + $0x138] sm:$0xf]
      %v436 = vld [vmem:[%s1 + $0x13c] sm:$0xf]
      %v437 = vld [vmem:[%s1 + $0x140] sm:$0xf]
      %v438 = vld [vmem:[%s1 + $0x144] sm:$0xf]
      %v439 = vld [vmem:[%s1 + $0x148] sm:$0xf]
      %v440 = vld [vmem:[%s1 + $0x14c] sm:$0xf]
      %v441 = vld [vmem:[%s1 + $0x150] sm:$0xf]
      %v442 = vld [vmem:[%s1 + $0x154] sm:$0xf]
      %v443 = vld [vmem:[%s1 + $0x158] sm:$0xf]
      %v444 = vld [vmem:[%s1 + $0x15c] sm:$0xf]
      %v445 = vld [vmem:[%s1 + $0x160] sm:$0xf]
      %v446 = vld [vmem:[%s1 + $0x164] sm:$0xf]
      %v447 = vld [vmem:[%s1 + $0x168] sm:$0xf]
      %v448 = vld [vmem:[%s1 + $0x16c] sm:$0xf]
      %v449 = vld [vmem:[%s1 + $0x170] sm:$0xf]
      %v450 = vld [vmem:[%s1 + $0x174] sm:$0xf]
      %v451 = vld [vmem:[%s1 + $0x178] sm:$0xf]
      %v452 = vld [vmem:[%s1 + $0x17c] sm:$0xf]
      %v453 = vld [vmem:[%s1 + $0x180] sm:$0xf]
      %v454 = vld [vmem:[%s1 + $0x184] sm:$0xf]
      %v455 = vld [vmem:[%s1 + $0x188] sm:$0xf]
      %v456 = vld [vmem:[%s1 + $0x18c] sm:$0xf]
      %v457 = vld [vmem:[%s1 + $0x190] sm:$0xf]
      %v458 = vld [vmem:[%s1 + $0x194] sm:$0xf]
      %v459 = vld [vmem:[%s1 + $0x198] sm:$0xf]
      %v460 = vld [vmem:[%s1 + $0x19c] sm:$0xf]
      %v461 = vld [vmem:[%s1 + $0x1a0] sm:$0xf]
      %v462 = vld [vmem:[%s1 + $0x1a4] sm:$0xf]
      %v463 = vld [vmem:[%s1 + $0x1a8] sm:$0xf]
      %v464 = vld [vmem:[%s1 + $0x1ac] sm:$0xf]
      %v465 = vld [vmem:[%s1 + $0x1b0] sm:$0xf]
      %v466 = vld [vmem:[%s1 + $0x1b4] sm:$0xf]
      %v467 = vld [vmem:[%s1 + $0x1b8] sm:$0xf]
      %v468 = vld [vmem:[%s1 + $0x1bc] sm:$0xf]
      %v469 = vld [vmem:[%s1 + $0x1c0] sm:$0xf]
      %v470 = vld [vmem:[%s1 + $0x1c4] sm:$0xf]
      %v471 = vld [vmem:[%s1 + $0x1c8] sm:$0xf]
      %v472 = vld [vmem:[%s1 + $0x1cc] sm:$0xf]
      %v473 = vld [vmem:[%s1 + $0x1d0] sm:$0xf]
      %v474 = vld [vmem:[%s1 + $0x1d4] sm:$0xf]
      %v475 = vld [vmem:[%s1 + $0x1d8] sm:$0xf]
      %v476 = vld [vmem:[%s1 + $0x1dc] sm:$0xf]
      %v477 = vld [vmem:[%s1 + $0x1e0] sm:$0xf]
      %v478 = vld [vmem:[%s1 + $0x1e4] sm:$0xf]
      %v479 = vld [vmem:[%s1 + $0x1e8] sm:$0xf]
      %v480 = vld [vmem:[%s1 + $0x1ec] sm:$0xf]
      %v481 = vld [vmem:[%s1 + $0x1f0] sm:$0xf]
      %v482 = vld [vmem:[%s1 + $0x1f4] sm:$0xf]
      %v483 = vld [vmem:[%s1 + $0x1f8] sm:$0xf]
      %v484 = vld [vmem:[%s1 + $0x1fc] sm:$0xf]
      %v485 = vld [vmem:[%s1 + $0x200] sm:$0xf]
      %v486 = vld [vmem:[%s1 + $0x204] sm:$0xf]
      %v487 = vld [vmem:[%s1 + $0x208] sm:$0xf]
      %v488 = vld [vmem:[%s1 + $0x20c] sm:$0xf]
      %v489 = vld [vmem:[%s1 + $0x210] sm:$0xf]
      %v490 = vld [vmem:[%s1 + $0x214] sm:$0xf]
      %v491 = vld [vmem:[%s1 + $0x218] sm:$0xf]
      %v492 = vld [vmem:[%s1 + $0x21c] sm:$0xf]
      %v493 = vld [vmem:[%s1 + $0x220] sm:$0xf]
      %v494 = vld [vmem:[%s1 + $0x224] sm:$0xf]
      %v495 = vld [vmem:[%s1 + $0x228] sm:$0xf]
      %v496 = vld [vmem:[%s1 + $0x22c] sm:$0xf]
      %v497 = vld [vmem:[%s1 + $0x230] sm:$0xf]
      %v498 = vld [vmem:[%s1 + $0x234] sm:$0xf]
      %v499 = vld [vmem:[%s1 + $0x238] sm:$0xf]
      %v500 = vld [vmem:[%s1 + $0x23c] sm:$0xf]
      %v501 = vld [vmem:[%s2] sm:$0x1]
      %v503 = vlaneseq
      %v504 = vshrl.u32 %v503, 7
      %v505 = vsub.s32 0, %v504
      %v506 = vrot.slane %v501, %v505
      %v652 = vunpack.c.l.b16 %v357
      %v653 = vunpack.c.l.b16 %v358
      %v654 = vunpack.c.l.b16 %v359
      %v655 = vunpack.c.l.b16 %v360
      %v656 = vunpack.c.l.b16 %v361
      %v657 = vunpack.c.l.b16 %v362
      %v658 = vunpack.c.l.b16 %v363
      %v659 = vunpack.c.l.b16 %v364
      %v660 = vunpack.c.l.b16 %v365
      %v661 = vunpack.c.l.b16 %v366
      %v662 = vunpack.c.l.b16 %v367
      %v663 = vunpack.c.l.b16 %v368
      %v664 = vunpack.c.l.b16 %v369
      %v665 = vunpack.c.l.b16 %v370
      %v666 = vunpack.c.l.b16 %v371
      %v667 = vunpack.c.l.b16 %v372
      %v668 = vunpack.c.l.b16 %v373
      %v669 = vunpack.c.l.b16 %v374
      %v670 = vunpack.c.l.b16 %v375
      %v671 = vunpack.c.l.b16 %v376
      %v672 = vunpack.c.l.b16 %v377
      %v673 = vunpack.c.l.b16 %v378
      %v674 = vunpack.c.l.b16 %v379
      %v675 = vunpack.c.l.b16 %v380
      %v676 = vunpack.c.l.b16 %v381
      %v677 = vunpack.c.l.b16 %v382
      %v678 = vunpack.c.l.b16 %v383
      %v679 = vunpack.c.l.b16 %v384
      %v680 = vunpack.c.l.b16 %v385
      %v681 = vunpack.c.l.b16 %v386
      %v682 = vunpack.c.l.b16 %v387
      %v683 = vunpack.c.l.b16 %v388
      %v684 = vunpack.c.l.b16 %v389
      %v685 = vunpack.c.l.b16 %v390
      %v686 = vunpack.c.l.b16 %v391
      %v687 = vunpack.c.l.b16 %v392
      %v688 = vunpack.c.l.b16 %v393
      %v689 = vunpack.c.l.b16 %v394
      %v690 = vunpack.c.l.b16 %v395
      %v691 = vunpack.c.l.b16 %v396
      %v692 = vunpack.c.l.b16 %v397
      %v693 = vunpack.c.l.b16 %v398
      %v694 = vunpack.c.l.b16 %v399
      %v695 = vunpack.c.l.b16 %v400
      %v696 = vunpack.c.l.b16 %v401
      %v697 = vunpack.c.l.b16 %v402
      %v698 = vunpack.c.l.b16 %v403
      %v699 = vunpack.c.l.b16 %v404
      %v700 = vunpack.c.l.b16 %v405
      %v701 = vunpack.c.l.b16 %v406
      %v702 = vunpack.c.l.b16 %v407
      %v703 = vunpack.c.l.b16 %v408
      %v704 = vunpack.c.l.b16 %v409
      %v705 = vunpack.c.l.b16 %v410
      %v706 = vunpack.c.l.b16 %v411
      %v707 = vunpack.c.l.b16 %v412
      %v708 = vunpack.c.l.b16 %v413
      %v709 = vunpack.c.l.b16 %v414
      %v710 = vunpack.c.l.b16 %v415
      %v711 = vunpack.c.l.b16 %v416
      %v712 = vunpack.c.l.b16 %v417
      %v713 = vunpack.c.l.b16 %v418
      %v714 = vunpack.c.l.b16 %v419
      %v715 = vunpack.c.l.b16 %v420
      %v716 = vunpack.c.l.b16 %v421
      %v717 = vunpack.c.l.b16 %v422
      %v718 = vunpack.c.l.b16 %v423
      %v719 = vunpack.c.l.b16 %v424
      %v720 = vunpack.c.l.b16 %v425
      %v721 = vunpack.c.l.b16 %v426
      %v722 = vunpack.c.l.b16 %v427
      %v723 = vunpack.c.l.b16 %v428
      %v724 = vunpack.c.l.b16 %v429
      %v725 = vunpack.c.l.b16 %v430
      %v726 = vunpack.c.l.b16 %v431
      %v727 = vunpack.c.l.b16 %v432
      %v728 = vunpack.c.l.b16 %v433
      %v729 = vunpack.c.l.b16 %v434
      %v730 = vunpack.c.l.b16 %v435
      %v731 = vunpack.c.l.b16 %v436
      %v732 = vunpack.c.l.b16 %v437
      %v733 = vunpack.c.l.b16 %v438
      %v734 = vunpack.c.l.b16 %v439
      %v735 = vunpack.c.l.b16 %v440
      %v736 = vunpack.c.l.b16 %v441
      %v737 = vunpack.c.l.b16 %v442
      %v738 = vunpack.c.l.b16 %v443
      %v739 = vunpack.c.l.b16 %v444
      %v740 = vunpack.c.l.b16 %v445
      %v741 = vunpack.c.l.b16 %v446
      %v742 = vunpack.c.l.b16 %v447
      %v743 = vunpack.c.l.b16 %v448
      %v744 = vunpack.c.l.b16 %v449
      %v745 = vunpack.c.l.b16 %v450
      %v746 = vunpack.c.l.b16 %v451
      %v747 = vunpack.c.l.b16 %v452
      %v748 = vunpack.c.l.b16 %v453
      %v749 = vunpack.c.l.b16 %v454
      %v750 = vunpack.c.l.b16 %v455
      %v751 = vunpack.c.l.b16 %v456
      %v752 = vunpack.c.l.b16 %v457
      %v753 = vunpack.c.l.b16 %v458
      %v754 = vunpack.c.l.b16 %v459
      %v755 = vunpack.c.l.b16 %v460
      %v756 = vunpack.c.l.b16 %v461
      %v757 = vunpack.c.l.b16 %v462
      %v758 = vunpack.c.l.b16 %v463
      %v759 = vunpack.c.l.b16 %v464
      %v760 = vunpack.c.l.b16 %v465
      %v761 = vunpack.c.l.b16 %v466
      %v762 = vunpack.c.l.b16 %v467
      %v763 = vunpack.c.l.b16 %v468
      %v764 = vunpack.c.l.b16 %v469
      %v765 = vunpack.c.l.b16 %v470
      %v766 = vunpack.c.l.b16 %v471
      %v767 = vunpack.c.l.b16 %v472
      %v768 = vunpack.c.l.b16 %v473
      %v769 = vunpack.c.l.b16 %v474
      %v770 = vunpack.c.l.b16 %v475
      %v771 = vunpack.c.l.b16 %v476
      %v772 = vunpack.c.l.b16 %v477
      %v773 = vunpack.c.l.b16 %v478
      %v774 = vunpack.c.l.b16 %v479
      %v775 = vunpack.c.l.b16 %v480
      %v776 = vunpack.c.l.b16 %v481
      %v777 = vunpack.c.l.b16 %v482
      %v778 = vunpack.c.l.b16 %v483
      %v779 = vunpack.c.l.b16 %v484
      %v780 = vunpack.c.l.b16 %v485
      %v781 = vunpack.c.l.b16 %v486
      %v782 = vunpack.c.l.b16 %v487
      %v783 = vunpack.c.l.b16 %v488
      %v784 = vunpack.c.l.b16 %v489
      %v785 = vunpack.c.l.b16 %v490
      %v786 = vunpack.c.l.b16 %v491
      %v787 = vunpack.c.l.b16 %v492
      %v788 = vunpack.c.l.b16 %v493
      %v789 = vunpack.c.l.b16 %v494
      %v790 = vunpack.c.l.b16 %v495
      %v791 = vunpack.c.l.b16 %v496
      %v792 = vunpack.c.l.b16 %v497
      %v793 = vunpack.c.l.b16 %v498
      %v794 = vunpack.c.l.b16 %v499
      %v795 = vunpack.c.l.b16 %v500
      %v796 = vpack.c.b16 %v653, %v652
      %v797 = vpack.c.b16 %v655, %v654
      %v798 = vpack.c.b16 %v657, %v656
      %v799 = vpack.c.b16 %v659, %v658
      %v800 = vpack.c.b16 %v661, %v660
      %v801 = vpack.c.b16 %v663, %v662
      %v802 = vpack.c.b16 %v665, %v664
      %v803 = vpack.c.b16 %v667, %v666
      %v804 = vpack.c.b16 %v669, %v668
      %v805 = vpack.c.b16 %v671, %v670
      %v806 = vpack.c.b16 %v673, %v672
      %v807 = vpack.c.b16 %v675, %v674
      %v808 = vpack.c.b16 %v677, %v676
      %v809 = vpack.c.b16 %v679, %v678
      %v810 = vpack.c.b16 %v681, %v680
      %v811 = vpack.c.b16 %v683, %v682
      %v812 = vpack.c.b16 %v685, %v684
      %v813 = vpack.c.b16 %v687, %v686
      %v814 = vpack.c.b16 %v689, %v688
      %v815 = vpack.c.b16 %v691, %v690
      %v816 = vpack.c.b16 %v693, %v692
      %v817 = vpack.c.b16 %v695, %v694
      %v818 = vpack.c.b16 %v697, %v696
      %v819 = vpack.c.b16 %v699, %v698
      %v820 = vpack.c.b16 %v701, %v700
      %v821 = vpack.c.b16 %v703, %v702
      %v822 = vpack.c.b16 %v705, %v704
      %v823 = vpack.c.b16 %v707, %v706
      %v824 = vpack.c.b16 %v709, %v708
      %v825 = vpack.c.b16 %v711, %v710
      %v826 = vpack.c.b16 %v713, %v712
      %v827 = vpack.c.b16 %v715, %v714
      %v828 = vpack.c.b16 %v717, %v716
      %v829 = vpack.c.b16 %v719, %v718
      %v830 = vpack.c.b16 %v721, %v720
      %v831 = vpack.c.b16 %v723, %v722
      %v832 = vpack.c.b16 %v725, %v724
      %v833 = vpack.c.b16 %v727, %v726
      %v834 = vpack.c.b16 %v729, %v728
      %v835 = vpack.c.b16 %v731, %v730
      %v836 = vpack.c.b16 %v733, %v732
      %v837 = vpack.c.b16 %v735, %v734
      %v838 = vpack.c.b16 %v737, %v736
      %v839 = vpack.c.b16 %v739, %v738
      %v840 = vpack.c.b16 %v741, %v740
      %v841 = vpack.c.b16 %v743, %v742
      %v842 = vpack.c.b16 %v745, %v744
      %v843 = vpack.c.b16 %v747, %v746
      %v844 = vpack.c.b16 %v749, %v748
      %v845 = vpack.c.b16 %v751, %v750
      %v846 = vpack.c.b16 %v753, %v752
      %v847 = vpack.c.b16 %v755, %v754
      %v848 = vpack.c.b16 %v757, %v756
      %v849 = vpack.c.b16 %v759, %v758
      %v850 = vpack.c.b16 %v761, %v760
      %v851 = vpack.c.b16 %v763, %v762
      %v852 = vpack.c.b16 %v765, %v764
      %v853 = vpack.c.b16 %v767, %v766
      %v854 = vpack.c.b16 %v769, %v768
      %v855 = vpack.c.b16 %v771, %v770
      %v856 = vpack.c.b16 %v773, %v772
      %v857 = vpack.c.b16 %v775, %v774
      %v858 = vpack.c.b16 %v777, %v776
      %v859 = vpack.c.b16 %v779, %v778
      %v860 = vpack.c.b16 %v781, %v780
      %v861 = vpack.c.b16 %v783, %v782
      %v862 = vpack.c.b16 %v785, %v784
      %v863 = vpack.c.b16 %v787, %v786
      %v864 = vpack.c.b16 %v789, %v788
      %v865 = vpack.c.b16 %v791, %v790
      %v866 = vpack.c.b16 %v793, %v792
      %v867 = vpack.c.b16 %v795, %v794
      %940 = vmatprep.subr.bf16.mxu0 0
      %941 = vmatpush1.bf16.msra.mxu0 %v796
      %942 = vmatprep.subr.bf16.mxu0 0
      %943 = vmatpush1.bf16.msra.mxu0 %v797
      %944 = vmatprep.subr.bf16.mxu0 0
      %945 = vmatpush1.bf16.msra.mxu0 %v798
      %946 = vmatprep.subr.bf16.mxu0 0
      %947 = vmatpush1.bf16.msra.mxu0 %v799
      %948 = vmatprep.subr.bf16.mxu0 0
      %949 = vmatpush1.bf16.msra.mxu0 %v800
      %950 = vmatprep.subr.bf16.mxu0 0
      %951 = vmatpush1.bf16.msra.mxu0 %v801
      %952 = vmatprep.subr.bf16.mxu0 0
      %953 = vmatpush1.bf16.msra.mxu0 %v802
      %954 = vmatprep.subr.bf16.mxu0 0
      %955 = vmatpush1.bf16.msra.mxu0 %v803
      %956 = vmatprep.subr.bf16.mxu0 0
      %957 = vmatpush1.bf16.msra.mxu0 %v804
      %958 = vmatprep.subr.bf16.mxu0 0
      %959 = vmatpush1.bf16.msra.mxu0 %v805
      %960 = vmatprep.subr.bf16.mxu0 0
      %961 = vmatpush1.bf16.msra.mxu0 %v806
      %962 = vmatprep.subr.bf16.mxu0 0
      %963 = vmatpush1.bf16.msra.mxu0 %v807
      %964 = vmatprep.subr.bf16.mxu0 0
      %965 = vmatpush1.bf16.msra.mxu0 %v808
      %966 = vmatprep.subr.bf16.mxu0 0
      %967 = vmatpush1.bf16.msra.mxu0 %v809
      %968 = vmatprep.subr.bf16.mxu0 0
      %969 = vmatpush1.bf16.msra.mxu0 %v810
      %970 = vmatprep.subr.bf16.mxu0 0
      %971 = vmatpush1.bf16.msra.mxu0 %v811
      %972 = vmatprep.mubr.bf16.mxu0 %v292
      %973 = vmatmul.mubr.bf16.gmra.mrb[0].mxu0 %v276
      %v974 = vpop.f32.mrb[0].mxu0
      %v975 = vadd.f32 %v506, %v974
      %v976 = vpop.f32.mrb[0].mxu0
      %v977 = vpop.f32.mrb[0].mxu0
      %v978 = vadd.f32 %v506, %v977
      %v979 = vpop.f32.mrb[0].mxu0
      %980 = vmatprep.mubr.bf16.mxu0 %v300
      %981 = vmatmul.mubr.bf16.gmra.mrb[0].mxu0 %v277
      %v982 = vpop.f32.mrb[0].mxu0
      %v983 = vadd.f32 %v506, %v982
      %v984 = vpop.f32.mrb[0].mxu0
      %v985 = vpop.f32.mrb[0].mxu0
      %v986 = vadd.f32 %v506, %v985
      %v987 = vpop.f32.mrb[0].mxu0
      %988 = vdwg.mxu0
      %989 = vmatprep.subr.bf16.mxu0 0
      %990 = vmatpush1.bf16.msra.mxu0 %v812
      %991 = vmatprep.subr.bf16.mxu0 0
      %992 = vmatpush1.bf16.msra.mxu0 %v813
      %993 = vmatprep.subr.bf16.mxu0 0
      %994 = vmatpush1.bf16.msra.mxu0 %v814
      %995 = vmatprep.subr.bf16.mxu0 0
      %996 = vmatpush1.bf16.msra.mxu0 %v815
      %997 = vmatprep.subr.bf16.mxu0 0
      %998 = vmatpush1.bf16.msra.mxu0 %v816
      %999 = vmatprep.subr.bf16.mxu0 0
      %1000 = vmatpush1.bf16.msra.mxu0 %v817
      %1001 = vmatprep.subr.bf16.mxu0 0
      %1002 = vmatpush1.bf16.msra.mxu0 %v818
      %1003 = vmatprep.subr.bf16.mxu0 0
      %1004 = vmatpush1.bf16.msra.mxu0 %v819
      %1005 = vmatprep.subr.bf16.mxu0 0
      %1006 = vmatpush1.bf16.msra.mxu0 %v820
      %1007 = vmatprep.subr.bf16.mxu0 0
      %1008 = vmatpush1.bf16.msra.mxu0 %v821
      %1009 = vmatprep.subr.bf16.mxu0 0
      %1010 = vmatpush1.bf16.msra.mxu0 %v822
      %1011 = vmatprep.subr.bf16.mxu0 0
      %1012 = vmatpush1.bf16.msra.mxu0 %v823
      %1013 = vmatprep.subr.bf16.mxu0 0
      %1014 = vmatpush1.bf16.msra.mxu0 %v824
      %1015 = vmatprep.subr.bf16.mxu0 0
      %1016 = vmatpush1.bf16.msra.mxu0 %v825
      %1017 = vmatprep.subr.bf16.mxu0 0
      %1018 = vmatpush1.bf16.msra.mxu0 %v826
      %1019 = vmatprep.subr.bf16.mxu0 0
      %1020 = vmatpush1.bf16.msra.mxu0 %v827
      %1021 = vmatprep.mubr.bf16.mxu0 %v317
      %1022 = vmatmul.mubr.bf16.gmra.mrb[0].mxu0 %v309
      %v1023 = vpop.f32.mrb[0].mxu0
      %v1024 = vadd.f32 %v975, %v1023
      %v1025 = vpop.f32.mrb[0].mxu0
      %v1026 = vpop.f32.mrb[0].mxu0
      %v1027 = vadd.f32 %v978, %v1026
      %v1028 = vpop.f32.mrb[0].mxu0
      %1029 = vmatprep.mubr.bf16.mxu0 %v319
      %1030 = vmatmul.mubr.bf16.gmra.mrb[0].mxu0 %v311
      %v1031 = vpop.f32.mrb[0].mxu0
      %v1032 = vadd.f32 %v983, %v1031
      %v1033 = vpop.f32.mrb[0].mxu0
      %v1034 = vpop.f32.mrb[0].mxu0
      %v1035 = vadd.f32 %v986, %v1034
      %v1036 = vpop.f32.mrb[0].mxu0
      %1037 = vdwg.mxu0
      %1038 = vmatprep.subr.bf16.mxu0 0
      %1039 = vmatpush1.bf16.msra.mxu0 %v828
      %1040 = vmatprep.subr.bf16.mxu0 0
      %1041 = vmatpush1.bf16.msra.mxu0 %v829
      %1042 = vmatprep.subr.bf16.mxu0 0
      %1043 = vmatpush1.bf16.msra.mxu0 %v830
      %1044 = vmatprep.subr.bf16.mxu0 0
      %1045 = vmatpush1.bf16.msra.mxu0 %v831
      %1046 = vmatprep.subr.bf16.mxu0 0
      %1047 = vmatpush1.bf16.msra.mxu0 %v832
      %1048 = vmatprep.subr.bf16.mxu0 0
      %1049 = vmatpush1.bf16.msra.mxu0 %v833
      %1050 = vmatprep.subr.bf16.mxu0 0
      %1051 = vmatpush1.bf16.msra.mxu0 %v834
      %1052 = vmatprep.subr.bf16.mxu0 0
      %1053 = vmatpush1.bf16.msra.mxu0 %v835
      %1054 = vmatprep.subr.bf16.mxu0 0
      %1055 = vmatpush1.bf16.msra.mxu0 %v836
      %1056 = vmatprep.subr.bf16.mxu0 0
      %1057 = vmatpush1.bf16.msra.mxu0 %v837
      %1058 = vmatprep.subr.bf16.mxu0 0
      %1059 = vmatpush1.bf16.msra.mxu0 %v838
      %1060 = vmatprep.subr.bf16.mxu0 0
      %1061 = vmatpush1.bf16.msra.mxu0 %v839
      %1062 = vmatprep.subr.bf16.mxu0 0
      %1063 = vmatpush1.bf16.msra.mxu0 %v840
      %1064 = vmatprep.subr.bf16.mxu0 0
      %1065 = vmatpush1.bf16.msra.mxu0 %v841
      %1066 = vmatprep.subr.bf16.mxu0 0
      %1067 = vmatpush1.bf16.msra.mxu0 %v842
      %1068 = vmatprep.subr.bf16.mxu0 0
      %1069 = vmatpush1.bf16.msra.mxu0 %v843
      %1070 = vmatprep.mubr.bf16.mxu0 %v341
      %1071 = vmatmul.mubr.bf16.gmra.mrb[0].mxu0 %v329
      %v1072 = vpop.f32.mrb[0].mxu0
      %v1073 = vadd.f32 %v1024, %v1072
      %v1074 = vpop.f32.mrb[0].mxu0
      %v1075 = vpop.f32.mrb[0].mxu0
      %v1076 = vadd.f32 %v1027, %v1075
      %v1077 = vpop.f32.mrb[0].mxu0
      %1078 = vmatprep.mubr.bf16.mxu0 %v343
      %1079 = vmatmul.mubr.bf16.gmra.mrb[0].mxu0 %v335
      %v1080 = vpop.f32.mrb[0].mxu0
      %v1081 = vadd.f32 %v1032, %v1080
      %v1082 = vpop.f32.mrb[0].mxu0
      %v1083 = vpop.f32.mrb[0].mxu0
      %v1084 = vadd.f32 %v1035, %v1083
      %v1085 = vpop.f32.mrb[0].mxu0
      %1086 = vdwg.mxu0
      %1087 = vmatprep.subr.bf16.mxu0 0
      %1088 = vmatpush1.bf16.msra.mxu0 %v844
      %1089 = vmatprep.subr.bf16.mxu0 0
      %1090 = vmatpush1.bf16.msra.mxu0 %v845
      %1091 = vmatprep.subr.bf16.mxu0 0
      %1092 = vmatpush1.bf16.msra.mxu0 %v846
      %1093 = vmatprep.subr.bf16.mxu0 0
      %1094 = vmatpush1.bf16.msra.mxu0 %v847
      %1095 = vmatprep.subr.bf16.mxu0 0
      %1096 = vmatpush1.bf16.msra.mxu0 %v848
      %1097 = vmatprep.subr.bf16.mxu0 0
      %1098 = vmatpush1.bf16.msra.mxu0 %v849
      %1099 = vmatprep.subr.bf16.mxu0 0
      %1100 = vmatpush1.bf16.msra.mxu0 %v850
      %1101 = vmatprep.subr.bf16.mxu0 0
      %1102 = vmatpush1.bf16.msra.mxu0 %v851
      %1103 = vmatprep.subr.bf16.mxu0 0
      %1104 = vmatpush1.bf16.msra.mxu0 %v852
      %1105 = vmatprep.subr.bf16.mxu0 0
      %1106 = vmatpush1.bf16.msra.mxu0 %v853
      %1107 = vmatprep.subr.bf16.mxu0 0
      %1108 = vmatpush1.bf16.msra.mxu0 %v854
      %1109 = vmatprep.subr.bf16.mxu0 0
      %1110 = vmatpush1.bf16.msra.mxu0 %v855
      %1111 = vmatprep.subr.bf16.mxu0 0
      %1112 = vmatpush1.bf16.msra.mxu0 %v856
      %1113 = vmatprep.subr.bf16.mxu0 0
      %1114 = vmatpush1.bf16.msra.mxu0 %v857
      %1115 = vmatprep.subr.bf16.mxu0 0
      %1116 = vmatpush1.bf16.msra.mxu0 %v858
      %1117 = vmatprep.subr.bf16.mxu0 0
      %1118 = vmatpush1.bf16.msra.mxu0 %v859
      %1119 = vmatprep.mubr.bf16.mxu0 %v300
      %1120 = vmatmul.mubr.bf16.gmra.mrb[0].mxu0 %v277
      %v1121 = vpop.f32.mrb[0].mxu0
      %v1122 = vadd.f32 %v1073, %v1121
      %v1123 = vpop.f32.mrb[0].mxu0
      %v1124 = vpop.f32.mrb[0].mxu0
      %v1125 = vadd.f32 %v1076, %v1124
      %v1126 = vpop.f32.mrb[0].mxu0
      %1127 = vmatprep.mubr.bf16.mxu0 %v351
      %1128 = vmatmul.mubr.bf16.gmra.mrb[0].mxu0 %v278
      %v1129 = vpop.f32.mrb[0].mxu0
      %v1130 = vadd.f32 %v1081, %v1129
      %v1131 = vpop.f32.mrb[0].mxu0
      %v1132 = vpop.f32.mrb[0].mxu0
      %v1133 = vadd.f32 %v1084, %v1132
      %v1134 = vpop.f32.mrb[0].mxu0
      %1135 = vdwg.mxu0
      %1136 = vmatprep.subr.bf16.mxu0 0
      %1137 = vmatpush1.bf16.msra.mxu0 %v860
      %1138 = vmatprep.subr.bf16.mxu0 0
      %1139 = vmatpush1.bf16.msra.mxu0 %v861
      %1140 = vmatprep.subr.bf16.mxu0 0
      %1141 = vmatpush1.bf16.msra.mxu0 %v862
      %1142 = vmatprep.subr.bf16.mxu0 0
      %1143 = vmatpush1.bf16.msra.mxu0 %v863
      %1144 = vmatprep.subr.bf16.mxu0 0
      %1145 = vmatpush1.bf16.msra.mxu0 %v864
      %1146 = vmatprep.subr.bf16.mxu0 0
      %1147 = vmatpush1.bf16.msra.mxu0 %v865
      %1148 = vmatprep.subr.bf16.mxu0 0
      %1149 = vmatpush1.bf16.msra.mxu0 %v866
      %1150 = vmatprep.subr.bf16.mxu0 0
      %1151 = vmatpush1.bf16.msra.mxu0 %v867
      %1152 = vmatprep.subr.bf16.mxu0 0
      %1153 = vmatpush1.bf16.msra.mxu0 0
      %1154 = vmatprep.subr.bf16.mxu0 0
      %1155 = vmatpush1.bf16.msra.mxu0 0
      %1156 = vmatprep.subr.bf16.mxu0 0
      %1157 = vmatpush1.bf16.msra.mxu0 0
      %1158 = vmatprep.subr.bf16.mxu0 0
      %1159 = vmatpush1.bf16.msra.mxu0 0
      %1160 = vmatprep.subr.bf16.mxu0 0
      %1161 = vmatpush1.bf16.msra.mxu0 0
      %1162 = vmatprep.subr.bf16.mxu0 0
      %1163 = vmatpush1.bf16.msra.mxu0 0
      %1164 = vmatprep.subr.bf16.mxu0 0
      %1165 = vmatpush1.bf16.msra.mxu0 0
      %1166 = vmatprep.subr.bf16.mxu0 0
      %1167 = vmatpush1.bf16.msra.mxu0 0
      %1168 = vmatprep.mubr.bf16.mxu0 0
      %1169 = vmatmul.mubr.bf16.gmra.mrb[0].mxu0 %v311
      %v1170 = vpop.f32.mrb[0].mxu0
      %v1171 = vadd.f32 %v1122, %v1170
      %v1172 = vpop.f32.mrb[0].mxu0
      %v1173 = vpop.f32.mrb[0].mxu0
      %v1174 = vadd.f32 %v1125, %v1173
      %v1175 = vpop.f32.mrb[0].mxu0
      %1176 = vmatprep.mubr.bf16.mxu0 0
      %1177 = vmatmul.mubr.bf16.gmra.mrb[0].mxu0 %v355
      %v1178 = vpop.f32.mrb[0].mxu0
      %v1179 = vadd.f32 %v1130, %v1178
      %v1180 = vpop.f32.mrb[0].mxu0
      %v1181 = vpop.f32.mrb[0].mxu0
      %v1182 = vadd.f32 %v1133, %v1181
      %v1183 = vpop.f32.mrb[0].mxu0
      %1184 = vdwg.mxu0
      %v1185 = vmax.f32 %v1171, 0.0
      %v1186 = vmax.f32 %v1174, 0.0
      %v1187 = vmax.f32 %v1179, 0.0
      %v1188 = vmax.f32 %v1182, 0.0
      %v1189 = vpack.c.bf16 %v1186, %v1185
      %v1190 = vpack.c.bf16 %v1188, %v1187
      %v1191 = vld [vmem:[%s3] sm:$0xf]
      %v1192 = vld [vmem:[%s3 + $0x4] sm:$0xf]
      %v1193 = vld [vmem:[%s3 + $0x8] sm:$0xf]
      %v1194 = vld [vmem:[%s3 + $0xc] sm:$0xf]
      %v1195 = vld [vmem:[%s3 + $0x10] sm:$0xf]
      %v1196 = vld [vmem:[%s3 + $0x14] sm:$0xf]
      %v1197 = vld [vmem:[%s3 + $0x18] sm:$0xf]
      %v1198 = vld [vmem:[%s3 + $0x1c] sm:$0xf]
      %v1199 = vld [vmem:[%s3 + $0x20] sm:$0xf]
      %v1200 = vld [vmem:[%s3 + $0x24] sm:$0xf]
      %v1201 = vld [vmem:[%s3 + $0x28] sm:$0xf]
      %v1202 = vld [vmem:[%s3 + $0x2c] sm:$0xf]
      %v1203 = vld [vmem:[%s3 + $0x30] sm:$0xf]
      %v1204 = vld [vmem:[%s3 + $0x34] sm:$0xf]
      %v1205 = vld [vmem:[%s3 + $0x38] sm:$0xf]
      %v1206 = vld [vmem:[%s3 + $0x3c] sm:$0xf]
      %v1207 = vld [vmem:[%s4] sm:$0x1]
      %v1209 = vlaneseq
      %v1210 = vshrl.u32 %v1209, 7
      %v1211 = vsub.s32 0, %v1210
      %v1212 = vrot.slane %v1207, %v1211
      %v1230 = vunpack.c.l.b16 %v1191
      %v1231 = vunpack.c.l.b16 %v1192
      %v1232 = vunpack.c.l.b16 %v1193
      %v1233 = vunpack.c.l.b16 %v1194
      %v1234 = vunpack.c.l.b16 %v1195
      %v1235 = vunpack.c.l.b16 %v1196
      %v1236 = vunpack.c.l.b16 %v1197
      %v1237 = vunpack.c.l.b16 %v1198
      %v1238 = vunpack.c.l.b16 %v1199
      %v1239 = vunpack.c.l.b16 %v1200
      %v1240 = vunpack.c.l.b16 %v1201
      %v1241 = vunpack.c.l.b16 %v1202
      %v1242 = vunpack.c.l.b16 %v1203
      %v1243 = vunpack.c.l.b16 %v1204
      %v1244 = vunpack.c.l.b16 %v1205
      %v1245 = vunpack.c.l.b16 %v1206
      %v1246 = vpack.c.b16 %v1231, %v1230
      %v1247 = vpack.c.b16 %v1233, %v1232
      %v1248 = vpack.c.b16 %v1235, %v1234
      %v1249 = vpack.c.b16 %v1237, %v1236
      %v1250 = vpack.c.b16 %v1239, %v1238
      %v1251 = vpack.c.b16 %v1241, %v1240
      %v1252 = vpack.c.b16 %v1243, %v1242
      %v1253 = vpack.c.b16 %v1245, %v1244
      %1262 = vmatprep.subr.bf16.mxu0 0
      %1263 = vmatpush1.bf16.msra.mxu0 %v1246
      %1264 = vmatprep.subr.bf16.mxu0 0
      %1265 = vmatpush1.bf16.msra.mxu0 %v1247
      %1266 = vmatprep.subr.bf16.mxu0 0
      %1267 = vmatpush1.bf16.msra.mxu0 %v1248
      %1268 = vmatprep.subr.bf16.mxu0 0
      %1269 = vmatpush1.bf16.msra.mxu0 %v1249
      %1270 = vmatprep.subr.bf16.mxu0 0
      %1271 = vmatpush1.bf16.msra.mxu0 %v1250
      %1272 = vmatprep.subr.bf16.mxu0 0
      %1273 = vmatpush1.bf16.msra.mxu0 %v1251
      %1274 = vmatprep.subr.bf16.mxu0 0
      %1275 = vmatpush1.bf16.msra.mxu0 %v1252
      %1276 = vmatprep.subr.bf16.mxu0 0
      %1277 = vmatpush1.bf16.msra.mxu0 %v1253
      %1278 = vmatprep.subr.bf16.mxu0 0
      %1279 = vmatpush1.bf16.msra.mxu0 0
      %1280 = vmatprep.subr.bf16.mxu0 0
      %1281 = vmatpush1.bf16.msra.mxu0 0
      %1282 = vmatprep.subr.bf16.mxu0 0
      %1283 = vmatpush1.bf16.msra.mxu0 0
      %1284 = vmatprep.subr.bf16.mxu0 0
      %1285 = vmatpush1.bf16.msra.mxu0 0
      %1286 = vmatprep.subr.bf16.mxu0 0
      %1287 = vmatpush1.bf16.msra.mxu0 0
      %1288 = vmatprep.subr.bf16.mxu0 0
      %1289 = vmatpush1.bf16.msra.mxu0 0
      %1290 = vmatprep.subr.bf16.mxu0 0
      %1291 = vmatpush1.bf16.msra.mxu0 0
      %1292 = vmatprep.subr.bf16.mxu0 0
      %1293 = vmatpush1.bf16.msra.mxu0 0
      %1294 = vmatprep.mubr.bf16.mxu0 0
      %1295 = vmatmul.mubr.bf16.gmra.mrb[0].mxu0 %v1189
      %v1296 = vpop.f32.mrb[0].mxu0
      %v1297 = vadd.f32 %v1212, %v1296
      %v1298 = vpop.f32.mrb[0].mxu0
      %v1299 = vpop.f32.mrb[0].mxu0
      %v1300 = vadd.f32 %v1212, %v1299
      %v1301 = vpop.f32.mrb[0].mxu0
      %1302 = vmatprep.mubr.bf16.mxu0 0
      %1303 = vmatmul.mubr.bf16.gmra.mrb[0].mxu0 %v1190
      %v1304 = vpop.f32.mrb[0].mxu0
      %v1305 = vadd.f32 %v1212, %v1304
      %v1306 = vpop.f32.mrb[0].mxu0
      %v1307 = vpop.f32.mrb[0].mxu0
      %v1308 = vadd.f32 %v1212, %v1307
      %v1309 = vpop.f32.mrb[0].mxu0
      %1310 = vdwg.mxu0
      %vm1316 = vcmask 1046528
      %v1317 = vrot.slane %v263, 1
      %v1318 = vrot.slane %v264, 1
      %v1319 = vsel %vm1316, %v1317, %v1318
      %v1320 = vrot.slane %v265, 1
      %v1321 = vsel %vm1316, %v1318, %v1320
      %v1322 = vrot.slane %v266, 1
      %v1323 = vsel %vm1316, %v1320, %v1322
      %v1324 = vrot.slane %v267, 1
      %v1325 = vsel %vm1316, %v1322, %v1324
      %v1330 = vadd.f32 %v1297, %v1319
      %v1331 = vadd.f32 %v1300, %v1321
      %v1332 = vadd.f32 %v1305, %v1323
      %v1333 = vadd.f32 %v1308, %v1325
      %1334 = vst [vmem:[%s260] sm:$0xff] %v1330
      %1335 = vst [vmem:[%s260 + $0x8] sm:$0xff] %v1331
      %1336 = vst [vmem:[%s260 + $0x10] sm:$0xff] %v1332
      %1337 = vst [vmem:[%s260 + $0x18] sm:$0xff] %v1333
      %p1338 = scmp.lt.s32.totalorder %s20, 1
      %s1339 = scalar_select %p1338, %s20, 1
      %p1340 = scmp.lt.s32.totalorder %s21, 0
      %s1341 = scalar_select %p1340, %s21, 0
      %s1342 = smul.addr %s1341, 4
      %s1343 = smul.addr %s1339, 4
      %s1344 = sadd.s32 %s1342, %s1343
      %s1345 = smul.addr %s1344, 8
      %s1346 = scalar_lea.vmem %s5, %s1345
      // Predicated region
      $region41: #{encoder_forward_pallas.8} parent=39 // pred_check
        %p1347 = pneg %p160
      $region42: #{encoder_forward_pallas.8} parent=39 // pred_check_branch
        %1349 = sbr.rel (%p1347) target = $region44
      $region43: #{encoder_forward_pallas.8} parent=39 // pred_region
        _
      $region44: #{encoder_forward_pallas.8} parent=39 // pred_fallthru
        _
    $region40: #{encoder_forward_pallas.8} parent=5 // pred_fallthru
      _
    %p1350 = scmp.le.s32.totalorder 2, %s11
    // Predicated region
    $region45: #{encoder_forward_pallas.8} parent=5 // pred_check
      %p1351 = pneg %p1350
    $region46: #{encoder_forward_pallas.8} parent=5 // pred_check_branch
      %1353 = sbr.rel (%p1351) target = $region48
    $region47: #{encoder_forward_pallas.8} parent=5 // pred_region
      %s1354 = ssub.s32 %s11, 2
      // Predicated region
      $region49: #{encoder_forward_pallas.8} parent=47 // pred_check
        %p1355 = pneg %p166
      $region50: #{encoder_forward_pallas.8} parent=47 // pred_check_branch
        %1357 = sbr.rel (%p1355) target = $region52
      $region51: #{encoder_forward_pallas.8} parent=47 // pred_region
        %p1358 = scmp.lt.s32.totalorder %s22, 1
        %s1359 = scalar_select %p1358, %s22, 1
        %p1360 = scmp.lt.s32.totalorder %s23, 0
        %s1361 = scalar_select %p1360, %s23, 0
        %s1362 = smul.addr %s1361, 4
        %s1363 = smul.addr %s1359, 4
        %s1364 = sadd.s32 %s1362, %s1363
        %s1365 = smul.addr %s1364, 8
        %s1366 = scalar_lea.vmem %s5, %s1365
      $region52: #{encoder_forward_pallas.8} parent=47 // pred_fallthru
        _
    $region48: #{encoder_forward_pallas.8} parent=5 // pred_fallthru
      _
  $region6: #{encoder_forward_pallas.8} parent=0 // loop_footer
    %s15 = sadd.s32 1, %s11
  $region7: #{encoder_forward_pallas.8} parent=0 // loop_footer_branch
    %10 = sbr.rel target = $region3
  $region8: #{encoder_forward_pallas.8} parent=0 // loop_exit
    _

// kernel: encoder_forward_pallas.9
$region0: #{encoder_forward_pallas.9}
  #allocation0 [shape = 'u32[]', space=smem, size = 0x4, offset = 0x4, fixed_abs, tag = 'smem constant byte address 0x4 - core index']
  #allocation1 [shape = 'u32[144,128]{1,0:T(1,128)}', space=vmem, size = 0x12000, scoped, tag = 'internal scratch']
  %s0 = inlined_call_operand.vmem [shape: f32[2,1,50,128], index: 0, kind: input, shape index: {}]
  %s1 = inlined_call_operand.vmem [shape: bf16[1152,128], index: 1, kind: input, shape index: {}]
  %s2 = inlined_call_operand.vmem [shape: f32[1,128], index: 2, kind: input, shape index: {}]
  %s3 = inlined_call_operand.vmem [shape: bf16[128,128], index: 3, kind: input, shape index: {}]
  %s4 = inlined_call_operand.vmem [shape: f32[1,128], index: 4, kind: input, shape index: {}]
  %s5 = inlined_call_operand.vmem [shape: f32[2,1,32,128], index: 5, kind: output, shape index: {}]
  %s6 = sld [smem:[#allocation0]]
  $region53: #{encoder_forward_pallas.9} parent=0
    _
  %s8 = ssub.s32 1, %s6
  %s9 = scalar_select 0, %s8, %s6
  loop: start=0, step=1, limit=4
  $region2: #{encoder_forward_pallas.9} parent=0 // loop_pre_header
    _
  $region3: #{encoder_forward_pallas.9} parent=0 // loop_header
    %s11 = sphi 0, %s15
    %p12 = scmp.ge.s32.totalorder %s11, 4
    %s18 = sphi 0, %s30
    %s19 = sphi 0, %s26
    %s20 = sphi 0, %s18
    %s21 = sphi 0, %s19
    %s22 = sphi 0, %s20
    %s23 = sphi 0, %s21
    %s35 = sphi 0, %s37
    %s38 = sphi 0, %s35
    %s39 = sphi 0, %s38
    %s55 = sphi 0, %s39
    %s59 = sphi 0, %s59
    %s61 = sphi 0, %s59
    %s62 = sphi 0, %s61
    %s76 = sphi 0, %s62
    %s80 = sphi 0, %s80
    %s82 = sphi 0, %s80
    %s83 = sphi 0, %s82
    %s97 = sphi 0, %s83
    %s101 = sphi 0, %s101
    %s103 = sphi 0, %s101
    %s104 = sphi 0, %s103
    %s118 = sphi 0, %s104
    %s122 = sphi 0, %s122
    %s124 = sphi 0, %s122
    %s125 = sphi 0, %s124
    %s139 = sphi 0, %s125
    %s147 = sphi 0, %s149
    %s150 = sphi 0, %s147
    %s151 = sphi 0, %s150
    %s167 = sphi 0, %s151
  $region4: #{encoder_forward_pallas.9} parent=0 // loop_header_branch
    %14 = sbr.rel (%p12) target = $region8
  $region5: #{encoder_forward_pallas.9} parent=0 // loop_body
    %s16 = ssub.s32 %s11, 1
    %s17 = ssub.s32 %s11, 2
    %s24 = sadd.s32 1, %s19
    %p25 = scmp.ge.s32.totalorder %s24, 1
    %s26 = scalar_select %p25, 0, %s24
    %s27 = sadd.s32 1, %s18
    %s28 = scalar_select %p25, %s27, %s18
    %p29 = scmp.ge.s32.totalorder %s28, 2
    %s30 = scalar_select %p29, 0, %s28
    %s31 = ssub.s32 %s18, %s30
    %s32 = ssub.s32 %s19, %s26
    %s33 = sor.u32 %s31, %s32
    %p34 = scmp.eq.s32.totalorder %s33, 0
    %s36 = sadd.s32 %s35, 1
    %s37 = scalar_select %p34, %s35, %s36
    %p40 = pneg %p34
    %p41 = scmp.eq.s32.totalorder %s11, 1
    %p42 = por %p40, %p41
    %p43 = scmp.ne.s32.totalorder %s35, %s38
    %p44 = scmp.eq.s32.totalorder %s11, 0
    %p45 = por %p43, %p44
    %p46 = scmp.ne.s32.totalorder %s35, %s38
    %p47 = scmp.eq.s32.totalorder %s16, 1
    %p48 = por %p46, %p47
    %p49 = scmp.ne.s32.totalorder %s38, %s39
    %p50 = scmp.eq.s32.totalorder %s16, 0
    %p51 = por %p49, %p50
    %p52 = scmp.ne.s32.totalorder %s38, %s39
    %p53 = scmp.eq.s32.totalorder %s17, 1
    %p54 = por %p52, %p53
    %p56 = scmp.ne.s32.totalorder %s39, %s55
    %p57 = scmp.eq.s32.totalorder %s17, 0
    %p58 = por %p56, %p57
    %s60 = sadd.s32 %s59, 1
    %p63 = scmp.eq.s32.totalorder %s11, 1
    %p64 = scmp.ne.s32.totalorder %s59, %s61
    %p65 = scmp.eq.s32.totalorder %s11, 0
    %p66 = por %p64, %p65
    %p67 = scmp.ne.s32.totalorder %s59, %s61
    %p68 = scmp.eq.s32.totalorder %s16, 1
    %p69 = por %p67, %p68
    %p70 = scmp.ne.s32.totalorder %s61, %s62
    %p71 = scmp.eq.s32.totalorder %s16, 0
    %p72 = por %p70, %p71
    %p73 = scmp.ne.s32.totalorder %s61, %s62
    %p74 = scmp.eq.s32.totalorder %s17, 1
    %p75 = por %p73, %p74
    %p77 = scmp.ne.s32.totalorder %s62, %s76
    %p78 = scmp.eq.s32.totalorder %s17, 0
    %p79 = por %p77, %p78
    %s81 = sadd.s32 %s80, 1
    %p84 = scmp.eq.s32.totalorder %s11, 1
    %p85 = scmp.ne.s32.totalorder %s80, %s82
    %p86 = scmp.eq.s32.totalorder %s11, 0
    %p87 = por %p85, %p86
    %p88 = scmp.ne.s32.totalorder %s80, %s82
    %p89 = scmp.eq.s32.totalorder %s16, 1
    %p90 = por %p88, %p89
    %p91 = scmp.ne.s32.totalorder %s82, %s83
    %p92 = scmp.eq.s32.totalorder %s16, 0
    %p93 = por %p91, %p92
    %p94 = scmp.ne.s32.totalorder %s82, %s83
    %p95 = scmp.eq.s32.totalorder %s17, 1
    %p96 = por %p94, %p95
    %p98 = scmp.ne.s32.totalorder %s83, %s97
    %p99 = scmp.eq.s32.totalorder %s17, 0
    %p100 = por %p98, %p99
    %s102 = sadd.s32 %s101, 1
    %p105 = scmp.eq.s32.totalorder %s11, 1
    %p106 = scmp.ne.s32.totalorder %s101, %s103
    %p107 = scmp.eq.s32.totalorder %s11, 0
    %p108 = por %p106, %p107
    %p109 = scmp.ne.s32.totalorder %s101, %s103
    %p110 = scmp.eq.s32.totalorder %s16, 1
    %p111 = por %p109, %p110
    %p112 = scmp.ne.s32.totalorder %s103, %s104
    %p113 = scmp.eq.s32.totalorder %s16, 0
    %p114 = por %p112, %p113
    %p115 = scmp.ne.s32.totalorder %s103, %s104
    %p116 = scmp.eq.s32.totalorder %s17, 1
    %p117 = por %p115, %p116
    %p119 = scmp.ne.s32.totalorder %s104, %s118
    %p120 = scmp.eq.s32.totalorder %s17, 0
    %p121 = por %p119, %p120
    %s123 = sadd.s32 %s122, 1
    %p126 = scmp.eq.s32.totalorder %s11, 1
    %p127 = scmp.ne.s32.totalorder %s122, %s124
    %p128 = scmp.eq.s32.totalorder %s11, 0
    %p129 = por %p127, %p128
    %p130 = scmp.ne.s32.totalorder %s122, %s124
    %p131 = scmp.eq.s32.totalorder %s16, 1
    %p132 = por %p130, %p131
    %p133 = scmp.ne.s32.totalorder %s124, %s125
    %p134 = scmp.eq.s32.totalorder %s16, 0
    %p135 = por %p133, %p134
    %p136 = scmp.ne.s32.totalorder %s124, %s125
    %p137 = scmp.eq.s32.totalorder %s17, 1
    %p138 = por %p136, %p137
    %p140 = scmp.ne.s32.totalorder %s125, %s139
    %p141 = scmp.eq.s32.totalorder %s17, 0
    %p142 = por %p140, %p141
    %s143 = ssub.s32 %s18, %s30
    %s144 = ssub.s32 %s19, %s26
    %s145 = sor.u32 %s143, %s144
    %p146 = scmp.eq.s32.totalorder %s145, 0
    %s148 = sadd.s32 %s147, 1
    %s149 = scalar_select %p146, %s147, %s148
    %p152 = pneg %p146
    %p153 = scmp.eq.s32.totalorder %s11, 1
    %p154 = por %p152, %p153
    %p155 = scmp.ne.s32.totalorder %s147, %s150
    %p156 = scmp.eq.s32.totalorder %s11, 0
    %p157 = por %p155, %p156
    %p158 = scmp.ne.s32.totalorder %s147, %s150
    %p159 = scmp.eq.s32.totalorder %s16, 1
    %p160 = por %p158, %p159
    %p161 = scmp.ne.s32.totalorder %s150, %s151
    %p162 = scmp.eq.s32.totalorder %s16, 0
    %p163 = por %p161, %p162
    %p164 = scmp.ne.s32.totalorder %s150, %s151
    %p165 = scmp.eq.s32.totalorder %s17, 1
    %p166 = por %p164, %p165
    %p168 = scmp.ne.s32.totalorder %s151, %s167
    %p169 = scmp.eq.s32.totalorder %s17, 0
    %p170 = por %p168, %p169
    %p171 = scmp.le.s32.totalorder 1, %s11
    %p172 = scmp.lt.s32.totalorder %s11, 3
    %p173 = pnand %p171, %p172
    %p174 = pneg %p173
    // Predicated region
    $region9: #{encoder_forward_pallas.9} parent=5 // pred_check
      _
    $region10: #{encoder_forward_pallas.9} parent=5 // pred_check_branch
      %176 = sbr.rel (%p173) target = $region12
    $region11: #{encoder_forward_pallas.9} parent=5 // pred_region
      %s177 = ssub.s32 %s11, 1
      // Predicated region
      $region13: #{encoder_forward_pallas.9} parent=11 // pred_check
        %p178 = pneg %p72
      $region14: #{encoder_forward_pallas.9} parent=11 // pred_check_branch
        %180 = sbr.rel (%p178) target = $region16
      $region15: #{encoder_forward_pallas.9} parent=11 // pred_region
        _
      $region16: #{encoder_forward_pallas.9} parent=11 // pred_fallthru
        _
      // Predicated region
      $region17: #{encoder_forward_pallas.9} parent=11 // pred_check
        %p181 = pneg %p93
      $region18: #{encoder_forward_pallas.9} parent=11 // pred_check_branch
        %183 = sbr.rel (%p181) target = $region20
      $region19: #{encoder_forward_pallas.9} parent=11 // pred_region
        _
      $region20: #{encoder_forward_pallas.9} parent=11 // pred_fallthru
        _
      // Predicated region
      $region21: #{encoder_forward_pallas.9} parent=11 // pred_check
        %p184 = pneg %p114
      $region22: #{encoder_forward_pallas.9} parent=11 // pred_check_branch
        %186 = sbr.rel (%p184) target = $region24
      $region23: #{encoder_forward_pallas.9} parent=11 // pred_region
        _
      $region24: #{encoder_forward_pallas.9} parent=11 // pred_fallthru
        _
      // Predicated region
      $region25: #{encoder_forward_pallas.9} parent=11 // pred_check
        %p187 = pneg %p135
      $region26: #{encoder_forward_pallas.9} parent=11 // pred_check_branch
        %189 = sbr.rel (%p187) target = $region28
      $region27: #{encoder_forward_pallas.9} parent=11 // pred_region
        _
      $region28: #{encoder_forward_pallas.9} parent=11 // pred_fallthru
        _
    $region12: #{encoder_forward_pallas.9} parent=5 // pred_fallthru
      _
    %p190 = scmp.lt.s32.totalorder %s11, 2
    // Predicated region
    $region29: #{encoder_forward_pallas.9} parent=5 // pred_check
      %p191 = pneg %p190
    $region30: #{encoder_forward_pallas.9} parent=5 // pred_check_branch
      %193 = sbr.rel (%p191) target = $region32
    $region31: #{encoder_forward_pallas.9} parent=5 // pred_region
      // Predicated region
      $region33: #{encoder_forward_pallas.9} parent=31 // pred_check
        %p194 = pneg %p45
      $region34: #{encoder_forward_pallas.9} parent=31 // pred_check_branch
        %196 = sbr.rel (%p194) target = $region36
      $region35: #{encoder_forward_pallas.9} parent=31 // pred_region
        %p197 = scmp.lt.s32.totalorder %s18, 1
        %s198 = scalar_select %p197, %s18, 1
        %p199 = scmp.lt.s32.totalorder %s19, 0
        %s200 = scalar_select %p199, %s19, 0
        %s201 = smul.addr %s200, 7
        %s202 = smul.addr %s198, 7
        %s203 = sadd.s32 %s201, %s202
        %s204 = smul.addr %s203, 8
        %s205 = scalar_lea.vmem %s0, %s204
      $region36: #{encoder_forward_pallas.9} parent=31 // pred_fallthru
        _
    $region32: #{encoder_forward_pallas.9} parent=5 // pred_fallthru
      _
    %p206 = scmp.le.s32.totalorder 1, %s11
    %p207 = scmp.lt.s32.totalorder %s11, 3
    %p208 = pnand %p206, %p207
    %p209 = pneg %p208
    // Predicated region
    $region37: #{encoder_forward_pallas.9} parent=5 // pred_check
      _
    $region38: #{encoder_forward_pallas.9} parent=5 // pred_check_branch
      %211 = sbr.rel (%p208) target = $region40
    $region39: #{encoder_forward_pallas.9} parent=5 // pred_region
      %s212 = ssub.s32 %s11, 1
      %p213 = scmp.lt.s32.totalorder %s20, 1
      %s214 = scalar_select %p213, %s20, 1
      %p215 = scmp.lt.s32.totalorder %s21, 0
      %s216 = scalar_select %p215, %s21, 0
      %s217 = smul.addr %s216, 7
      %s218 = smul.addr %s214, 7
      %s219 = sadd.s32 %s217, %s218
      %s220 = smul.addr %s219, 8
      %s221 = scalar_lea.vmem %s0, %s220
      %p222 = pneg %p51
      %p223 = pneg %p48
      %p224 = pneg %p72
      %p225 = pneg %p69
      %p226 = pneg %p93
      %p227 = pneg %p90
      %p228 = pneg %p114
      %p229 = pneg %p111
      %p230 = pneg %p135
      %p231 = pneg %p132
      %p232 = pneg %p163
      %p233 = pneg %p160
      %p234 = scmp.lt.s32.totalorder %s20, 1
      %s235 = scalar_select %p234, %s20, 1
      %p236 = scmp.lt.s32.totalorder %s21, 0
      %s237 = scalar_select %p236, %s21, 0
      %s238 = smul.addr %s237, 4
      %s239 = smul.addr %s235, 4
      %s240 = sadd.s32 %s238, %s239
      %s241 = smul.addr %s240, 8
      %s242 = scalar_lea.vmem %s5, %s241
      %p243 = scmp.lt.s32.totalorder %s20, 1
      %s244 = scalar_select %p243, %s20, 1
      %p245 = scmp.lt.s32.totalorder %s21, 0
      %s246 = scalar_select %p245, %s21, 0
      %s247 = smul.addr %s246, 7
      %s248 = smul.addr %s244, 7
      %s249 = sadd.s32 %s247, %s248
      %s250 = smul.addr %s249, 8
      %s251 = scalar_lea.vmem %s0, %s250
      %p252 = scmp.lt.s32.totalorder %s20, 1
      %s253 = scalar_select %p252, %s20, 1
      %p254 = scmp.lt.s32.totalorder %s21, 0
      %s255 = scalar_select %p254, %s21, 0
      %s256 = smul.addr %s255, 4
      %s257 = smul.addr %s253, 4
      %s258 = sadd.s32 %s256, %s257
      %s259 = smul.addr %s258, 8
      %s260 = scalar_lea.vmem %s5, %s259
      %v262 = vld [vmem:[%s251] sm:$0xff]
      %v263 = vld [vmem:[%s251 + $0x8] sm:$0xff]
      %v264 = vld [vmem:[%s251 + $0x10] sm:$0xff]
      %v265 = vld [vmem:[%s251 + $0x18] sm:$0xff]
      %v266 = vld [vmem:[%s251 + $0x20] sm:$0xff]
      %v267 = vld [vmem:[%s251 + $0x28] sm:$0xff]
      %v268 = vld [vmem:[%s251 + $0x30] sm:$0x3]
      %v269 = vmax.f32 %v262, 0.0
      %v270 = vmax.f32 %v263, 0.0
      %v271 = vmax.f32 %v264, 0.0
      %v272 = vmax.f32 %v265, 0.0
      %v273 = vmax.f32 %v266, 0.0
      %v274 = vmax.f32 %v267, 0.0
      %v275 = vmax.f32 %v268, 0.0
      %v276 = vpack.c.bf16 %v270, %v269
      %v277 = vpack.c.bf16 %v272, %v271
      %v278 = vpack.c.bf16 %v274, %v273
      %v279 = vpack.c.bf16 %v275, %v275
      %vm280 = vsmask.f32 7424
      %v282 = vshrl.u32 %v276, 16
      %v284 = vshll.u32 %v276, 16
      %v286 = vrot.slane %v284, 1
      %v287 = vor.u32 %v282, %v286
      %v289 = vshll.u32 %v277, 16
      %v291 = vrot.slane %v289, 1
      %v292 = vsel %vm280, %v287, %v291
      %v293 = vshrl.u32 %v277, 16
      %v295 = vor.u32 %v293, %v291
      %v297 = vshll.u32 %v278, 16
      %v299 = vrot.slane %v297, 1
      %v300 = vsel %vm280, %v295, %v299
      %vm306 = vcmask 1046528
      %v307 = vrot.slane %v276, 1
      %v308 = vrot.slane %v277, 1
      %v309 = vsel %vm306, %v307, %v308
      %v310 = vrot.slane %v278, 1
      %v311 = vsel %vm306, %v308, %v310
      %vm314 = vcmask 1043456
      %v315 = vrot.slane %v276, 4
      %v316 = vrot.slane %v277, 4
      %v317 = vsel %vm314, %v315, %v316
      %v318 = vrot.slane %v278, 4
      %v319 = vsel %vm314, %v316, %v318
      %vm322 = vsmask.f32 3328
      %v323 = vrot.slane %v282, 4
      %v324 = vrot.slane %v284, 5
      %v325 = vor.u32 %v323, %v324
      %v326 = vrot.slane %v293, 4
      %v327 = vrot.slane %v289, 5
      %v328 = vor.u32 %v326, %v327
      %v329 = vsel %vm322, %v325, %v328
      %v330 = vshrl.u32 %v278, 16
      %v332 = vrot.slane %v330, 4
      %v333 = vrot.slane %v297, 5
      %v334 = vor.u32 %v332, %v333
      %v335 = vsel %vm322, %v328, %v334
      %vm338 = vcmask 1042432
      %v339 = vrot.slane %v276, 5
      %v340 = vrot.slane %v277, 5
      %v341 = vsel %vm338, %v339, %v340
      %v342 = vrot.slane %v278, 5
      %v343 = vsel %vm338, %v340, %v342
      %v346 = vor.u32 %v330, %v299
      %v348 = vshll.u32 %v279, 16
      %v350 = vrot.slane %v348, 1
      %v351 = vsel %vm280, %v346, %v350
      %v354 = vrot.slane %v279, 1
      %v355 = vsel %vm306, %v310, %v354
      %v357 = vld [vmem:[%s1] sm:$0xf]
      %v358 = vld [vmem:[%s1 + $0x4] sm:$0xf]
      %v359 = vld [vmem:[%s1 + $0x8] sm:$0xf]
      %v360 = vld [vmem:[%s1 + $0xc] sm:$0xf]
      %v361 = vld [vmem:[%s1 + $0x10] sm:$0xf]
      %v362 = vld [vmem:[%s1 + $0x14] sm:$0xf]
      %v363 = vld [vmem:[%s1 + $0x18] sm:$0xf]
      %v364 = vld [vmem:[%s1 + $0x1c] sm:$0xf]
      %v365 = vld [vmem:[%s1 + $0x20] sm:$0xf]
      %v366 = vld [vmem:[%s1 + $0x24] sm:$0xf]
      %v367 = vld [vmem:[%s1 + $0x28] sm:$0xf]
      %v368 = vld [vmem:[%s1 + $0x2c] sm:$0xf]
      %v369 = vld [vmem:[%s1 + $0x30] sm:$0xf]
      %v370 = vld [vmem:[%s1 + $0x34] sm:$0xf]
      %v371 = vld [vmem:[%s1 + $0x38] sm:$0xf]
      %v372 = vld [vmem:[%s1 + $0x3c] sm:$0xf]
      %v373 = vld [vmem:[%s1 + $0x40] sm:$0xf]
      %v374 = vld [vmem:[%s1 + $0x44] sm:$0xf]
      %v375 = vld [vmem:[%s1 + $0x48] sm:$0xf]
      %v376 = vld [vmem:[%s1 + $0x4c] sm:$0xf]
      %v377 = vld [vmem:[%s1 + $0x50] sm:$0xf]
      %v378 = vld [vmem:[%s1 + $0x54] sm:$0xf]
      %v379 = vld [vmem:[%s1 + $0x58] sm:$0xf]
      %v380 = vld [vmem:[%s1 + $0x5c] sm:$0xf]
      %v381 = vld [vmem:[%s1 + $0x60] sm:$0xf]
      %v382 = vld [vmem:[%s1 + $0x64] sm:$0xf]
      %v383 = vld [vmem:[%s1 + $0x68] sm:$0xf]
      %v384 = vld [vmem:[%s1 + $0x6c] sm:$0xf]
      %v385 = vld [vmem:[%s1 + $0x70] sm:$0xf]
      %v386 = vld [vmem:[%s1 + $0x74] sm:$0xf]
      %v387 = vld [vmem:[%s1 + $0x78] sm:$0xf]
      %v388 = vld [vmem:[%s1 + $0x7c] sm:$0xf]
      %v389 = vld [vmem:[%s1 + $0x80] sm:$0xf]
      %v390 = vld [vmem:[%s1 + $0x84] sm:$0xf]
      %v391 = vld [vmem:[%s1 + $0x88] sm:$0xf]
      %v392 = vld [vmem:[%s1 + $0x8c] sm:$0xf]
      %v393 = vld [vmem:[%s1 + $0x90] sm:$0xf]
      %v394 = vld [vmem:[%s1 + $0x94] sm:$0xf]
      %v395 = vld [vmem:[%s1 + $0x98] sm:$0xf]
      %v396 = vld [vmem:[%s1 + $0x9c] sm:$0xf]
      %v397 = vld [vmem:[%s1 + $0xa0] sm:$0xf]
      %v398 = vld [vmem:[%s1 + $0xa4] sm:$0xf]
      %v399 = vld [vmem:[%s1 + $0xa8] sm:$0xf]
      %v400 = vld [vmem:[%s1 + $0xac] sm:$0xf]
      %v401 = vld [vmem:[%s1 + $0xb0] sm:$0xf]
      %v402 = vld [vmem:[%s1 + $0xb4] sm:$0xf]
      %v403 = vld [vmem:[%s1 + $0xb8] sm:$0xf]
      %v404 = vld [vmem:[%s1 + $0xbc] sm:$0xf]
      %v405 = vld [vmem:[%s1 + $0xc0] sm:$0xf]
      %v406 = vld [vmem:[%s1 + $0xc4] sm:$0xf]
      %v407 = vld [vmem:[%s1 + $0xc8] sm:$0xf]
      %v408 = vld [vmem:[%s1 + $0xcc] sm:$0xf]
      %v409 = vld [vmem:[%s1 + $0xd0] sm:$0xf]
      %v410 = vld [vmem:[%s1 + $0xd4] sm:$0xf]
      %v411 = vld [vmem:[%s1 + $0xd8] sm:$0xf]
      %v412 = vld [vmem:[%s1 + $0xdc] sm:$0xf]
      %v413 = vld [vmem:[%s1 + $0xe0] sm:$0xf]
      %v414 = vld [vmem:[%s1 + $0xe4] sm:$0xf]
      %v415 = vld [vmem:[%s1 + $0xe8] sm:$0xf]
      %v416 = vld [vmem:[%s1 + $0xec] sm:$0xf]
      %v417 = vld [vmem:[%s1 + $0xf0] sm:$0xf]
      %v418 = vld [vmem:[%s1 + $0xf4] sm:$0xf]
      %v419 = vld [vmem:[%s1 + $0xf8] sm:$0xf]
      %v420 = vld [vmem:[%s1 + $0xfc] sm:$0xf]
      %v421 = vld [vmem:[%s1 + $0x100] sm:$0xf]
      %v422 = vld [vmem:[%s1 + $0x104] sm:$0xf]
      %v423 = vld [vmem:[%s1 + $0x108] sm:$0xf]
      %v424 = vld [vmem:[%s1 + $0x10c] sm:$0xf]
      %v425 = vld [vmem:[%s1 + $0x110] sm:$0xf]
      %v426 = vld [vmem:[%s1 + $0x114] sm:$0xf]
      %v427 = vld [vmem:[%s1 + $0x118] sm:$0xf]
      %v428 = vld [vmem:[%s1 + $0x11c] sm:$0xf]
      %v429 = vld [vmem:[%s1 + $0x120] sm:$0xf]
      %v430 = vld [vmem:[%s1 + $0x124] sm:$0xf]
      %v431 = vld [vmem:[%s1 + $0x128] sm:$0xf]
      %v432 = vld [vmem:[%s1 + $0x12c] sm:$0xf]
      %v433 = vld [vmem:[%s1 + $0x130] sm:$0xf]
      %v434 = vld [vmem:[%s1 + $0x134] sm:$0xf]
      %v435 = vld [vmem:[%s1 + $0x138] sm:$0xf]
      %v436 = vld [vmem:[%s1 + $0x13c] sm:$0xf]
      %v437 = vld [vmem:[%s1 + $0x140] sm:$0xf]
      %v438 = vld [vmem:[%s1 + $0x144] sm:$0xf]
      %v439 = vld [vmem:[%s1 + $0x148] sm:$0xf]
      %v440 = vld [vmem:[%s1 + $0x14c] sm:$0xf]
      %v441 = vld [vmem:[%s1 + $0x150] sm:$0xf]
      %v442 = vld [vmem:[%s1 + $0x154] sm:$0xf]
      %v443 = vld [vmem:[%s1 + $0x158] sm:$0xf]
      %v444 = vld [vmem:[%s1 + $0x15c] sm:$0xf]
      %v445 = vld [vmem:[%s1 + $0x160] sm:$0xf]
      %v446 = vld [vmem:[%s1 + $0x164] sm:$0xf]
      %v447 = vld [vmem:[%s1 + $0x168] sm:$0xf]
      %v448 = vld [vmem:[%s1 + $0x16c] sm:$0xf]
      %v449 = vld [vmem:[%s1 + $0x170] sm:$0xf]
      %v450 = vld [vmem:[%s1 + $0x174] sm:$0xf]
      %v451 = vld [vmem:[%s1 + $0x178] sm:$0xf]
      %v452 = vld [vmem:[%s1 + $0x17c] sm:$0xf]
      %v453 = vld [vmem:[%s1 + $0x180] sm:$0xf]
      %v454 = vld [vmem:[%s1 + $0x184] sm:$0xf]
      %v455 = vld [vmem:[%s1 + $0x188] sm:$0xf]
      %v456 = vld [vmem:[%s1 + $0x18c] sm:$0xf]
      %v457 = vld [vmem:[%s1 + $0x190] sm:$0xf]
      %v458 = vld [vmem:[%s1 + $0x194] sm:$0xf]
      %v459 = vld [vmem:[%s1 + $0x198] sm:$0xf]
      %v460 = vld [vmem:[%s1 + $0x19c] sm:$0xf]
      %v461 = vld [vmem:[%s1 + $0x1a0] sm:$0xf]
      %v462 = vld [vmem:[%s1 + $0x1a4] sm:$0xf]
      %v463 = vld [vmem:[%s1 + $0x1a8] sm:$0xf]
      %v464 = vld [vmem:[%s1 + $0x1ac] sm:$0xf]
      %v465 = vld [vmem:[%s1 + $0x1b0] sm:$0xf]
      %v466 = vld [vmem:[%s1 + $0x1b4] sm:$0xf]
      %v467 = vld [vmem:[%s1 + $0x1b8] sm:$0xf]
      %v468 = vld [vmem:[%s1 + $0x1bc] sm:$0xf]
      %v469 = vld [vmem:[%s1 + $0x1c0] sm:$0xf]
      %v470 = vld [vmem:[%s1 + $0x1c4] sm:$0xf]
      %v471 = vld [vmem:[%s1 + $0x1c8] sm:$0xf]
      %v472 = vld [vmem:[%s1 + $0x1cc] sm:$0xf]
      %v473 = vld [vmem:[%s1 + $0x1d0] sm:$0xf]
      %v474 = vld [vmem:[%s1 + $0x1d4] sm:$0xf]
      %v475 = vld [vmem:[%s1 + $0x1d8] sm:$0xf]
      %v476 = vld [vmem:[%s1 + $0x1dc] sm:$0xf]
      %v477 = vld [vmem:[%s1 + $0x1e0] sm:$0xf]
      %v478 = vld [vmem:[%s1 + $0x1e4] sm:$0xf]
      %v479 = vld [vmem:[%s1 + $0x1e8] sm:$0xf]
      %v480 = vld [vmem:[%s1 + $0x1ec] sm:$0xf]
      %v481 = vld [vmem:[%s1 + $0x1f0] sm:$0xf]
      %v482 = vld [vmem:[%s1 + $0x1f4] sm:$0xf]
      %v483 = vld [vmem:[%s1 + $0x1f8] sm:$0xf]
      %v484 = vld [vmem:[%s1 + $0x1fc] sm:$0xf]
      %v485 = vld [vmem:[%s1 + $0x200] sm:$0xf]
      %v486 = vld [vmem:[%s1 + $0x204] sm:$0xf]
      %v487 = vld [vmem:[%s1 + $0x208] sm:$0xf]
      %v488 = vld [vmem:[%s1 + $0x20c] sm:$0xf]
      %v489 = vld [vmem:[%s1 + $0x210] sm:$0xf]
      %v490 = vld [vmem:[%s1 + $0x214] sm:$0xf]
      %v491 = vld [vmem:[%s1 + $0x218] sm:$0xf]
      %v492 = vld [vmem:[%s1 + $0x21c] sm:$0xf]
      %v493 = vld [vmem:[%s1 + $0x220] sm:$0xf]
      %v494 = vld [vmem:[%s1 + $0x224] sm:$0xf]
      %v495 = vld [vmem:[%s1 + $0x228] sm:$0xf]
      %v496 = vld [vmem:[%s1 + $0x22c] sm:$0xf]
      %v497 = vld [vmem:[%s1 + $0x230] sm:$0xf]
      %v498 = vld [vmem:[%s1 + $0x234] sm:$0xf]
      %v499 = vld [vmem:[%s1 + $0x238] sm:$0xf]
      %v500 = vld [vmem:[%s1 + $0x23c] sm:$0xf]
      %v501 = vld [vmem:[%s2] sm:$0x1]
      %v503 = vlaneseq
      %v504 = vshrl.u32 %v503, 7
      %v505 = vsub.s32 0, %v504
      %v506 = vrot.slane %v501, %v505
      %v652 = vunpack.c.l.b16 %v357
      %v653 = vunpack.c.l.b16 %v358
      %v654 = vunpack.c.l.b16 %v359
      %v655 = vunpack.c.l.b16 %v360
      %v656 = vunpack.c.l.b16 %v361
      %v657 = vunpack.c.l.b16 %v362
      %v658 = vunpack.c.l.b16 %v363
      %v659 = vunpack.c.l.b16 %v364
      %v660 = vunpack.c.l.b16 %v365
      %v661 = vunpack.c.l.b16 %v366
      %v662 = vunpack.c.l.b16 %v367
      %v663 = vunpack.c.l.b16 %v368
      %v664 = vunpack.c.l.b16 %v369
      %v665 = vunpack.c.l.b16 %v370
      %v666 = vunpack.c.l.b16 %v371
      %v667 = vunpack.c.l.b16 %v372
      %v668 = vunpack.c.l.b16 %v373
      %v669 = vunpack.c.l.b16 %v374
      %v670 = vunpack.c.l.b16 %v375
      %v671 = vunpack.c.l.b16 %v376
      %v672 = vunpack.c.l.b16 %v377
      %v673 = vunpack.c.l.b16 %v378
      %v674 = vunpack.c.l.b16 %v379
      %v675 = vunpack.c.l.b16 %v380
      %v676 = vunpack.c.l.b16 %v381
      %v677 = vunpack.c.l.b16 %v382
      %v678 = vunpack.c.l.b16 %v383
      %v679 = vunpack.c.l.b16 %v384
      %v680 = vunpack.c.l.b16 %v385
      %v681 = vunpack.c.l.b16 %v386
      %v682 = vunpack.c.l.b16 %v387
      %v683 = vunpack.c.l.b16 %v388
      %v684 = vunpack.c.l.b16 %v389
      %v685 = vunpack.c.l.b16 %v390
      %v686 = vunpack.c.l.b16 %v391
      %v687 = vunpack.c.l.b16 %v392
      %v688 = vunpack.c.l.b16 %v393
      %v689 = vunpack.c.l.b16 %v394
      %v690 = vunpack.c.l.b16 %v395
      %v691 = vunpack.c.l.b16 %v396
      %v692 = vunpack.c.l.b16 %v397
      %v693 = vunpack.c.l.b16 %v398
      %v694 = vunpack.c.l.b16 %v399
      %v695 = vunpack.c.l.b16 %v400
      %v696 = vunpack.c.l.b16 %v401
      %v697 = vunpack.c.l.b16 %v402
      %v698 = vunpack.c.l.b16 %v403
      %v699 = vunpack.c.l.b16 %v404
      %v700 = vunpack.c.l.b16 %v405
      %v701 = vunpack.c.l.b16 %v406
      %v702 = vunpack.c.l.b16 %v407
      %v703 = vunpack.c.l.b16 %v408
      %v704 = vunpack.c.l.b16 %v409
      %v705 = vunpack.c.l.b16 %v410
      %v706 = vunpack.c.l.b16 %v411
      %v707 = vunpack.c.l.b16 %v412
      %v708 = vunpack.c.l.b16 %v413
      %v709 = vunpack.c.l.b16 %v414
      %v710 = vunpack.c.l.b16 %v415
      %v711 = vunpack.c.l.b16 %v416
      %v712 = vunpack.c.l.b16 %v417
      %v713 = vunpack.c.l.b16 %v418
      %v714 = vunpack.c.l.b16 %v419
      %v715 = vunpack.c.l.b16 %v420
      %v716 = vunpack.c.l.b16 %v421
      %v717 = vunpack.c.l.b16 %v422
      %v718 = vunpack.c.l.b16 %v423
      %v719 = vunpack.c.l.b16 %v424
      %v720 = vunpack.c.l.b16 %v425
      %v721 = vunpack.c.l.b16 %v426
      %v722 = vunpack.c.l.b16 %v427
      %v723 = vunpack.c.l.b16 %v428
      %v724 = vunpack.c.l.b16 %v429
      %v725 = vunpack.c.l.b16 %v430
      %v726 = vunpack.c.l.b16 %v431
      %v727 = vunpack.c.l.b16 %v432
      %v728 = vunpack.c.l.b16 %v433
      %v729 = vunpack.c.l.b16 %v434
      %v730 = vunpack.c.l.b16 %v435
      %v731 = vunpack.c.l.b16 %v436
      %v732 = vunpack.c.l.b16 %v437
      %v733 = vunpack.c.l.b16 %v438
      %v734 = vunpack.c.l.b16 %v439
      %v735 = vunpack.c.l.b16 %v440
      %v736 = vunpack.c.l.b16 %v441
      %v737 = vunpack.c.l.b16 %v442
      %v738 = vunpack.c.l.b16 %v443
      %v739 = vunpack.c.l.b16 %v444
      %v740 = vunpack.c.l.b16 %v445
      %v741 = vunpack.c.l.b16 %v446
      %v742 = vunpack.c.l.b16 %v447
      %v743 = vunpack.c.l.b16 %v448
      %v744 = vunpack.c.l.b16 %v449
      %v745 = vunpack.c.l.b16 %v450
      %v746 = vunpack.c.l.b16 %v451
      %v747 = vunpack.c.l.b16 %v452
      %v748 = vunpack.c.l.b16 %v453
      %v749 = vunpack.c.l.b16 %v454
      %v750 = vunpack.c.l.b16 %v455
      %v751 = vunpack.c.l.b16 %v456
      %v752 = vunpack.c.l.b16 %v457
      %v753 = vunpack.c.l.b16 %v458
      %v754 = vunpack.c.l.b16 %v459
      %v755 = vunpack.c.l.b16 %v460
      %v756 = vunpack.c.l.b16 %v461
      %v757 = vunpack.c.l.b16 %v462
      %v758 = vunpack.c.l.b16 %v463
      %v759 = vunpack.c.l.b16 %v464
      %v760 = vunpack.c.l.b16 %v465
      %v761 = vunpack.c.l.b16 %v466
      %v762 = vunpack.c.l.b16 %v467
      %v763 = vunpack.c.l.b16 %v468
      %v764 = vunpack.c.l.b16 %v469
      %v765 = vunpack.c.l.b16 %v470
      %v766 = vunpack.c.l.b16 %v471
      %v767 = vunpack.c.l.b16 %v472
      %v768 = vunpack.c.l.b16 %v473
      %v769 = vunpack.c.l.b16 %v474
      %v770 = vunpack.c.l.b16 %v475
      %v771 = vunpack.c.l.b16 %v476
      %v772 = vunpack.c.l.b16 %v477
      %v773 = vunpack.c.l.b16 %v478
      %v774 = vunpack.c.l.b16 %v479
      %v775 = vunpack.c.l.b16 %v480
      %v776 = vunpack.c.l.b16 %v481
      %v777 = vunpack.c.l.b16 %v482
      %v778 = vunpack.c.l.b16 %v483
      %v779 = vunpack.c.l.b16 %v484
      %v780 = vunpack.c.l.b16 %v485
      %v781 = vunpack.c.l.b16 %v486
      %v782 = vunpack.c.l.b16 %v487
      %v783 = vunpack.c.l.b16 %v488
      %v784 = vunpack.c.l.b16 %v489
      %v785 = vunpack.c.l.b16 %v490
      %v786 = vunpack.c.l.b16 %v491
      %v787 = vunpack.c.l.b16 %v492
      %v788 = vunpack.c.l.b16 %v493
      %v789 = vunpack.c.l.b16 %v494
      %v790 = vunpack.c.l.b16 %v495
      %v791 = vunpack.c.l.b16 %v496
      %v792 = vunpack.c.l.b16 %v497
      %v793 = vunpack.c.l.b16 %v498
      %v794 = vunpack.c.l.b16 %v499
      %v795 = vunpack.c.l.b16 %v500
      %v796 = vpack.c.b16 %v653, %v652
      %v797 = vpack.c.b16 %v655, %v654
      %v798 = vpack.c.b16 %v657, %v656
      %v799 = vpack.c.b16 %v659, %v658
      %v800 = vpack.c.b16 %v661, %v660
      %v801 = vpack.c.b16 %v663, %v662
      %v802 = vpack.c.b16 %v665, %v664
      %v803 = vpack.c.b16 %v667, %v666
      %v804 = vpack.c.b16 %v669, %v668
      %v805 = vpack.c.b16 %v671, %v670
      %v806 = vpack.c.b16 %v673, %v672
      %v807 = vpack.c.b16 %v675, %v674
      %v808 = vpack.c.b16 %v677, %v676
      %v809 = vpack.c.b16 %v679, %v678
      %v810 = vpack.c.b16 %v681, %v680
      %v811 = vpack.c.b16 %v683, %v682
      %v812 = vpack.c.b16 %v685, %v684
      %v813 = vpack.c.b16 %v687, %v686
      %v814 = vpack.c.b16 %v689, %v688
      %v815 = vpack.c.b16 %v691, %v690
      %v816 = vpack.c.b16 %v693, %v692
      %v817 = vpack.c.b16 %v695, %v694
      %v818 = vpack.c.b16 %v697, %v696
      %v819 = vpack.c.b16 %v699, %v698
      %v820 = vpack.c.b16 %v701, %v700
      %v821 = vpack.c.b16 %v703, %v702
      %v822 = vpack.c.b16 %v705, %v704
      %v823 = vpack.c.b16 %v707, %v706
      %v824 = vpack.c.b16 %v709, %v708
      %v825 = vpack.c.b16 %v711, %v710
      %v826 = vpack.c.b16 %v713, %v712
      %v827 = vpack.c.b16 %v715, %v714
      %v828 = vpack.c.b16 %v717, %v716
      %v829 = vpack.c.b16 %v719, %v718
      %v830 = vpack.c.b16 %v721, %v720
      %v831 = vpack.c.b16 %v723, %v722
      %v832 = vpack.c.b16 %v725, %v724
      %v833 = vpack.c.b16 %v727, %v726
      %v834 = vpack.c.b16 %v729, %v728
      %v835 = vpack.c.b16 %v731, %v730
      %v836 = vpack.c.b16 %v733, %v732
      %v837 = vpack.c.b16 %v735, %v734
      %v838 = vpack.c.b16 %v737, %v736
      %v839 = vpack.c.b16 %v739, %v738
      %v840 = vpack.c.b16 %v741, %v740
      %v841 = vpack.c.b16 %v743, %v742
      %v842 = vpack.c.b16 %v745, %v744
      %v843 = vpack.c.b16 %v747, %v746
      %v844 = vpack.c.b16 %v749, %v748
      %v845 = vpack.c.b16 %v751, %v750
      %v846 = vpack.c.b16 %v753, %v752
      %v847 = vpack.c.b16 %v755, %v754
      %v848 = vpack.c.b16 %v757, %v756
      %v849 = vpack.c.b16 %v759, %v758
      %v850 = vpack.c.b16 %v761, %v760
      %v851 = vpack.c.b16 %v763, %v762
      %v852 = vpack.c.b16 %v765, %v764
      %v853 = vpack.c.b16 %v767, %v766
      %v854 = vpack.c.b16 %v769, %v768
      %v855 = vpack.c.b16 %v771, %v770
      %v856 = vpack.c.b16 %v773, %v772
      %v857 = vpack.c.b16 %v775, %v774
      %v858 = vpack.c.b16 %v777, %v776
      %v859 = vpack.c.b16 %v779, %v778
      %v860 = vpack.c.b16 %v781, %v780
      %v861 = vpack.c.b16 %v783, %v782
      %v862 = vpack.c.b16 %v785, %v784
      %v863 = vpack.c.b16 %v787, %v786
      %v864 = vpack.c.b16 %v789, %v788
      %v865 = vpack.c.b16 %v791, %v790
      %v866 = vpack.c.b16 %v793, %v792
      %v867 = vpack.c.b16 %v795, %v794
      %940 = vmatprep.subr.bf16.mxu0 0
      %941 = vmatpush1.bf16.msra.mxu0 %v796
      %942 = vmatprep.subr.bf16.mxu0 0
      %943 = vmatpush1.bf16.msra.mxu0 %v797
      %944 = vmatprep.subr.bf16.mxu0 0
      %945 = vmatpush1.bf16.msra.mxu0 %v798
      %946 = vmatprep.subr.bf16.mxu0 0
      %947 = vmatpush1.bf16.msra.mxu0 %v799
      %948 = vmatprep.subr.bf16.mxu0 0
      %949 = vmatpush1.bf16.msra.mxu0 %v800
      %950 = vmatprep.subr.bf16.mxu0 0
      %951 = vmatpush1.bf16.msra.mxu0 %v801
      %952 = vmatprep.subr.bf16.mxu0 0
      %953 = vmatpush1.bf16.msra.mxu0 %v802
      %954 = vmatprep.subr.bf16.mxu0 0
      %955 = vmatpush1.bf16.msra.mxu0 %v803
      %956 = vmatprep.subr.bf16.mxu0 0
      %957 = vmatpush1.bf16.msra.mxu0 %v804
      %958 = vmatprep.subr.bf16.mxu0 0
      %959 = vmatpush1.bf16.msra.mxu0 %v805
      %960 = vmatprep.subr.bf16.mxu0 0
      %961 = vmatpush1.bf16.msra.mxu0 %v806
      %962 = vmatprep.subr.bf16.mxu0 0
      %963 = vmatpush1.bf16.msra.mxu0 %v807
      %964 = vmatprep.subr.bf16.mxu0 0
      %965 = vmatpush1.bf16.msra.mxu0 %v808
      %966 = vmatprep.subr.bf16.mxu0 0
      %967 = vmatpush1.bf16.msra.mxu0 %v809
      %968 = vmatprep.subr.bf16.mxu0 0
      %969 = vmatpush1.bf16.msra.mxu0 %v810
      %970 = vmatprep.subr.bf16.mxu0 0
      %971 = vmatpush1.bf16.msra.mxu0 %v811
      %972 = vmatprep.mubr.bf16.mxu0 %v292
      %973 = vmatmul.mubr.bf16.gmra.mrb[0].mxu0 %v276
      %v974 = vpop.f32.mrb[0].mxu0
      %v975 = vadd.f32 %v506, %v974
      %v976 = vpop.f32.mrb[0].mxu0
      %v977 = vpop.f32.mrb[0].mxu0
      %v978 = vadd.f32 %v506, %v977
      %v979 = vpop.f32.mrb[0].mxu0
      %980 = vmatprep.mubr.bf16.mxu0 %v300
      %981 = vmatmul.mubr.bf16.gmra.mrb[0].mxu0 %v277
      %v982 = vpop.f32.mrb[0].mxu0
      %v983 = vadd.f32 %v506, %v982
      %v984 = vpop.f32.mrb[0].mxu0
      %v985 = vpop.f32.mrb[0].mxu0
      %v986 = vadd.f32 %v506, %v985
      %v987 = vpop.f32.mrb[0].mxu0
      %988 = vdwg.mxu0
      %989 = vmatprep.subr.bf16.mxu0 0
      %990 = vmatpush1.bf16.msra.mxu0 %v812
      %991 = vmatprep.subr.bf16.mxu0 0
      %992 = vmatpush1.bf16.msra.mxu0 %v813
      %993 = vmatprep.subr.bf16.mxu0 0
      %994 = vmatpush1.bf16.msra.mxu0 %v814
      %995 = vmatprep.subr.bf16.mxu0 0
      %996 = vmatpush1.bf16.msra.mxu0 %v815
      %997 = vmatprep.subr.bf16.mxu0 0
      %998 = vmatpush1.bf16.msra.mxu0 %v816
      %999 = vmatprep.subr.bf16.mxu0 0
      %1000 = vmatpush1.bf16.msra.mxu0 %v817
      %1001 = vmatprep.subr.bf16.mxu0 0
      %1002 = vmatpush1.bf16.msra.mxu0 %v818
      %1003 = vmatprep.subr.bf16.mxu0 0
      %1004 = vmatpush1.bf16.msra.mxu0 %v819
      %1005 = vmatprep.subr.bf16.mxu0 0
      %1006 = vmatpush1.bf16.msra.mxu0 %v820
      %1007 = vmatprep.subr.bf16.mxu0 0
      %1008 = vmatpush1.bf16.msra.mxu0 %v821
      %1009 = vmatprep.subr.bf16.mxu0 0
      %1010 = vmatpush1.bf16.msra.mxu0 %v822
      %1011 = vmatprep.subr.bf16.mxu0 0
      %1012 = vmatpush1.bf16.msra.mxu0 %v823
      %1013 = vmatprep.subr.bf16.mxu0 0
      %1014 = vmatpush1.bf16.msra.mxu0 %v824
      %1015 = vmatprep.subr.bf16.mxu0 0
      %1016 = vmatpush1.bf16.msra.mxu0 %v825
      %1017 = vmatprep.subr.bf16.mxu0 0
      %1018 = vmatpush1.bf16.msra.mxu0 %v826
      %1019 = vmatprep.subr.bf16.mxu0 0
      %1020 = vmatpush1.bf16.msra.mxu0 %v827
      %1021 = vmatprep.mubr.bf16.mxu0 %v317
      %1022 = vmatmul.mubr.bf16.gmra.mrb[0].mxu0 %v309
      %v1023 = vpop.f32.mrb[0].mxu0
      %v1024 = vadd.f32 %v975, %v1023
      %v1025 = vpop.f32.mrb[0].mxu0
      %v1026 = vpop.f32.mrb[0].mxu0
      %v1027 = vadd.f32 %v978, %v1026
      %v1028 = vpop.f32.mrb[0].mxu0
      %1029 = vmatprep.mubr.bf16.mxu0 %v319
      %1030 = vmatmul.mubr.bf16.gmra.mrb[0].mxu0 %v311
      %v1031 = vpop.f32.mrb[0].mxu0
      %v1032 = vadd.f32 %v983, %v1031
      %v1033 = vpop.f32.mrb[0].mxu0
      %v1034 = vpop.f32.mrb[0].mxu0
      %v1035 = vadd.f32 %v986, %v1034
      %v1036 = vpop.f32.mrb[0].mxu0
      %1037 = vdwg.mxu0
      %1038 = vmatprep.subr.bf16.mxu0 0
      %1039 = vmatpush1.bf16.msra.mxu0 %v828
      %1040 = vmatprep.subr.bf16.mxu0 0
      %1041 = vmatpush1.bf16.msra.mxu0 %v829
      %1042 = vmatprep.subr.bf16.mxu0 0
      %1043 = vmatpush1.bf16.msra.mxu0 %v830
      %1044 = vmatprep.subr.bf16.mxu0 0
      %1045 = vmatpush1.bf16.msra.mxu0 %v831
      %1046 = vmatprep.subr.bf16.mxu0 0
      %1047 = vmatpush1.bf16.msra.mxu0 %v832
      %1048 = vmatprep.subr.bf16.mxu0 0
      %1049 = vmatpush1.bf16.msra.mxu0 %v833
      %1050 = vmatprep.subr.bf16.mxu0 0
      %1051 = vmatpush1.bf16.msra.mxu0 %v834
      %1052 = vmatprep.subr.bf16.mxu0 0
      %1053 = vmatpush1.bf16.msra.mxu0 %v835
      %1054 = vmatprep.subr.bf16.mxu0 0
      %1055 = vmatpush1.bf16.msra.mxu0 %v836
      %1056 = vmatprep.subr.bf16.mxu0 0
      %1057 = vmatpush1.bf16.msra.mxu0 %v837
      %1058 = vmatprep.subr.bf16.mxu0 0
      %1059 = vmatpush1.bf16.msra.mxu0 %v838
      %1060 = vmatprep.subr.bf16.mxu0 0
      %1061 = vmatpush1.bf16.msra.mxu0 %v839
      %1062 = vmatprep.subr.bf16.mxu0 0
      %1063 = vmatpush1.bf16.msra.mxu0 %v840
      %1064 = vmatprep.subr.bf16.mxu0 0
      %1065 = vmatpush1.bf16.msra.mxu0 %v841
      %1066 = vmatprep.subr.bf16.mxu0 0
      %1067 = vmatpush1.bf16.msra.mxu0 %v842
      %1068 = vmatprep.subr.bf16.mxu0 0
      %1069 = vmatpush1.bf16.msra.mxu0 %v843
      %1070 = vmatprep.mubr.bf16.mxu0 %v341
      %1071 = vmatmul.mubr.bf16.gmra.mrb[0].mxu0 %v329
      %v1072 = vpop.f32.mrb[0].mxu0
      %v1073 = vadd.f32 %v1024, %v1072
      %v1074 = vpop.f32.mrb[0].mxu0
      %v1075 = vpop.f32.mrb[0].mxu0
      %v1076 = vadd.f32 %v1027, %v1075
      %v1077 = vpop.f32.mrb[0].mxu0
      %1078 = vmatprep.mubr.bf16.mxu0 %v343
      %1079 = vmatmul.mubr.bf16.gmra.mrb[0].mxu0 %v335
      %v1080 = vpop.f32.mrb[0].mxu0
      %v1081 = vadd.f32 %v1032, %v1080
      %v1082 = vpop.f32.mrb[0].mxu0
      %v1083 = vpop.f32.mrb[0].mxu0
      %v1084 = vadd.f32 %v1035, %v1083
      %v1085 = vpop.f32.mrb[0].mxu0
      %1086 = vdwg.mxu0
      %1087 = vmatprep.subr.bf16.mxu0 0
      %1088 = vmatpush1.bf16.msra.mxu0 %v844
      %1089 = vmatprep.subr.bf16.mxu0 0
      %1090 = vmatpush1.bf16.msra.mxu0 %v845
      %1091 = vmatprep.subr.bf16.mxu0 0
      %1092 = vmatpush1.bf16.msra.mxu0 %v846
      %1093 = vmatprep.subr.bf16.mxu0 0
      %1094 = vmatpush1.bf16.msra.mxu0 %v847
      %1095 = vmatprep.subr.bf16.mxu0 0
      %1096 = vmatpush1.bf16.msra.mxu0 %v848
      %1097 = vmatprep.subr.bf16.mxu0 0
      %1098 = vmatpush1.bf16.msra.mxu0 %v849
      %1099 = vmatprep.subr.bf16.mxu0 0
      %1100 = vmatpush1.bf16.msra.mxu0 %v850
      %1101 = vmatprep.subr.bf16.mxu0 0
      %1102 = vmatpush1.bf16.msra.mxu0 %v851
      %1103 = vmatprep.subr.bf16.mxu0 0
      %1104 = vmatpush1.bf16.msra.mxu0 %v852
      %1105 = vmatprep.subr.bf16.mxu0 0
      %1106 = vmatpush1.bf16.msra.mxu0 %v853
      %1107 = vmatprep.subr.bf16.mxu0 0
      %1108 = vmatpush1.bf16.msra.mxu0 %v854
      %1109 = vmatprep.subr.bf16.mxu0 0
      %1110 = vmatpush1.bf16.msra.mxu0 %v855
      %1111 = vmatprep.subr.bf16.mxu0 0
      %1112 = vmatpush1.bf16.msra.mxu0 %v856
      %1113 = vmatprep.subr.bf16.mxu0 0
      %1114 = vmatpush1.bf16.msra.mxu0 %v857
      %1115 = vmatprep.subr.bf16.mxu0 0
      %1116 = vmatpush1.bf16.msra.mxu0 %v858
      %1117 = vmatprep.subr.bf16.mxu0 0
      %1118 = vmatpush1.bf16.msra.mxu0 %v859
      %1119 = vmatprep.mubr.bf16.mxu0 %v300
      %1120 = vmatmul.mubr.bf16.gmra.mrb[0].mxu0 %v277
      %v1121 = vpop.f32.mrb[0].mxu0
      %v1122 = vadd.f32 %v1073, %v1121
      %v1123 = vpop.f32.mrb[0].mxu0
      %v1124 = vpop.f32.mrb[0].mxu0
      %v1125 = vadd.f32 %v1076, %v1124
      %v1126 = vpop.f32.mrb[0].mxu0
      %1127 = vmatprep.mubr.bf16.mxu0 %v351
      %1128 = vmatmul.mubr.bf16.gmra.mrb[0].mxu0 %v278
      %v1129 = vpop.f32.mrb[0].mxu0
      %v1130 = vadd.f32 %v1081, %v1129
      %v1131 = vpop.f32.mrb[0].mxu0
      %v1132 = vpop.f32.mrb[0].mxu0
      %v1133 = vadd.f32 %v1084, %v1132
      %v1134 = vpop.f32.mrb[0].mxu0
      %1135 = vdwg.mxu0
      %1136 = vmatprep.subr.bf16.mxu0 0
      %1137 = vmatpush1.bf16.msra.mxu0 %v860
      %1138 = vmatprep.subr.bf16.mxu0 0
      %1139 = vmatpush1.bf16.msra.mxu0 %v861
      %1140 = vmatprep.subr.bf16.mxu0 0
      %1141 = vmatpush1.bf16.msra.mxu0 %v862
      %1142 = vmatprep.subr.bf16.mxu0 0
      %1143 = vmatpush1.bf16.msra.mxu0 %v863
      %1144 = vmatprep.subr.bf16.mxu0 0
      %1145 = vmatpush1.bf16.msra.mxu0 %v864
      %1146 = vmatprep.subr.bf16.mxu0 0
      %1147 = vmatpush1.bf16.msra.mxu0 %v865
      %1148 = vmatprep.subr.bf16.mxu0 0
      %1149 = vmatpush1.bf16.msra.mxu0 %v866
      %1150 = vmatprep.subr.bf16.mxu0 0
      %1151 = vmatpush1.bf16.msra.mxu0 %v867
      %1152 = vmatprep.subr.bf16.mxu0 0
      %1153 = vmatpush1.bf16.msra.mxu0 0
      %1154 = vmatprep.subr.bf16.mxu0 0
      %1155 = vmatpush1.bf16.msra.mxu0 0
      %1156 = vmatprep.subr.bf16.mxu0 0
      %1157 = vmatpush1.bf16.msra.mxu0 0
      %1158 = vmatprep.subr.bf16.mxu0 0
      %1159 = vmatpush1.bf16.msra.mxu0 0
      %1160 = vmatprep.subr.bf16.mxu0 0
      %1161 = vmatpush1.bf16.msra.mxu0 0
      %1162 = vmatprep.subr.bf16.mxu0 0
      %1163 = vmatpush1.bf16.msra.mxu0 0
      %1164 = vmatprep.subr.bf16.mxu0 0
      %1165 = vmatpush1.bf16.msra.mxu0 0
      %1166 = vmatprep.subr.bf16.mxu0 0
      %1167 = vmatpush1.bf16.msra.mxu0 0
      %1168 = vmatprep.mubr.bf16.mxu0 0
      %1169 = vmatmul.mubr.bf16.gmra.mrb[0].mxu0 %v311
      %v1170 = vpop.f32.mrb[0].mxu0
      %v1171 = vadd.f32 %v1122, %v1170
      %v1172 = vpop.f32.mrb[0].mxu0
      %v1173 = vpop.f32.mrb[0].mxu0
      %v1174 = vadd.f32 %v1125, %v1173
      %v1175 = vpop.f32.mrb[0].mxu0
      %1176 = vmatprep.mubr.bf16.mxu0 0
      %1177 = vmatmul.mubr.bf16.gmra.mrb[0].mxu0 %v355
      %v1178 = vpop.f32.mrb[0].mxu0
      %v1179 = vadd.f32 %v1130, %v1178
      %v1180 = vpop.f32.mrb[0].mxu0
      %v1181 = vpop.f32.mrb[0].mxu0
      %v1182 = vadd.f32 %v1133, %v1181
      %v1183 = vpop.f32.mrb[0].mxu0
      %1184 = vdwg.mxu0
      %v1185 = vmax.f32 %v1171, 0.0
      %v1186 = vmax.f32 %v1174, 0.0
      %v1187 = vmax.f32 %v1179, 0.0
      %v1188 = vmax.f32 %v1182, 0.0
      %v1189 = vpack.c.bf16 %v1186, %v1185
      %v1190 = vpack.c.bf16 %v1188, %v1187
      %v1191 = vld [vmem:[%s3] sm:$0xf]
      %v1192 = vld [vmem:[%s3 + $0x4] sm:$0xf]
      %v1193 = vld [vmem:[%s3 + $0x8] sm:$0xf]
      %v1194 = vld [vmem:[%s3 + $0xc] sm:$0xf]
      %v1195 = vld [vmem:[%s3 + $0x10] sm:$0xf]
      %v1196 = vld [vmem:[%s3 + $0x14] sm:$0xf]
      %v1197 = vld [vmem:[%s3 + $0x18] sm:$0xf]
      %v1198 = vld [vmem:[%s3 + $0x1c] sm:$0xf]
      %v1199 = vld [vmem:[%s3 + $0x20] sm:$0xf]
      %v1200 = vld [vmem:[%s3 + $0x24] sm:$0xf]
      %v1201 = vld [vmem:[%s3 + $0x28] sm:$0xf]
      %v1202 = vld [vmem:[%s3 + $0x2c] sm:$0xf]
      %v1203 = vld [vmem:[%s3 + $0x30] sm:$0xf]
      %v1204 = vld [vmem:[%s3 + $0x34] sm:$0xf]
      %v1205 = vld [vmem:[%s3 + $0x38] sm:$0xf]
      %v1206 = vld [vmem:[%s3 + $0x3c] sm:$0xf]
      %v1207 = vld [vmem:[%s4] sm:$0x1]
      %v1209 = vlaneseq
      %v1210 = vshrl.u32 %v1209, 7
      %v1211 = vsub.s32 0, %v1210
      %v1212 = vrot.slane %v1207, %v1211
      %v1230 = vunpack.c.l.b16 %v1191
      %v1231 = vunpack.c.l.b16 %v1192
      %v1232 = vunpack.c.l.b16 %v1193
      %v1233 = vunpack.c.l.b16 %v1194
      %v1234 = vunpack.c.l.b16 %v1195
      %v1235 = vunpack.c.l.b16 %v1196
      %v1236 = vunpack.c.l.b16 %v1197
      %v1237 = vunpack.c.l.b16 %v1198
      %v1238 = vunpack.c.l.b16 %v1199
      %v1239 = vunpack.c.l.b16 %v1200
      %v1240 = vunpack.c.l.b16 %v1201
      %v1241 = vunpack.c.l.b16 %v1202
      %v1242 = vunpack.c.l.b16 %v1203
      %v1243 = vunpack.c.l.b16 %v1204
      %v1244 = vunpack.c.l.b16 %v1205
      %v1245 = vunpack.c.l.b16 %v1206
      %v1246 = vpack.c.b16 %v1231, %v1230
      %v1247 = vpack.c.b16 %v1233, %v1232
      %v1248 = vpack.c.b16 %v1235, %v1234
      %v1249 = vpack.c.b16 %v1237, %v1236
      %v1250 = vpack.c.b16 %v1239, %v1238
      %v1251 = vpack.c.b16 %v1241, %v1240
      %v1252 = vpack.c.b16 %v1243, %v1242
      %v1253 = vpack.c.b16 %v1245, %v1244
      %1262 = vmatprep.subr.bf16.mxu0 0
      %1263 = vmatpush1.bf16.msra.mxu0 %v1246
      %1264 = vmatprep.subr.bf16.mxu0 0
      %1265 = vmatpush1.bf16.msra.mxu0 %v1247
      %1266 = vmatprep.subr.bf16.mxu0 0
      %1267 = vmatpush1.bf16.msra.mxu0 %v1248
      %1268 = vmatprep.subr.bf16.mxu0 0
      %1269 = vmatpush1.bf16.msra.mxu0 %v1249
      %1270 = vmatprep.subr.bf16.mxu0 0
      %1271 = vmatpush1.bf16.msra.mxu0 %v1250
      %1272 = vmatprep.subr.bf16.mxu0 0
      %1273 = vmatpush1.bf16.msra.mxu0 %v1251
      %1274 = vmatprep.subr.bf16.mxu0 0
      %1275 = vmatpush1.bf16.msra.mxu0 %v1252
      %1276 = vmatprep.subr.bf16.mxu0 0
      %1277 = vmatpush1.bf16.msra.mxu0 %v1253
      %1278 = vmatprep.subr.bf16.mxu0 0
      %1279 = vmatpush1.bf16.msra.mxu0 0
      %1280 = vmatprep.subr.bf16.mxu0 0
      %1281 = vmatpush1.bf16.msra.mxu0 0
      %1282 = vmatprep.subr.bf16.mxu0 0
      %1283 = vmatpush1.bf16.msra.mxu0 0
      %1284 = vmatprep.subr.bf16.mxu0 0
      %1285 = vmatpush1.bf16.msra.mxu0 0
      %1286 = vmatprep.subr.bf16.mxu0 0
      %1287 = vmatpush1.bf16.msra.mxu0 0
      %1288 = vmatprep.subr.bf16.mxu0 0
      %1289 = vmatpush1.bf16.msra.mxu0 0
      %1290 = vmatprep.subr.bf16.mxu0 0
      %1291 = vmatpush1.bf16.msra.mxu0 0
      %1292 = vmatprep.subr.bf16.mxu0 0
      %1293 = vmatpush1.bf16.msra.mxu0 0
      %1294 = vmatprep.mubr.bf16.mxu0 0
      %1295 = vmatmul.mubr.bf16.gmra.mrb[0].mxu0 %v1189
      %v1296 = vpop.f32.mrb[0].mxu0
      %v1297 = vadd.f32 %v1212, %v1296
      %v1298 = vpop.f32.mrb[0].mxu0
      %v1299 = vpop.f32.mrb[0].mxu0
      %v1300 = vadd.f32 %v1212, %v1299
      %v1301 = vpop.f32.mrb[0].mxu0
      %1302 = vmatprep.mubr.bf16.mxu0 0
      %1303 = vmatmul.mubr.bf16.gmra.mrb[0].mxu0 %v1190
      %v1304 = vpop.f32.mrb[0].mxu0
      %v1305 = vadd.f32 %v1212, %v1304
      %v1306 = vpop.f32.mrb[0].mxu0
      %v1307 = vpop.f32.mrb[0].mxu0
      %v1308 = vadd.f32 %v1212, %v1307
      %v1309 = vpop.f32.mrb[0].mxu0
      %1310 = vdwg.mxu0
      %vm1316 = vcmask 1046528
      %v1317 = vrot.slane %v263, 1
      %v1318 = vrot.slane %v264, 1
      %v1319 = vsel %vm1316, %v1317, %v1318
      %v1320 = vrot.slane %v265, 1
      %v1321 = vsel %vm1316, %v1318, %v1320
      %v1322 = vrot.slane %v266, 1
      %v1323 = vsel %vm1316, %v1320, %v1322
      %v1324 = vrot.slane %v267, 1
      %v1325 = vsel %vm1316, %v1322, %v1324
      %v1330 = vadd.f32 %v1297, %v1319
      %v1331 = vadd.f32 %v1300, %v1321
      %v1332 = vadd.f32 %v1305, %v1323
      %v1333 = vadd.f32 %v1308, %v1325
      %v1334 = vmax.f32 %v1330, 0.0
      %v1335 = vmax.f32 %v1331, 0.0
      %v1336 = vmax.f32 %v1332, 0.0
      %v1337 = vmax.f32 %v1333, 0.0
      %1338 = vst [vmem:[%s260] sm:$0xff] %v1334
      %1339 = vst [vmem:[%s260 + $0x8] sm:$0xff] %v1335
      %1340 = vst [vmem:[%s260 + $0x10] sm:$0xff] %v1336
      %1341 = vst [vmem:[%s260 + $0x18] sm:$0xff] %v1337
      %p1342 = scmp.lt.s32.totalorder %s20, 1
      %s1343 = scalar_select %p1342, %s20, 1
      %p1344 = scmp.lt.s32.totalorder %s21, 0
      %s1345 = scalar_select %p1344, %s21, 0
      %s1346 = smul.addr %s1345, 4
      %s1347 = smul.addr %s1343, 4
      %s1348 = sadd.s32 %s1346, %s1347
      %s1349 = smul.addr %s1348, 8
      %s1350 = scalar_lea.vmem %s5, %s1349
      // Predicated region
      $region41: #{encoder_forward_pallas.9} parent=39 // pred_check
        %p1351 = pneg %p160
      $region42: #{encoder_forward_pallas.9} parent=39 // pred_check_branch
        %1353 = sbr.rel (%p1351) target = $region44
      $region43: #{encoder_forward_pallas.9} parent=39 // pred_region
        _
      $region44: #{encoder_forward_pallas.9} parent=39 // pred_fallthru
        _
    $region40: #{encoder_forward_pallas.9} parent=5 // pred_fallthru
      _
    %p1354 = scmp.le.s32.totalorder 2, %s11
    // Predicated region
    $region45: #{encoder_forward_pallas.9} parent=5 // pred_check
      %p1355 = pneg %p1354
    $region46: #{encoder_forward_pallas.9} parent=5 // pred_check_branch
      %1357 = sbr.rel (%p1355) target = $region48
    $region47: #{encoder_forward_pallas.9} parent=5 // pred_region
      %s1358 = ssub.s32 %s11, 2
      // Predicated region
      $region49: #{encoder_forward_pallas.9} parent=47 // pred_check
        %p1359 = pneg %p166
      $region50: #{encoder_forward_pallas.9} parent=47 // pred_check_branch
        %1361 = sbr.rel (%p1359) target = $region52
      $region51: #{encoder_forward_pallas.9} parent=47 // pred_region
        %p1362 = scmp.lt.s32.totalorder %s22, 1
        %s1363 = scalar_select %p1362, %s22, 1
        %p1364 = scmp.lt.s32.totalorder %s23, 0
        %s1365 = scalar_select %p1364, %s23, 0
        %s1366 = smul.addr %s1365, 4
        %s1367 = smul.addr %s1363, 4
        %s1368 = sadd.s32 %s1366, %s1367
        %s1369 = smul.addr %s1368, 8
        %s1370 = scalar_lea.vmem %s5, %s1369
      $region52: #{encoder_forward_pallas.9} parent=47 // pred_fallthru
        _
    $region48: #{encoder_forward_pallas.9} parent=5 // pred_fallthru
      _
  $region6: #{encoder_forward_pallas.9} parent=0 // loop_footer
    %s15 = sadd.s32 1, %s11
  $region7: #{encoder_forward_pallas.9} parent=0 // loop_footer_branch
    %10 = sbr.rel target = $region3
  $region8: #{encoder_forward_pallas.9} parent=0 // loop_exit
    _

</llo_original>
